<compile_context>
chip_gen: v7x
topology: tpu7x:2x2x1
jax: 0.10.0
libtpu: 0.0.40
codegen_flags: <defaults>
</compile_context>

<pallas_src>
import functools

import jax
import jax.numpy as jnp
from jax.experimental import pallas as pl
from jax.experimental.pallas import tpu as pltpu


def _round_up(x, m):
    return (x + m - 1) // m * m


# ----------------------------------------------------------------------------
# Fused per-block kernel: conv1+BN+ReLU -> conv2+BN+ReLU
# ----------------------------------------------------------------------------
def _block_kernel(x_ref, w1_ref, b1_ref, w2_ref, b2_ref, feat_ref,
                  pad1_ref, pad2_ref, slab1_ref, slab2_ref,
                  *, H, W, Cin, C, P):
    """
    grid = (N,), one batch image per step.
      x_ref    : (1, H*W, Cin)  bf16 block input (NHWC, spatial flattened)
      w1_ref   : (9*Cin, C)     bf16 conv1 weight, BN folded (VMEM resident)
      b1_ref   : (1, C)         f32  conv1 bias,   BN folded (resident)
      w2_ref   : (9*C, C)       bf16 conv2 weight, BN folded (resident)
      b2_ref   : (1, C)         f32  conv2 bias,   BN folded (resident)
      feat_ref : (1, H*W, C)    f32  pre-pool activations
      pad*_ref : zero-halo padded flat conv inputs (VMEM scratch, bf16)
      slab*_ref: (H*W, 9*K) im2col slabs feeding the deep-K matmuls (scratch)
    """
    HW = H * W
    bf16 = jnp.bfloat16

    # Column-wrap masks shared by both 3x3 "same" convs.  Row-major flat
    # layout: a spatial shift (dy, dx) is a row offset of dy*W + dx in the
    # padded flat buffer; dx = +/-1 taps are zeroed where they would wrap
    # into the next / previous image row.
    row = jax.lax.broadcasted_iota(jnp.int32, (HW, 1), 0)
    col = jnp.bitwise_and(row, W - 1) if (W & (W - 1)) == 0 else row % W
    not_last = col < (W - 1)      # tap valid when dx == +1
    not_first = col > 0           # tap valid when dx == -1

    def build_slab(pad_ref, slab_ref, ck):
        k = 0
        for dy in (-1, 0, 1):
            for dx in (-1, 0, 1):
                t = pad_ref[pl.ds(P + dy * W + dx, HW), :]
                if dx == 1:
                    t = jnp.where(not_last, t, jnp.zeros_like(t))
                elif dx == -1:
                    t = jnp.where(not_first, t, jnp.zeros_like(t))
                slab_ref[:, pl.ds(k * ck, ck)] = t
                k += 1

    def conv_bn_relu(pad_ref, slab_ref, ck, w_ref, b_ref):
        build_slab(pad_ref, slab_ref, ck)
        acc = jnp.dot(slab_ref[...], w_ref[...],
                      preferred_element_type=jnp.float32)
        return jnp.maximum(acc + b_ref[...], 0.0)            # f32 (HW, C)

    # ---- conv1 (+ folded BN + ReLU): single K = 9*Cin MXU matmul -----------
    pad1_ref[pl.ds(0, P), :] = jnp.zeros((P, Cin), bf16)          # head halo
    pad1_ref[pl.ds(P + HW, P), :] = jnp.zeros((P, Cin), bf16)     # tail halo
    pad1_ref[pl.ds(P, HW), :] = x_ref[0]
    h1 = conv_bn_relu(pad1_ref, slab1_ref, Cin, w1_ref, b1_ref)

    # ---- conv2 (+ folded BN + ReLU): single K = 9*C MXU matmul -------------
    pad2_ref[pl.ds(0, P), :] = jnp.zeros((P, C), bf16)
    pad2_ref[pl.ds(P + HW, P), :] = jnp.zeros((P, C), bf16)
    pad2_ref[pl.ds(P, HW), :] = h1.astype(bf16)
    h2 = conv_bn_relu(pad2_ref, slab2_ref, C, w2_ref, b2_ref)

    # ---- feature output: one slab store (Dropout2d = identity in eval) -----
    feat_ref[0] = h2.astype(feat_ref.dtype)


# ----------------------------------------------------------------------------
# Wrappers: BN folding + pallas_call plumbing
# ----------------------------------------------------------------------------
def _fold_bn(w_hwio, b, bn, eps=1e-5):
    gamma, beta, mean, var = bn
    scale = gamma / jnp.sqrt(var + eps)
    return w_hwio * scale, (b - mean) * scale + beta


def conv_block_fused(x_nhwc, blk, eps=1e-5):
    """One MultiChannelConvBlock + 2x2 max-pool.  Returns (feat, pooled), NHWC."""
    N, H, W, Cin = x_nhwc.shape
    assert H % 2 == 0 and W % 2 == 0, "even spatial dims expected (2x2 pool)"
    C = blk["w1"].shape[-1]
    HW = H * W
    P = _round_up(W + 1, 8)            # halo rows of the padded flat buffer
    Cin_p = _round_up(Cin, 8)          # keep slab column offsets sublane-group aligned

    # Fold eval-mode BatchNorm into the conv weights / biases; bf16 operands
    # for the MXU, f32 bias.
    w1f, b1f = _fold_bn(blk["w1"], blk["b1"], blk["bn1"], eps)
    w2f, b2f = _fold_bn(blk["w2"], blk["b2"], blk["bn2"], eps)
    if Cin_p != Cin:
        w1f = jnp.pad(w1f, ((0, 0), (0, 0), (0, Cin_p - Cin), (0, 0)))
    w1f = w1f.reshape(9 * Cin_p, C).astype(jnp.bfloat16)
    w2f = w2f.reshape(9 * C, C).astype(jnp.bfloat16)
    b1f = b1f.reshape(1, C).astype(jnp.float32)
    b2f = b2f.reshape(1, C).astype(jnp.float32)

    x_flat = x_nhwc.reshape(N, HW, Cin)
    if Cin_p != Cin:
        x_flat = jnp.pad(x_flat, ((0, 0), (0, 0), (0, Cin_p - Cin)))
    x_flat = x_flat.astype(jnp.bfloat16)

    kernel = functools.partial(_block_kernel, H=H, W=W, Cin=Cin_p, C=C, P=P)
    feat_flat = pl.pallas_call(
        kernel,
        out_shape=jax.ShapeDtypeStruct((N, HW, C), jnp.float32),
        grid_spec=pltpu.PrefetchScalarGridSpec(
            num_scalar_prefetch=0,
            grid=(N,),                    # extent >= 2 keeps both v7x TCs busy
            in_specs=[
                pl.BlockSpec((1, HW, Cin_p), lambda n: (n, 0, 0)),
                pl.BlockSpec((9 * Cin_p, C), lambda n: (0, 0)),   # resident
                pl.BlockSpec((1, C), lambda n: (0, 0)),           # resident
                pl.BlockSpec((9 * C, C), lambda n: (0, 0)),       # resident
                pl.BlockSpec((1, C), lambda n: (0, 0)),           # resident
            ],
            out_specs=pl.BlockSpec((1, HW, C), lambda n: (n, 0, 0)),
            scratch_shapes=[
                pltpu.VMEM((HW + 2 * P, Cin_p), jnp.bfloat16),    # pad1
                pltpu.VMEM((HW + 2 * P, C), jnp.bfloat16),        # pad2
                pltpu.VMEM((HW, 9 * Cin_p), jnp.bfloat16),        # slab1
                pltpu.VMEM((HW, 9 * C), jnp.bfloat16),            # slab2
            ],
        ),
        compiler_params=pltpu.CompilerParams(
            dimension_semantics=("parallel",),
            vmem_limit_bytes=32 * 1024 * 1024),
    )(x_flat, w1f, b1f, w2f, b2f)

    feat = feat_flat.reshape(N, H, W, C)
    # 2x2 max-pool as a tiny XLA op on the already-materialized feature map.
    pooled = feat.reshape(N, H // 2, 2, W // 2, 2, C).max(axis=(2, 4))
    return feat, pooled


# ----------------------------------------------------------------------------
# Parameter construction (matches module __init__ shapes; HWIO conv weights)
# ----------------------------------------------------------------------------
def make_params(key, input_channels, base_channels=32, depth=3):
    def bn_params(k, c):
        kg, kb, km, kv = jax.random.split(k, 4)
        return (1.0 + 0.1 * jax.random.normal(kg, (c,), jnp.float32),  # gamma
                0.1 * jax.random.normal(kb, (c,), jnp.float32),        # beta
                0.1 * jax.random.normal(km, (c,), jnp.float32),        # running_mean
                jax.random.uniform(kv, (c,), jnp.float32, 0.5, 1.5))   # running_var

    params = []
    in_c = input_channels
    for i in range(depth):
        out_c = base_channels * (2 ** i)
        key, k1, k2, k3, k4, k5, k6 = jax.random.split(key, 7)
        params.append(dict(
            w1=0.1 * jax.random.normal(k1, (3, 3, in_c, out_c), jnp.float32),
            b1=0.1 * jax.random.normal(k2, (out_c,), jnp.float32),
            bn1=bn_params(k5, out_c),
            w2=0.1 * jax.random.normal(k3, (3, 3, out_c, out_c), jnp.float32),
            b2=0.1 * jax.random.normal(k4, (out_c,), jnp.float32),
            bn2=bn_params(k6, out_c),
        ))
        in_c = out_c
    return params


# ----------------------------------------------------------------------------
# MultiChannelEncoder.forward (eval mode)
# ----------------------------------------------------------------------------
def multi_channel_encoder(x_nchw, params):
    x = jnp.transpose(x_nchw, (0, 2, 3, 1))            # NCHW -> NHWC
    features = []
    for blk in params:
        feat, x = conv_block_fused(x, blk)
        # Dropout2d(p=0.2) -> identity in eval mode.
        features.append(jnp.transpose(feat, (0, 3, 1, 2)))   # boundary -> NCHW
    return features, jnp.transpose(x, (0, 3, 1, 2))


# ----------------------------------------------------------------------------
# Pure-JAX f32 reference (HIGHEST precision), for correctness checking only
# ----------------------------------------------------------------------------
def _ref_forward(x_nchw, params, eps=1e-5):
    x = x_nchw
    feats = []
    for blk in params:
        for w, b, bn in ((blk["w1"], blk["b1"], blk["bn1"]),
                         (blk["w2"], blk["b2"], blk["bn2"])):
            gamma, beta, mean, var = bn
            y = jax.lax.conv_general_dilated(
                x, w, window_strides=(1, 1), padding=((1, 1), (1, 1)),
                dimension_numbers=("NCHW", "HWIO", "NCHW"),
                precision=jax.lax.Precision.HIGHEST)
            y = y + b[None, :, None, None]
            scale = gamma / jnp.sqrt(var + eps)
            y = (y - mean[None, :, None, None]) * scale[None, :, None, None] \
                + beta[None, :, None, None]
            x = jnp.maximum(y, 0.0)
        feats.append(x)
        x = jax.lax.reduce_window(x, -jnp.inf, jax.lax.max,
                                  (1, 1, 2, 2), (1, 1, 2, 2), "VALID")
    return feats, x


# ----------------------------------------------------------------------------
if __name__ == "__main__":
    key = jax.random.PRNGKey(0)
    kx, kp = jax.random.split(key)

    N, C_in, H, W = 2, 4, 16, 16
    x = jax.random.normal(kx, (N, C_in, H, W), jnp.float32)
    params = make_params(kp, input_channels=C_in, base_channels=32, depth=3)

    fwd = jax.jit(functools.partial(multi_channel_encoder, params=params))
    features, out = fwd(x)
    jax.block_until_ready(out)
    jax.block_until_ready(features)

    # Shapes + numerics vs. a full-precision f32 reference.  The kernel feeds
    # the MXU bf16 operands (f32 accumulation), so the check is normalized to
    # the per-tensor scale rather than an f32-tight 1e-4 comparison.
    ref_feats, ref_out = _ref_forward(x, params)

    def _check(a, b):
        a = jnp.asarray(a, jnp.float32)
        b = jnp.asarray(b, jnp.float32)
        err = float(jnp.max(jnp.abs(a - b)))
        tol = 4e-2 * float(jnp.max(jnp.abs(b))) + 1e-2
        assert err <= tol, ("numerics mismatch", err, tol)

    assert out.shape == (N, 128, 2, 2), out.shape
    expected_feat_shapes = [(N, 32, 16, 16), (N, 64, 8, 8), (N, 128, 4, 4)]
    for f, rf, es in zip(features, ref_feats, expected_feat_shapes):
        assert f.shape == es, (f.shape, es)
        _check(f, rf)
    _check(out, ref_out)

    print("KERNEL_OK")
</pallas_src>

<mosaic_0001>
module attributes {stable_mosaic.version = 11 : i64} {
  func.func @_block_kernel(%arg0: i32, %arg1: memref<1x256x8xbf16, #tpu.memory_space<vmem>>, %arg2: memref<72x32xbf16, #tpu.memory_space<vmem>>, %arg3: memref<1x32xf32, #tpu.memory_space<vmem>>, %arg4: memref<288x32xbf16, #tpu.memory_space<vmem>>, %arg5: memref<1x32xf32, #tpu.memory_space<vmem>>, %arg6: memref<1x256x32xf32, #tpu.memory_space<vmem>>, %arg7: memref<304x8xbf16, #tpu.memory_space<vmem>>, %arg8: memref<304x32xbf16, #tpu.memory_space<vmem>>, %arg9: memref<256x72xbf16, #tpu.memory_space<vmem>>, %arg10: memref<256x288xbf16, #tpu.memory_space<vmem>>) attributes {dimension_semantics = [#tpu.dimension_semantics<parallel>], iteration_bounds = array<i64: 2>, scalar_prefetch = 0 : i64, scratch_operands = 4 : i64, tpu.core_type = #tpu.core_type<tc>, window_params = [{transform_indices = @transform_0, window_bounds = array<i64: 1, 256, 8>}, {pipeline_mode = #tpu.pipeline_mode<synchronous>, transform_indices = @transform_1, window_bounds = array<i64: 72, 32>}, {pipeline_mode = #tpu.pipeline_mode<synchronous>, transform_indices = @transform_2, window_bounds = array<i64: 1, 32>}, {pipeline_mode = #tpu.pipeline_mode<synchronous>, transform_indices = @transform_3, window_bounds = array<i64: 288, 32>}, {pipeline_mode = #tpu.pipeline_mode<synchronous>, transform_indices = @transform_4, window_bounds = array<i64: 1, 32>}, {transform_indices = @transform_5, window_bounds = array<i64: 1, 256, 32>}]} {
    %0 = tpu.iota {dimensions = array<i32: 0>} : vector<256x1xi32>
    %c15_i32 = arith.constant 15 : i32
    %1 = vector.broadcast %c15_i32 : i32 to vector<256x1xi32>
    %2 = arith.andi %0, %1 : vector<256x1xi32>
    %c15_i32_0 = arith.constant 15 : i32
    %3 = vector.broadcast %c15_i32_0 : i32 to vector<256x1xi32>
    %4 = arith.cmpi slt, %2, %3 : vector<256x1xi32>
    %c0_i32 = arith.constant 0 : i32
    %5 = vector.broadcast %c0_i32 : i32 to vector<256x1xi32>
    %6 = arith.cmpi sgt, %2, %5 : vector<256x1xi32>
    %cst = arith.constant 0.000000e+00 : bf16
    %7 = vector.broadcast %cst : bf16 to vector<24x8xbf16>
    %c0 = arith.constant 0 : index
    %c0_1 = arith.constant 0 : index
    %8 = vector.load %arg7[%c0, %c0_1] : memref<304x8xbf16, #tpu.memory_space<vmem>>, vector<24x8xbf16>
    tpu.vector_store %arg7[%c0, %c0_1], %7 {strides = array<i32>} : memref<304x8xbf16, #tpu.memory_space<vmem>>, vector<24x8xbf16>,
    %cst_2 = arith.constant 0.000000e+00 : bf16
    %9 = vector.broadcast %cst_2 : bf16 to vector<24x8xbf16>
    %c280 = arith.constant 280 : index
    %c0_3 = arith.constant 0 : index
    %10 = vector.load %arg7[%c280, %c0_3] : memref<304x8xbf16, #tpu.memory_space<vmem>>, vector<24x8xbf16>
    tpu.vector_store %arg7[%c280, %c0_3], %9 {strides = array<i32>} : memref<304x8xbf16, #tpu.memory_space<vmem>>, vector<24x8xbf16>,
    %c0_4 = arith.constant 0 : index
    %c0_5 = arith.constant 0 : index
    %c0_6 = arith.constant 0 : index
    %11 = vector.load %arg1[%c0_4, %c0_5, %c0_6] : memref<1x256x8xbf16, #tpu.memory_space<vmem>>, vector<1x256x8xbf16>
    %12 = vector.shape_cast %11 : vector<1x256x8xbf16> to vector<256x8xbf16>
    %c24 = arith.constant 24 : index
    %c0_7 = arith.constant 0 : index
    %13 = vector.load %arg7[%c24, %c0_7] : memref<304x8xbf16, #tpu.memory_space<vmem>>, vector<256x8xbf16>
    tpu.vector_store %arg7[%c24, %c0_7], %12 {strides = array<i32>} : memref<304x8xbf16, #tpu.memory_space<vmem>>, vector<256x8xbf16>,
    %c7 = arith.constant 7 : index
    %c0_8 = arith.constant 0 : index
    %14 = vector.load %arg7[%c7, %c0_8] : memref<304x8xbf16, #tpu.memory_space<vmem>>, vector<256x8xbf16>
    %cst_9 = arith.constant 0.000000e+00 : bf16
    %15 = vector.broadcast %cst_9 : bf16 to vector<256x8xbf16>
    %16 = vector.shape_cast %6 : vector<256x1xi1> to vector<256x1xi1>
    %17 = vector.broadcast %16 : vector<256x1xi1> to vector<256x8xi1>
    %18 = arith.select %17, %14, %15 : vector<256x8xi1>, vector<256x8xbf16>
    %c0_10 = arith.constant 0 : index
    %c0_11 = arith.constant 0 : index
    %19 = vector.load %arg9[%c0_10, %c0_11] : memref<256x72xbf16, #tpu.memory_space<vmem>>, vector<256x8xbf16>
    tpu.vector_store %arg9[%c0_10, %c0_11], %18 {strides = array<i32>} : memref<256x72xbf16, #tpu.memory_space<vmem>>, vector<256x8xbf16>,
    %c8 = arith.constant 8 : index
    %c0_12 = arith.constant 0 : index
    %20 = vector.load %arg7[%c8, %c0_12] : memref<304x8xbf16, #tpu.memory_space<vmem>>, vector<256x8xbf16>
    %c0_13 = arith.constant 0 : index
    %c8_14 = arith.constant 8 : index
    %21 = vector.load %arg9[%c0_13, %c8_14] : memref<256x72xbf16, #tpu.memory_space<vmem>>, vector<256x8xbf16>
    tpu.vector_store %arg9[%c0_13, %c8_14], %20 {strides = array<i32>} : memref<256x72xbf16, #tpu.memory_space<vmem>>, vector<256x8xbf16>,
    %c9 = arith.constant 9 : index
    %c0_15 = arith.constant 0 : index
    %22 = vector.load %arg7[%c9, %c0_15] : memref<304x8xbf16, #tpu.memory_space<vmem>>, vector<256x8xbf16>
    %cst_16 = arith.constant 0.000000e+00 : bf16
    %23 = vector.broadcast %cst_16 : bf16 to vector<256x8xbf16>
    %24 = vector.shape_cast %4 : vector<256x1xi1> to vector<256x1xi1>
    %25 = vector.broadcast %24 : vector<256x1xi1> to vector<256x8xi1>
    %26 = arith.select %25, %22, %23 : vector<256x8xi1>, vector<256x8xbf16>
    %c0_17 = arith.constant 0 : index
    %c16 = arith.constant 16 : index
    %27 = vector.load %arg9[%c0_17, %c16] : memref<256x72xbf16, #tpu.memory_space<vmem>>, vector<256x8xbf16>
    tpu.vector_store %arg9[%c0_17, %c16], %26 {strides = array<i32>} : memref<256x72xbf16, #tpu.memory_space<vmem>>, vector<256x8xbf16>,
    %c23 = arith.constant 23 : index
    %c0_18 = arith.constant 0 : index
    %28 = vector.load %arg7[%c23, %c0_18] : memref<304x8xbf16, #tpu.memory_space<vmem>>, vector<256x8xbf16>
    %cst_19 = arith.constant 0.000000e+00 : bf16
    %29 = vector.broadcast %cst_19 : bf16 to vector<256x8xbf16>
    %30 = vector.shape_cast %6 : vector<256x1xi1> to vector<256x1xi1>
    %31 = vector.broadcast %30 : vector<256x1xi1> to vector<256x8xi1>
    %32 = arith.select %31, %28, %29 : vector<256x8xi1>, vector<256x8xbf16>
    %c0_20 = arith.constant 0 : index
    %c24_21 = arith.constant 24 : index
    %33 = vector.load %arg9[%c0_20, %c24_21] : memref<256x72xbf16, #tpu.memory_space<vmem>>, vector<256x8xbf16>
    tpu.vector_store %arg9[%c0_20, %c24_21], %32 {strides = array<i32>} : memref<256x72xbf16, #tpu.memory_space<vmem>>, vector<256x8xbf16>,
    %c24_22 = arith.constant 24 : index
    %c0_23 = arith.constant 0 : index
    %34 = vector.load %arg7[%c24_22, %c0_23] : memref<304x8xbf16, #tpu.memory_space<vmem>>, vector<256x8xbf16>
    %c0_24 = arith.constant 0 : index
    %c32 = arith.constant 32 : index
    %35 = vector.load %arg9[%c0_24, %c32] : memref<256x72xbf16, #tpu.memory_space<vmem>>, vector<256x8xbf16>
    tpu.vector_store %arg9[%c0_24, %c32], %34 {strides = array<i32>} : memref<256x72xbf16, #tpu.memory_space<vmem>>, vector<256x8xbf16>,
    %c25 = arith.constant 25 : index
    %c0_25 = arith.constant 0 : index
    %36 = vector.load %arg7[%c25, %c0_25] : memref<304x8xbf16, #tpu.memory_space<vmem>>, vector<256x8xbf16>
    %cst_26 = arith.constant 0.000000e+00 : bf16
    %37 = vector.broadcast %cst_26 : bf16 to vector<256x8xbf16>
    %38 = vector.shape_cast %4 : vector<256x1xi1> to vector<256x1xi1>
    %39 = vector.broadcast %38 : vector<256x1xi1> to vector<256x8xi1>
    %40 = arith.select %39, %36, %37 : vector<256x8xi1>, vector<256x8xbf16>
    %c0_27 = arith.constant 0 : index
    %c40 = arith.constant 40 : index
    %41 = vector.load %arg9[%c0_27, %c40] : memref<256x72xbf16, #tpu.memory_space<vmem>>, vector<256x8xbf16>
    tpu.vector_store %arg9[%c0_27, %c40], %40 {strides = array<i32>} : memref<256x72xbf16, #tpu.memory_space<vmem>>, vector<256x8xbf16>,
    %c39 = arith.constant 39 : index
    %c0_28 = arith.constant 0 : index
    %42 = vector.load %arg7[%c39, %c0_28] : memref<304x8xbf16, #tpu.memory_space<vmem>>, vector<256x8xbf16>
    %cst_29 = arith.constant 0.000000e+00 : bf16
    %43 = vector.broadcast %cst_29 : bf16 to vector<256x8xbf16>
    %44 = vector.shape_cast %6 : vector<256x1xi1> to vector<256x1xi1>
    %45 = vector.broadcast %44 : vector<256x1xi1> to vector<256x8xi1>
    %46 = arith.select %45, %42, %43 : vector<256x8xi1>, vector<256x8xbf16>
    %c0_30 = arith.constant 0 : index
    %c48 = arith.constant 48 : index
    %47 = vector.load %arg9[%c0_30, %c48] : memref<256x72xbf16, #tpu.memory_space<vmem>>, vector<256x8xbf16>
    tpu.vector_store %arg9[%c0_30, %c48], %46 {strides = array<i32>} : memref<256x72xbf16, #tpu.memory_space<vmem>>, vector<256x8xbf16>,
    %c40_31 = arith.constant 40 : index
    %c0_32 = arith.constant 0 : index
    %48 = vector.load %arg7[%c40_31, %c0_32] : memref<304x8xbf16, #tpu.memory_space<vmem>>, vector<256x8xbf16>
    %c0_33 = arith.constant 0 : index
    %c56 = arith.constant 56 : index
    %49 = vector.load %arg9[%c0_33, %c56] : memref<256x72xbf16, #tpu.memory_space<vmem>>, vector<256x8xbf16>
    tpu.vector_store %arg9[%c0_33, %c56], %48 {strides = array<i32>} : memref<256x72xbf16, #tpu.memory_space<vmem>>, vector<256x8xbf16>,
    %c41 = arith.constant 41 : index
    %c0_34 = arith.constant 0 : index
    %50 = vector.load %arg7[%c41, %c0_34] : memref<304x8xbf16, #tpu.memory_space<vmem>>, vector<256x8xbf16>
    %cst_35 = arith.constant 0.000000e+00 : bf16
    %51 = vector.broadcast %cst_35 : bf16 to vector<256x8xbf16>
    %52 = vector.shape_cast %4 : vector<256x1xi1> to vector<256x1xi1>
    %53 = vector.broadcast %52 : vector<256x1xi1> to vector<256x8xi1>
    %54 = arith.select %53, %50, %51 : vector<256x8xi1>, vector<256x8xbf16>
    %c0_36 = arith.constant 0 : index
    %c64 = arith.constant 64 : index
    %55 = vector.load %arg9[%c0_36, %c64] : memref<256x72xbf16, #tpu.memory_space<vmem>>, vector<256x8xbf16>
    tpu.vector_store %arg9[%c0_36, %c64], %54 {strides = array<i32>} : memref<256x72xbf16, #tpu.memory_space<vmem>>, vector<256x8xbf16>,
    %c0_37 = arith.constant 0 : index
    %c0_38 = arith.constant 0 : index
    %56 = vector.load %arg9[%c0_37, %c0_38] : memref<256x72xbf16, #tpu.memory_space<vmem>>, vector<256x72xbf16>
    %c0_39 = arith.constant 0 : index
    %c0_40 = arith.constant 0 : index
    %57 = vector.load %arg2[%c0_39, %c0_40] : memref<72x32xbf16, #tpu.memory_space<vmem>>, vector<72x32xbf16>
    %cst_41 = arith.constant dense<0.000000e+00> : vector<256x32xf32>
    %58 = tpu.matmul %56, %57, %cst_41 {dimension_numbers = #tpu.dot_dimension_numbers<[1], [0], [0], [1], [0, 0, 1, 1], [], []>} : vector<256x72xbf16>, vector<72x32xbf16>, vector<256x32xf32> -> vector<256x32xf32>
    %c0_42 = arith.constant 0 : index
    %c0_43 = arith.constant 0 : index
    %59 = vector.load %arg3[%c0_42, %c0_43] : memref<1x32xf32, #tpu.memory_space<vmem>>, vector<1x32xf32>
    %60 = vector.broadcast %59 : vector<1x32xf32> to vector<256x32xf32>
    %61 = arith.addf %58, %60 : vector<256x32xf32>
    %cst_44 = arith.constant 0.000000e+00 : f32
    %62 = vector.broadcast %cst_44 : f32 to vector<256x32xf32>
    %63 = arith.maximumf %61, %62 : vector<256x32xf32>
    %cst_45 = arith.constant 0.000000e+00 : bf16
    %64 = vector.broadcast %cst_45 : bf16 to vector<24x32xbf16>
    %c0_46 = arith.constant 0 : index
    %c0_47 = arith.constant 0 : index
    %65 = vector.load %arg8[%c0_46, %c0_47] : memref<304x32xbf16, #tpu.memory_space<vmem>>, vector<24x32xbf16>
    tpu.vector_store %arg8[%c0_46, %c0_47], %64 {strides = array<i32>} : memref<304x32xbf16, #tpu.memory_space<vmem>>, vector<24x32xbf16>,
    %cst_48 = arith.constant 0.000000e+00 : bf16
    %66 = vector.broadcast %cst_48 : bf16 to vector<24x32xbf16>
    %c280_49 = arith.constant 280 : index
    %c0_50 = arith.constant 0 : index
    %67 = vector.load %arg8[%c280_49, %c0_50] : memref<304x32xbf16, #tpu.memory_space<vmem>>, vector<24x32xbf16>
    tpu.vector_store %arg8[%c280_49, %c0_50], %66 {strides = array<i32>} : memref<304x32xbf16, #tpu.memory_space<vmem>>, vector<24x32xbf16>,
    %68 = arith.truncf %63 : vector<256x32xf32> to vector<256x32xbf16>
    %c24_51 = arith.constant 24 : index
    %c0_52 = arith.constant 0 : index
    %69 = vector.load %arg8[%c24_51, %c0_52] : memref<304x32xbf16, #tpu.memory_space<vmem>>, vector<256x32xbf16>
    tpu.vector_store %arg8[%c24_51, %c0_52], %68 {strides = array<i32>} : memref<304x32xbf16, #tpu.memory_space<vmem>>, vector<256x32xbf16>,
    %c7_53 = arith.constant 7 : index
    %c0_54 = arith.constant 0 : index
    %70 = vector.load %arg8[%c7_53, %c0_54] : memref<304x32xbf16, #tpu.memory_space<vmem>>, vector<256x32xbf16>
    %cst_55 = arith.constant 0.000000e+00 : bf16
    %71 = vector.broadcast %cst_55 : bf16 to vector<256x32xbf16>
    %72 = vector.shape_cast %6 : vector<256x1xi1> to vector<256x1xi1>
    %73 = vector.broadcast %72 : vector<256x1xi1> to vector<256x32xi1>
    %74 = arith.select %73, %70, %71 : vector<256x32xi1>, vector<256x32xbf16>
    %c0_56 = arith.constant 0 : index
    %c0_57 = arith.constant 0 : index
    %75 = vector.load %arg10[%c0_56, %c0_57] : memref<256x288xbf16, #tpu.memory_space<vmem>>, vector<256x32xbf16>
    tpu.vector_store %arg10[%c0_56, %c0_57], %74 {strides = array<i32>} : memref<256x288xbf16, #tpu.memory_space<vmem>>, vector<256x32xbf16>,
    %c8_58 = arith.constant 8 : index
    %c0_59 = arith.constant 0 : index
    %76 = vector.load %arg8[%c8_58, %c0_59] : memref<304x32xbf16, #tpu.memory_space<vmem>>, vector<256x32xbf16>
    %c0_60 = arith.constant 0 : index
    %c32_61 = arith.constant 32 : index
    %77 = vector.load %arg10[%c0_60, %c32_61] : memref<256x288xbf16, #tpu.memory_space<vmem>>, vector<256x32xbf16>
    tpu.vector_store %arg10[%c0_60, %c32_61], %76 {strides = array<i32>} : memref<256x288xbf16, #tpu.memory_space<vmem>>, vector<256x32xbf16>,
    %c9_62 = arith.constant 9 : index
    %c0_63 = arith.constant 0 : index
    %78 = vector.load %arg8[%c9_62, %c0_63] : memref<304x32xbf16, #tpu.memory_space<vmem>>, vector<256x32xbf16>
    %cst_64 = arith.constant 0.000000e+00 : bf16
    %79 = vector.broadcast %cst_64 : bf16 to vector<256x32xbf16>
    %80 = vector.shape_cast %4 : vector<256x1xi1> to vector<256x1xi1>
    %81 = vector.broadcast %80 : vector<256x1xi1> to vector<256x32xi1>
    %82 = arith.select %81, %78, %79 : vector<256x32xi1>, vector<256x32xbf16>
    %c0_65 = arith.constant 0 : index
    %c64_66 = arith.constant 64 : index
    %83 = vector.load %arg10[%c0_65, %c64_66] : memref<256x288xbf16, #tpu.memory_space<vmem>>, vector<256x32xbf16>
    tpu.vector_store %arg10[%c0_65, %c64_66], %82 {strides = array<i32>} : memref<256x288xbf16, #tpu.memory_space<vmem>>, vector<256x32xbf16>,
    %c23_67 = arith.constant 23 : index
    %c0_68 = arith.constant 0 : index
    %84 = vector.load %arg8[%c23_67, %c0_68] : memref<304x32xbf16, #tpu.memory_space<vmem>>, vector<256x32xbf16>
    %cst_69 = arith.constant 0.000000e+00 : bf16
    %85 = vector.broadcast %cst_69 : bf16 to vector<256x32xbf16>
    %86 = vector.shape_cast %6 : vector<256x1xi1> to vector<256x1xi1>
    %87 = vector.broadcast %86 : vector<256x1xi1> to vector<256x32xi1>
    %88 = arith.select %87, %84, %85 : vector<256x32xi1>, vector<256x32xbf16>
    %c0_70 = arith.constant 0 : index
    %c96 = arith.constant 96 : index
    %89 = vector.load %arg10[%c0_70, %c96] : memref<256x288xbf16, #tpu.memory_space<vmem>>, vector<256x32xbf16>
    tpu.vector_store %arg10[%c0_70, %c96], %88 {strides = array<i32>} : memref<256x288xbf16, #tpu.memory_space<vmem>>, vector<256x32xbf16>,
    %c24_71 = arith.constant 24 : index
    %c0_72 = arith.constant 0 : index
    %90 = vector.load %arg8[%c24_71, %c0_72] : memref<304x32xbf16, #tpu.memory_space<vmem>>, vector<256x32xbf16>
    %c0_73 = arith.constant 0 : index
    %c128 = arith.constant 128 : index
    %91 = vector.load %arg10[%c0_73, %c128] : memref<256x288xbf16, #tpu.memory_space<vmem>>, vector<256x32xbf16>
    tpu.vector_store %arg10[%c0_73, %c128], %90 {strides = array<i32>} : memref<256x288xbf16, #tpu.memory_space<vmem>>, vector<256x32xbf16>,
    %c25_74 = arith.constant 25 : index
    %c0_75 = arith.constant 0 : index
    %92 = vector.load %arg8[%c25_74, %c0_75] : memref<304x32xbf16, #tpu.memory_space<vmem>>, vector<256x32xbf16>
    %cst_76 = arith.constant 0.000000e+00 : bf16
    %93 = vector.broadcast %cst_76 : bf16 to vector<256x32xbf16>
    %94 = vector.shape_cast %4 : vector<256x1xi1> to vector<256x1xi1>
    %95 = vector.broadcast %94 : vector<256x1xi1> to vector<256x32xi1>
    %96 = arith.select %95, %92, %93 : vector<256x32xi1>, vector<256x32xbf16>
    %c0_77 = arith.constant 0 : index
    %c160 = arith.constant 160 : index
    %97 = vector.load %arg10[%c0_77, %c160] : memref<256x288xbf16, #tpu.memory_space<vmem>>, vector<256x32xbf16>
    tpu.vector_store %arg10[%c0_77, %c160], %96 {strides = array<i32>} : memref<256x288xbf16, #tpu.memory_space<vmem>>, vector<256x32xbf16>,
    %c39_78 = arith.constant 39 : index
    %c0_79 = arith.constant 0 : index
    %98 = vector.load %arg8[%c39_78, %c0_79] : memref<304x32xbf16, #tpu.memory_space<vmem>>, vector<256x32xbf16>
    %cst_80 = arith.constant 0.000000e+00 : bf16
    %99 = vector.broadcast %cst_80 : bf16 to vector<256x32xbf16>
    %100 = vector.shape_cast %6 : vector<256x1xi1> to vector<256x1xi1>
    %101 = vector.broadcast %100 : vector<256x1xi1> to vector<256x32xi1>
    %102 = arith.select %101, %98, %99 : vector<256x32xi1>, vector<256x32xbf16>
    %c0_81 = arith.constant 0 : index
    %c192 = arith.constant 192 : index
    %103 = vector.load %arg10[%c0_81, %c192] : memref<256x288xbf16, #tpu.memory_space<vmem>>, vector<256x32xbf16>
    tpu.vector_store %arg10[%c0_81, %c192], %102 {strides = array<i32>} : memref<256x288xbf16, #tpu.memory_space<vmem>>, vector<256x32xbf16>,
    %c40_82 = arith.constant 40 : index
    %c0_83 = arith.constant 0 : index
    %104 = vector.load %arg8[%c40_82, %c0_83] : memref<304x32xbf16, #tpu.memory_space<vmem>>, vector<256x32xbf16>
    %c0_84 = arith.constant 0 : index
    %c224 = arith.constant 224 : index
    %105 = vector.load %arg10[%c0_84, %c224] : memref<256x288xbf16, #tpu.memory_space<vmem>>, vector<256x32xbf16>
    tpu.vector_store %arg10[%c0_84, %c224], %104 {strides = array<i32>} : memref<256x288xbf16, #tpu.memory_space<vmem>>, vector<256x32xbf16>,
    %c41_85 = arith.constant 41 : index
    %c0_86 = arith.constant 0 : index
    %106 = vector.load %arg8[%c41_85, %c0_86] : memref<304x32xbf16, #tpu.memory_space<vmem>>, vector<256x32xbf16>
    %cst_87 = arith.constant 0.000000e+00 : bf16
    %107 = vector.broadcast %cst_87 : bf16 to vector<256x32xbf16>
    %108 = vector.shape_cast %4 : vector<256x1xi1> to vector<256x1xi1>
    %109 = vector.broadcast %108 : vector<256x1xi1> to vector<256x32xi1>
    %110 = arith.select %109, %106, %107 : vector<256x32xi1>, vector<256x32xbf16>
    %c0_88 = arith.constant 0 : index
    %c256 = arith.constant 256 : index
    %111 = vector.load %arg10[%c0_88, %c256] : memref<256x288xbf16, #tpu.memory_space<vmem>>, vector<256x32xbf16>
    tpu.vector_store %arg10[%c0_88, %c256], %110 {strides = array<i32>} : memref<256x288xbf16, #tpu.memory_space<vmem>>, vector<256x32xbf16>,
    %c0_89 = arith.constant 0 : index
    %c0_90 = arith.constant 0 : index
    %112 = vector.load %arg10[%c0_89, %c0_90] : memref<256x288xbf16, #tpu.memory_space<vmem>>, vector<256x288xbf16>
    %c0_91 = arith.constant 0 : index
    %c0_92 = arith.constant 0 : index
    %113 = vector.load %arg4[%c0_91, %c0_92] : memref<288x32xbf16, #tpu.memory_space<vmem>>, vector<288x32xbf16>
    %cst_93 = arith.constant dense<0.000000e+00> : vector<256x32xf32>
    %114 = tpu.matmul %112, %113, %cst_93 {dimension_numbers = #tpu.dot_dimension_numbers<[1], [0], [0], [1], [0, 0, 1, 1], [], []>} : vector<256x288xbf16>, vector<288x32xbf16>, vector<256x32xf32> -> vector<256x32xf32>
    %c0_94 = arith.constant 0 : index
    %c0_95 = arith.constant 0 : index
    %115 = vector.load %arg5[%c0_94, %c0_95] : memref<1x32xf32, #tpu.memory_space<vmem>>, vector<1x32xf32>
    %116 = vector.broadcast %115 : vector<1x32xf32> to vector<256x32xf32>
    %117 = arith.addf %114, %116 : vector<256x32xf32>
    %cst_96 = arith.constant 0.000000e+00 : f32
    %118 = vector.broadcast %cst_96 : f32 to vector<256x32xf32>
    %119 = arith.maximumf %117, %118 : vector<256x32xf32>
    %c0_97 = arith.constant 0 : index
    %c0_98 = arith.constant 0 : index
    %c0_99 = arith.constant 0 : index
    %120 = vector.load %arg6[%c0_97, %c0_98, %c0_99] : memref<1x256x32xf32, #tpu.memory_space<vmem>>, vector<1x256x32xf32>
    %121 = vector.shape_cast %120 : vector<1x256x32xf32> to vector<256x32xf32>
    %122 = vector.shape_cast %119 : vector<256x32xf32> to vector<1x256x32xf32>
    tpu.vector_store %arg6[%c0_97, %c0_98, %c0_99], %122 {strides = array<i32>} : memref<1x256x32xf32, #tpu.memory_space<vmem>>, vector<1x256x32xf32>,
    return
  }
  func.func @transform_0(%arg0: i32) -> (i32, i32, i32) {
    %c0_i32 = arith.constant 0 : i32
    %c0_i32_0 = arith.constant 0 : i32
    %c0_i32_1 = arith.constant 0 : i32
    return %arg0, %c0_i32, %c0_i32_0 : i32, i32, i32
  }
  func.func @transform_1(%arg0: i32) -> (i32, i32) {
    %c0_i32 = arith.constant 0 : i32
    %c0_i32_0 = arith.constant 0 : i32
    %c0_i32_1 = arith.constant 0 : i32
    return %c0_i32, %c0_i32_0 : i32, i32
  }
  func.func @transform_2(%arg0: i32) -> (i32, i32) {
    %c0_i32 = arith.constant 0 : i32
    %c0_i32_0 = arith.constant 0 : i32
    %c0_i32_1 = arith.constant 0 : i32
    return %c0_i32, %c0_i32_0 : i32, i32
  }
  func.func @transform_3(%arg0: i32) -> (i32, i32) {
    %c0_i32 = arith.constant 0 : i32
    %c0_i32_0 = arith.constant 0 : i32
    %c0_i32_1 = arith.constant 0 : i32
    return %c0_i32, %c0_i32_0 : i32, i32
  }
  func.func @transform_4(%arg0: i32) -> (i32, i32) {
    %c0_i32 = arith.constant 0 : i32
    %c0_i32_0 = arith.constant 0 : i32
    %c0_i32_1 = arith.constant 0 : i32
    return %c0_i32, %c0_i32_0 : i32, i32
  }
  func.func @transform_5(%arg0: i32) -> (i32, i32, i32) {
    %c0_i32 = arith.constant 0 : i32
    %c0_i32_0 = arith.constant 0 : i32
    %c0_i32_1 = arith.constant 0 : i32
    return %arg0, %c0_i32, %c0_i32_0 : i32, i32, i32
  }
}

module attributes {stable_mosaic.version = 11 : i64} {
  func.func @_block_kernel(%arg0: i32, %arg1: memref<1x64x32xbf16, #tpu.memory_space<vmem>>, %arg2: memref<288x64xbf16, #tpu.memory_space<vmem>>, %arg3: memref<1x64xf32, #tpu.memory_space<vmem>>, %arg4: memref<576x64xbf16, #tpu.memory_space<vmem>>, %arg5: memref<1x64xf32, #tpu.memory_space<vmem>>, %arg6: memref<1x64x64xf32, #tpu.memory_space<vmem>>, %arg7: memref<96x32xbf16, #tpu.memory_space<vmem>>, %arg8: memref<96x64xbf16, #tpu.memory_space<vmem>>, %arg9: memref<64x288xbf16, #tpu.memory_space<vmem>>, %arg10: memref<64x576xbf16, #tpu.memory_space<vmem>>) attributes {dimension_semantics = [#tpu.dimension_semantics<parallel>], iteration_bounds = array<i64: 2>, scalar_prefetch = 0 : i64, scratch_operands = 4 : i64, tpu.core_type = #tpu.core_type<tc>, window_params = [{transform_indices = @transform_0, window_bounds = array<i64: 1, 64, 32>}, {pipeline_mode = #tpu.pipeline_mode<synchronous>, transform_indices = @transform_1, window_bounds = array<i64: 288, 64>}, {pipeline_mode = #tpu.pipeline_mode<synchronous>, transform_indices = @transform_2, window_bounds = array<i64: 1, 64>}, {pipeline_mode = #tpu.pipeline_mode<synchronous>, transform_indices = @transform_3, window_bounds = array<i64: 576, 64>}, {pipeline_mode = #tpu.pipeline_mode<synchronous>, transform_indices = @transform_4, window_bounds = array<i64: 1, 64>}, {transform_indices = @transform_5, window_bounds = array<i64: 1, 64, 64>}]} {
    %0 = tpu.iota {dimensions = array<i32: 0>} : vector<64x1xi32>
    %c7_i32 = arith.constant 7 : i32
    %1 = vector.broadcast %c7_i32 : i32 to vector<64x1xi32>
    %2 = arith.andi %0, %1 : vector<64x1xi32>
    %c7_i32_0 = arith.constant 7 : i32
    %3 = vector.broadcast %c7_i32_0 : i32 to vector<64x1xi32>
    %4 = arith.cmpi slt, %2, %3 : vector<64x1xi32>
    %c0_i32 = arith.constant 0 : i32
    %5 = vector.broadcast %c0_i32 : i32 to vector<64x1xi32>
    %6 = arith.cmpi sgt, %2, %5 : vector<64x1xi32>
    %cst = arith.constant 0.000000e+00 : bf16
    %7 = vector.broadcast %cst : bf16 to vector<16x32xbf16>
    %c0 = arith.constant 0 : index
    %c0_1 = arith.constant 0 : index
    %8 = vector.load %arg7[%c0, %c0_1] : memref<96x32xbf16, #tpu.memory_space<vmem>>, vector<16x32xbf16>
    tpu.vector_store %arg7[%c0, %c0_1], %7 {strides = array<i32>} : memref<96x32xbf16, #tpu.memory_space<vmem>>, vector<16x32xbf16>,
    %cst_2 = arith.constant 0.000000e+00 : bf16
    %9 = vector.broadcast %cst_2 : bf16 to vector<16x32xbf16>
    %c80 = arith.constant 80 : index
    %c0_3 = arith.constant 0 : index
    %10 = vector.load %arg7[%c80, %c0_3] : memref<96x32xbf16, #tpu.memory_space<vmem>>, vector<16x32xbf16>
    tpu.vector_store %arg7[%c80, %c0_3], %9 {strides = array<i32>} : memref<96x32xbf16, #tpu.memory_space<vmem>>, vector<16x32xbf16>,
    %c0_4 = arith.constant 0 : index
    %c0_5 = arith.constant 0 : index
    %c0_6 = arith.constant 0 : index
    %11 = vector.load %arg1[%c0_4, %c0_5, %c0_6] : memref<1x64x32xbf16, #tpu.memory_space<vmem>>, vector<1x64x32xbf16>
    %12 = vector.shape_cast %11 : vector<1x64x32xbf16> to vector<64x32xbf16>
    %c16 = arith.constant 16 : index
    %c0_7 = arith.constant 0 : index
    %13 = vector.load %arg7[%c16, %c0_7] : memref<96x32xbf16, #tpu.memory_space<vmem>>, vector<64x32xbf16>
    tpu.vector_store %arg7[%c16, %c0_7], %12 {strides = array<i32>} : memref<96x32xbf16, #tpu.memory_space<vmem>>, vector<64x32xbf16>,
    %c7 = arith.constant 7 : index
    %c0_8 = arith.constant 0 : index
    %14 = vector.load %arg7[%c7, %c0_8] : memref<96x32xbf16, #tpu.memory_space<vmem>>, vector<64x32xbf16>
    %cst_9 = arith.constant 0.000000e+00 : bf16
    %15 = vector.broadcast %cst_9 : bf16 to vector<64x32xbf16>
    %16 = vector.shape_cast %6 : vector<64x1xi1> to vector<64x1xi1>
    %17 = vector.broadcast %16 : vector<64x1xi1> to vector<64x32xi1>
    %18 = arith.select %17, %14, %15 : vector<64x32xi1>, vector<64x32xbf16>
    %c0_10 = arith.constant 0 : index
    %c0_11 = arith.constant 0 : index
    %19 = vector.load %arg9[%c0_10, %c0_11] : memref<64x288xbf16, #tpu.memory_space<vmem>>, vector<64x32xbf16>
    tpu.vector_store %arg9[%c0_10, %c0_11], %18 {strides = array<i32>} : memref<64x288xbf16, #tpu.memory_space<vmem>>, vector<64x32xbf16>,
    %c8 = arith.constant 8 : index
    %c0_12 = arith.constant 0 : index
    %20 = vector.load %arg7[%c8, %c0_12] : memref<96x32xbf16, #tpu.memory_space<vmem>>, vector<64x32xbf16>
    %c0_13 = arith.constant 0 : index
    %c32 = arith.constant 32 : index
    %21 = vector.load %arg9[%c0_13, %c32] : memref<64x288xbf16, #tpu.memory_space<vmem>>, vector<64x32xbf16>
    tpu.vector_store %arg9[%c0_13, %c32], %20 {strides = array<i32>} : memref<64x288xbf16, #tpu.memory_space<vmem>>, vector<64x32xbf16>,
    %c9 = arith.constant 9 : index
    %c0_14 = arith.constant 0 : index
    %22 = vector.load %arg7[%c9, %c0_14] : memref<96x32xbf16, #tpu.memory_space<vmem>>, vector<64x32xbf16>
    %cst_15 = arith.constant 0.000000e+00 : bf16
    %23 = vector.broadcast %cst_15 : bf16 to vector<64x32xbf16>
    %24 = vector.shape_cast %4 : vector<64x1xi1> to vector<64x1xi1>
    %25 = vector.broadcast %24 : vector<64x1xi1> to vector<64x32xi1>
    %26 = arith.select %25, %22, %23 : vector<64x32xi1>, vector<64x32xbf16>
    %c0_16 = arith.constant 0 : index
    %c64 = arith.constant 64 : index
    %27 = vector.load %arg9[%c0_16, %c64] : memref<64x288xbf16, #tpu.memory_space<vmem>>, vector<64x32xbf16>
    tpu.vector_store %arg9[%c0_16, %c64], %26 {strides = array<i32>} : memref<64x288xbf16, #tpu.memory_space<vmem>>, vector<64x32xbf16>,
    %c15 = arith.constant 15 : index
    %c0_17 = arith.constant 0 : index
    %28 = vector.load %arg7[%c15, %c0_17] : memref<96x32xbf16, #tpu.memory_space<vmem>>, vector<64x32xbf16>
    %cst_18 = arith.constant 0.000000e+00 : bf16
    %29 = vector.broadcast %cst_18 : bf16 to vector<64x32xbf16>
    %30 = vector.shape_cast %6 : vector<64x1xi1> to vector<64x1xi1>
    %31 = vector.broadcast %30 : vector<64x1xi1> to vector<64x32xi1>
    %32 = arith.select %31, %28, %29 : vector<64x32xi1>, vector<64x32xbf16>
    %c0_19 = arith.constant 0 : index
    %c96 = arith.constant 96 : index
    %33 = vector.load %arg9[%c0_19, %c96] : memref<64x288xbf16, #tpu.memory_space<vmem>>, vector<64x32xbf16>
    tpu.vector_store %arg9[%c0_19, %c96], %32 {strides = array<i32>} : memref<64x288xbf16, #tpu.memory_space<vmem>>, vector<64x32xbf16>,
    %c16_20 = arith.constant 16 : index
    %c0_21 = arith.constant 0 : index
    %34 = vector.load %arg7[%c16_20, %c0_21] : memref<96x32xbf16, #tpu.memory_space<vmem>>, vector<64x32xbf16>
    %c0_22 = arith.constant 0 : index
    %c128 = arith.constant 128 : index
    %35 = vector.load %arg9[%c0_22, %c128] : memref<64x288xbf16, #tpu.memory_space<vmem>>, vector<64x32xbf16>
    tpu.vector_store %arg9[%c0_22, %c128], %34 {strides = array<i32>} : memref<64x288xbf16, #tpu.memory_space<vmem>>, vector<64x32xbf16>,
    %c17 = arith.constant 17 : index
    %c0_23 = arith.constant 0 : index
    %36 = vector.load %arg7[%c17, %c0_23] : memref<96x32xbf16, #tpu.memory_space<vmem>>, vector<64x32xbf16>
    %cst_24 = arith.constant 0.000000e+00 : bf16
    %37 = vector.broadcast %cst_24 : bf16 to vector<64x32xbf16>
    %38 = vector.shape_cast %4 : vector<64x1xi1> to vector<64x1xi1>
    %39 = vector.broadcast %38 : vector<64x1xi1> to vector<64x32xi1>
    %40 = arith.select %39, %36, %37 : vector<64x32xi1>, vector<64x32xbf16>
    %c0_25 = arith.constant 0 : index
    %c160 = arith.constant 160 : index
    %41 = vector.load %arg9[%c0_25, %c160] : memref<64x288xbf16, #tpu.memory_space<vmem>>, vector<64x32xbf16>
    tpu.vector_store %arg9[%c0_25, %c160], %40 {strides = array<i32>} : memref<64x288xbf16, #tpu.memory_space<vmem>>, vector<64x32xbf16>,
    %c23 = arith.constant 23 : index
    %c0_26 = arith.constant 0 : index
    %42 = vector.load %arg7[%c23, %c0_26] : memref<96x32xbf16, #tpu.memory_space<vmem>>, vector<64x32xbf16>
    %cst_27 = arith.constant 0.000000e+00 : bf16
    %43 = vector.broadcast %cst_27 : bf16 to vector<64x32xbf16>
    %44 = vector.shape_cast %6 : vector<64x1xi1> to vector<64x1xi1>
    %45 = vector.broadcast %44 : vector<64x1xi1> to vector<64x32xi1>
    %46 = arith.select %45, %42, %43 : vector<64x32xi1>, vector<64x32xbf16>
    %c0_28 = arith.constant 0 : index
    %c192 = arith.constant 192 : index
    %47 = vector.load %arg9[%c0_28, %c192] : memref<64x288xbf16, #tpu.memory_space<vmem>>, vector<64x32xbf16>
    tpu.vector_store %arg9[%c0_28, %c192], %46 {strides = array<i32>} : memref<64x288xbf16, #tpu.memory_space<vmem>>, vector<64x32xbf16>,
    %c24 = arith.constant 24 : index
    %c0_29 = arith.constant 0 : index
    %48 = vector.load %arg7[%c24, %c0_29] : memref<96x32xbf16, #tpu.memory_space<vmem>>, vector<64x32xbf16>
    %c0_30 = arith.constant 0 : index
    %c224 = arith.constant 224 : index
    %49 = vector.load %arg9[%c0_30, %c224] : memref<64x288xbf16, #tpu.memory_space<vmem>>, vector<64x32xbf16>
    tpu.vector_store %arg9[%c0_30, %c224], %48 {strides = array<i32>} : memref<64x288xbf16, #tpu.memory_space<vmem>>, vector<64x32xbf16>,
    %c25 = arith.constant 25 : index
    %c0_31 = arith.constant 0 : index
    %50 = vector.load %arg7[%c25, %c0_31] : memref<96x32xbf16, #tpu.memory_space<vmem>>, vector<64x32xbf16>
    %cst_32 = arith.constant 0.000000e+00 : bf16
    %51 = vector.broadcast %cst_32 : bf16 to vector<64x32xbf16>
    %52 = vector.shape_cast %4 : vector<64x1xi1> to vector<64x1xi1>
    %53 = vector.broadcast %52 : vector<64x1xi1> to vector<64x32xi1>
    %54 = arith.select %53, %50, %51 : vector<64x32xi1>, vector<64x32xbf16>
    %c0_33 = arith.constant 0 : index
    %c256 = arith.constant 256 : index
    %55 = vector.load %arg9[%c0_33, %c256] : memref<64x288xbf16, #tpu.memory_space<vmem>>, vector<64x32xbf16>
    tpu.vector_store %arg9[%c0_33, %c256], %54 {strides = array<i32>} : memref<64x288xbf16, #tpu.memory_space<vmem>>, vector<64x32xbf16>,
    %c0_34 = arith.constant 0 : index
    %c0_35 = arith.constant 0 : index
    %56 = vector.load %arg9[%c0_34, %c0_35] : memref<64x288xbf16, #tpu.memory_space<vmem>>, vector<64x288xbf16>
    %c0_36 = arith.constant 0 : index
    %c0_37 = arith.constant 0 : index
    %57 = vector.load %arg2[%c0_36, %c0_37] : memref<288x64xbf16, #tpu.memory_space<vmem>>, vector<288x64xbf16>
    %cst_38 = arith.constant dense<0.000000e+00> : vector<64x64xf32>
    %58 = tpu.matmul %56, %57, %cst_38 {dimension_numbers = #tpu.dot_dimension_numbers<[1], [0], [0], [1], [0, 0, 1, 1], [], []>} : vector<64x288xbf16>, vector<288x64xbf16>, vector<64x64xf32> -> vector<64x64xf32>
    %c0_39 = arith.constant 0 : index
    %c0_40 = arith.constant 0 : index
    %59 = vector.load %arg3[%c0_39, %c0_40] : memref<1x64xf32, #tpu.memory_space<vmem>>, vector<1x64xf32>
    %60 = vector.broadcast %59 : vector<1x64xf32> to vector<64x64xf32>
    %61 = arith.addf %58, %60 : vector<64x64xf32>
    %cst_41 = arith.constant 0.000000e+00 : f32
    %62 = vector.broadcast %cst_41 : f32 to vector<64x64xf32>
    %63 = arith.maximumf %61, %62 : vector<64x64xf32>
    %cst_42 = arith.constant 0.000000e+00 : bf16
    %64 = vector.broadcast %cst_42 : bf16 to vector<16x64xbf16>
    %c0_43 = arith.constant 0 : index
    %c0_44 = arith.constant 0 : index
    %65 = vector.load %arg8[%c0_43, %c0_44] : memref<96x64xbf16, #tpu.memory_space<vmem>>, vector<16x64xbf16>
    tpu.vector_store %arg8[%c0_43, %c0_44], %64 {strides = array<i32>} : memref<96x64xbf16, #tpu.memory_space<vmem>>, vector<16x64xbf16>,
    %cst_45 = arith.constant 0.000000e+00 : bf16
    %66 = vector.broadcast %cst_45 : bf16 to vector<16x64xbf16>
    %c80_46 = arith.constant 80 : index
    %c0_47 = arith.constant 0 : index
    %67 = vector.load %arg8[%c80_46, %c0_47] : memref<96x64xbf16, #tpu.memory_space<vmem>>, vector<16x64xbf16>
    tpu.vector_store %arg8[%c80_46, %c0_47], %66 {strides = array<i32>} : memref<96x64xbf16, #tpu.memory_space<vmem>>, vector<16x64xbf16>,
    %68 = arith.truncf %63 : vector<64x64xf32> to vector<64x64xbf16>
    %c16_48 = arith.constant 16 : index
    %c0_49 = arith.constant 0 : index
    %69 = vector.load %arg8[%c16_48, %c0_49] : memref<96x64xbf16, #tpu.memory_space<vmem>>, vector<64x64xbf16>
    tpu.vector_store %arg8[%c16_48, %c0_49], %68 {strides = array<i32>} : memref<96x64xbf16, #tpu.memory_space<vmem>>, vector<64x64xbf16>,
    %c7_50 = arith.constant 7 : index
    %c0_51 = arith.constant 0 : index
    %70 = vector.load %arg8[%c7_50, %c0_51] : memref<96x64xbf16, #tpu.memory_space<vmem>>, vector<64x64xbf16>
    %cst_52 = arith.constant 0.000000e+00 : bf16
    %71 = vector.broadcast %cst_52 : bf16 to vector<64x64xbf16>
    %72 = vector.shape_cast %6 : vector<64x1xi1> to vector<64x1xi1>
    %73 = vector.broadcast %72 : vector<64x1xi1> to vector<64x64xi1>
    %74 = arith.select %73, %70, %71 : vector<64x64xi1>, vector<64x64xbf16>
    %c0_53 = arith.constant 0 : index
    %c0_54 = arith.constant 0 : index
    %75 = vector.load %arg10[%c0_53, %c0_54] : memref<64x576xbf16, #tpu.memory_space<vmem>>, vector<64x64xbf16>
    tpu.vector_store %arg10[%c0_53, %c0_54], %74 {strides = array<i32>} : memref<64x576xbf16, #tpu.memory_space<vmem>>, vector<64x64xbf16>,
    %c8_55 = arith.constant 8 : index
    %c0_56 = arith.constant 0 : index
    %76 = vector.load %arg8[%c8_55, %c0_56] : memref<96x64xbf16, #tpu.memory_space<vmem>>, vector<64x64xbf16>
    %c0_57 = arith.constant 0 : index
    %c64_58 = arith.constant 64 : index
    %77 = vector.load %arg10[%c0_57, %c64_58] : memref<64x576xbf16, #tpu.memory_space<vmem>>, vector<64x64xbf16>
    tpu.vector_store %arg10[%c0_57, %c64_58], %76 {strides = array<i32>} : memref<64x576xbf16, #tpu.memory_space<vmem>>, vector<64x64xbf16>,
    %c9_59 = arith.constant 9 : index
    %c0_60 = arith.constant 0 : index
    %78 = vector.load %arg8[%c9_59, %c0_60] : memref<96x64xbf16, #tpu.memory_space<vmem>>, vector<64x64xbf16>
    %cst_61 = arith.constant 0.000000e+00 : bf16
    %79 = vector.broadcast %cst_61 : bf16 to vector<64x64xbf16>
    %80 = vector.shape_cast %4 : vector<64x1xi1> to vector<64x1xi1>
    %81 = vector.broadcast %80 : vector<64x1xi1> to vector<64x64xi1>
    %82 = arith.select %81, %78, %79 : vector<64x64xi1>, vector<64x64xbf16>
    %c0_62 = arith.constant 0 : index
    %c128_63 = arith.constant 128 : index
    %83 = vector.load %arg10[%c0_62, %c128_63] : memref<64x576xbf16, #tpu.memory_space<vmem>>, vector<64x64xbf16>
    tpu.vector_store %arg10[%c0_62, %c128_63], %82 {strides = array<i32>} : memref<64x576xbf16, #tpu.memory_space<vmem>>, vector<64x64xbf16>,
    %c15_64 = arith.constant 15 : index
    %c0_65 = arith.constant 0 : index
    %84 = vector.load %arg8[%c15_64, %c0_65] : memref<96x64xbf16, #tpu.memory_space<vmem>>, vector<64x64xbf16>
    %cst_66 = arith.constant 0.000000e+00 : bf16
    %85 = vector.broadcast %cst_66 : bf16 to vector<64x64xbf16>
    %86 = vector.shape_cast %6 : vector<64x1xi1> to vector<64x1xi1>
    %87 = vector.broadcast %86 : vector<64x1xi1> to vector<64x64xi1>
    %88 = arith.select %87, %84, %85 : vector<64x64xi1>, vector<64x64xbf16>
    %c0_67 = arith.constant 0 : index
    %c192_68 = arith.constant 192 : index
    %89 = vector.load %arg10[%c0_67, %c192_68] : memref<64x576xbf16, #tpu.memory_space<vmem>>, vector<64x64xbf16>
    tpu.vector_store %arg10[%c0_67, %c192_68], %88 {strides = array<i32>} : memref<64x576xbf16, #tpu.memory_space<vmem>>, vector<64x64xbf16>,
    %c16_69 = arith.constant 16 : index
    %c0_70 = arith.constant 0 : index
    %90 = vector.load %arg8[%c16_69, %c0_70] : memref<96x64xbf16, #tpu.memory_space<vmem>>, vector<64x64xbf16>
    %c0_71 = arith.constant 0 : index
    %c256_72 = arith.constant 256 : index
    %91 = vector.load %arg10[%c0_71, %c256_72] : memref<64x576xbf16, #tpu.memory_space<vmem>>, vector<64x64xbf16>
    tpu.vector_store %arg10[%c0_71, %c256_72], %90 {strides = array<i32>} : memref<64x576xbf16, #tpu.memory_space<vmem>>, vector<64x64xbf16>,
    %c17_73 = arith.constant 17 : index
    %c0_74 = arith.constant 0 : index
    %92 = vector.load %arg8[%c17_73, %c0_74] : memref<96x64xbf16, #tpu.memory_space<vmem>>, vector<64x64xbf16>
    %cst_75 = arith.constant 0.000000e+00 : bf16
    %93 = vector.broadcast %cst_75 : bf16 to vector<64x64xbf16>
    %94 = vector.shape_cast %4 : vector<64x1xi1> to vector<64x1xi1>
    %95 = vector.broadcast %94 : vector<64x1xi1> to vector<64x64xi1>
    %96 = arith.select %95, %92, %93 : vector<64x64xi1>, vector<64x64xbf16>
    %c0_76 = arith.constant 0 : index
    %c320 = arith.constant 320 : index
    %97 = vector.load %arg10[%c0_76, %c320] : memref<64x576xbf16, #tpu.memory_space<vmem>>, vector<64x64xbf16>
    tpu.vector_store %arg10[%c0_76, %c320], %96 {strides = array<i32>} : memref<64x576xbf16, #tpu.memory_space<vmem>>, vector<64x64xbf16>,
    %c23_77 = arith.constant 23 : index
    %c0_78 = arith.constant 0 : index
    %98 = vector.load %arg8[%c23_77, %c0_78] : memref<96x64xbf16, #tpu.memory_space<vmem>>, vector<64x64xbf16>
    %cst_79 = arith.constant 0.000000e+00 : bf16
    %99 = vector.broadcast %cst_79 : bf16 to vector<64x64xbf16>
    %100 = vector.shape_cast %6 : vector<64x1xi1> to vector<64x1xi1>
    %101 = vector.broadcast %100 : vector<64x1xi1> to vector<64x64xi1>
    %102 = arith.select %101, %98, %99 : vector<64x64xi1>, vector<64x64xbf16>
    %c0_80 = arith.constant 0 : index
    %c384 = arith.constant 384 : index
    %103 = vector.load %arg10[%c0_80, %c384] : memref<64x576xbf16, #tpu.memory_space<vmem>>, vector<64x64xbf16>
    tpu.vector_store %arg10[%c0_80, %c384], %102 {strides = array<i32>} : memref<64x576xbf16, #tpu.memory_space<vmem>>, vector<64x64xbf16>,
    %c24_81 = arith.constant 24 : index
    %c0_82 = arith.constant 0 : index
    %104 = vector.load %arg8[%c24_81, %c0_82] : memref<96x64xbf16, #tpu.memory_space<vmem>>, vector<64x64xbf16>
    %c0_83 = arith.constant 0 : index
    %c448 = arith.constant 448 : index
    %105 = vector.load %arg10[%c0_83, %c448] : memref<64x576xbf16, #tpu.memory_space<vmem>>, vector<64x64xbf16>
    tpu.vector_store %arg10[%c0_83, %c448], %104 {strides = array<i32>} : memref<64x576xbf16, #tpu.memory_space<vmem>>, vector<64x64xbf16>,
    %c25_84 = arith.constant 25 : index
    %c0_85 = arith.constant 0 : index
    %106 = vector.load %arg8[%c25_84, %c0_85] : memref<96x64xbf16, #tpu.memory_space<vmem>>, vector<64x64xbf16>
    %cst_86 = arith.constant 0.000000e+00 : bf16
    %107 = vector.broadcast %cst_86 : bf16 to vector<64x64xbf16>
    %108 = vector.shape_cast %4 : vector<64x1xi1> to vector<64x1xi1>
    %109 = vector.broadcast %108 : vector<64x1xi1> to vector<64x64xi1>
    %110 = arith.select %109, %106, %107 : vector<64x64xi1>, vector<64x64xbf16>
    %c0_87 = arith.constant 0 : index
    %c512 = arith.constant 512 : index
    %111 = vector.load %arg10[%c0_87, %c512] : memref<64x576xbf16, #tpu.memory_space<vmem>>, vector<64x64xbf16>
    tpu.vector_store %arg10[%c0_87, %c512], %110 {strides = array<i32>} : memref<64x576xbf16, #tpu.memory_space<vmem>>, vector<64x64xbf16>,
    %c0_88 = arith.constant 0 : index
    %c0_89 = arith.constant 0 : index
    %112 = vector.load %arg10[%c0_88, %c0_89] : memref<64x576xbf16, #tpu.memory_space<vmem>>, vector<64x576xbf16>
    %c0_90 = arith.constant 0 : index
    %c0_91 = arith.constant 0 : index
    %113 = vector.load %arg4[%c0_90, %c0_91] : memref<576x64xbf16, #tpu.memory_space<vmem>>, vector<576x64xbf16>
    %cst_92 = arith.constant dense<0.000000e+00> : vector<64x64xf32>
    %114 = tpu.matmul %112, %113, %cst_92 {dimension_numbers = #tpu.dot_dimension_numbers<[1], [0], [0], [1], [0, 0, 1, 1], [], []>} : vector<64x576xbf16>, vector<576x64xbf16>, vector<64x64xf32> -> vector<64x64xf32>
    %c0_93 = arith.constant 0 : index
    %c0_94 = arith.constant 0 : index
    %115 = vector.load %arg5[%c0_93, %c0_94] : memref<1x64xf32, #tpu.memory_space<vmem>>, vector<1x64xf32>
    %116 = vector.broadcast %115 : vector<1x64xf32> to vector<64x64xf32>
    %117 = arith.addf %114, %116 : vector<64x64xf32>
    %cst_95 = arith.constant 0.000000e+00 : f32
    %118 = vector.broadcast %cst_95 : f32 to vector<64x64xf32>
    %119 = arith.maximumf %117, %118 : vector<64x64xf32>
    %c0_96 = arith.constant 0 : index
    %c0_97 = arith.constant 0 : index
    %c0_98 = arith.constant 0 : index
    %120 = vector.load %arg6[%c0_96, %c0_97, %c0_98] : memref<1x64x64xf32, #tpu.memory_space<vmem>>, vector<1x64x64xf32>
    %121 = vector.shape_cast %120 : vector<1x64x64xf32> to vector<64x64xf32>
    %122 = vector.shape_cast %119 : vector<64x64xf32> to vector<1x64x64xf32>
    tpu.vector_store %arg6[%c0_96, %c0_97, %c0_98], %122 {strides = array<i32>} : memref<1x64x64xf32, #tpu.memory_space<vmem>>, vector<1x64x64xf32>,
    return
  }
  func.func @transform_0(%arg0: i32) -> (i32, i32, i32) {
    %c0_i32 = arith.constant 0 : i32
    %c0_i32_0 = arith.constant 0 : i32
    %c0_i32_1 = arith.constant 0 : i32
    return %arg0, %c0_i32, %c0_i32_0 : i32, i32, i32
  }
  func.func @transform_1(%arg0: i32) -> (i32, i32) {
    %c0_i32 = arith.constant 0 : i32
    %c0_i32_0 = arith.constant 0 : i32
    %c0_i32_1 = arith.constant 0 : i32
    return %c0_i32, %c0_i32_0 : i32, i32
  }
  func.func @transform_2(%arg0: i32) -> (i32, i32) {
    %c0_i32 = arith.constant 0 : i32
    %c0_i32_0 = arith.constant 0 : i32
    %c0_i32_1 = arith.constant 0 : i32
    return %c0_i32, %c0_i32_0 : i32, i32
  }
  func.func @transform_3(%arg0: i32) -> (i32, i32) {
    %c0_i32 = arith.constant 0 : i32
    %c0_i32_0 = arith.constant 0 : i32
    %c0_i32_1 = arith.constant 0 : i32
    return %c0_i32, %c0_i32_0 : i32, i32
  }
  func.func @transform_4(%arg0: i32) -> (i32, i32) {
    %c0_i32 = arith.constant 0 : i32
    %c0_i32_0 = arith.constant 0 : i32
    %c0_i32_1 = arith.constant 0 : i32
    return %c0_i32, %c0_i32_0 : i32, i32
  }
  func.func @transform_5(%arg0: i32) -> (i32, i32, i32) {
    %c0_i32 = arith.constant 0 : i32
    %c0_i32_0 = arith.constant 0 : i32
    %c0_i32_1 = arith.constant 0 : i32
    return %arg0, %c0_i32, %c0_i32_0 : i32, i32, i32
  }
}

module attributes {stable_mosaic.version = 11 : i64} {
  func.func @_block_kernel(%arg0: i32, %arg1: memref<1x16x64xbf16, #tpu.memory_space<vmem>>, %arg2: memref<576x128xbf16, #tpu.memory_space<vmem>>, %arg3: memref<1x128xf32, #tpu.memory_space<vmem>>, %arg4: memref<1152x128xbf16, #tpu.memory_space<vmem>>, %arg5: memref<1x128xf32, #tpu.memory_space<vmem>>, %arg6: memref<1x16x128xf32, #tpu.memory_space<vmem>>, %arg7: memref<32x64xbf16, #tpu.memory_space<vmem>>, %arg8: memref<32x128xbf16, #tpu.memory_space<vmem>>, %arg9: memref<16x576xbf16, #tpu.memory_space<vmem>>, %arg10: memref<16x1152xbf16, #tpu.memory_space<vmem>>) attributes {dimension_semantics = [#tpu.dimension_semantics<parallel>], iteration_bounds = array<i64: 2>, scalar_prefetch = 0 : i64, scratch_operands = 4 : i64, tpu.core_type = #tpu.core_type<tc>, window_params = [{transform_indices = @transform_0, window_bounds = array<i64: 1, 16, 64>}, {pipeline_mode = #tpu.pipeline_mode<synchronous>, transform_indices = @transform_1, window_bounds = array<i64: 576, 128>}, {pipeline_mode = #tpu.pipeline_mode<synchronous>, transform_indices = @transform_2, window_bounds = array<i64: 1, 128>}, {pipeline_mode = #tpu.pipeline_mode<synchronous>, transform_indices = @transform_3, window_bounds = array<i64: 1152, 128>}, {pipeline_mode = #tpu.pipeline_mode<synchronous>, transform_indices = @transform_4, window_bounds = array<i64: 1, 128>}, {transform_indices = @transform_5, window_bounds = array<i64: 1, 16, 128>}]} {
    %0 = tpu.iota {dimensions = array<i32: 0>} : vector<16x1xi32>
    %c3_i32 = arith.constant 3 : i32
    %1 = vector.broadcast %c3_i32 : i32 to vector<16x1xi32>
    %2 = arith.andi %0, %1 : vector<16x1xi32>
    %c3_i32_0 = arith.constant 3 : i32
    %3 = vector.broadcast %c3_i32_0 : i32 to vector<16x1xi32>
    %4 = arith.cmpi slt, %2, %3 : vector<16x1xi32>
    %c0_i32 = arith.constant 0 : i32
    %5 = vector.broadcast %c0_i32 : i32 to vector<16x1xi32>
    %6 = arith.cmpi sgt, %2, %5 : vector<16x1xi32>
    %cst = arith.constant 0.000000e+00 : bf16
    %7 = vector.broadcast %cst : bf16 to vector<8x64xbf16>
    %c0 = arith.constant 0 : index
    %c0_1 = arith.constant 0 : index
    %8 = vector.load %arg7[%c0, %c0_1] : memref<32x64xbf16, #tpu.memory_space<vmem>>, vector<8x64xbf16>
    tpu.vector_store %arg7[%c0, %c0_1], %7 {strides = array<i32>} : memref<32x64xbf16, #tpu.memory_space<vmem>>, vector<8x64xbf16>,
    %cst_2 = arith.constant 0.000000e+00 : bf16
    %9 = vector.broadcast %cst_2 : bf16 to vector<8x64xbf16>
    %c24 = arith.constant 24 : index
    %c0_3 = arith.constant 0 : index
    %10 = vector.load %arg7[%c24, %c0_3] : memref<32x64xbf16, #tpu.memory_space<vmem>>, vector<8x64xbf16>
    tpu.vector_store %arg7[%c24, %c0_3], %9 {strides = array<i32>} : memref<32x64xbf16, #tpu.memory_space<vmem>>, vector<8x64xbf16>,
    %c0_4 = arith.constant 0 : index
    %c0_5 = arith.constant 0 : index
    %c0_6 = arith.constant 0 : index
    %11 = vector.load %arg1[%c0_4, %c0_5, %c0_6] : memref<1x16x64xbf16, #tpu.memory_space<vmem>>, vector<1x16x64xbf16>
    %12 = vector.shape_cast %11 : vector<1x16x64xbf16> to vector<16x64xbf16>
    %c8 = arith.constant 8 : index
    %c0_7 = arith.constant 0 : index
    %13 = vector.load %arg7[%c8, %c0_7] : memref<32x64xbf16, #tpu.memory_space<vmem>>, vector<16x64xbf16>
    tpu.vector_store %arg7[%c8, %c0_7], %12 {strides = array<i32>} : memref<32x64xbf16, #tpu.memory_space<vmem>>, vector<16x64xbf16>,
    %c3 = arith.constant 3 : index
    %c0_8 = arith.constant 0 : index
    %14 = vector.load %arg7[%c3, %c0_8] : memref<32x64xbf16, #tpu.memory_space<vmem>>, vector<16x64xbf16>
    %cst_9 = arith.constant 0.000000e+00 : bf16
    %15 = vector.broadcast %cst_9 : bf16 to vector<16x64xbf16>
    %16 = vector.shape_cast %6 : vector<16x1xi1> to vector<16x1xi1>
    %17 = vector.broadcast %16 : vector<16x1xi1> to vector<16x64xi1>
    %18 = arith.select %17, %14, %15 : vector<16x64xi1>, vector<16x64xbf16>
    %c0_10 = arith.constant 0 : index
    %c0_11 = arith.constant 0 : index
    %19 = vector.load %arg9[%c0_10, %c0_11] : memref<16x576xbf16, #tpu.memory_space<vmem>>, vector<16x64xbf16>
    tpu.vector_store %arg9[%c0_10, %c0_11], %18 {strides = array<i32>} : memref<16x576xbf16, #tpu.memory_space<vmem>>, vector<16x64xbf16>,
    %c4 = arith.constant 4 : index
    %c0_12 = arith.constant 0 : index
    %20 = vector.load %arg7[%c4, %c0_12] : memref<32x64xbf16, #tpu.memory_space<vmem>>, vector<16x64xbf16>
    %c0_13 = arith.constant 0 : index
    %c64 = arith.constant 64 : index
    %21 = vector.load %arg9[%c0_13, %c64] : memref<16x576xbf16, #tpu.memory_space<vmem>>, vector<16x64xbf16>
    tpu.vector_store %arg9[%c0_13, %c64], %20 {strides = array<i32>} : memref<16x576xbf16, #tpu.memory_space<vmem>>, vector<16x64xbf16>,
    %c5 = arith.constant 5 : index
    %c0_14 = arith.constant 0 : index
    %22 = vector.load %arg7[%c5, %c0_14] : memref<32x64xbf16, #tpu.memory_space<vmem>>, vector<16x64xbf16>
    %cst_15 = arith.constant 0.000000e+00 : bf16
    %23 = vector.broadcast %cst_15 : bf16 to vector<16x64xbf16>
    %24 = vector.shape_cast %4 : vector<16x1xi1> to vector<16x1xi1>
    %25 = vector.broadcast %24 : vector<16x1xi1> to vector<16x64xi1>
    %26 = arith.select %25, %22, %23 : vector<16x64xi1>, vector<16x64xbf16>
    %c0_16 = arith.constant 0 : index
    %c128 = arith.constant 128 : index
    %27 = vector.load %arg9[%c0_16, %c128] : memref<16x576xbf16, #tpu.memory_space<vmem>>, vector<16x64xbf16>
    tpu.vector_store %arg9[%c0_16, %c128], %26 {strides = array<i32>} : memref<16x576xbf16, #tpu.memory_space<vmem>>, vector<16x64xbf16>,
    %c7 = arith.constant 7 : index
    %c0_17 = arith.constant 0 : index
    %28 = vector.load %arg7[%c7, %c0_17] : memref<32x64xbf16, #tpu.memory_space<vmem>>, vector<16x64xbf16>
    %cst_18 = arith.constant 0.000000e+00 : bf16
    %29 = vector.broadcast %cst_18 : bf16 to vector<16x64xbf16>
    %30 = vector.shape_cast %6 : vector<16x1xi1> to vector<16x1xi1>
    %31 = vector.broadcast %30 : vector<16x1xi1> to vector<16x64xi1>
    %32 = arith.select %31, %28, %29 : vector<16x64xi1>, vector<16x64xbf16>
    %c0_19 = arith.constant 0 : index
    %c192 = arith.constant 192 : index
    %33 = vector.load %arg9[%c0_19, %c192] : memref<16x576xbf16, #tpu.memory_space<vmem>>, vector<16x64xbf16>
    tpu.vector_store %arg9[%c0_19, %c192], %32 {strides = array<i32>} : memref<16x576xbf16, #tpu.memory_space<vmem>>, vector<16x64xbf16>,
    %c8_20 = arith.constant 8 : index
    %c0_21 = arith.constant 0 : index
    %34 = vector.load %arg7[%c8_20, %c0_21] : memref<32x64xbf16, #tpu.memory_space<vmem>>, vector<16x64xbf16>
    %c0_22 = arith.constant 0 : index
    %c256 = arith.constant 256 : index
    %35 = vector.load %arg9[%c0_22, %c256] : memref<16x576xbf16, #tpu.memory_space<vmem>>, vector<16x64xbf16>
    tpu.vector_store %arg9[%c0_22, %c256], %34 {strides = array<i32>} : memref<16x576xbf16, #tpu.memory_space<vmem>>, vector<16x64xbf16>,
    %c9 = arith.constant 9 : index
    %c0_23 = arith.constant 0 : index
    %36 = vector.load %arg7[%c9, %c0_23] : memref<32x64xbf16, #tpu.memory_space<vmem>>, vector<16x64xbf16>
    %cst_24 = arith.constant 0.000000e+00 : bf16
    %37 = vector.broadcast %cst_24 : bf16 to vector<16x64xbf16>
    %38 = vector.shape_cast %4 : vector<16x1xi1> to vector<16x1xi1>
    %39 = vector.broadcast %38 : vector<16x1xi1> to vector<16x64xi1>
    %40 = arith.select %39, %36, %37 : vector<16x64xi1>, vector<16x64xbf16>
    %c0_25 = arith.constant 0 : index
    %c320 = arith.constant 320 : index
    %41 = vector.load %arg9[%c0_25, %c320] : memref<16x576xbf16, #tpu.memory_space<vmem>>, vector<16x64xbf16>
    tpu.vector_store %arg9[%c0_25, %c320], %40 {strides = array<i32>} : memref<16x576xbf16, #tpu.memory_space<vmem>>, vector<16x64xbf16>,
    %c11 = arith.constant 11 : index
    %c0_26 = arith.constant 0 : index
    %42 = vector.load %arg7[%c11, %c0_26] : memref<32x64xbf16, #tpu.memory_space<vmem>>, vector<16x64xbf16>
    %cst_27 = arith.constant 0.000000e+00 : bf16
    %43 = vector.broadcast %cst_27 : bf16 to vector<16x64xbf16>
    %44 = vector.shape_cast %6 : vector<16x1xi1> to vector<16x1xi1>
    %45 = vector.broadcast %44 : vector<16x1xi1> to vector<16x64xi1>
    %46 = arith.select %45, %42, %43 : vector<16x64xi1>, vector<16x64xbf16>
    %c0_28 = arith.constant 0 : index
    %c384 = arith.constant 384 : index
    %47 = vector.load %arg9[%c0_28, %c384] : memref<16x576xbf16, #tpu.memory_space<vmem>>, vector<16x64xbf16>
    tpu.vector_store %arg9[%c0_28, %c384], %46 {strides = array<i32>} : memref<16x576xbf16, #tpu.memory_space<vmem>>, vector<16x64xbf16>,
    %c12 = arith.constant 12 : index
    %c0_29 = arith.constant 0 : index
    %48 = vector.load %arg7[%c12, %c0_29] : memref<32x64xbf16, #tpu.memory_space<vmem>>, vector<16x64xbf16>
    %c0_30 = arith.constant 0 : index
    %c448 = arith.constant 448 : index
    %49 = vector.load %arg9[%c0_30, %c448] : memref<16x576xbf16, #tpu.memory_space<vmem>>, vector<16x64xbf16>
    tpu.vector_store %arg9[%c0_30, %c448], %48 {strides = array<i32>} : memref<16x576xbf16, #tpu.memory_space<vmem>>, vector<16x64xbf16>,
    %c13 = arith.constant 13 : index
    %c0_31 = arith.constant 0 : index
    %50 = vector.load %arg7[%c13, %c0_31] : memref<32x64xbf16, #tpu.memory_space<vmem>>, vector<16x64xbf16>
    %cst_32 = arith.constant 0.000000e+00 : bf16
    %51 = vector.broadcast %cst_32 : bf16 to vector<16x64xbf16>
    %52 = vector.shape_cast %4 : vector<16x1xi1> to vector<16x1xi1>
    %53 = vector.broadcast %52 : vector<16x1xi1> to vector<16x64xi1>
    %54 = arith.select %53, %50, %51 : vector<16x64xi1>, vector<16x64xbf16>
    %c0_33 = arith.constant 0 : index
    %c512 = arith.constant 512 : index
    %55 = vector.load %arg9[%c0_33, %c512] : memref<16x576xbf16, #tpu.memory_space<vmem>>, vector<16x64xbf16>
    tpu.vector_store %arg9[%c0_33, %c512], %54 {strides = array<i32>} : memref<16x576xbf16, #tpu.memory_space<vmem>>, vector<16x64xbf16>,
    %c0_34 = arith.constant 0 : index
    %c0_35 = arith.constant 0 : index
    %56 = vector.load %arg9[%c0_34, %c0_35] : memref<16x576xbf16, #tpu.memory_space<vmem>>, vector<16x576xbf16>
    %c0_36 = arith.constant 0 : index
    %c0_37 = arith.constant 0 : index
    %57 = vector.load %arg2[%c0_36, %c0_37] : memref<576x128xbf16, #tpu.memory_space<vmem>>, vector<576x128xbf16>
    %cst_38 = arith.constant dense<0.000000e+00> : vector<16x128xf32>
    %58 = tpu.matmul %56, %57, %cst_38 {dimension_numbers = #tpu.dot_dimension_numbers<[1], [0], [0], [1], [0, 0, 1, 1], [], []>} : vector<16x576xbf16>, vector<576x128xbf16>, vector<16x128xf32> -> vector<16x128xf32>
    %c0_39 = arith.constant 0 : index
    %c0_40 = arith.constant 0 : index
    %59 = vector.load %arg3[%c0_39, %c0_40] : memref<1x128xf32, #tpu.memory_space<vmem>>, vector<1x128xf32>
    %60 = vector.broadcast %59 : vector<1x128xf32> to vector<16x128xf32>
    %61 = arith.addf %58, %60 : vector<16x128xf32>
    %cst_41 = arith.constant 0.000000e+00 : f32
    %62 = vector.broadcast %cst_41 : f32 to vector<16x128xf32>
    %63 = arith.maximumf %61, %62 : vector<16x128xf32>
    %cst_42 = arith.constant 0.000000e+00 : bf16
    %64 = vector.broadcast %cst_42 : bf16 to vector<8x128xbf16>
    %c0_43 = arith.constant 0 : index
    %c0_44 = arith.constant 0 : index
    %65 = vector.load %arg8[%c0_43, %c0_44] : memref<32x128xbf16, #tpu.memory_space<vmem>>, vector<8x128xbf16>
    tpu.vector_store %arg8[%c0_43, %c0_44], %64 {strides = array<i32>} : memref<32x128xbf16, #tpu.memory_space<vmem>>, vector<8x128xbf16>,
    %cst_45 = arith.constant 0.000000e+00 : bf16
    %66 = vector.broadcast %cst_45 : bf16 to vector<8x128xbf16>
    %c24_46 = arith.constant 24 : index
    %c0_47 = arith.constant 0 : index
    %67 = vector.load %arg8[%c24_46, %c0_47] : memref<32x128xbf16, #tpu.memory_space<vmem>>, vector<8x128xbf16>
    tpu.vector_store %arg8[%c24_46, %c0_47], %66 {strides = array<i32>} : memref<32x128xbf16, #tpu.memory_space<vmem>>, vector<8x128xbf16>,
    %68 = arith.truncf %63 : vector<16x128xf32> to vector<16x128xbf16>
    %c8_48 = arith.constant 8 : index
    %c0_49 = arith.constant 0 : index
    %69 = vector.load %arg8[%c8_48, %c0_49] : memref<32x128xbf16, #tpu.memory_space<vmem>>, vector<16x128xbf16>
    tpu.vector_store %arg8[%c8_48, %c0_49], %68 {strides = array<i32>} : memref<32x128xbf16, #tpu.memory_space<vmem>>, vector<16x128xbf16>,
    %c3_50 = arith.constant 3 : index
    %c0_51 = arith.constant 0 : index
    %70 = vector.load %arg8[%c3_50, %c0_51] : memref<32x128xbf16, #tpu.memory_space<vmem>>, vector<16x128xbf16>
    %cst_52 = arith.constant 0.000000e+00 : bf16
    %71 = vector.broadcast %cst_52 : bf16 to vector<16x128xbf16>
    %72 = vector.shape_cast %6 : vector<16x1xi1> to vector<16x1xi1>
    %73 = vector.broadcast %72 : vector<16x1xi1> to vector<16x128xi1>
    %74 = arith.select %73, %70, %71 : vector<16x128xi1>, vector<16x128xbf16>
    %c0_53 = arith.constant 0 : index
    %c0_54 = arith.constant 0 : index
    %75 = vector.load %arg10[%c0_53, %c0_54] : memref<16x1152xbf16, #tpu.memory_space<vmem>>, vector<16x128xbf16>
    tpu.vector_store %arg10[%c0_53, %c0_54], %74 {strides = array<i32>} : memref<16x1152xbf16, #tpu.memory_space<vmem>>, vector<16x128xbf16>,
    %c4_55 = arith.constant 4 : index
    %c0_56 = arith.constant 0 : index
    %76 = vector.load %arg8[%c4_55, %c0_56] : memref<32x128xbf16, #tpu.memory_space<vmem>>, vector<16x128xbf16>
    %c0_57 = arith.constant 0 : index
    %c128_58 = arith.constant 128 : index
    %77 = vector.load %arg10[%c0_57, %c128_58] : memref<16x1152xbf16, #tpu.memory_space<vmem>>, vector<16x128xbf16>
    tpu.vector_store %arg10[%c0_57, %c128_58], %76 {strides = array<i32>} : memref<16x1152xbf16, #tpu.memory_space<vmem>>, vector<16x128xbf16>,
    %c5_59 = arith.constant 5 : index
    %c0_60 = arith.constant 0 : index
    %78 = vector.load %arg8[%c5_59, %c0_60] : memref<32x128xbf16, #tpu.memory_space<vmem>>, vector<16x128xbf16>
    %cst_61 = arith.constant 0.000000e+00 : bf16
    %79 = vector.broadcast %cst_61 : bf16 to vector<16x128xbf16>
    %80 = vector.shape_cast %4 : vector<16x1xi1> to vector<16x1xi1>
    %81 = vector.broadcast %80 : vector<16x1xi1> to vector<16x128xi1>
    %82 = arith.select %81, %78, %79 : vector<16x128xi1>, vector<16x128xbf16>
    %c0_62 = arith.constant 0 : index
    %c256_63 = arith.constant 256 : index
    %83 = vector.load %arg10[%c0_62, %c256_63] : memref<16x1152xbf16, #tpu.memory_space<vmem>>, vector<16x128xbf16>
    tpu.vector_store %arg10[%c0_62, %c256_63], %82 {strides = array<i32>} : memref<16x1152xbf16, #tpu.memory_space<vmem>>, vector<16x128xbf16>,
    %c7_64 = arith.constant 7 : index
    %c0_65 = arith.constant 0 : index
    %84 = vector.load %arg8[%c7_64, %c0_65] : memref<32x128xbf16, #tpu.memory_space<vmem>>, vector<16x128xbf16>
    %cst_66 = arith.constant 0.000000e+00 : bf16
    %85 = vector.broadcast %cst_66 : bf16 to vector<16x128xbf16>
    %86 = vector.shape_cast %6 : vector<16x1xi1> to vector<16x1xi1>
    %87 = vector.broadcast %86 : vector<16x1xi1> to vector<16x128xi1>
    %88 = arith.select %87, %84, %85 : vector<16x128xi1>, vector<16x128xbf16>
    %c0_67 = arith.constant 0 : index
    %c384_68 = arith.constant 384 : index
    %89 = vector.load %arg10[%c0_67, %c384_68] : memref<16x1152xbf16, #tpu.memory_space<vmem>>, vector<16x128xbf16>
    tpu.vector_store %arg10[%c0_67, %c384_68], %88 {strides = array<i32>} : memref<16x1152xbf16, #tpu.memory_space<vmem>>, vector<16x128xbf16>,
    %c8_69 = arith.constant 8 : index
    %c0_70 = arith.constant 0 : index
    %90 = vector.load %arg8[%c8_69, %c0_70] : memref<32x128xbf16, #tpu.memory_space<vmem>>, vector<16x128xbf16>
    %c0_71 = arith.constant 0 : index
    %c512_72 = arith.constant 512 : index
    %91 = vector.load %arg10[%c0_71, %c512_72] : memref<16x1152xbf16, #tpu.memory_space<vmem>>, vector<16x128xbf16>
    tpu.vector_store %arg10[%c0_71, %c512_72], %90 {strides = array<i32>} : memref<16x1152xbf16, #tpu.memory_space<vmem>>, vector<16x128xbf16>,
    %c9_73 = arith.constant 9 : index
    %c0_74 = arith.constant 0 : index
    %92 = vector.load %arg8[%c9_73, %c0_74] : memref<32x128xbf16, #tpu.memory_space<vmem>>, vector<16x128xbf16>
    %cst_75 = arith.constant 0.000000e+00 : bf16
    %93 = vector.broadcast %cst_75 : bf16 to vector<16x128xbf16>
    %94 = vector.shape_cast %4 : vector<16x1xi1> to vector<16x1xi1>
    %95 = vector.broadcast %94 : vector<16x1xi1> to vector<16x128xi1>
    %96 = arith.select %95, %92, %93 : vector<16x128xi1>, vector<16x128xbf16>
    %c0_76 = arith.constant 0 : index
    %c640 = arith.constant 640 : index
    %97 = vector.load %arg10[%c0_76, %c640] : memref<16x1152xbf16, #tpu.memory_space<vmem>>, vector<16x128xbf16>
    tpu.vector_store %arg10[%c0_76, %c640], %96 {strides = array<i32>} : memref<16x1152xbf16, #tpu.memory_space<vmem>>, vector<16x128xbf16>,
    %c11_77 = arith.constant 11 : index
    %c0_78 = arith.constant 0 : index
    %98 = vector.load %arg8[%c11_77, %c0_78] : memref<32x128xbf16, #tpu.memory_space<vmem>>, vector<16x128xbf16>
    %cst_79 = arith.constant 0.000000e+00 : bf16
    %99 = vector.broadcast %cst_79 : bf16 to vector<16x128xbf16>
    %100 = vector.shape_cast %6 : vector<16x1xi1> to vector<16x1xi1>
    %101 = vector.broadcast %100 : vector<16x1xi1> to vector<16x128xi1>
    %102 = arith.select %101, %98, %99 : vector<16x128xi1>, vector<16x128xbf16>
    %c0_80 = arith.constant 0 : index
    %c768 = arith.constant 768 : index
    %103 = vector.load %arg10[%c0_80, %c768] : memref<16x1152xbf16, #tpu.memory_space<vmem>>, vector<16x128xbf16>
    tpu.vector_store %arg10[%c0_80, %c768], %102 {strides = array<i32>} : memref<16x1152xbf16, #tpu.memory_space<vmem>>, vector<16x128xbf16>,
    %c12_81 = arith.constant 12 : index
    %c0_82 = arith.constant 0 : index
    %104 = vector.load %arg8[%c12_81, %c0_82] : memref<32x128xbf16, #tpu.memory_space<vmem>>, vector<16x128xbf16>
    %c0_83 = arith.constant 0 : index
    %c896 = arith.constant 896 : index
    %105 = vector.load %arg10[%c0_83, %c896] : memref<16x1152xbf16, #tpu.memory_space<vmem>>, vector<16x128xbf16>
    tpu.vector_store %arg10[%c0_83, %c896], %104 {strides = array<i32>} : memref<16x1152xbf16, #tpu.memory_space<vmem>>, vector<16x128xbf16>,
    %c13_84 = arith.constant 13 : index
    %c0_85 = arith.constant 0 : index
    %106 = vector.load %arg8[%c13_84, %c0_85] : memref<32x128xbf16, #tpu.memory_space<vmem>>, vector<16x128xbf16>
    %cst_86 = arith.constant 0.000000e+00 : bf16
    %107 = vector.broadcast %cst_86 : bf16 to vector<16x128xbf16>
    %108 = vector.shape_cast %4 : vector<16x1xi1> to vector<16x1xi1>
    %109 = vector.broadcast %108 : vector<16x1xi1> to vector<16x128xi1>
    %110 = arith.select %109, %106, %107 : vector<16x128xi1>, vector<16x128xbf16>
    %c0_87 = arith.constant 0 : index
    %c1024 = arith.constant 1024 : index
    %111 = vector.load %arg10[%c0_87, %c1024] : memref<16x1152xbf16, #tpu.memory_space<vmem>>, vector<16x128xbf16>
    tpu.vector_store %arg10[%c0_87, %c1024], %110 {strides = array<i32>} : memref<16x1152xbf16, #tpu.memory_space<vmem>>, vector<16x128xbf16>,
    %c0_88 = arith.constant 0 : index
    %c0_89 = arith.constant 0 : index
    %112 = vector.load %arg10[%c0_88, %c0_89] : memref<16x1152xbf16, #tpu.memory_space<vmem>>, vector<16x1152xbf16>
    %c0_90 = arith.constant 0 : index
    %c0_91 = arith.constant 0 : index
    %113 = vector.load %arg4[%c0_90, %c0_91] : memref<1152x128xbf16, #tpu.memory_space<vmem>>, vector<1152x128xbf16>
    %cst_92 = arith.constant dense<0.000000e+00> : vector<16x128xf32>
    %114 = tpu.matmul %112, %113, %cst_92 {dimension_numbers = #tpu.dot_dimension_numbers<[1], [0], [0], [1], [0, 0, 1, 1], [], []>} : vector<16x1152xbf16>, vector<1152x128xbf16>, vector<16x128xf32> -> vector<16x128xf32>
    %c0_93 = arith.constant 0 : index
    %c0_94 = arith.constant 0 : index
    %115 = vector.load %arg5[%c0_93, %c0_94] : memref<1x128xf32, #tpu.memory_space<vmem>>, vector<1x128xf32>
    %116 = vector.broadcast %115 : vector<1x128xf32> to vector<16x128xf32>
    %117 = arith.addf %114, %116 : vector<16x128xf32>
    %cst_95 = arith.constant 0.000000e+00 : f32
    %118 = vector.broadcast %cst_95 : f32 to vector<16x128xf32>
    %119 = arith.maximumf %117, %118 : vector<16x128xf32>
    %c0_96 = arith.constant 0 : index
    %c0_97 = arith.constant 0 : index
    %c0_98 = arith.constant 0 : index
    %120 = vector.load %arg6[%c0_96, %c0_97, %c0_98] : memref<1x16x128xf32, #tpu.memory_space<vmem>>, vector<1x16x128xf32>
    %121 = vector.shape_cast %120 : vector<1x16x128xf32> to vector<16x128xf32>
    %122 = vector.shape_cast %119 : vector<16x128xf32> to vector<1x16x128xf32>
    tpu.vector_store %arg6[%c0_96, %c0_97, %c0_98], %122 {strides = array<i32>} : memref<1x16x128xf32, #tpu.memory_space<vmem>>, vector<1x16x128xf32>,
    return
  }
  func.func @transform_0(%arg0: i32) -> (i32, i32, i32) {
    %c0_i32 = arith.constant 0 : i32
    %c0_i32_0 = arith.constant 0 : i32
    %c0_i32_1 = arith.constant 0 : i32
    return %arg0, %c0_i32, %c0_i32_0 : i32, i32, i32
  }
  func.func @transform_1(%arg0: i32) -> (i32, i32) {
    %c0_i32 = arith.constant 0 : i32
    %c0_i32_0 = arith.constant 0 : i32
    %c0_i32_1 = arith.constant 0 : i32
    return %c0_i32, %c0_i32_0 : i32, i32
  }
  func.func @transform_2(%arg0: i32) -> (i32, i32) {
    %c0_i32 = arith.constant 0 : i32
    %c0_i32_0 = arith.constant 0 : i32
    %c0_i32_1 = arith.constant 0 : i32
    return %c0_i32, %c0_i32_0 : i32, i32
  }
  func.func @transform_3(%arg0: i32) -> (i32, i32) {
    %c0_i32 = arith.constant 0 : i32
    %c0_i32_0 = arith.constant 0 : i32
    %c0_i32_1 = arith.constant 0 : i32
    return %c0_i32, %c0_i32_0 : i32, i32
  }
  func.func @transform_4(%arg0: i32) -> (i32, i32) {
    %c0_i32 = arith.constant 0 : i32
    %c0_i32_0 = arith.constant 0 : i32
    %c0_i32_1 = arith.constant 0 : i32
    return %c0_i32, %c0_i32_0 : i32, i32
  }
  func.func @transform_5(%arg0: i32) -> (i32, i32, i32) {
    %c0_i32 = arith.constant 0 : i32
    %c0_i32_0 = arith.constant 0 : i32
    %c0_i32_1 = arith.constant 0 : i32
    return %arg0, %c0_i32, %c0_i32_0 : i32, i32, i32
  }
}

</mosaic_0001>

<llo_original>
// kernel: multi_channel_encoder.4
$region0: #{multi_channel_encoder.4}
  #allocation0 [shape = 'u32[]', space=smem, size = 0x4, offset = 0x4, fixed_abs, tag = 'smem constant byte address 0x4 - core index']
  #allocation1 [shape = 'u32[144,128]{1,0:T(1,128)}', space=vmem, size = 0x12000, scoped, tag = 'internal scratch']
  #allocation2 [shape = 'bf16[96,32]{1,0:T(16,128)(2,1)}', space=vmem, size = 0x6000, scoped, tag = 'scratch operand']
  #allocation3 [shape = 'bf16[96,64]{1,0:T(16,128)(2,1)}', space=vmem, size = 0x6000, scoped, tag = 'scratch operand']
  #allocation4 [shape = 'bf16[64,288]{1,0:T(16,128)(2,1)}', space=vmem, size = 0xc000, scoped, tag = 'scratch operand']
  #allocation5 [shape = 'bf16[64,576]{1,0:T(16,128)(2,1)}', space=vmem, size = 0x14000, scoped, tag = 'scratch operand']
  %s0 = inlined_call_operand.vmem [shape: bf16[2,64,32], index: 0, kind: input, shape index: {}]
  %s1 = inlined_call_operand.vmem [shape: bf16[288,64], index: 1, kind: input, shape index: {}]
  %s2 = inlined_call_operand.vmem [shape: f32[1,64], index: 2, kind: input, shape index: {}]
  %s3 = inlined_call_operand.vmem [shape: bf16[576,64], index: 3, kind: input, shape index: {}]
  %s4 = inlined_call_operand.vmem [shape: f32[1,64], index: 4, kind: input, shape index: {}]
  %s5 = inlined_call_operand.vmem [shape: f32[2,64,64], index: 5, kind: output, shape index: {}]
  %s6 = sld [smem:[#allocation0]]
  $region53: #{multi_channel_encoder.4} parent=0
    _
  %s8 = ssub.s32 1, %s6
  %s9 = scalar_select 0, %s8, %s6
  loop: start=0, step=1, limit=4
  $region2: #{multi_channel_encoder.4} parent=0 // loop_pre_header
    _
  $region3: #{multi_channel_encoder.4} parent=0 // loop_header
    %s11 = sphi 0, %s15
    %p12 = scmp.ge.s32.totalorder %s11, 4
    %s21 = sphi 0, %s23
    %s24 = sphi 0, %s21
    %s25 = sphi 0, %s24
    %s41 = sphi 0, %s25
    %s45 = sphi 0, %s45
    %s47 = sphi 0, %s45
    %s48 = sphi 0, %s47
    %s62 = sphi 0, %s48
    %s66 = sphi 0, %s66
    %s68 = sphi 0, %s66
    %s69 = sphi 0, %s68
    %s83 = sphi 0, %s69
    %s87 = sphi 0, %s87
    %s89 = sphi 0, %s87
    %s90 = sphi 0, %s89
    %s104 = sphi 0, %s90
    %s108 = sphi 0, %s108
    %s110 = sphi 0, %s108
    %s111 = sphi 0, %s110
    %s125 = sphi 0, %s111
    %s131 = sphi 0, %s133
    %s134 = sphi 0, %s131
    %s135 = sphi 0, %s134
    %s151 = sphi 0, %s135
  $region4: #{multi_channel_encoder.4} parent=0 // loop_header_branch
    %14 = sbr.rel (%p12) target = $region8
  $region5: #{multi_channel_encoder.4} parent=0 // loop_body
    %s16 = ssub.s32 %s11, 1
    %s17 = ssub.s32 %s11, 2
    %s18 = sadd.s32 %s11, 1
    %s19 = ssub.s32 %s11, %s18
    %p20 = scmp.eq.s32.totalorder %s19, 0
    %s22 = sadd.s32 %s21, 1
    %s23 = scalar_select %p20, %s21, %s22
    %p26 = pneg %p20
    %p27 = scmp.eq.s32.totalorder %s11, 1
    %p28 = por %p26, %p27
    %p29 = scmp.ne.s32.totalorder %s21, %s24
    %p30 = scmp.eq.s32.totalorder %s11, 0
    %p31 = por %p29, %p30
    %p32 = scmp.ne.s32.totalorder %s21, %s24
    %p33 = scmp.eq.s32.totalorder %s16, 1
    %p34 = por %p32, %p33
    %p35 = scmp.ne.s32.totalorder %s24, %s25
    %p36 = scmp.eq.s32.totalorder %s16, 0
    %p37 = por %p35, %p36
    %p38 = scmp.ne.s32.totalorder %s24, %s25
    %p39 = scmp.eq.s32.totalorder %s17, 1
    %p40 = por %p38, %p39
    %p42 = scmp.ne.s32.totalorder %s25, %s41
    %p43 = scmp.eq.s32.totalorder %s17, 0
    %p44 = por %p42, %p43
    %s46 = sadd.s32 %s45, 1
    %p49 = scmp.eq.s32.totalorder %s11, 1
    %p50 = scmp.ne.s32.totalorder %s45, %s47
    %p51 = scmp.eq.s32.totalorder %s11, 0
    %p52 = por %p50, %p51
    %p53 = scmp.ne.s32.totalorder %s45, %s47
    %p54 = scmp.eq.s32.totalorder %s16, 1
    %p55 = por %p53, %p54
    %p56 = scmp.ne.s32.totalorder %s47, %s48
    %p57 = scmp.eq.s32.totalorder %s16, 0
    %p58 = por %p56, %p57
    %p59 = scmp.ne.s32.totalorder %s47, %s48
    %p60 = scmp.eq.s32.totalorder %s17, 1
    %p61 = por %p59, %p60
    %p63 = scmp.ne.s32.totalorder %s48, %s62
    %p64 = scmp.eq.s32.totalorder %s17, 0
    %p65 = por %p63, %p64
    %s67 = sadd.s32 %s66, 1
    %p70 = scmp.eq.s32.totalorder %s11, 1
    %p71 = scmp.ne.s32.totalorder %s66, %s68
    %p72 = scmp.eq.s32.totalorder %s11, 0
    %p73 = por %p71, %p72
    %p74 = scmp.ne.s32.totalorder %s66, %s68
    %p75 = scmp.eq.s32.totalorder %s16, 1
    %p76 = por %p74, %p75
    %p77 = scmp.ne.s32.totalorder %s68, %s69
    %p78 = scmp.eq.s32.totalorder %s16, 0
    %p79 = por %p77, %p78
    %p80 = scmp.ne.s32.totalorder %s68, %s69
    %p81 = scmp.eq.s32.totalorder %s17, 1
    %p82 = por %p80, %p81
    %p84 = scmp.ne.s32.totalorder %s69, %s83
    %p85 = scmp.eq.s32.totalorder %s17, 0
    %p86 = por %p84, %p85
    %s88 = sadd.s32 %s87, 1
    %p91 = scmp.eq.s32.totalorder %s11, 1
    %p92 = scmp.ne.s32.totalorder %s87, %s89
    %p93 = scmp.eq.s32.totalorder %s11, 0
    %p94 = por %p92, %p93
    %p95 = scmp.ne.s32.totalorder %s87, %s89
    %p96 = scmp.eq.s32.totalorder %s16, 1
    %p97 = por %p95, %p96
    %p98 = scmp.ne.s32.totalorder %s89, %s90
    %p99 = scmp.eq.s32.totalorder %s16, 0
    %p100 = por %p98, %p99
    %p101 = scmp.ne.s32.totalorder %s89, %s90
    %p102 = scmp.eq.s32.totalorder %s17, 1
    %p103 = por %p101, %p102
    %p105 = scmp.ne.s32.totalorder %s90, %s104
    %p106 = scmp.eq.s32.totalorder %s17, 0
    %p107 = por %p105, %p106
    %s109 = sadd.s32 %s108, 1
    %p112 = scmp.eq.s32.totalorder %s11, 1
    %p113 = scmp.ne.s32.totalorder %s108, %s110
    %p114 = scmp.eq.s32.totalorder %s11, 0
    %p115 = por %p113, %p114
    %p116 = scmp.ne.s32.totalorder %s108, %s110
    %p117 = scmp.eq.s32.totalorder %s16, 1
    %p118 = por %p116, %p117
    %p119 = scmp.ne.s32.totalorder %s110, %s111
    %p120 = scmp.eq.s32.totalorder %s16, 0
    %p121 = por %p119, %p120
    %p122 = scmp.ne.s32.totalorder %s110, %s111
    %p123 = scmp.eq.s32.totalorder %s17, 1
    %p124 = por %p122, %p123
    %p126 = scmp.ne.s32.totalorder %s111, %s125
    %p127 = scmp.eq.s32.totalorder %s17, 0
    %p128 = por %p126, %p127
    %s129 = ssub.s32 %s11, %s18
    %p130 = scmp.eq.s32.totalorder %s129, 0
    %s132 = sadd.s32 %s131, 1
    %s133 = scalar_select %p130, %s131, %s132
    %p136 = pneg %p130
    %p137 = scmp.eq.s32.totalorder %s11, 1
    %p138 = por %p136, %p137
    %p139 = scmp.ne.s32.totalorder %s131, %s134
    %p140 = scmp.eq.s32.totalorder %s11, 0
    %p141 = por %p139, %p140
    %p142 = scmp.ne.s32.totalorder %s131, %s134
    %p143 = scmp.eq.s32.totalorder %s16, 1
    %p144 = por %p142, %p143
    %p145 = scmp.ne.s32.totalorder %s134, %s135
    %p146 = scmp.eq.s32.totalorder %s16, 0
    %p147 = por %p145, %p146
    %p148 = scmp.ne.s32.totalorder %s134, %s135
    %p149 = scmp.eq.s32.totalorder %s17, 1
    %p150 = por %p148, %p149
    %p152 = scmp.ne.s32.totalorder %s135, %s151
    %p153 = scmp.eq.s32.totalorder %s17, 0
    %p154 = por %p152, %p153
    %p155 = scmp.le.s32.totalorder 1, %s11
    %p156 = scmp.lt.s32.totalorder %s11, 3
    %p157 = pnand %p155, %p156
    %p158 = pneg %p157
    // Predicated region
    $region9: #{multi_channel_encoder.4} parent=5 // pred_check
      _
    $region10: #{multi_channel_encoder.4} parent=5 // pred_check_branch
      %160 = sbr.rel (%p157) target = $region12
    $region11: #{multi_channel_encoder.4} parent=5 // pred_region
      %s161 = ssub.s32 %s11, 1
      // Predicated region
      $region13: #{multi_channel_encoder.4} parent=11 // pred_check
        %p162 = pneg %p58
      $region14: #{multi_channel_encoder.4} parent=11 // pred_check_branch
        %164 = sbr.rel (%p162) target = $region16
      $region15: #{multi_channel_encoder.4} parent=11 // pred_region
        _
      $region16: #{multi_channel_encoder.4} parent=11 // pred_fallthru
        _
      // Predicated region
      $region17: #{multi_channel_encoder.4} parent=11 // pred_check
        %p165 = pneg %p79
      $region18: #{multi_channel_encoder.4} parent=11 // pred_check_branch
        %167 = sbr.rel (%p165) target = $region20
      $region19: #{multi_channel_encoder.4} parent=11 // pred_region
        _
      $region20: #{multi_channel_encoder.4} parent=11 // pred_fallthru
        _
      // Predicated region
      $region21: #{multi_channel_encoder.4} parent=11 // pred_check
        %p168 = pneg %p100
      $region22: #{multi_channel_encoder.4} parent=11 // pred_check_branch
        %170 = sbr.rel (%p168) target = $region24
      $region23: #{multi_channel_encoder.4} parent=11 // pred_region
        _
      $region24: #{multi_channel_encoder.4} parent=11 // pred_fallthru
        _
      // Predicated region
      $region25: #{multi_channel_encoder.4} parent=11 // pred_check
        %p171 = pneg %p121
      $region26: #{multi_channel_encoder.4} parent=11 // pred_check_branch
        %173 = sbr.rel (%p171) target = $region28
      $region27: #{multi_channel_encoder.4} parent=11 // pred_region
        _
      $region28: #{multi_channel_encoder.4} parent=11 // pred_fallthru
        _
    $region12: #{multi_channel_encoder.4} parent=5 // pred_fallthru
      _
    %p174 = scmp.lt.s32.totalorder %s11, 2
    // Predicated region
    $region29: #{multi_channel_encoder.4} parent=5 // pred_check
      %p175 = pneg %p174
    $region30: #{multi_channel_encoder.4} parent=5 // pred_check_branch
      %177 = sbr.rel (%p175) target = $region32
    $region31: #{multi_channel_encoder.4} parent=5 // pred_region
      // Predicated region
      $region33: #{multi_channel_encoder.4} parent=31 // pred_check
        %p178 = pneg %p31
      $region34: #{multi_channel_encoder.4} parent=31 // pred_check_branch
        %180 = sbr.rel (%p178) target = $region36
      $region35: #{multi_channel_encoder.4} parent=31 // pred_region
        %p181 = scmp.lt.s32.totalorder %s11, 1
        %s182 = scalar_select %p181, %s11, 1
        %s183 = smul.addr %s182, 8
        %s184 = smul.addr %s183, 4
        %s185 = scalar_lea.vmem %s0, %s184
      $region36: #{multi_channel_encoder.4} parent=31 // pred_fallthru
        _
    $region32: #{multi_channel_encoder.4} parent=5 // pred_fallthru
      _
    %p186 = scmp.le.s32.totalorder 1, %s11
    %p187 = scmp.lt.s32.totalorder %s11, 3
    %p188 = pnand %p186, %p187
    %p189 = pneg %p188
    // Predicated region
    $region37: #{multi_channel_encoder.4} parent=5 // pred_check
      _
    $region38: #{multi_channel_encoder.4} parent=5 // pred_check_branch
      %191 = sbr.rel (%p188) target = $region40
    $region39: #{multi_channel_encoder.4} parent=5 // pred_region
      %s192 = ssub.s32 %s11, 1
      %p193 = scmp.lt.s32.totalorder %s16, 1
      %s194 = scalar_select %p193, %s16, 1
      %s195 = smul.addr %s194, 8
      %s196 = smul.addr %s195, 4
      %s197 = scalar_lea.vmem %s0, %s196
      %p198 = pneg %p37
      %p199 = pneg %p34
      %p200 = pneg %p58
      %p201 = pneg %p55
      %p202 = pneg %p79
      %p203 = pneg %p76
      %p204 = pneg %p100
      %p205 = pneg %p97
      %p206 = pneg %p121
      %p207 = pneg %p118
      %p208 = pneg %p147
      %p209 = pneg %p144
      %p210 = scmp.lt.s32.totalorder %s16, 1
      %s211 = scalar_select %p210, %s16, 1
      %s212 = smul.addr %s211, 8
      %s213 = smul.addr %s212, 8
      %s214 = scalar_lea.vmem %s5, %s213
      %p215 = scmp.lt.s32.totalorder %s16, 1
      %s216 = scalar_select %p215, %s16, 1
      %s217 = smul.addr %s216, 8
      %s218 = smul.addr %s217, 4
      %s219 = scalar_lea.vmem %s0, %s218
      %p220 = scmp.lt.s32.totalorder %s16, 1
      %s221 = scalar_select %p220, %s16, 1
      %s222 = smul.addr %s221, 8
      %s223 = smul.addr %s222, 8
      %s224 = scalar_lea.vmem %s5, %s223
      %v228 = vlaneseq
      %v229 = vshrl.u32 %v228, 7
      %v230 = vadd.s32 %v229, 8
      %v231 = vadd.s32 %v229, 16
      %v232 = vadd.s32 %v229, 24
      %v233 = vadd.s32 %v229, 32
      %v234 = vadd.s32 %v229, 40
      %v235 = vadd.s32 %v229, 48
      %v236 = vadd.s32 %v229, 56
      %v237 = vand.u32 %v229, 7
      %v238 = vand.u32 %v230, 7
      %v239 = vand.u32 %v231, 7
      %v240 = vand.u32 %v232, 7
      %v241 = vand.u32 %v233, 7
      %v242 = vand.u32 %v234, 7
      %v243 = vand.u32 %v235, 7
      %v244 = vand.u32 %v236, 7
      %vm245 = vcmp.lt.s32.totalorder %v237, 7
      %vm246 = vcmp.lt.s32.totalorder %v238, 7
      %vm247 = vcmp.lt.s32.totalorder %v239, 7
      %vm248 = vcmp.lt.s32.totalorder %v240, 7
      %vm249 = vcmp.lt.s32.totalorder %v241, 7
      %vm250 = vcmp.lt.s32.totalorder %v242, 7
      %vm251 = vcmp.lt.s32.totalorder %v243, 7
      %vm252 = vcmp.lt.s32.totalorder %v244, 7
      %vm253 = vcmp.gt.s32.totalorder %v237, 0
      %vm254 = vcmp.gt.s32.totalorder %v238, 0
      %vm255 = vcmp.gt.s32.totalorder %v239, 0
      %vm256 = vcmp.gt.s32.totalorder %v240, 0
      %vm257 = vcmp.gt.s32.totalorder %v241, 0
      %vm258 = vcmp.gt.s32.totalorder %v242, 0
      %vm259 = vcmp.gt.s32.totalorder %v243, 0
      %vm260 = vcmp.gt.s32.totalorder %v244, 0
      %vm261 = vcmask 261120
      %262 = vst.msk [vmem:[#allocation2] sm:$0xff] %vm261, 0
      %263 = vst.msk [vmem:[#allocation2 + $0x28] sm:$0xff] %vm261, 0
      %v264 = vld [vmem:[%s219] sm:$0xf]
      %v265 = vld [vmem:[%s219 + $0x4] sm:$0xf]
      %v266 = vld [vmem:[%s219 + $0x8] sm:$0xf]
      %v267 = vld [vmem:[%s219 + $0xc] sm:$0xf]
      %v268 = vld [vmem:[%s219 + $0x10] sm:$0xf]
      %v269 = vld [vmem:[%s219 + $0x14] sm:$0xf]
      %v270 = vld [vmem:[%s219 + $0x18] sm:$0xf]
      %v271 = vld [vmem:[%s219 + $0x1c] sm:$0xf]
      %v280 = vunpack.c.l.b16 %v264
      %v281 = vunpack.c.l.b16 %v265
      %v282 = vunpack.c.l.b16 %v266
      %v283 = vunpack.c.l.b16 %v267
      %v284 = vunpack.c.l.b16 %v268
      %v285 = vunpack.c.l.b16 %v269
      %v286 = vunpack.c.l.b16 %v270
      %v287 = vunpack.c.l.b16 %v271
      %v288 = vpack.c.b16 %v281, %v280
      %v289 = vpack.c.b16 %v283, %v282
      %v290 = vpack.c.b16 %v285, %v284
      %v291 = vpack.c.b16 %v287, %v286
      %296 = vst.msk [vmem:[#allocation2 + $0x8] sm:$0xff] %vm261, %v288
      %297 = vst.msk [vmem:[#allocation2 + $0x10] sm:$0xff] %vm261, %v289
      %298 = vst.msk [vmem:[#allocation2 + $0x18] sm:$0xff] %vm261, %v290
      %299 = vst.msk [vmem:[#allocation2 + $0x20] sm:$0xff] %vm261, %v291
      %v300 = vld [vmem:[#allocation2] sm:$0xf8]
      %v301 = vld [vmem:[#allocation2 + $0x8] sm:$0xff]
      %v302 = vld [vmem:[#allocation2 + $0x10] sm:$0xff]
      %v303 = vld [vmem:[#allocation2 + $0x18] sm:$0xff]
      %v304 = vld [vmem:[#allocation2 + $0x20] sm:$0xf]
      %v305 = vsel %vm253, 1, 0
      %v306 = vsel %vm254, 1, 0
      %v307 = vsel %vm255, 1, 0
      %v308 = vsel %vm256, 1, 0
      %v309 = vsel %vm257, 1, 0
      %v310 = vsel %vm258, 1, 0
      %v311 = vsel %vm259, 1, 0
      %v312 = vsel %vm260, 1, 0
      %vm313 = vcmp.eq.s32.totalorder %v305, 1
      %vm314 = vcmp.eq.s32.totalorder %v306, 1
      %vm315 = vcmp.eq.s32.totalorder %v307, 1
      %vm316 = vcmp.eq.s32.totalorder %v308, 1
      %vm317 = vcmp.eq.s32.totalorder %v309, 1
      %vm318 = vcmp.eq.s32.totalorder %v310, 1
      %vm319 = vcmp.eq.s32.totalorder %v311, 1
      %vm320 = vcmp.eq.s32.totalorder %v312, 1
      %vm321 = vmpackc.low %vm313, %vm313
      %vm322 = vmpackc.low %vm314, %vm314
      %vm323 = vmpackc.low %vm315, %vm315
      %vm324 = vmpackc.low %vm316, %vm316
      %vm325 = vmpackc.low %vm317, %vm317
      %vm326 = vmpackc.low %vm318, %vm318
      %vm327 = vmpackc.low %vm319, %vm319
      %vm328 = vmpackc.low %vm320, %vm320
      %v329 = vsel %vm321, 65537, 0
      %v330 = vsel %vm322, 65537, 0
      %v331 = vsel %vm323, 65537, 0
      %v332 = vsel %vm324, 65537, 0
      %v333 = vsel %vm325, 65537, 0
      %v334 = vsel %vm326, 65537, 0
      %v335 = vsel %vm327, 65537, 0
      %v336 = vsel %vm328, 65537, 0
      %v337 = vunpack.c.l.b16 %v329
      %v338 = vunpack.c.l.b16 %v330
      %v339 = vunpack.c.l.b16 %v331
      %v340 = vunpack.c.l.b16 %v332
      %v341 = vunpack.c.l.b16 %v333
      %v342 = vunpack.c.l.b16 %v334
      %v343 = vunpack.c.l.b16 %v335
      %v344 = vunpack.c.l.b16 %v336
      %v345 = vpack.c.b16 %v338, %v337
      %v346 = vpack.c.b16 %v340, %v339
      %v347 = vpack.c.b16 %v342, %v341
      %v348 = vpack.c.b16 %v344, %v343
      %vm349 = vsmask.f32 3328
      %v351 = vshrl.u32 %v345, 16
      %v353 = vrot.slane %v351, 4
      %v354 = vshll.u32 %v345, 16
      %v356 = vrot.slane %v354, 5
      %v357 = vor.u32 %v353, %v356
      %v359 = vshrl.u32 %v346, 16
      %v361 = vrot.slane %v359, 4
      %v362 = vshll.u32 %v346, 16
      %v364 = vrot.slane %v362, 5
      %v365 = vor.u32 %v361, %v364
      %v366 = vsel %vm349, %v357, %v365
      %v368 = vshrl.u32 %v347, 16
      %v370 = vrot.slane %v368, 4
      %v371 = vshll.u32 %v347, 16
      %v373 = vrot.slane %v371, 5
      %v374 = vor.u32 %v370, %v373
      %v375 = vsel %vm349, %v365, %v374
      %v377 = vshrl.u32 %v348, 16
      %v379 = vrot.slane %v377, 4
      %v380 = vshll.u32 %v348, 16
      %v382 = vrot.slane %v380, 5
      %v383 = vor.u32 %v379, %v382
      %v384 = vsel %vm349, %v374, %v383
      %vm385 = vcmp.ne.s16.totalorder %v357, 0
      %vm386 = vcmp.ne.s16.totalorder %v366, 0
      %vm387 = vcmp.ne.s16.totalorder %v375, 0
      %vm388 = vcmp.ne.s16.totalorder %v384, 0
      %vm389 = vcmp.ne.s16.totalorder %v383, 0
      %v390 = vsel %vm385, %v300, 0
      %v391 = vsel %vm386, %v301, 0
      %v392 = vsel %vm387, %v302, 0
      %v393 = vsel %vm388, %v303, 0
      %v394 = vsel %vm389, %v304, 0
      %vm395 = vsmask.f32 4352
      %v397 = vshrl.u32 %v390, 16
      %v399 = vrot.slane %v397, 3
      %v400 = vshll.u32 %v390, 16
      %v402 = vrot.slane %v400, 4
      %v403 = vor.u32 %v399, %v402
      %v405 = vshrl.u32 %v391, 16
      %v407 = vrot.slane %v405, 3
      %v408 = vshll.u32 %v391, 16
      %v410 = vrot.slane %v408, 4
      %v411 = vor.u32 %v407, %v410
      %v412 = vsel %vm395, %v403, %v411
      %v414 = vshrl.u32 %v392, 16
      %v416 = vrot.slane %v414, 3
      %v417 = vshll.u32 %v392, 16
      %v419 = vrot.slane %v417, 4
      %v420 = vor.u32 %v416, %v419
      %v421 = vsel %vm395, %v411, %v420
      %v423 = vshrl.u32 %v393, 16
      %v425 = vrot.slane %v423, 3
      %v426 = vshll.u32 %v393, 16
      %v428 = vrot.slane %v426, 4
      %v429 = vor.u32 %v425, %v428
      %v430 = vsel %vm395, %v420, %v429
      %v432 = vshrl.u32 %v394, 16
      %v434 = vrot.slane %v432, 3
      %v435 = vshll.u32 %v394, 16
      %v437 = vrot.slane %v435, 4
      %v438 = vor.u32 %v434, %v437
      %v439 = vsel %vm395, %v429, %v438
      %444 = vst.msk [vmem:[#allocation4] sm:$0xff] %vm261, %v412
      %445 = vst.msk [vmem:[#allocation4 + $0x18] sm:$0xff] %vm261, %v421
      %446 = vst.msk [vmem:[#allocation4 + $0x30] sm:$0xff] %vm261, %v430
      %447 = vst.msk [vmem:[#allocation4 + $0x48] sm:$0xff] %vm261, %v439
      %v448 = vld [vmem:[#allocation2] sm:$0xf0]
      %v449 = vld [vmem:[#allocation2 + $0x8] sm:$0xff]
      %v450 = vld [vmem:[#allocation2 + $0x10] sm:$0xff]
      %v451 = vld [vmem:[#allocation2 + $0x18] sm:$0xff]
      %v452 = vld [vmem:[#allocation2 + $0x20] sm:$0xf]
      %vm458 = vcmask 1043456
      %v459 = vrot.slane %v448, 4
      %v460 = vrot.slane %v449, 4
      %v461 = vsel %vm458, %v459, %v460
      %v462 = vrot.slane %v450, 4
      %v463 = vsel %vm458, %v460, %v462
      %v464 = vrot.slane %v451, 4
      %v465 = vsel %vm458, %v462, %v464
      %v466 = vrot.slane %v452, 4
      %v467 = vsel %vm458, %v464, %v466
      %468 = vrot.lane.b32.xlu0 %v461, 32
      %v469 = vpop.permute.xlu0 %468
      %470 = vrot.lane.b32.xlu0 %v463, 32
      %v471 = vpop.permute.xlu0 %470
      %472 = vrot.lane.b32.xlu0 %v465, 32
      %v473 = vpop.permute.xlu0 %472
      %474 = vrot.lane.b32.xlu0 %v467, 32
      %v475 = vpop.permute.xlu0 %474
      %vm480 = vcmask 523520
      %481 = vst.msk [vmem:[#allocation4] sm:$0xff] %vm480, %v469
      %482 = vst.msk [vmem:[#allocation4 + $0x18] sm:$0xff] %vm480, %v471
      %483 = vst.msk [vmem:[#allocation4 + $0x30] sm:$0xff] %vm480, %v473
      %484 = vst.msk [vmem:[#allocation4 + $0x48] sm:$0xff] %vm480, %v475
      %v485 = vld [vmem:[#allocation2] sm:$0xf0]
      %v486 = vld [vmem:[#allocation2 + $0x8] sm:$0xff]
      %v487 = vld [vmem:[#allocation2 + $0x10] sm:$0xff]
      %v488 = vld [vmem:[#allocation2 + $0x18] sm:$0xff]
      %v489 = vld [vmem:[#allocation2 + $0x20] sm:$0x1f]
      %v490 = vsel %vm245, 1, 0
      %v491 = vsel %vm246, 1, 0
      %v492 = vsel %vm247, 1, 0
      %v493 = vsel %vm248, 1, 0
      %v494 = vsel %vm249, 1, 0
      %v495 = vsel %vm250, 1, 0
      %v496 = vsel %vm251, 1, 0
      %v497 = vsel %vm252, 1, 0
      %vm498 = vcmp.eq.s32.totalorder %v490, 1
      %vm499 = vcmp.eq.s32.totalorder %v491, 1
      %vm500 = vcmp.eq.s32.totalorder %v492, 1
      %vm501 = vcmp.eq.s32.totalorder %v493, 1
      %vm502 = vcmp.eq.s32.totalorder %v494, 1
      %vm503 = vcmp.eq.s32.totalorder %v495, 1
      %vm504 = vcmp.eq.s32.totalorder %v496, 1
      %vm505 = vcmp.eq.s32.totalorder %v497, 1
      %vm506 = vmpackc.low %vm498, %vm498
      %vm507 = vmpackc.low %vm499, %vm499
      %vm508 = vmpackc.low %vm500, %vm500
      %vm509 = vmpackc.low %vm501, %vm501
      %vm510 = vmpackc.low %vm502, %vm502
      %vm511 = vmpackc.low %vm503, %vm503
      %vm512 = vmpackc.low %vm504, %vm504
      %vm513 = vmpackc.low %vm505, %vm505
      %v514 = vsel %vm506, 65537, 0
      %v515 = vsel %vm507, 65537, 0
      %v516 = vsel %vm508, 65537, 0
      %v517 = vsel %vm509, 65537, 0
      %v518 = vsel %vm510, 65537, 0
      %v519 = vsel %vm511, 65537, 0
      %v520 = vsel %vm512, 65537, 0
      %v521 = vsel %vm513, 65537, 0
      %v522 = vunpack.c.l.b16 %v514
      %v523 = vunpack.c.l.b16 %v515
      %v524 = vunpack.c.l.b16 %v516
      %v525 = vunpack.c.l.b16 %v517
      %v526 = vunpack.c.l.b16 %v518
      %v527 = vunpack.c.l.b16 %v519
      %v528 = vunpack.c.l.b16 %v520
      %v529 = vunpack.c.l.b16 %v521
      %v530 = vpack.c.b16 %v523, %v522
      %v531 = vpack.c.b16 %v525, %v524
      %v532 = vpack.c.b16 %v527, %v526
      %v533 = vpack.c.b16 %v529, %v528
      %v535 = vshrl.u32 %v530, 16
      %v537 = vrot.slane %v535, 3
      %v538 = vshll.u32 %v530, 16
      %v540 = vrot.slane %v538, 4
      %v541 = vor.u32 %v537, %v540
      %v543 = vshrl.u32 %v531, 16
      %v545 = vrot.slane %v543, 3
      %v546 = vshll.u32 %v531, 16
      %v548 = vrot.slane %v546, 4
      %v549 = vor.u32 %v545, %v548
      %v550 = vsel %vm395, %v541, %v549
      %v552 = vshrl.u32 %v532, 16
      %v554 = vrot.slane %v552, 3
      %v555 = vshll.u32 %v532, 16
      %v557 = vrot.slane %v555, 4
      %v558 = vor.u32 %v554, %v557
      %v559 = vsel %vm395, %v549, %v558
      %v561 = vshrl.u32 %v533, 16
      %v563 = vrot.slane %v561, 3
      %v564 = vshll.u32 %v533, 16
      %v566 = vrot.slane %v564, 4
      %v567 = vor.u32 %v563, %v566
      %v568 = vsel %vm395, %v558, %v567
      %vm569 = vcmp.ne.s16.totalorder %v541, 0
      %vm570 = vcmp.ne.s16.totalorder %v550, 0
      %vm571 = vcmp.ne.s16.totalorder %v559, 0
      %vm572 = vcmp.ne.s16.totalorder %v568, 0
      %vm573 = vcmp.ne.s16.totalorder %v567, 0
      %v574 = vsel %vm569, %v485, 0
      %v575 = vsel %vm570, %v486, 0
      %v576 = vsel %vm571, %v487, 0
      %v577 = vsel %vm572, %v488, 0
      %v578 = vsel %vm573, %v489, 0
      %v580 = vshrl.u32 %v574, 16
      %v582 = vrot.slane %v580, 4
      %v583 = vshll.u32 %v574, 16
      %v585 = vrot.slane %v583, 5
      %v586 = vor.u32 %v582, %v585
      %v588 = vshrl.u32 %v575, 16
      %v590 = vrot.slane %v588, 4
      %v591 = vshll.u32 %v575, 16
      %v593 = vrot.slane %v591, 5
      %v594 = vor.u32 %v590, %v593
      %v595 = vsel %vm349, %v586, %v594
      %v597 = vshrl.u32 %v576, 16
      %v599 = vrot.slane %v597, 4
      %v600 = vshll.u32 %v576, 16
      %v602 = vrot.slane %v600, 5
      %v603 = vor.u32 %v599, %v602
      %v604 = vsel %vm349, %v594, %v603
      %v606 = vshrl.u32 %v577, 16
      %v608 = vrot.slane %v606, 4
      %v609 = vshll.u32 %v577, 16
      %v611 = vrot.slane %v609, 5
      %v612 = vor.u32 %v608, %v611
      %v613 = vsel %vm349, %v603, %v612
      %v615 = vshrl.u32 %v578, 16
      %v617 = vrot.slane %v615, 4
      %v618 = vshll.u32 %v578, 16
      %v620 = vrot.slane %v618, 5
      %v621 = vor.u32 %v617, %v620
      %v622 = vsel %vm349, %v612, %v621
      %623 = vrot.lane.b32.xlu0 %v595, 64
      %v624 = vpop.permute.xlu0 %623
      %625 = vrot.lane.b32.xlu0 %v604, 64
      %v626 = vpop.permute.xlu0 %625
      %627 = vrot.lane.b32.xlu0 %v613, 64
      %v628 = vpop.permute.xlu0 %627
      %629 = vrot.lane.b32.xlu0 %v622, 64
      %v630 = vpop.permute.xlu0 %629
      %vm635 = vcmask 785920
      %636 = vst.msk [vmem:[#allocation4] sm:$0xff] %vm635, %v624
      %637 = vst.msk [vmem:[#allocation4 + $0x18] sm:$0xff] %vm635, %v626
      %638 = vst.msk [vmem:[#allocation4 + $0x30] sm:$0xff] %vm635, %v628
      %639 = vst.msk [vmem:[#allocation4 + $0x48] sm:$0xff] %vm635, %v630
      %v640 = vld [vmem:[#allocation2] sm:$0x80]
      %v641 = vld [vmem:[#allocation2 + $0x8] sm:$0xff]
      %v642 = vld [vmem:[#allocation2 + $0x10] sm:$0xff]
      %v643 = vld [vmem:[#allocation2 + $0x18] sm:$0xff]
      %v644 = vld [vmem:[#allocation2 + $0x20] sm:$0xff]
      %vm645 = vsmask.f32 7424
      %v646 = vrot.slane %v354, 1
      %v647 = vor.u32 %v351, %v646
      %v648 = vrot.slane %v362, 1
      %v649 = vsel %vm645, %v647, %v648
      %v650 = vor.u32 %v359, %v648
      %v651 = vrot.slane %v371, 1
      %v652 = vsel %vm645, %v650, %v651
      %v653 = vor.u32 %v368, %v651
      %v654 = vrot.slane %v380, 1
      %v655 = vsel %vm645, %v653, %v654
      %v656 = vor.u32 %v377, %v654
      %vm657 = vcmp.ne.s16.totalorder %v646, 0
      %vm658 = vcmp.ne.s16.totalorder %v649, 0
      %vm659 = vcmp.ne.s16.totalorder %v652, 0
      %vm660 = vcmp.ne.s16.totalorder %v655, 0
      %vm661 = vcmp.ne.s16.totalorder %v656, 0
      %v662 = vsel %vm657, %v640, 0
      %v663 = vsel %vm658, %v641, 0
      %v664 = vsel %vm659, %v642, 0
      %v665 = vsel %vm660, %v643, 0
      %v666 = vsel %vm661, %v644, 0
      %vm667 = vsmask.f32 256
      %v669 = vshrl.u32 %v662, 16
      %v671 = vrot.slane %v669, 7
      %v673 = vshrl.u32 %v663, 16
      %v675 = vrot.slane %v673, 7
      %v676 = vshll.u32 %v663, 16
      %v678 = vor.u32 %v675, %v676
      %v679 = vsel %vm667, %v671, %v678
      %v681 = vshrl.u32 %v664, 16
      %v683 = vrot.slane %v681, 7
      %v684 = vshll.u32 %v664, 16
      %v686 = vor.u32 %v683, %v684
      %v687 = vsel %vm667, %v675, %v686
      %v689 = vshrl.u32 %v665, 16
      %v691 = vrot.slane %v689, 7
      %v692 = vshll.u32 %v665, 16
      %v694 = vor.u32 %v691, %v692
      %v695 = vsel %vm667, %v683, %v694
      %v697 = vshrl.u32 %v666, 16
      %v699 = vrot.slane %v697, 7
      %v700 = vshll.u32 %v666, 16
      %v702 = vor.u32 %v699, %v700
      %v703 = vsel %vm667, %v691, %v702
      %704 = vrot.lane.b32.xlu0 %v679, 96
      %v705 = vpop.permute.xlu0 %704
      %706 = vrot.lane.b32.xlu0 %v687, 96
      %v707 = vpop.permute.xlu0 %706
      %708 = vrot.lane.b32.xlu0 %v695, 96
      %v709 = vpop.permute.xlu0 %708
      %710 = vrot.lane.b32.xlu0 %v703, 96
      %v711 = vpop.permute.xlu0 %710
      %vm716 = vcmask 1048320
      %717 = vst.msk [vmem:[#allocation4] sm:$0xff] %vm716, %v705
      %718 = vst.msk [vmem:[#allocation4 + $0x18] sm:$0xff] %vm716, %v707
      %719 = vst.msk [vmem:[#allocation4 + $0x30] sm:$0xff] %vm716, %v709
      %720 = vst.msk [vmem:[#allocation4 + $0x48] sm:$0xff] %vm716, %v711
      %v721 = vld [vmem:[#allocation2 + $0x8] sm:$0xff]
      %v722 = vld [vmem:[#allocation2 + $0x10] sm:$0xff]
      %v723 = vld [vmem:[#allocation2 + $0x18] sm:$0xff]
      %v724 = vld [vmem:[#allocation2 + $0x20] sm:$0xff]
      %725 = vst.msk [vmem:[#allocation4 + $0x8] sm:$0xff] %vm261, %v721
      %726 = vst.msk [vmem:[#allocation4 + $0x20] sm:$0xff] %vm261, %v722
      %727 = vst.msk [vmem:[#allocation4 + $0x38] sm:$0xff] %vm261, %v723
      %728 = vst.msk [vmem:[#allocation4 + $0x50] sm:$0xff] %vm261, %v724
      %v729 = vld [vmem:[#allocation2 + $0x8] sm:$0xff]
      %v730 = vld [vmem:[#allocation2 + $0x10] sm:$0xff]
      %v731 = vld [vmem:[#allocation2 + $0x18] sm:$0xff]
      %v732 = vld [vmem:[#allocation2 + $0x20] sm:$0xff]
      %v733 = vld [vmem:[#allocation2 + $0x28] sm:$0x1]
      %v734 = vrot.slane %v535, 7
      %v735 = vor.u32 %v734, %v538
      %v736 = vrot.slane %v543, 7
      %v737 = vor.u32 %v736, %v546
      %v738 = vsel %vm667, %v734, %v737
      %v739 = vrot.slane %v552, 7
      %v740 = vor.u32 %v739, %v555
      %v741 = vsel %vm667, %v736, %v740
      %v742 = vrot.slane %v561, 7
      %v743 = vor.u32 %v742, %v564
      %v744 = vsel %vm667, %v739, %v743
      %vm745 = vcmp.ne.s16.totalorder %v735, 0
      %vm746 = vcmp.ne.s16.totalorder %v738, 0
      %vm747 = vcmp.ne.s16.totalorder %v741, 0
      %vm748 = vcmp.ne.s16.totalorder %v744, 0
      %vm749 = vcmp.ne.s16.totalorder %v742, 0
      %v750 = vsel %vm745, %v729, 0
      %v751 = vsel %vm746, %v730, 0
      %v752 = vsel %vm747, %v731, 0
      %v753 = vsel %vm748, %v732, 0
      %v754 = vsel %vm749, %v733, 0
      %v756 = vshrl.u32 %v750, 16
      %v758 = vshll.u32 %v750, 16
      %v760 = vrot.slane %v758, 1
      %v761 = vor.u32 %v756, %v760
      %v763 = vshll.u32 %v751, 16
      %v765 = vrot.slane %v763, 1
      %v766 = vsel %vm645, %v761, %v765
      %v767 = vshrl.u32 %v751, 16
      %v769 = vor.u32 %v767, %v765
      %v771 = vshll.u32 %v752, 16
      %v773 = vrot.slane %v771, 1
      %v774 = vsel %vm645, %v769, %v773
      %v775 = vshrl.u32 %v752, 16
      %v777 = vor.u32 %v775, %v773
      %v779 = vshll.u32 %v753, 16
      %v781 = vrot.slane %v779, 1
      %v782 = vsel %vm645, %v777, %v781
      %v783 = vshrl.u32 %v753, 16
      %v785 = vor.u32 %v783, %v781
      %v787 = vshll.u32 %v754, 16
      %v789 = vrot.slane %v787, 1
      %v790 = vsel %vm645, %v785, %v789
      %791 = vrot.lane.b32.xlu0 %v766, 32
      %v792 = vpop.permute.xlu0 %791
      %793 = vrot.lane.b32.xlu0 %v774, 32
      %v794 = vpop.permute.xlu0 %793
      %795 = vrot.lane.b32.xlu0 %v782, 32
      %v796 = vpop.permute.xlu0 %795
      %797 = vrot.lane.b32.xlu0 %v790, 32
      %v798 = vpop.permute.xlu0 %797
      %803 = vst.msk [vmem:[#allocation4 + $0x8] sm:$0xff] %vm480, %v792
      %804 = vst.msk [vmem:[#allocation4 + $0x20] sm:$0xff] %vm480, %v794
      %805 = vst.msk [vmem:[#allocation4 + $0x38] sm:$0xff] %vm480, %v796
      %806 = vst.msk [vmem:[#allocation4 + $0x50] sm:$0xff] %vm480, %v798
      %v807 = vld [vmem:[#allocation2 + $0x8] sm:$0xf8]
      %v808 = vld [vmem:[#allocation2 + $0x10] sm:$0xff]
      %v809 = vld [vmem:[#allocation2 + $0x18] sm:$0xff]
      %v810 = vld [vmem:[#allocation2 + $0x20] sm:$0xff]
      %v811 = vld [vmem:[#allocation2 + $0x28] sm:$0xf]
      %v812 = vsel %vm385, %v807, 0
      %v813 = vsel %vm386, %v808, 0
      %v814 = vsel %vm387, %v809, 0
      %v815 = vsel %vm388, %v810, 0
      %v816 = vsel %vm389, %v811, 0
      %v818 = vshrl.u32 %v812, 16
      %v820 = vrot.slane %v818, 3
      %v821 = vshll.u32 %v812, 16
      %v823 = vrot.slane %v821, 4
      %v824 = vor.u32 %v820, %v823
      %v826 = vshrl.u32 %v813, 16
      %v828 = vrot.slane %v826, 3
      %v829 = vshll.u32 %v813, 16
      %v831 = vrot.slane %v829, 4
      %v832 = vor.u32 %v828, %v831
      %v833 = vsel %vm395, %v824, %v832
      %v835 = vshrl.u32 %v814, 16
      %v837 = vrot.slane %v835, 3
      %v838 = vshll.u32 %v814, 16
      %v840 = vrot.slane %v838, 4
      %v841 = vor.u32 %v837, %v840
      %v842 = vsel %vm395, %v832, %v841
      %v844 = vshrl.u32 %v815, 16
      %v846 = vrot.slane %v844, 3
      %v847 = vshll.u32 %v815, 16
      %v849 = vrot.slane %v847, 4
      %v850 = vor.u32 %v846, %v849
      %v851 = vsel %vm395, %v841, %v850
      %v853 = vshrl.u32 %v816, 16
      %v855 = vrot.slane %v853, 3
      %v856 = vshll.u32 %v816, 16
      %v858 = vrot.slane %v856, 4
      %v859 = vor.u32 %v855, %v858
      %v860 = vsel %vm395, %v850, %v859
      %861 = vrot.lane.b32.xlu0 %v833, 64
      %v862 = vpop.permute.xlu0 %861
      %863 = vrot.lane.b32.xlu0 %v842, 64
      %v864 = vpop.permute.xlu0 %863
      %865 = vrot.lane.b32.xlu0 %v851, 64
      %v866 = vpop.permute.xlu0 %865
      %867 = vrot.lane.b32.xlu0 %v860, 64
      %v868 = vpop.permute.xlu0 %867
      %873 = vst.msk [vmem:[#allocation4 + $0x8] sm:$0xff] %vm635, %v862
      %874 = vst.msk [vmem:[#allocation4 + $0x20] sm:$0xff] %vm635, %v864
      %875 = vst.msk [vmem:[#allocation4 + $0x38] sm:$0xff] %vm635, %v866
      %876 = vst.msk [vmem:[#allocation4 + $0x50] sm:$0xff] %vm635, %v868
      %v877 = vld [vmem:[#allocation2 + $0x8] sm:$0xf0]
      %v878 = vld [vmem:[#allocation2 + $0x10] sm:$0xff]
      %v879 = vld [vmem:[#allocation2 + $0x18] sm:$0xff]
      %v880 = vld [vmem:[#allocation2 + $0x20] sm:$0xff]
      %v881 = vld [vmem:[#allocation2 + $0x28] sm:$0xf]
      %v887 = vrot.slane %v877, 4
      %v888 = vrot.slane %v878, 4
      %v889 = vsel %vm458, %v887, %v888
      %v890 = vrot.slane %v879, 4
      %v891 = vsel %vm458, %v888, %v890
      %v892 = vrot.slane %v880, 4
      %v893 = vsel %vm458, %v890, %v892
      %v894 = vrot.slane %v881, 4
      %v895 = vsel %vm458, %v892, %v894
      %896 = vrot.lane.b32.xlu0 %v889, 96
      %v897 = vpop.permute.xlu0 %896
      %898 = vrot.lane.b32.xlu0 %v891, 96
      %v899 = vpop.permute.xlu0 %898
      %900 = vrot.lane.b32.xlu0 %v893, 96
      %v901 = vpop.permute.xlu0 %900
      %902 = vrot.lane.b32.xlu0 %v895, 96
      %v903 = vpop.permute.xlu0 %902
      %908 = vst.msk [vmem:[#allocation4 + $0x8] sm:$0xff] %vm716, %v897
      %909 = vst.msk [vmem:[#allocation4 + $0x20] sm:$0xff] %vm716, %v899
      %910 = vst.msk [vmem:[#allocation4 + $0x38] sm:$0xff] %vm716, %v901
      %911 = vst.msk [vmem:[#allocation4 + $0x50] sm:$0xff] %vm716, %v903
      %v912 = vld [vmem:[#allocation2 + $0x8] sm:$0xf0]
      %v913 = vld [vmem:[#allocation2 + $0x10] sm:$0xff]
      %v914 = vld [vmem:[#allocation2 + $0x18] sm:$0xff]
      %v915 = vld [vmem:[#allocation2 + $0x20] sm:$0xff]
      %v916 = vld [vmem:[#allocation2 + $0x28] sm:$0x1f]
      %v917 = vsel %vm569, %v912, 0
      %v918 = vsel %vm570, %v913, 0
      %v919 = vsel %vm571, %v914, 0
      %v920 = vsel %vm572, %v915, 0
      %v921 = vsel %vm573, %v916, 0
      %v923 = vshrl.u32 %v917, 16
      %v925 = vrot.slane %v923, 4
      %v926 = vshll.u32 %v917, 16
      %v928 = vrot.slane %v926, 5
      %v929 = vor.u32 %v925, %v928
      %v931 = vshrl.u32 %v918, 16
      %v933 = vrot.slane %v931, 4
      %v934 = vshll.u32 %v918, 16
      %v936 = vrot.slane %v934, 5
      %v937 = vor.u32 %v933, %v936
      %v938 = vsel %vm349, %v929, %v937
      %v940 = vshrl.u32 %v919, 16
      %v942 = vrot.slane %v940, 4
      %v943 = vshll.u32 %v919, 16
      %v945 = vrot.slane %v943, 5
      %v946 = vor.u32 %v942, %v945
      %v947 = vsel %vm349, %v937, %v946
      %v949 = vshrl.u32 %v920, 16
      %v951 = vrot.slane %v949, 4
      %v952 = vshll.u32 %v920, 16
      %v954 = vrot.slane %v952, 5
      %v955 = vor.u32 %v951, %v954
      %v956 = vsel %vm349, %v946, %v955
      %v958 = vshrl.u32 %v921, 16
      %v960 = vrot.slane %v958, 4
      %v961 = vshll.u32 %v921, 16
      %v963 = vrot.slane %v961, 5
      %v964 = vor.u32 %v960, %v963
      %v965 = vsel %vm349, %v955, %v964
      %970 = vst.msk [vmem:[#allocation4 + $0x10] sm:$0xff] %vm261, %v938
      %971 = vst.msk [vmem:[#allocation4 + $0x28] sm:$0xff] %vm261, %v947
      %972 = vst.msk [vmem:[#allocation4 + $0x40] sm:$0xff] %vm261, %v956
      %973 = vst.msk [vmem:[#allocation4 + $0x58] sm:$0xff] %vm261, %v965
      %v974 = vld [vmem:[#allocation4] sm:$0xff]
      %v975 = vld [vmem:[#allocation4 + $0x8] sm:$0xff]
      %v976 = vld [vmem:[#allocation4 + $0x10] sm:$0xff]
      %v977 = vld [vmem:[#allocation4 + $0x18] sm:$0xff]
      %v978 = vld [vmem:[#allocation4 + $0x20] sm:$0xff]
      %v979 = vld [vmem:[#allocation4 + $0x28] sm:$0xff]
      %v980 = vld [vmem:[#allocation4 + $0x30] sm:$0xff]
      %v981 = vld [vmem:[#allocation4 + $0x38] sm:$0xff]
      %v982 = vld [vmem:[#allocation4 + $0x40] sm:$0xff]
      %v983 = vld [vmem:[#allocation4 + $0x48] sm:$0xff]
      %v984 = vld [vmem:[#allocation4 + $0x50] sm:$0xff]
      %v985 = vld [vmem:[#allocation4 + $0x58] sm:$0xff]
      %v986 = vld [vmem:[%s1] sm:$0xf]
      %v987 = vld [vmem:[%s1 + $0x4] sm:$0xf]
      %v988 = vld [vmem:[%s1 + $0x8] sm:$0xf]
      %v989 = vld [vmem:[%s1 + $0xc] sm:$0xf]
      %v990 = vld [vmem:[%s1 + $0x10] sm:$0xf]
      %v991 = vld [vmem:[%s1 + $0x14] sm:$0xf]
      %v992 = vld [vmem:[%s1 + $0x18] sm:$0xf]
      %v993 = vld [vmem:[%s1 + $0x1c] sm:$0xf]
      %v994 = vld [vmem:[%s1 + $0x20] sm:$0xf]
      %v995 = vld [vmem:[%s1 + $0x24] sm:$0xf]
      %v996 = vld [vmem:[%s1 + $0x28] sm:$0xf]
      %v997 = vld [vmem:[%s1 + $0x2c] sm:$0xf]
      %v998 = vld [vmem:[%s1 + $0x30] sm:$0xf]
      %v999 = vld [vmem:[%s1 + $0x34] sm:$0xf]
      %v1000 = vld [vmem:[%s1 + $0x38] sm:$0xf]
      %v1001 = vld [vmem:[%s1 + $0x3c] sm:$0xf]
      %v1002 = vld [vmem:[%s1 + $0x40] sm:$0xf]
      %v1003 = vld [vmem:[%s1 + $0x44] sm:$0xf]
      %v1004 = vld [vmem:[%s1 + $0x48] sm:$0xf]
      %v1005 = vld [vmem:[%s1 + $0x4c] sm:$0xf]
      %v1006 = vld [vmem:[%s1 + $0x50] sm:$0xf]
      %v1007 = vld [vmem:[%s1 + $0x54] sm:$0xf]
      %v1008 = vld [vmem:[%s1 + $0x58] sm:$0xf]
      %v1009 = vld [vmem:[%s1 + $0x5c] sm:$0xf]
      %v1010 = vld [vmem:[%s1 + $0x60] sm:$0xf]
      %v1011 = vld [vmem:[%s1 + $0x64] sm:$0xf]
      %v1012 = vld [vmem:[%s1 + $0x68] sm:$0xf]
      %v1013 = vld [vmem:[%s1 + $0x6c] sm:$0xf]
      %v1014 = vld [vmem:[%s1 + $0x70] sm:$0xf]
      %v1015 = vld [vmem:[%s1 + $0x74] sm:$0xf]
      %v1016 = vld [vmem:[%s1 + $0x78] sm:$0xf]
      %v1017 = vld [vmem:[%s1 + $0x7c] sm:$0xf]
      %v1018 = vld [vmem:[%s1 + $0x80] sm:$0xf]
      %v1019 = vld [vmem:[%s1 + $0x84] sm:$0xf]
      %v1020 = vld [vmem:[%s1 + $0x88] sm:$0xf]
      %v1021 = vld [vmem:[%s1 + $0x8c] sm:$0xf]
      %v1022 = vld [vmem:[%s2] sm:$0x1]
      %v1024 = vlaneseq
      %v1025 = vshrl.u32 %v1024, 7
      %v1026 = vsub.s32 0, %v1025
      %v1027 = vrot.slane %v1022, %v1026
      %v1065 = vunpack.c.l.b16 %v986
      %v1066 = vunpack.c.l.b16 %v987
      %v1067 = vunpack.c.l.b16 %v988
      %v1068 = vunpack.c.l.b16 %v989
      %v1069 = vunpack.c.l.b16 %v990
      %v1070 = vunpack.c.l.b16 %v991
      %v1071 = vunpack.c.l.b16 %v992
      %v1072 = vunpack.c.l.b16 %v993
      %v1073 = vunpack.c.l.b16 %v994
      %v1074 = vunpack.c.l.b16 %v995
      %v1075 = vunpack.c.l.b16 %v996
      %v1076 = vunpack.c.l.b16 %v997
      %v1077 = vunpack.c.l.b16 %v998
      %v1078 = vunpack.c.l.b16 %v999
      %v1079 = vunpack.c.l.b16 %v1000
      %v1080 = vunpack.c.l.b16 %v1001
      %v1081 = vunpack.c.l.b16 %v1002
      %v1082 = vunpack.c.l.b16 %v1003
      %v1083 = vunpack.c.l.b16 %v1004
      %v1084 = vunpack.c.l.b16 %v1005
      %v1085 = vunpack.c.l.b16 %v1006
      %v1086 = vunpack.c.l.b16 %v1007
      %v1087 = vunpack.c.l.b16 %v1008
      %v1088 = vunpack.c.l.b16 %v1009
      %v1089 = vunpack.c.l.b16 %v1010
      %v1090 = vunpack.c.l.b16 %v1011
      %v1091 = vunpack.c.l.b16 %v1012
      %v1092 = vunpack.c.l.b16 %v1013
      %v1093 = vunpack.c.l.b16 %v1014
      %v1094 = vunpack.c.l.b16 %v1015
      %v1095 = vunpack.c.l.b16 %v1016
      %v1096 = vunpack.c.l.b16 %v1017
      %v1097 = vunpack.c.l.b16 %v1018
      %v1098 = vunpack.c.l.b16 %v1019
      %v1099 = vunpack.c.l.b16 %v1020
      %v1100 = vunpack.c.l.b16 %v1021
      %v1101 = vpack.c.b16 %v1066, %v1065
      %v1102 = vpack.c.b16 %v1068, %v1067
      %v1103 = vpack.c.b16 %v1070, %v1069
      %v1104 = vpack.c.b16 %v1072, %v1071
      %v1105 = vpack.c.b16 %v1074, %v1073
      %v1106 = vpack.c.b16 %v1076, %v1075
      %v1107 = vpack.c.b16 %v1078, %v1077
      %v1108 = vpack.c.b16 %v1080, %v1079
      %v1109 = vpack.c.b16 %v1082, %v1081
      %v1110 = vpack.c.b16 %v1084, %v1083
      %v1111 = vpack.c.b16 %v1086, %v1085
      %v1112 = vpack.c.b16 %v1088, %v1087
      %v1113 = vpack.c.b16 %v1090, %v1089
      %v1114 = vpack.c.b16 %v1092, %v1091
      %v1115 = vpack.c.b16 %v1094, %v1093
      %v1116 = vpack.c.b16 %v1096, %v1095
      %v1117 = vpack.c.b16 %v1098, %v1097
      %v1118 = vpack.c.b16 %v1100, %v1099
      %v1138 = vsel %vm261, %v976, 0
      %v1141 = vsel %vm261, %v979, 0
      %v1144 = vsel %vm261, %v982, 0
      %v1147 = vsel %vm261, %v985, 0
      %1149 = vmatprep.subr.bf16.mxu0 0
      %1150 = vmatpush1.bf16.msra.mxu0 %v1101
      %1151 = vmatprep.subr.bf16.mxu0 0
      %1152 = vmatpush1.bf16.msra.mxu0 %v1102
      %1153 = vmatprep.subr.bf16.mxu0 0
      %1154 = vmatpush1.bf16.msra.mxu0 %v1103
      %1155 = vmatprep.subr.bf16.mxu0 0
      %1156 = vmatpush1.bf16.msra.mxu0 %v1104
      %1157 = vmatprep.subr.bf16.mxu0 0
      %1158 = vmatpush1.bf16.msra.mxu0 %v1105
      %1159 = vmatprep.subr.bf16.mxu0 0
      %1160 = vmatpush1.bf16.msra.mxu0 %v1106
      %1161 = vmatprep.subr.bf16.mxu0 0
      %1162 = vmatpush1.bf16.msra.mxu0 %v1107
      %1163 = vmatprep.subr.bf16.mxu0 0
      %1164 = vmatpush1.bf16.msra.mxu0 %v1108
      %1165 = vmatprep.subr.bf16.mxu0 0
      %1166 = vmatpush1.bf16.msra.mxu0 %v1109
      %1167 = vmatprep.subr.bf16.mxu0 0
      %1168 = vmatpush1.bf16.msra.mxu0 %v1110
      %1169 = vmatprep.subr.bf16.mxu0 0
      %1170 = vmatpush1.bf16.msra.mxu0 %v1111
      %1171 = vmatprep.subr.bf16.mxu0 0
      %1172 = vmatpush1.bf16.msra.mxu0 %v1112
      %1173 = vmatprep.subr.bf16.mxu0 0
      %1174 = vmatpush1.bf16.msra.mxu0 %v1113
      %1175 = vmatprep.subr.bf16.mxu0 0
      %1176 = vmatpush1.bf16.msra.mxu0 %v1114
      %1177 = vmatprep.subr.bf16.mxu0 0
      %1178 = vmatpush1.bf16.msra.mxu0 %v1115
      %1179 = vmatprep.subr.bf16.mxu0 0
      %1180 = vmatpush1.bf16.msra.mxu0 %v1116
      %1181 = vmatprep.mubr.bf16.mxu0 %v975
      %1182 = vmatmul.mubr.bf16.gmra.mrb[0].mxu0 %v974
      %v1183 = vpop.f32.mrb[0].mxu0
      %v1184 = vadd.f32 %v1027, %v1183
      %v1185 = vpop.f32.mrb[0].mxu0
      %v1186 = vpop.f32.mrb[0].mxu0
      %v1187 = vadd.f32 %v1027, %v1186
      %v1188 = vpop.f32.mrb[0].mxu0
      %1189 = vmatprep.mubr.bf16.mxu0 %v978
      %1190 = vmatmul.mubr.bf16.gmra.mrb[0].mxu0 %v977
      %v1191 = vpop.f32.mrb[0].mxu0
      %v1192 = vadd.f32 %v1027, %v1191
      %v1193 = vpop.f32.mrb[0].mxu0
      %v1194 = vpop.f32.mrb[0].mxu0
      %v1195 = vadd.f32 %v1027, %v1194
      %v1196 = vpop.f32.mrb[0].mxu0
      %1197 = vmatprep.mubr.bf16.mxu0 %v981
      %1198 = vmatmul.mubr.bf16.gmra.mrb[0].mxu0 %v980
      %v1199 = vpop.f32.mrb[0].mxu0
      %v1200 = vadd.f32 %v1027, %v1199
      %v1201 = vpop.f32.mrb[0].mxu0
      %v1202 = vpop.f32.mrb[0].mxu0
      %v1203 = vadd.f32 %v1027, %v1202
      %v1204 = vpop.f32.mrb[0].mxu0
      %1205 = vmatprep.mubr.bf16.mxu0 %v984
      %1206 = vmatmul.mubr.bf16.gmra.mrb[0].mxu0 %v983
      %v1207 = vpop.f32.mrb[0].mxu0
      %v1208 = vadd.f32 %v1027, %v1207
      %v1209 = vpop.f32.mrb[0].mxu0
      %v1210 = vpop.f32.mrb[0].mxu0
      %v1211 = vadd.f32 %v1027, %v1210
      %v1212 = vpop.f32.mrb[0].mxu0
      %1213 = vdwg.mxu0
      %1214 = vmatprep.subr.bf16.mxu0 0
      %1215 = vmatpush1.bf16.msra.mxu0 %v1117
      %1216 = vmatprep.subr.bf16.mxu0 0
      %1217 = vmatpush1.bf16.msra.mxu0 %v1118
      %1218 = vmatprep.subr.bf16.mxu0 0
      %1219 = vmatpush1.bf16.msra.mxu0 0
      %1220 = vmatprep.subr.bf16.mxu0 0
      %1221 = vmatpush1.bf16.msra.mxu0 0
      %1222 = vmatprep.subr.bf16.mxu0 0
      %1223 = vmatpush1.bf16.msra.mxu0 0
      %1224 = vmatprep.subr.bf16.mxu0 0
      %1225 = vmatpush1.bf16.msra.mxu0 0
      %1226 = vmatprep.subr.bf16.mxu0 0
      %1227 = vmatpush1.bf16.msra.mxu0 0
      %1228 = vmatprep.subr.bf16.mxu0 0
      %1229 = vmatpush1.bf16.msra.mxu0 0
      %1230 = vmatprep.subr.bf16.mxu0 0
      %1231 = vmatpush1.bf16.msra.mxu0 0
      %1232 = vmatprep.subr.bf16.mxu0 0
      %1233 = vmatpush1.bf16.msra.mxu0 0
      %1234 = vmatprep.subr.bf16.mxu0 0
      %1235 = vmatpush1.bf16.msra.mxu0 0
      %1236 = vmatprep.subr.bf16.mxu0 0
      %1237 = vmatpush1.bf16.msra.mxu0 0
      %1238 = vmatprep.subr.bf16.mxu0 0
      %1239 = vmatpush1.bf16.msra.mxu0 0
      %1240 = vmatprep.subr.bf16.mxu0 0
      %1241 = vmatpush1.bf16.msra.mxu0 0
      %1242 = vmatprep.subr.bf16.mxu0 0
      %1243 = vmatpush1.bf16.msra.mxu0 0
      %1244 = vmatprep.subr.bf16.mxu0 0
      %1245 = vmatpush1.bf16.msra.mxu0 0
      %1246 = vmatprep.mubr.bf16.mxu0 0
      %1247 = vmatmul.mubr.bf16.gmra.mrb[0].mxu0 %v1138
      %v1248 = vpop.f32.mrb[0].mxu0
      %v1249 = vadd.f32 %v1184, %v1248
      %v1250 = vpop.f32.mrb[0].mxu0
      %v1251 = vpop.f32.mrb[0].mxu0
      %v1252 = vadd.f32 %v1187, %v1251
      %v1253 = vpop.f32.mrb[0].mxu0
      %1254 = vmatprep.mubr.bf16.mxu0 0
      %1255 = vmatmul.mubr.bf16.gmra.mrb[0].mxu0 %v1141
      %v1256 = vpop.f32.mrb[0].mxu0
      %v1257 = vadd.f32 %v1192, %v1256
      %v1258 = vpop.f32.mrb[0].mxu0
      %v1259 = vpop.f32.mrb[0].mxu0
      %v1260 = vadd.f32 %v1195, %v1259
      %v1261 = vpop.f32.mrb[0].mxu0
      %1262 = vmatprep.mubr.bf16.mxu0 0
      %1263 = vmatmul.mubr.bf16.gmra.mrb[0].mxu0 %v1144
      %v1264 = vpop.f32.mrb[0].mxu0
      %v1265 = vadd.f32 %v1200, %v1264
      %v1266 = vpop.f32.mrb[0].mxu0
      %v1267 = vpop.f32.mrb[0].mxu0
      %v1268 = vadd.f32 %v1203, %v1267
      %v1269 = vpop.f32.mrb[0].mxu0
      %1270 = vmatprep.mubr.bf16.mxu0 0
      %1271 = vmatmul.mubr.bf16.gmra.mrb[0].mxu0 %v1147
      %v1272 = vpop.f32.mrb[0].mxu0
      %v1273 = vadd.f32 %v1208, %v1272
      %v1274 = vpop.f32.mrb[0].mxu0
      %v1275 = vpop.f32.mrb[0].mxu0
      %v1276 = vadd.f32 %v1211, %v1275
      %v1277 = vpop.f32.mrb[0].mxu0
      %1278 = vdwg.mxu0
      %v1279 = vmax.f32 %v1249, 0.0
      %v1280 = vmax.f32 %v1252, 0.0
      %v1281 = vmax.f32 %v1257, 0.0
      %v1282 = vmax.f32 %v1260, 0.0
      %v1283 = vmax.f32 %v1265, 0.0
      %v1284 = vmax.f32 %v1268, 0.0
      %v1285 = vmax.f32 %v1273, 0.0
      %v1286 = vmax.f32 %v1276, 0.0
      %vm1287 = vcmask 523264
      %1288 = vst.msk [vmem:[#allocation3] sm:$0xff] %vm1287, 0
      %1289 = vst.msk [vmem:[#allocation3 + $0x28] sm:$0xff] %vm1287, 0
      %v1290 = vpack.c.bf16 %v1280, %v1279
      %v1291 = vpack.c.bf16 %v1282, %v1281
      %v1292 = vpack.c.bf16 %v1284, %v1283
      %v1293 = vpack.c.bf16 %v1286, %v1285
      %1294 = vst.msk [vmem:[#allocation3 + $0x8] sm:$0xff] %vm1287, %v1290
      %1295 = vst.msk [vmem:[#allocation3 + $0x10] sm:$0xff] %vm1287, %v1291
      %1296 = vst.msk [vmem:[#allocation3 + $0x18] sm:$0xff] %vm1287, %v1292
      %1297 = vst.msk [vmem:[#allocation3 + $0x20] sm:$0xff] %vm1287, %v1293
      %v1298 = vld [vmem:[#allocation3] sm:$0xf8]
      %v1299 = vld [vmem:[#allocation3 + $0x8] sm:$0xff]
      %v1300 = vld [vmem:[#allocation3 + $0x10] sm:$0xff]
      %v1301 = vld [vmem:[#allocation3 + $0x18] sm:$0xff]
      %v1302 = vld [vmem:[#allocation3 + $0x20] sm:$0xf]
      %v1303 = vsel %vm385, %v1298, 0
      %v1304 = vsel %vm386, %v1299, 0
      %v1305 = vsel %vm387, %v1300, 0
      %v1306 = vsel %vm388, %v1301, 0
      %v1307 = vsel %vm389, %v1302, 0
      %v1309 = vshrl.u32 %v1303, 16
      %v1311 = vrot.slane %v1309, 3
      %v1312 = vshll.u32 %v1303, 16
      %v1314 = vrot.slane %v1312, 4
      %v1315 = vor.u32 %v1311, %v1314
      %v1317 = vshrl.u32 %v1304, 16
      %v1319 = vrot.slane %v1317, 3
      %v1320 = vshll.u32 %v1304, 16
      %v1322 = vrot.slane %v1320, 4
      %v1323 = vor.u32 %v1319, %v1322
      %v1324 = vsel %vm395, %v1315, %v1323
      %v1326 = vshrl.u32 %v1305, 16
      %v1328 = vrot.slane %v1326, 3
      %v1329 = vshll.u32 %v1305, 16
      %v1331 = vrot.slane %v1329, 4
      %v1332 = vor.u32 %v1328, %v1331
      %v1333 = vsel %vm395, %v1323, %v1332
      %v1335 = vshrl.u32 %v1306, 16
      %v1337 = vrot.slane %v1335, 3
      %v1338 = vshll.u32 %v1306, 16
      %v1340 = vrot.slane %v1338, 4
      %v1341 = vor.u32 %v1337, %v1340
      %v1342 = vsel %vm395, %v1332, %v1341
      %v1344 = vshrl.u32 %v1307, 16
      %v1346 = vrot.slane %v1344, 3
      %v1347 = vshll.u32 %v1307, 16
      %v1349 = vrot.slane %v1347, 4
      %v1350 = vor.u32 %v1346, %v1349
      %v1351 = vsel %vm395, %v1341, %v1350
      %1356 = vst.msk [vmem:[#allocation5] sm:$0xff] %vm1287, %v1324
      %1357 = vst.msk [vmem:[#allocation5 + $0x28] sm:$0xff] %vm1287, %v1333
      %1358 = vst.msk [vmem:[#allocation5 + $0x50] sm:$0xff] %vm1287, %v1342
      %1359 = vst.msk [vmem:[#allocation5 + $0x78] sm:$0xff] %vm1287, %v1351
      %v1360 = vld [vmem:[#allocation3] sm:$0xf0]
      %v1361 = vld [vmem:[#allocation3 + $0x8] sm:$0xff]
      %v1362 = vld [vmem:[#allocation3 + $0x10] sm:$0xff]
      %v1363 = vld [vmem:[#allocation3 + $0x18] sm:$0xff]
      %v1364 = vld [vmem:[#allocation3 + $0x20] sm:$0xf]
      %v1370 = vrot.slane %v1360, 4
      %v1371 = vrot.slane %v1361, 4
      %v1372 = vsel %vm458, %v1370, %v1371
      %v1373 = vrot.slane %v1362, 4
      %v1374 = vsel %vm458, %v1371, %v1373
      %v1375 = vrot.slane %v1363, 4
      %v1376 = vsel %vm458, %v1373, %v1375
      %v1377 = vrot.slane %v1364, 4
      %v1378 = vsel %vm458, %v1375, %v1377
      %1379 = vrot.lane.b32.xlu0 %v1372, 64
      %v1380 = vpop.permute.xlu0 %1379
      %1381 = vrot.lane.b32.xlu0 %v1374, 64
      %v1382 = vpop.permute.xlu0 %1381
      %1383 = vrot.lane.b32.xlu0 %v1376, 64
      %v1384 = vpop.permute.xlu0 %1383
      %1385 = vrot.lane.b32.xlu0 %v1378, 64
      %v1386 = vpop.permute.xlu0 %1385
      %vm1391 = vcmask 1048064
      %1392 = vst.msk [vmem:[#allocation5] sm:$0xff] %vm1391, %v1380
      %1393 = vst.msk [vmem:[#allocation5 + $0x28] sm:$0xff] %vm1391, %v1382
      %1394 = vst.msk [vmem:[#allocation5 + $0x50] sm:$0xff] %vm1391, %v1384
      %1395 = vst.msk [vmem:[#allocation5 + $0x78] sm:$0xff] %vm1391, %v1386
      %v1396 = vld [vmem:[#allocation3] sm:$0xf0]
      %v1397 = vld [vmem:[#allocation3 + $0x8] sm:$0xff]
      %v1398 = vld [vmem:[#allocation3 + $0x10] sm:$0xff]
      %v1399 = vld [vmem:[#allocation3 + $0x18] sm:$0xff]
      %v1400 = vld [vmem:[#allocation3 + $0x20] sm:$0x1f]
      %v1401 = vsel %vm569, %v1396, 0
      %v1402 = vsel %vm570, %v1397, 0
      %v1403 = vsel %vm571, %v1398, 0
      %v1404 = vsel %vm572, %v1399, 0
      %v1405 = vsel %vm573, %v1400, 0
      %v1407 = vshrl.u32 %v1401, 16
      %v1409 = vrot.slane %v1407, 4
      %v1410 = vshll.u32 %v1401, 16
      %v1412 = vrot.slane %v1410, 5
      %v1413 = vor.u32 %v1409, %v1412
      %v1415 = vshrl.u32 %v1402, 16
      %v1417 = vrot.slane %v1415, 4
      %v1418 = vshll.u32 %v1402, 16
      %v1420 = vrot.slane %v1418, 5
      %v1421 = vor.u32 %v1417, %v1420
      %v1422 = vsel %vm349, %v1413, %v1421
      %v1424 = vshrl.u32 %v1403, 16
      %v1426 = vrot.slane %v1424, 4
      %v1427 = vshll.u32 %v1403, 16
      %v1429 = vrot.slane %v1427, 5
      %v1430 = vor.u32 %v1426, %v1429
      %v1431 = vsel %vm349, %v1421, %v1430
      %v1433 = vshrl.u32 %v1404, 16
      %v1435 = vrot.slane %v1433, 4
      %v1436 = vshll.u32 %v1404, 16
      %v1438 = vrot.slane %v1436, 5
      %v1439 = vor.u32 %v1435, %v1438
      %v1440 = vsel %vm349, %v1430, %v1439
      %v1442 = vshrl.u32 %v1405, 16
      %v1444 = vrot.slane %v1442, 4
      %v1445 = vshll.u32 %v1405, 16
      %v1447 = vrot.slane %v1445, 5
      %v1448 = vor.u32 %v1444, %v1447
      %v1449 = vsel %vm349, %v1439, %v1448
      %1454 = vst.msk [vmem:[#allocation5 + $0x8] sm:$0xff] %vm1287, %v1422
      %1455 = vst.msk [vmem:[#allocation5 + $0x30] sm:$0xff] %vm1287, %v1431
      %1456 = vst.msk [vmem:[#allocation5 + $0x58] sm:$0xff] %vm1287, %v1440
      %1457 = vst.msk [vmem:[#allocation5 + $0x80] sm:$0xff] %vm1287, %v1449
      %v1458 = vld [vmem:[#allocation3] sm:$0x80]
      %v1459 = vld [vmem:[#allocation3 + $0x8] sm:$0xff]
      %v1460 = vld [vmem:[#allocation3 + $0x10] sm:$0xff]
      %v1461 = vld [vmem:[#allocation3 + $0x18] sm:$0xff]
      %v1462 = vld [vmem:[#allocation3 + $0x20] sm:$0xff]
      %v1463 = vsel %vm657, %v1458, 0
      %v1464 = vsel %vm658, %v1459, 0
      %v1465 = vsel %vm659, %v1460, 0
      %v1466 = vsel %vm660, %v1461, 0
      %v1467 = vsel %vm661, %v1462, 0
      %v1469 = vshrl.u32 %v1463, 16
      %v1471 = vrot.slane %v1469, 7
      %v1473 = vshrl.u32 %v1464, 16
      %v1475 = vrot.slane %v1473, 7
      %v1476 = vshll.u32 %v1464, 16
      %v1478 = vor.u32 %v1475, %v1476
      %v1479 = vsel %vm667, %v1471, %v1478
      %v1481 = vshrl.u32 %v1465, 16
      %v1483 = vrot.slane %v1481, 7
      %v1484 = vshll.u32 %v1465, 16
      %v1486 = vor.u32 %v1483, %v1484
      %v1487 = vsel %vm667, %v1475, %v1486
      %v1489 = vshrl.u32 %v1466, 16
      %v1491 = vrot.slane %v1489, 7
      %v1492 = vshll.u32 %v1466, 16
      %v1494 = vor.u32 %v1491, %v1492
      %v1495 = vsel %vm667, %v1483, %v1494
      %v1497 = vshrl.u32 %v1467, 16
      %v1499 = vrot.slane %v1497, 7
      %v1500 = vshll.u32 %v1467, 16
      %v1502 = vor.u32 %v1499, %v1500
      %v1503 = vsel %vm667, %v1491, %v1502
      %1504 = vrot.lane.b32.xlu0 %v1479, 64
      %v1505 = vpop.permute.xlu0 %1504
      %1506 = vrot.lane.b32.xlu0 %v1487, 64
      %v1507 = vpop.permute.xlu0 %1506
      %1508 = vrot.lane.b32.xlu0 %v1495, 64
      %v1509 = vpop.permute.xlu0 %1508
      %1510 = vrot.lane.b32.xlu0 %v1503, 64
      %v1511 = vpop.permute.xlu0 %1510
      %1516 = vst.msk [vmem:[#allocation5 + $0x8] sm:$0xff] %vm1391, %v1505
      %1517 = vst.msk [vmem:[#allocation5 + $0x30] sm:$0xff] %vm1391, %v1507
      %1518 = vst.msk [vmem:[#allocation5 + $0x58] sm:$0xff] %vm1391, %v1509
      %1519 = vst.msk [vmem:[#allocation5 + $0x80] sm:$0xff] %vm1391, %v1511
      %v1520 = vld [vmem:[#allocation3 + $0x8] sm:$0xff]
      %v1521 = vld [vmem:[#allocation3 + $0x10] sm:$0xff]
      %v1522 = vld [vmem:[#allocation3 + $0x18] sm:$0xff]
      %v1523 = vld [vmem:[#allocation3 + $0x20] sm:$0xff]
      %1524 = vst.msk [vmem:[#allocation5 + $0x10] sm:$0xff] %vm1287, %v1520
      %1525 = vst.msk [vmem:[#allocation5 + $0x38] sm:$0xff] %vm1287, %v1521
      %1526 = vst.msk [vmem:[#allocation5 + $0x60] sm:$0xff] %vm1287, %v1522
      %1527 = vst.msk [vmem:[#allocation5 + $0x88] sm:$0xff] %vm1287, %v1523
      %v1528 = vld [vmem:[#allocation3 + $0x8] sm:$0xff]
      %v1529 = vld [vmem:[#allocation3 + $0x10] sm:$0xff]
      %v1530 = vld [vmem:[#allocation3 + $0x18] sm:$0xff]
      %v1531 = vld [vmem:[#allocation3 + $0x20] sm:$0xff]
      %v1532 = vld [vmem:[#allocation3 + $0x28] sm:$0x1]
      %v1533 = vsel %vm745, %v1528, 0
      %v1534 = vsel %vm746, %v1529, 0
      %v1535 = vsel %vm747, %v1530, 0
      %v1536 = vsel %vm748, %v1531, 0
      %v1537 = vsel %vm749, %v1532, 0
      %v1539 = vshrl.u32 %v1533, 16
      %v1541 = vshll.u32 %v1533, 16
      %v1543 = vrot.slane %v1541, 1
      %v1544 = vor.u32 %v1539, %v1543
      %v1546 = vshll.u32 %v1534, 16
      %v1548 = vrot.slane %v1546, 1
      %v1549 = vsel %vm645, %v1544, %v1548
      %v1550 = vshrl.u32 %v1534, 16
      %v1552 = vor.u32 %v1550, %v1548
      %v1554 = vshll.u32 %v1535, 16
      %v1556 = vrot.slane %v1554, 1
      %v1557 = vsel %vm645, %v1552, %v1556
      %v1558 = vshrl.u32 %v1535, 16
      %v1560 = vor.u32 %v1558, %v1556
      %v1562 = vshll.u32 %v1536, 16
      %v1564 = vrot.slane %v1562, 1
      %v1565 = vsel %vm645, %v1560, %v1564
      %v1566 = vshrl.u32 %v1536, 16
      %v1568 = vor.u32 %v1566, %v1564
      %v1570 = vshll.u32 %v1537, 16
      %v1572 = vrot.slane %v1570, 1
      %v1573 = vsel %vm645, %v1568, %v1572
      %1574 = vrot.lane.b32.xlu0 %v1549, 64
      %v1575 = vpop.permute.xlu0 %1574
      %1576 = vrot.lane.b32.xlu0 %v1557, 64
      %v1577 = vpop.permute.xlu0 %1576
      %1578 = vrot.lane.b32.xlu0 %v1565, 64
      %v1579 = vpop.permute.xlu0 %1578
      %1580 = vrot.lane.b32.xlu0 %v1573, 64
      %v1581 = vpop.permute.xlu0 %1580
      %1586 = vst.msk [vmem:[#allocation5 + $0x10] sm:$0xff] %vm1391, %v1575
      %1587 = vst.msk [vmem:[#allocation5 + $0x38] sm:$0xff] %vm1391, %v1577
      %1588 = vst.msk [vmem:[#allocation5 + $0x60] sm:$0xff] %vm1391, %v1579
      %1589 = vst.msk [vmem:[#allocation5 + $0x88] sm:$0xff] %vm1391, %v1581
      %v1590 = vld [vmem:[#allocation3 + $0x8] sm:$0xf8]
      %v1591 = vld [vmem:[#allocation3 + $0x10] sm:$0xff]
      %v1592 = vld [vmem:[#allocation3 + $0x18] sm:$0xff]
      %v1593 = vld [vmem:[#allocation3 + $0x20] sm:$0xff]
      %v1594 = vld [vmem:[#allocation3 + $0x28] sm:$0xf]
      %v1595 = vsel %vm385, %v1590, 0
      %v1596 = vsel %vm386, %v1591, 0
      %v1597 = vsel %vm387, %v1592, 0
      %v1598 = vsel %vm388, %v1593, 0
      %v1599 = vsel %vm389, %v1594, 0
      %v1601 = vshrl.u32 %v1595, 16
      %v1603 = vrot.slane %v1601, 3
      %v1604 = vshll.u32 %v1595, 16
      %v1606 = vrot.slane %v1604, 4
      %v1607 = vor.u32 %v1603, %v1606
      %v1609 = vshrl.u32 %v1596, 16
      %v1611 = vrot.slane %v1609, 3
      %v1612 = vshll.u32 %v1596, 16
      %v1614 = vrot.slane %v1612, 4
      %v1615 = vor.u32 %v1611, %v1614
      %v1616 = vsel %vm395, %v1607, %v1615
      %v1618 = vshrl.u32 %v1597, 16
      %v1620 = vrot.slane %v1618, 3
      %v1621 = vshll.u32 %v1597, 16
      %v1623 = vrot.slane %v1621, 4
      %v1624 = vor.u32 %v1620, %v1623
      %v1625 = vsel %vm395, %v1615, %v1624
      %v1627 = vshrl.u32 %v1598, 16
      %v1629 = vrot.slane %v1627, 3
      %v1630 = vshll.u32 %v1598, 16
      %v1632 = vrot.slane %v1630, 4
      %v1633 = vor.u32 %v1629, %v1632
      %v1634 = vsel %vm395, %v1624, %v1633
      %v1636 = vshrl.u32 %v1599, 16
      %v1638 = vrot.slane %v1636, 3
      %v1639 = vshll.u32 %v1599, 16
      %v1641 = vrot.slane %v1639, 4
      %v1642 = vor.u32 %v1638, %v1641
      %v1643 = vsel %vm395, %v1633, %v1642
      %1648 = vst.msk [vmem:[#allocation5 + $0x18] sm:$0xff] %vm1287, %v1616
      %1649 = vst.msk [vmem:[#allocation5 + $0x40] sm:$0xff] %vm1287, %v1625
      %1650 = vst.msk [vmem:[#allocation5 + $0x68] sm:$0xff] %vm1287, %v1634
      %1651 = vst.msk [vmem:[#allocation5 + $0x90] sm:$0xff] %vm1287, %v1643
      %v1652 = vld [vmem:[#allocation3 + $0x8] sm:$0xf0]
      %v1653 = vld [vmem:[#allocation3 + $0x10] sm:$0xff]
      %v1654 = vld [vmem:[#allocation3 + $0x18] sm:$0xff]
      %v1655 = vld [vmem:[#allocation3 + $0x20] sm:$0xff]
      %v1656 = vld [vmem:[#allocation3 + $0x28] sm:$0xf]
      %v1662 = vrot.slane %v1652, 4
      %v1663 = vrot.slane %v1653, 4
      %v1664 = vsel %vm458, %v1662, %v1663
      %v1665 = vrot.slane %v1654, 4
      %v1666 = vsel %vm458, %v1663, %v1665
      %v1667 = vrot.slane %v1655, 4
      %v1668 = vsel %vm458, %v1665, %v1667
      %v1669 = vrot.slane %v1656, 4
      %v1670 = vsel %vm458, %v1667, %v1669
      %1671 = vrot.lane.b32.xlu0 %v1664, 64
      %v1672 = vpop.permute.xlu0 %1671
      %1673 = vrot.lane.b32.xlu0 %v1666, 64
      %v1674 = vpop.permute.xlu0 %1673
      %1675 = vrot.lane.b32.xlu0 %v1668, 64
      %v1676 = vpop.permute.xlu0 %1675
      %1677 = vrot.lane.b32.xlu0 %v1670, 64
      %v1678 = vpop.permute.xlu0 %1677
      %1683 = vst.msk [vmem:[#allocation5 + $0x18] sm:$0xff] %vm1391, %v1672
      %1684 = vst.msk [vmem:[#allocation5 + $0x40] sm:$0xff] %vm1391, %v1674
      %1685 = vst.msk [vmem:[#allocation5 + $0x68] sm:$0xff] %vm1391, %v1676
      %1686 = vst.msk [vmem:[#allocation5 + $0x90] sm:$0xff] %vm1391, %v1678
      %v1687 = vld [vmem:[#allocation3 + $0x8] sm:$0xf0]
      %v1688 = vld [vmem:[#allocation3 + $0x10] sm:$0xff]
      %v1689 = vld [vmem:[#allocation3 + $0x18] sm:$0xff]
      %v1690 = vld [vmem:[#allocation3 + $0x20] sm:$0xff]
      %v1691 = vld [vmem:[#allocation3 + $0x28] sm:$0x1f]
      %v1692 = vsel %vm569, %v1687, 0
      %v1693 = vsel %vm570, %v1688, 0
      %v1694 = vsel %vm571, %v1689, 0
      %v1695 = vsel %vm572, %v1690, 0
      %v1696 = vsel %vm573, %v1691, 0
      %v1698 = vshrl.u32 %v1692, 16
      %v1700 = vrot.slane %v1698, 4
      %v1701 = vshll.u32 %v1692, 16
      %v1703 = vrot.slane %v1701, 5
      %v1704 = vor.u32 %v1700, %v1703
      %v1706 = vshrl.u32 %v1693, 16
      %v1708 = vrot.slane %v1706, 4
      %v1709 = vshll.u32 %v1693, 16
      %v1711 = vrot.slane %v1709, 5
      %v1712 = vor.u32 %v1708, %v1711
      %v1713 = vsel %vm349, %v1704, %v1712
      %v1715 = vshrl.u32 %v1694, 16
      %v1717 = vrot.slane %v1715, 4
      %v1718 = vshll.u32 %v1694, 16
      %v1720 = vrot.slane %v1718, 5
      %v1721 = vor.u32 %v1717, %v1720
      %v1722 = vsel %vm349, %v1712, %v1721
      %v1724 = vshrl.u32 %v1695, 16
      %v1726 = vrot.slane %v1724, 4
      %v1727 = vshll.u32 %v1695, 16
      %v1729 = vrot.slane %v1727, 5
      %v1730 = vor.u32 %v1726, %v1729
      %v1731 = vsel %vm349, %v1721, %v1730
      %v1733 = vshrl.u32 %v1696, 16
      %v1735 = vrot.slane %v1733, 4
      %v1736 = vshll.u32 %v1696, 16
      %v1738 = vrot.slane %v1736, 5
      %v1739 = vor.u32 %v1735, %v1738
      %v1740 = vsel %vm349, %v1730, %v1739
      %1745 = vst.msk [vmem:[#allocation5 + $0x20] sm:$0xff] %vm1287, %v1713
      %1746 = vst.msk [vmem:[#allocation5 + $0x48] sm:$0xff] %vm1287, %v1722
      %1747 = vst.msk [vmem:[#allocation5 + $0x70] sm:$0xff] %vm1287, %v1731
      %1748 = vst.msk [vmem:[#allocation5 + $0x98] sm:$0xff] %vm1287, %v1740
      %v1749 = vld [vmem:[#allocation5] sm:$0xff]
      %v1750 = vld [vmem:[#allocation5 + $0x8] sm:$0xff]
      %v1751 = vld [vmem:[#allocation5 + $0x10] sm:$0xff]
      %v1752 = vld [vmem:[#allocation5 + $0x18] sm:$0xff]
      %v1753 = vld [vmem:[#allocation5 + $0x20] sm:$0xff]
      %v1754 = vld [vmem:[#allocation5 + $0x28] sm:$0xff]
      %v1755 = vld [vmem:[#allocation5 + $0x30] sm:$0xff]
      %v1756 = vld [vmem:[#allocation5 + $0x38] sm:$0xff]
      %v1757 = vld [vmem:[#allocation5 + $0x40] sm:$0xff]
      %v1758 = vld [vmem:[#allocation5 + $0x48] sm:$0xff]
      %v1759 = vld [vmem:[#allocation5 + $0x50] sm:$0xff]
      %v1760 = vld [vmem:[#allocation5 + $0x58] sm:$0xff]
      %v1761 = vld [vmem:[#allocation5 + $0x60] sm:$0xff]
      %v1762 = vld [vmem:[#allocation5 + $0x68] sm:$0xff]
      %v1763 = vld [vmem:[#allocation5 + $0x70] sm:$0xff]
      %v1764 = vld [vmem:[#allocation5 + $0x78] sm:$0xff]
      %v1765 = vld [vmem:[#allocation5 + $0x80] sm:$0xff]
      %v1766 = vld [vmem:[#allocation5 + $0x88] sm:$0xff]
      %v1767 = vld [vmem:[#allocation5 + $0x90] sm:$0xff]
      %v1768 = vld [vmem:[#allocation5 + $0x98] sm:$0xff]
      %v1769 = vld [vmem:[%s3] sm:$0xf]
      %v1770 = vld [vmem:[%s3 + $0x4] sm:$0xf]
      %v1771 = vld [vmem:[%s3 + $0x8] sm:$0xf]
      %v1772 = vld [vmem:[%s3 + $0xc] sm:$0xf]
      %v1773 = vld [vmem:[%s3 + $0x10] sm:$0xf]
      %v1774 = vld [vmem:[%s3 + $0x14] sm:$0xf]
      %v1775 = vld [vmem:[%s3 + $0x18] sm:$0xf]
      %v1776 = vld [vmem:[%s3 + $0x1c] sm:$0xf]
      %v1777 = vld [vmem:[%s3 + $0x20] sm:$0xf]
      %v1778 = vld [vmem:[%s3 + $0x24] sm:$0xf]
      %v1779 = vld [vmem:[%s3 + $0x28] sm:$0xf]
      %v1780 = vld [vmem:[%s3 + $0x2c] sm:$0xf]
      %v1781 = vld [vmem:[%s3 + $0x30] sm:$0xf]
      %v1782 = vld [vmem:[%s3 + $0x34] sm:$0xf]
      %v1783 = vld [vmem:[%s3 + $0x38] sm:$0xf]
      %v1784 = vld [vmem:[%s3 + $0x3c] sm:$0xf]
      %v1785 = vld [vmem:[%s3 + $0x40] sm:$0xf]
      %v1786 = vld [vmem:[%s3 + $0x44] sm:$0xf]
      %v1787 = vld [vmem:[%s3 + $0x48] sm:$0xf]
      %v1788 = vld [vmem:[%s3 + $0x4c] sm:$0xf]
      %v1789 = vld [vmem:[%s3 + $0x50] sm:$0xf]
      %v1790 = vld [vmem:[%s3 + $0x54] sm:$0xf]
      %v1791 = vld [vmem:[%s3 + $0x58] sm:$0xf]
      %v1792 = vld [vmem:[%s3 + $0x5c] sm:$0xf]
      %v1793 = vld [vmem:[%s3 + $0x60] sm:$0xf]
      %v1794 = vld [vmem:[%s3 + $0x64] sm:$0xf]
      %v1795 = vld [vmem:[%s3 + $0x68] sm:$0xf]
      %v1796 = vld [vmem:[%s3 + $0x6c] sm:$0xf]
      %v1797 = vld [vmem:[%s3 + $0x70] sm:$0xf]
      %v1798 = vld [vmem:[%s3 + $0x74] sm:$0xf]
      %v1799 = vld [vmem:[%s3 + $0x78] sm:$0xf]
      %v1800 = vld [vmem:[%s3 + $0x7c] sm:$0xf]
      %v1801 = vld [vmem:[%s3 + $0x80] sm:$0xf]
      %v1802 = vld [vmem:[%s3 + $0x84] sm:$0xf]
      %v1803 = vld [vmem:[%s3 + $0x88] sm:$0xf]
      %v1804 = vld [vmem:[%s3 + $0x8c] sm:$0xf]
      %v1805 = vld [vmem:[%s3 + $0x90] sm:$0xf]
      %v1806 = vld [vmem:[%s3 + $0x94] sm:$0xf]
      %v1807 = vld [vmem:[%s3 + $0x98] sm:$0xf]
      %v1808 = vld [vmem:[%s3 + $0x9c] sm:$0xf]
      %v1809 = vld [vmem:[%s3 + $0xa0] sm:$0xf]
      %v1810 = vld [vmem:[%s3 + $0xa4] sm:$0xf]
      %v1811 = vld [vmem:[%s3 + $0xa8] sm:$0xf]
      %v1812 = vld [vmem:[%s3 + $0xac] sm:$0xf]
      %v1813 = vld [vmem:[%s3 + $0xb0] sm:$0xf]
      %v1814 = vld [vmem:[%s3 + $0xb4] sm:$0xf]
      %v1815 = vld [vmem:[%s3 + $0xb8] sm:$0xf]
      %v1816 = vld [vmem:[%s3 + $0xbc] sm:$0xf]
      %v1817 = vld [vmem:[%s3 + $0xc0] sm:$0xf]
      %v1818 = vld [vmem:[%s3 + $0xc4] sm:$0xf]
      %v1819 = vld [vmem:[%s3 + $0xc8] sm:$0xf]
      %v1820 = vld [vmem:[%s3 + $0xcc] sm:$0xf]
      %v1821 = vld [vmem:[%s3 + $0xd0] sm:$0xf]
      %v1822 = vld [vmem:[%s3 + $0xd4] sm:$0xf]
      %v1823 = vld [vmem:[%s3 + $0xd8] sm:$0xf]
      %v1824 = vld [vmem:[%s3 + $0xdc] sm:$0xf]
      %v1825 = vld [vmem:[%s3 + $0xe0] sm:$0xf]
      %v1826 = vld [vmem:[%s3 + $0xe4] sm:$0xf]
      %v1827 = vld [vmem:[%s3 + $0xe8] sm:$0xf]
      %v1828 = vld [vmem:[%s3 + $0xec] sm:$0xf]
      %v1829 = vld [vmem:[%s3 + $0xf0] sm:$0xf]
      %v1830 = vld [vmem:[%s3 + $0xf4] sm:$0xf]
      %v1831 = vld [vmem:[%s3 + $0xf8] sm:$0xf]
      %v1832 = vld [vmem:[%s3 + $0xfc] sm:$0xf]
      %v1833 = vld [vmem:[%s3 + $0x100] sm:$0xf]
      %v1834 = vld [vmem:[%s3 + $0x104] sm:$0xf]
      %v1835 = vld [vmem:[%s3 + $0x108] sm:$0xf]
      %v1836 = vld [vmem:[%s3 + $0x10c] sm:$0xf]
      %v1837 = vld [vmem:[%s3 + $0x110] sm:$0xf]
      %v1838 = vld [vmem:[%s3 + $0x114] sm:$0xf]
      %v1839 = vld [vmem:[%s3 + $0x118] sm:$0xf]
      %v1840 = vld [vmem:[%s3 + $0x11c] sm:$0xf]
      %v1841 = vld [vmem:[%s4] sm:$0x1]
      %v1843 = vlaneseq
      %v1844 = vshrl.u32 %v1843, 7
      %v1845 = vsub.s32 0, %v1844
      %v1846 = vrot.slane %v1841, %v1845
      %v1920 = vunpack.c.l.b16 %v1769
      %v1921 = vunpack.c.l.b16 %v1770
      %v1922 = vunpack.c.l.b16 %v1771
      %v1923 = vunpack.c.l.b16 %v1772
      %v1924 = vunpack.c.l.b16 %v1773
      %v1925 = vunpack.c.l.b16 %v1774
      %v1926 = vunpack.c.l.b16 %v1775
      %v1927 = vunpack.c.l.b16 %v1776
      %v1928 = vunpack.c.l.b16 %v1777
      %v1929 = vunpack.c.l.b16 %v1778
      %v1930 = vunpack.c.l.b16 %v1779
      %v1931 = vunpack.c.l.b16 %v1780
      %v1932 = vunpack.c.l.b16 %v1781
      %v1933 = vunpack.c.l.b16 %v1782
      %v1934 = vunpack.c.l.b16 %v1783
      %v1935 = vunpack.c.l.b16 %v1784
      %v1936 = vunpack.c.l.b16 %v1785
      %v1937 = vunpack.c.l.b16 %v1786
      %v1938 = vunpack.c.l.b16 %v1787
      %v1939 = vunpack.c.l.b16 %v1788
      %v1940 = vunpack.c.l.b16 %v1789
      %v1941 = vunpack.c.l.b16 %v1790
      %v1942 = vunpack.c.l.b16 %v1791
      %v1943 = vunpack.c.l.b16 %v1792
      %v1944 = vunpack.c.l.b16 %v1793
      %v1945 = vunpack.c.l.b16 %v1794
      %v1946 = vunpack.c.l.b16 %v1795
      %v1947 = vunpack.c.l.b16 %v1796
      %v1948 = vunpack.c.l.b16 %v1797
      %v1949 = vunpack.c.l.b16 %v1798
      %v1950 = vunpack.c.l.b16 %v1799
      %v1951 = vunpack.c.l.b16 %v1800
      %v1952 = vunpack.c.l.b16 %v1801
      %v1953 = vunpack.c.l.b16 %v1802
      %v1954 = vunpack.c.l.b16 %v1803
      %v1955 = vunpack.c.l.b16 %v1804
      %v1956 = vunpack.c.l.b16 %v1805
      %v1957 = vunpack.c.l.b16 %v1806
      %v1958 = vunpack.c.l.b16 %v1807
      %v1959 = vunpack.c.l.b16 %v1808
      %v1960 = vunpack.c.l.b16 %v1809
      %v1961 = vunpack.c.l.b16 %v1810
      %v1962 = vunpack.c.l.b16 %v1811
      %v1963 = vunpack.c.l.b16 %v1812
      %v1964 = vunpack.c.l.b16 %v1813
      %v1965 = vunpack.c.l.b16 %v1814
      %v1966 = vunpack.c.l.b16 %v1815
      %v1967 = vunpack.c.l.b16 %v1816
      %v1968 = vunpack.c.l.b16 %v1817
      %v1969 = vunpack.c.l.b16 %v1818
      %v1970 = vunpack.c.l.b16 %v1819
      %v1971 = vunpack.c.l.b16 %v1820
      %v1972 = vunpack.c.l.b16 %v1821
      %v1973 = vunpack.c.l.b16 %v1822
      %v1974 = vunpack.c.l.b16 %v1823
      %v1975 = vunpack.c.l.b16 %v1824
      %v1976 = vunpack.c.l.b16 %v1825
      %v1977 = vunpack.c.l.b16 %v1826
      %v1978 = vunpack.c.l.b16 %v1827
      %v1979 = vunpack.c.l.b16 %v1828
      %v1980 = vunpack.c.l.b16 %v1829
      %v1981 = vunpack.c.l.b16 %v1830
      %v1982 = vunpack.c.l.b16 %v1831
      %v1983 = vunpack.c.l.b16 %v1832
      %v1984 = vunpack.c.l.b16 %v1833
      %v1985 = vunpack.c.l.b16 %v1834
      %v1986 = vunpack.c.l.b16 %v1835
      %v1987 = vunpack.c.l.b16 %v1836
      %v1988 = vunpack.c.l.b16 %v1837
      %v1989 = vunpack.c.l.b16 %v1838
      %v1990 = vunpack.c.l.b16 %v1839
      %v1991 = vunpack.c.l.b16 %v1840
      %v1992 = vpack.c.b16 %v1921, %v1920
      %v1993 = vpack.c.b16 %v1923, %v1922
      %v1994 = vpack.c.b16 %v1925, %v1924
      %v1995 = vpack.c.b16 %v1927, %v1926
      %v1996 = vpack.c.b16 %v1929, %v1928
      %v1997 = vpack.c.b16 %v1931, %v1930
      %v1998 = vpack.c.b16 %v1933, %v1932
      %v1999 = vpack.c.b16 %v1935, %v1934
      %v2000 = vpack.c.b16 %v1937, %v1936
      %v2001 = vpack.c.b16 %v1939, %v1938
      %v2002 = vpack.c.b16 %v1941, %v1940
      %v2003 = vpack.c.b16 %v1943, %v1942
      %v2004 = vpack.c.b16 %v1945, %v1944
      %v2005 = vpack.c.b16 %v1947, %v1946
      %v2006 = vpack.c.b16 %v1949, %v1948
      %v2007 = vpack.c.b16 %v1951, %v1950
      %v2008 = vpack.c.b16 %v1953, %v1952
      %v2009 = vpack.c.b16 %v1955, %v1954
      %v2010 = vpack.c.b16 %v1957, %v1956
      %v2011 = vpack.c.b16 %v1959, %v1958
      %v2012 = vpack.c.b16 %v1961, %v1960
      %v2013 = vpack.c.b16 %v1963, %v1962
      %v2014 = vpack.c.b16 %v1965, %v1964
      %v2015 = vpack.c.b16 %v1967, %v1966
      %v2016 = vpack.c.b16 %v1969, %v1968
      %v2017 = vpack.c.b16 %v1971, %v1970
      %v2018 = vpack.c.b16 %v1973, %v1972
      %v2019 = vpack.c.b16 %v1975, %v1974
      %v2020 = vpack.c.b16 %v1977, %v1976
      %v2021 = vpack.c.b16 %v1979, %v1978
      %v2022 = vpack.c.b16 %v1981, %v1980
      %v2023 = vpack.c.b16 %v1983, %v1982
      %v2024 = vpack.c.b16 %v1985, %v1984
      %v2025 = vpack.c.b16 %v1987, %v1986
      %v2026 = vpack.c.b16 %v1989, %v1988
      %v2027 = vpack.c.b16 %v1991, %v1990
      %v2065 = vsel %vm1287, %v1753, 0
      %v2068 = vsel %vm1287, %v1758, 0
      %v2071 = vsel %vm1287, %v1763, 0
      %v2074 = vsel %vm1287, %v1768, 0
      %2076 = vmatprep.subr.bf16.mxu0 0
      %2077 = vmatpush1.bf16.msra.mxu0 %v1992
      %2078 = vmatprep.subr.bf16.mxu0 0
      %2079 = vmatpush1.bf16.msra.mxu0 %v1993
      %2080 = vmatprep.subr.bf16.mxu0 0
      %2081 = vmatpush1.bf16.msra.mxu0 %v1994
      %2082 = vmatprep.subr.bf16.mxu0 0
      %2083 = vmatpush1.bf16.msra.mxu0 %v1995
      %2084 = vmatprep.subr.bf16.mxu0 0
      %2085 = vmatpush1.bf16.msra.mxu0 %v1996
      %2086 = vmatprep.subr.bf16.mxu0 0
      %2087 = vmatpush1.bf16.msra.mxu0 %v1997
      %2088 = vmatprep.subr.bf16.mxu0 0
      %2089 = vmatpush1.bf16.msra.mxu0 %v1998
      %2090 = vmatprep.subr.bf16.mxu0 0
      %2091 = vmatpush1.bf16.msra.mxu0 %v1999
      %2092 = vmatprep.subr.bf16.mxu0 0
      %2093 = vmatpush1.bf16.msra.mxu0 %v2000
      %2094 = vmatprep.subr.bf16.mxu0 0
      %2095 = vmatpush1.bf16.msra.mxu0 %v2001
      %2096 = vmatprep.subr.bf16.mxu0 0
      %2097 = vmatpush1.bf16.msra.mxu0 %v2002
      %2098 = vmatprep.subr.bf16.mxu0 0
      %2099 = vmatpush1.bf16.msra.mxu0 %v2003
      %2100 = vmatprep.subr.bf16.mxu0 0
      %2101 = vmatpush1.bf16.msra.mxu0 %v2004
      %2102 = vmatprep.subr.bf16.mxu0 0
      %2103 = vmatpush1.bf16.msra.mxu0 %v2005
      %2104 = vmatprep.subr.bf16.mxu0 0
      %2105 = vmatpush1.bf16.msra.mxu0 %v2006
      %2106 = vmatprep.subr.bf16.mxu0 0
      %2107 = vmatpush1.bf16.msra.mxu0 %v2007
      %2108 = vmatprep.mubr.bf16.mxu0 %v1750
      %2109 = vmatmul.mubr.bf16.gmra.mrb[0].mxu0 %v1749
      %v2110 = vpop.f32.mrb[0].mxu0
      %v2111 = vadd.f32 %v1846, %v2110
      %v2112 = vpop.f32.mrb[0].mxu0
      %v2113 = vpop.f32.mrb[0].mxu0
      %v2114 = vadd.f32 %v1846, %v2113
      %v2115 = vpop.f32.mrb[0].mxu0
      %2116 = vmatprep.mubr.bf16.mxu0 %v1755
      %2117 = vmatmul.mubr.bf16.gmra.mrb[0].mxu0 %v1754
      %v2118 = vpop.f32.mrb[0].mxu0
      %v2119 = vadd.f32 %v1846, %v2118
      %v2120 = vpop.f32.mrb[0].mxu0
      %v2121 = vpop.f32.mrb[0].mxu0
      %v2122 = vadd.f32 %v1846, %v2121
      %v2123 = vpop.f32.mrb[0].mxu0
      %2124 = vmatprep.mubr.bf16.mxu0 %v1760
      %2125 = vmatmul.mubr.bf16.gmra.mrb[0].mxu0 %v1759
      %v2126 = vpop.f32.mrb[0].mxu0
      %v2127 = vadd.f32 %v1846, %v2126
      %v2128 = vpop.f32.mrb[0].mxu0
      %v2129 = vpop.f32.mrb[0].mxu0
      %v2130 = vadd.f32 %v1846, %v2129
      %v2131 = vpop.f32.mrb[0].mxu0
      %2132 = vmatprep.mubr.bf16.mxu0 %v1765
      %2133 = vmatmul.mubr.bf16.gmra.mrb[0].mxu0 %v1764
      %v2134 = vpop.f32.mrb[0].mxu0
      %v2135 = vadd.f32 %v1846, %v2134
      %v2136 = vpop.f32.mrb[0].mxu0
      %v2137 = vpop.f32.mrb[0].mxu0
      %v2138 = vadd.f32 %v1846, %v2137
      %v2139 = vpop.f32.mrb[0].mxu0
      %2140 = vdwg.mxu0
      %2141 = vmatprep.subr.bf16.mxu0 0
      %2142 = vmatpush1.bf16.msra.mxu0 %v2008
      %2143 = vmatprep.subr.bf16.mxu0 0
      %2144 = vmatpush1.bf16.msra.mxu0 %v2009
      %2145 = vmatprep.subr.bf16.mxu0 0
      %2146 = vmatpush1.bf16.msra.mxu0 %v2010
      %2147 = vmatprep.subr.bf16.mxu0 0
      %2148 = vmatpush1.bf16.msra.mxu0 %v2011
      %2149 = vmatprep.subr.bf16.mxu0 0
      %2150 = vmatpush1.bf16.msra.mxu0 %v2012
      %2151 = vmatprep.subr.bf16.mxu0 0
      %2152 = vmatpush1.bf16.msra.mxu0 %v2013
      %2153 = vmatprep.subr.bf16.mxu0 0
      %2154 = vmatpush1.bf16.msra.mxu0 %v2014
      %2155 = vmatprep.subr.bf16.mxu0 0
      %2156 = vmatpush1.bf16.msra.mxu0 %v2015
      %2157 = vmatprep.subr.bf16.mxu0 0
      %2158 = vmatpush1.bf16.msra.mxu0 %v2016
      %2159 = vmatprep.subr.bf16.mxu0 0
      %2160 = vmatpush1.bf16.msra.mxu0 %v2017
      %2161 = vmatprep.subr.bf16.mxu0 0
      %2162 = vmatpush1.bf16.msra.mxu0 %v2018
      %2163 = vmatprep.subr.bf16.mxu0 0
      %2164 = vmatpush1.bf16.msra.mxu0 %v2019
      %2165 = vmatprep.subr.bf16.mxu0 0
      %2166 = vmatpush1.bf16.msra.mxu0 %v2020
      %2167 = vmatprep.subr.bf16.mxu0 0
      %2168 = vmatpush1.bf16.msra.mxu0 %v2021
      %2169 = vmatprep.subr.bf16.mxu0 0
      %2170 = vmatpush1.bf16.msra.mxu0 %v2022
      %2171 = vmatprep.subr.bf16.mxu0 0
      %2172 = vmatpush1.bf16.msra.mxu0 %v2023
      %2173 = vmatprep.mubr.bf16.mxu0 %v1752
      %2174 = vmatmul.mubr.bf16.gmra.mrb[0].mxu0 %v1751
      %v2175 = vpop.f32.mrb[0].mxu0
      %v2176 = vadd.f32 %v2111, %v2175
      %v2177 = vpop.f32.mrb[0].mxu0
      %v2178 = vpop.f32.mrb[0].mxu0
      %v2179 = vadd.f32 %v2114, %v2178
      %v2180 = vpop.f32.mrb[0].mxu0
      %2181 = vmatprep.mubr.bf16.mxu0 %v1757
      %2182 = vmatmul.mubr.bf16.gmra.mrb[0].mxu0 %v1756
      %v2183 = vpop.f32.mrb[0].mxu0
      %v2184 = vadd.f32 %v2119, %v2183
      %v2185 = vpop.f32.mrb[0].mxu0
      %v2186 = vpop.f32.mrb[0].mxu0
      %v2187 = vadd.f32 %v2122, %v2186
      %v2188 = vpop.f32.mrb[0].mxu0
      %2189 = vmatprep.mubr.bf16.mxu0 %v1762
      %2190 = vmatmul.mubr.bf16.gmra.mrb[0].mxu0 %v1761
      %v2191 = vpop.f32.mrb[0].mxu0
      %v2192 = vadd.f32 %v2127, %v2191
      %v2193 = vpop.f32.mrb[0].mxu0
      %v2194 = vpop.f32.mrb[0].mxu0
      %v2195 = vadd.f32 %v2130, %v2194
      %v2196 = vpop.f32.mrb[0].mxu0
      %2197 = vmatprep.mubr.bf16.mxu0 %v1767
      %2198 = vmatmul.mubr.bf16.gmra.mrb[0].mxu0 %v1766
      %v2199 = vpop.f32.mrb[0].mxu0
      %v2200 = vadd.f32 %v2135, %v2199
      %v2201 = vpop.f32.mrb[0].mxu0
      %v2202 = vpop.f32.mrb[0].mxu0
      %v2203 = vadd.f32 %v2138, %v2202
      %v2204 = vpop.f32.mrb[0].mxu0
      %2205 = vdwg.mxu0
      %2206 = vmatprep.subr.bf16.mxu0 0
      %2207 = vmatpush1.bf16.msra.mxu0 %v2024
      %2208 = vmatprep.subr.bf16.mxu0 0
      %2209 = vmatpush1.bf16.msra.mxu0 %v2025
      %2210 = vmatprep.subr.bf16.mxu0 0
      %2211 = vmatpush1.bf16.msra.mxu0 %v2026
      %2212 = vmatprep.subr.bf16.mxu0 0
      %2213 = vmatpush1.bf16.msra.mxu0 %v2027
      %2214 = vmatprep.subr.bf16.mxu0 0
      %2215 = vmatpush1.bf16.msra.mxu0 0
      %2216 = vmatprep.subr.bf16.mxu0 0
      %2217 = vmatpush1.bf16.msra.mxu0 0
      %2218 = vmatprep.subr.bf16.mxu0 0
      %2219 = vmatpush1.bf16.msra.mxu0 0
      %2220 = vmatprep.subr.bf16.mxu0 0
      %2221 = vmatpush1.bf16.msra.mxu0 0
      %2222 = vmatprep.subr.bf16.mxu0 0
      %2223 = vmatpush1.bf16.msra.mxu0 0
      %2224 = vmatprep.subr.bf16.mxu0 0
      %2225 = vmatpush1.bf16.msra.mxu0 0
      %2226 = vmatprep.subr.bf16.mxu0 0
      %2227 = vmatpush1.bf16.msra.mxu0 0
      %2228 = vmatprep.subr.bf16.mxu0 0
      %2229 = vmatpush1.bf16.msra.mxu0 0
      %2230 = vmatprep.subr.bf16.mxu0 0
      %2231 = vmatpush1.bf16.msra.mxu0 0
      %2232 = vmatprep.subr.bf16.mxu0 0
      %2233 = vmatpush1.bf16.msra.mxu0 0
      %2234 = vmatprep.subr.bf16.mxu0 0
      %2235 = vmatpush1.bf16.msra.mxu0 0
      %2236 = vmatprep.subr.bf16.mxu0 0
      %2237 = vmatpush1.bf16.msra.mxu0 0
      %2238 = vmatprep.mubr.bf16.mxu0 0
      %2239 = vmatmul.mubr.bf16.gmra.mrb[0].mxu0 %v2065
      %v2240 = vpop.f32.mrb[0].mxu0
      %v2241 = vadd.f32 %v2176, %v2240
      %v2242 = vpop.f32.mrb[0].mxu0
      %v2243 = vpop.f32.mrb[0].mxu0
      %v2244 = vadd.f32 %v2179, %v2243
      %v2245 = vpop.f32.mrb[0].mxu0
      %2246 = vmatprep.mubr.bf16.mxu0 0
      %2247 = vmatmul.mubr.bf16.gmra.mrb[0].mxu0 %v2068
      %v2248 = vpop.f32.mrb[0].mxu0
      %v2249 = vadd.f32 %v2184, %v2248
      %v2250 = vpop.f32.mrb[0].mxu0
      %v2251 = vpop.f32.mrb[0].mxu0
      %v2252 = vadd.f32 %v2187, %v2251
      %v2253 = vpop.f32.mrb[0].mxu0
      %2254 = vmatprep.mubr.bf16.mxu0 0
      %2255 = vmatmul.mubr.bf16.gmra.mrb[0].mxu0 %v2071
      %v2256 = vpop.f32.mrb[0].mxu0
      %v2257 = vadd.f32 %v2192, %v2256
      %v2258 = vpop.f32.mrb[0].mxu0
      %v2259 = vpop.f32.mrb[0].mxu0
      %v2260 = vadd.f32 %v2195, %v2259
      %v2261 = vpop.f32.mrb[0].mxu0
      %2262 = vmatprep.mubr.bf16.mxu0 0
      %2263 = vmatmul.mubr.bf16.gmra.mrb[0].mxu0 %v2074
      %v2264 = vpop.f32.mrb[0].mxu0
      %v2265 = vadd.f32 %v2200, %v2264
      %v2266 = vpop.f32.mrb[0].mxu0
      %v2267 = vpop.f32.mrb[0].mxu0
      %v2268 = vadd.f32 %v2203, %v2267
      %v2269 = vpop.f32.mrb[0].mxu0
      %2270 = vdwg.mxu0
      %v2271 = vmax.f32 %v2241, 0.0
      %v2272 = vmax.f32 %v2244, 0.0
      %v2273 = vmax.f32 %v2249, 0.0
      %v2274 = vmax.f32 %v2252, 0.0
      %v2275 = vmax.f32 %v2257, 0.0
      %v2276 = vmax.f32 %v2260, 0.0
      %v2277 = vmax.f32 %v2265, 0.0
      %v2278 = vmax.f32 %v2268, 0.0
      %2279 = vst.msk [vmem:[%s224] sm:$0xff] %vm1287, %v2271
      %2280 = vst.msk [vmem:[%s224 + $0x8] sm:$0xff] %vm1287, %v2272
      %2281 = vst.msk [vmem:[%s224 + $0x10] sm:$0xff] %vm1287, %v2273
      %2282 = vst.msk [vmem:[%s224 + $0x18] sm:$0xff] %vm1287, %v2274
      %2283 = vst.msk [vmem:[%s224 + $0x20] sm:$0xff] %vm1287, %v2275
      %2284 = vst.msk [vmem:[%s224 + $0x28] sm:$0xff] %vm1287, %v2276
      %2285 = vst.msk [vmem:[%s224 + $0x30] sm:$0xff] %vm1287, %v2277
      %2286 = vst.msk [vmem:[%s224 + $0x38] sm:$0xff] %vm1287, %v2278
      %p2287 = scmp.lt.s32.totalorder %s16, 1
      %s2288 = scalar_select %p2287, %s16, 1
      %s2289 = smul.addr %s2288, 8
      %s2290 = smul.addr %s2289, 8
      %s2291 = scalar_lea.vmem %s5, %s2290
      // Predicated region
      $region41: #{multi_channel_encoder.4} parent=39 // pred_check
        %p2292 = pneg %p144
      $region42: #{multi_channel_encoder.4} parent=39 // pred_check_branch
        %2294 = sbr.rel (%p2292) target = $region44
      $region43: #{multi_channel_encoder.4} parent=39 // pred_region
        _
      $region44: #{multi_channel_encoder.4} parent=39 // pred_fallthru
        _
    $region40: #{multi_channel_encoder.4} parent=5 // pred_fallthru
      _
    %p2295 = scmp.le.s32.totalorder 2, %s11
    // Predicated region
    $region45: #{multi_channel_encoder.4} parent=5 // pred_check
      %p2296 = pneg %p2295
    $region46: #{multi_channel_encoder.4} parent=5 // pred_check_branch
      %2298 = sbr.rel (%p2296) target = $region48
    $region47: #{multi_channel_encoder.4} parent=5 // pred_region
      %s2299 = ssub.s32 %s11, 2
      // Predicated region
      $region49: #{multi_channel_encoder.4} parent=47 // pred_check
        %p2300 = pneg %p150
      $region50: #{multi_channel_encoder.4} parent=47 // pred_check_branch
        %2302 = sbr.rel (%p2300) target = $region52
      $region51: #{multi_channel_encoder.4} parent=47 // pred_region
        %p2303 = scmp.lt.s32.totalorder %s17, 1
        %s2304 = scalar_select %p2303, %s17, 1
        %s2305 = smul.addr %s2304, 8
        %s2306 = smul.addr %s2305, 8
        %s2307 = scalar_lea.vmem %s5, %s2306
      $region52: #{multi_channel_encoder.4} parent=47 // pred_fallthru
        _
    $region48: #{multi_channel_encoder.4} parent=5 // pred_fallthru
      _
  $region6: #{multi_channel_encoder.4} parent=0 // loop_footer
    %s15 = sadd.s32 1, %s11
  $region7: #{multi_channel_encoder.4} parent=0 // loop_footer_branch
    %10 = sbr.rel target = $region3
  $region8: #{multi_channel_encoder.4} parent=0 // loop_exit
    _

// kernel: multi_channel_encoder.5
$region0: #{multi_channel_encoder.5}
  #allocation0 [shape = 'u32[]', space=smem, size = 0x4, offset = 0x4, fixed_abs, tag = 'smem constant byte address 0x4 - core index']
  #allocation1 [shape = 'u32[144,128]{1,0:T(1,128)}', space=vmem, size = 0x12000, scoped, tag = 'internal scratch']
  #allocation2 [shape = 'bf16[32,64]{1,0:T(16,128)(2,1)}', space=vmem, size = 0x2000, scoped, tag = 'scratch operand']
  #allocation3 [shape = 'bf16[32,128]{1,0:T(16,128)(2,1)}', space=vmem, size = 0x2000, scoped, tag = 'scratch operand']
  #allocation4 [shape = 'bf16[16,576]{1,0:T(16,128)(2,1)}', space=vmem, size = 0x5000, scoped, tag = 'scratch operand']
  #allocation5 [shape = 'bf16[16,1152]{1,0:T(16,128)(2,1)}', space=vmem, size = 0x9000, scoped, tag = 'scratch operand']
  %s0 = inlined_call_operand.vmem [shape: bf16[2,16,64], index: 0, kind: input, shape index: {}]
  %s1 = inlined_call_operand.vmem [shape: bf16[576,128], index: 1, kind: input, shape index: {}]
  %s2 = inlined_call_operand.vmem [shape: f32[1,128], index: 2, kind: input, shape index: {}]
  %s3 = inlined_call_operand.vmem [shape: bf16[1152,128], index: 3, kind: input, shape index: {}]
  %s4 = inlined_call_operand.vmem [shape: f32[1,128], index: 4, kind: input, shape index: {}]
  %s5 = inlined_call_operand.vmem [shape: f32[2,16,128], index: 5, kind: output, shape index: {}]
  %s6 = sld [smem:[#allocation0]]
  $region53: #{multi_channel_encoder.5} parent=0
    _
  %s8 = ssub.s32 1, %s6
  %s9 = scalar_select 0, %s8, %s6
  loop: start=0, step=1, limit=4
  $region2: #{multi_channel_encoder.5} parent=0 // loop_pre_header
    _
  $region3: #{multi_channel_encoder.5} parent=0 // loop_header
    %s11 = sphi 0, %s15
    %p12 = scmp.ge.s32.totalorder %s11, 4
    %s21 = sphi 0, %s23
    %s24 = sphi 0, %s21
    %s25 = sphi 0, %s24
    %s41 = sphi 0, %s25
    %s45 = sphi 0, %s45
    %s47 = sphi 0, %s45
    %s48 = sphi 0, %s47
    %s62 = sphi 0, %s48
    %s66 = sphi 0, %s66
    %s68 = sphi 0, %s66
    %s69 = sphi 0, %s68
    %s83 = sphi 0, %s69
    %s87 = sphi 0, %s87
    %s89 = sphi 0, %s87
    %s90 = sphi 0, %s89
    %s104 = sphi 0, %s90
    %s108 = sphi 0, %s108
    %s110 = sphi 0, %s108
    %s111 = sphi 0, %s110
    %s125 = sphi 0, %s111
    %s131 = sphi 0, %s133
    %s134 = sphi 0, %s131
    %s135 = sphi 0, %s134
    %s151 = sphi 0, %s135
  $region4: #{multi_channel_encoder.5} parent=0 // loop_header_branch
    %14 = sbr.rel (%p12) target = $region8
  $region5: #{multi_channel_encoder.5} parent=0 // loop_body
    %s16 = ssub.s32 %s11, 1
    %s17 = ssub.s32 %s11, 2
    %s18 = sadd.s32 %s11, 1
    %s19 = ssub.s32 %s11, %s18
    %p20 = scmp.eq.s32.totalorder %s19, 0
    %s22 = sadd.s32 %s21, 1
    %s23 = scalar_select %p20, %s21, %s22
    %p26 = pneg %p20
    %p27 = scmp.eq.s32.totalorder %s11, 1
    %p28 = por %p26, %p27
    %p29 = scmp.ne.s32.totalorder %s21, %s24
    %p30 = scmp.eq.s32.totalorder %s11, 0
    %p31 = por %p29, %p30
    %p32 = scmp.ne.s32.totalorder %s21, %s24
    %p33 = scmp.eq.s32.totalorder %s16, 1
    %p34 = por %p32, %p33
    %p35 = scmp.ne.s32.totalorder %s24, %s25
    %p36 = scmp.eq.s32.totalorder %s16, 0
    %p37 = por %p35, %p36
    %p38 = scmp.ne.s32.totalorder %s24, %s25
    %p39 = scmp.eq.s32.totalorder %s17, 1
    %p40 = por %p38, %p39
    %p42 = scmp.ne.s32.totalorder %s25, %s41
    %p43 = scmp.eq.s32.totalorder %s17, 0
    %p44 = por %p42, %p43
    %s46 = sadd.s32 %s45, 1
    %p49 = scmp.eq.s32.totalorder %s11, 1
    %p50 = scmp.ne.s32.totalorder %s45, %s47
    %p51 = scmp.eq.s32.totalorder %s11, 0
    %p52 = por %p50, %p51
    %p53 = scmp.ne.s32.totalorder %s45, %s47
    %p54 = scmp.eq.s32.totalorder %s16, 1
    %p55 = por %p53, %p54
    %p56 = scmp.ne.s32.totalorder %s47, %s48
    %p57 = scmp.eq.s32.totalorder %s16, 0
    %p58 = por %p56, %p57
    %p59 = scmp.ne.s32.totalorder %s47, %s48
    %p60 = scmp.eq.s32.totalorder %s17, 1
    %p61 = por %p59, %p60
    %p63 = scmp.ne.s32.totalorder %s48, %s62
    %p64 = scmp.eq.s32.totalorder %s17, 0
    %p65 = por %p63, %p64
    %s67 = sadd.s32 %s66, 1
    %p70 = scmp.eq.s32.totalorder %s11, 1
    %p71 = scmp.ne.s32.totalorder %s66, %s68
    %p72 = scmp.eq.s32.totalorder %s11, 0
    %p73 = por %p71, %p72
    %p74 = scmp.ne.s32.totalorder %s66, %s68
    %p75 = scmp.eq.s32.totalorder %s16, 1
    %p76 = por %p74, %p75
    %p77 = scmp.ne.s32.totalorder %s68, %s69
    %p78 = scmp.eq.s32.totalorder %s16, 0
    %p79 = por %p77, %p78
    %p80 = scmp.ne.s32.totalorder %s68, %s69
    %p81 = scmp.eq.s32.totalorder %s17, 1
    %p82 = por %p80, %p81
    %p84 = scmp.ne.s32.totalorder %s69, %s83
    %p85 = scmp.eq.s32.totalorder %s17, 0
    %p86 = por %p84, %p85
    %s88 = sadd.s32 %s87, 1
    %p91 = scmp.eq.s32.totalorder %s11, 1
    %p92 = scmp.ne.s32.totalorder %s87, %s89
    %p93 = scmp.eq.s32.totalorder %s11, 0
    %p94 = por %p92, %p93
    %p95 = scmp.ne.s32.totalorder %s87, %s89
    %p96 = scmp.eq.s32.totalorder %s16, 1
    %p97 = por %p95, %p96
    %p98 = scmp.ne.s32.totalorder %s89, %s90
    %p99 = scmp.eq.s32.totalorder %s16, 0
    %p100 = por %p98, %p99
    %p101 = scmp.ne.s32.totalorder %s89, %s90
    %p102 = scmp.eq.s32.totalorder %s17, 1
    %p103 = por %p101, %p102
    %p105 = scmp.ne.s32.totalorder %s90, %s104
    %p106 = scmp.eq.s32.totalorder %s17, 0
    %p107 = por %p105, %p106
    %s109 = sadd.s32 %s108, 1
    %p112 = scmp.eq.s32.totalorder %s11, 1
    %p113 = scmp.ne.s32.totalorder %s108, %s110
    %p114 = scmp.eq.s32.totalorder %s11, 0
    %p115 = por %p113, %p114
    %p116 = scmp.ne.s32.totalorder %s108, %s110
    %p117 = scmp.eq.s32.totalorder %s16, 1
    %p118 = por %p116, %p117
    %p119 = scmp.ne.s32.totalorder %s110, %s111
    %p120 = scmp.eq.s32.totalorder %s16, 0
    %p121 = por %p119, %p120
    %p122 = scmp.ne.s32.totalorder %s110, %s111
    %p123 = scmp.eq.s32.totalorder %s17, 1
    %p124 = por %p122, %p123
    %p126 = scmp.ne.s32.totalorder %s111, %s125
    %p127 = scmp.eq.s32.totalorder %s17, 0
    %p128 = por %p126, %p127
    %s129 = ssub.s32 %s11, %s18
    %p130 = scmp.eq.s32.totalorder %s129, 0
    %s132 = sadd.s32 %s131, 1
    %s133 = scalar_select %p130, %s131, %s132
    %p136 = pneg %p130
    %p137 = scmp.eq.s32.totalorder %s11, 1
    %p138 = por %p136, %p137
    %p139 = scmp.ne.s32.totalorder %s131, %s134
    %p140 = scmp.eq.s32.totalorder %s11, 0
    %p141 = por %p139, %p140
    %p142 = scmp.ne.s32.totalorder %s131, %s134
    %p143 = scmp.eq.s32.totalorder %s16, 1
    %p144 = por %p142, %p143
    %p145 = scmp.ne.s32.totalorder %s134, %s135
    %p146 = scmp.eq.s32.totalorder %s16, 0
    %p147 = por %p145, %p146
    %p148 = scmp.ne.s32.totalorder %s134, %s135
    %p149 = scmp.eq.s32.totalorder %s17, 1
    %p150 = por %p148, %p149
    %p152 = scmp.ne.s32.totalorder %s135, %s151
    %p153 = scmp.eq.s32.totalorder %s17, 0
    %p154 = por %p152, %p153
    %p155 = scmp.le.s32.totalorder 1, %s11
    %p156 = scmp.lt.s32.totalorder %s11, 3
    %p157 = pnand %p155, %p156
    %p158 = pneg %p157
    // Predicated region
    $region9: #{multi_channel_encoder.5} parent=5 // pred_check
      _
    $region10: #{multi_channel_encoder.5} parent=5 // pred_check_branch
      %160 = sbr.rel (%p157) target = $region12
    $region11: #{multi_channel_encoder.5} parent=5 // pred_region
      %s161 = ssub.s32 %s11, 1
      // Predicated region
      $region13: #{multi_channel_encoder.5} parent=11 // pred_check
        %p162 = pneg %p58
      $region14: #{multi_channel_encoder.5} parent=11 // pred_check_branch
        %164 = sbr.rel (%p162) target = $region16
      $region15: #{multi_channel_encoder.5} parent=11 // pred_region
        _
      $region16: #{multi_channel_encoder.5} parent=11 // pred_fallthru
        _
      // Predicated region
      $region17: #{multi_channel_encoder.5} parent=11 // pred_check
        %p165 = pneg %p79
      $region18: #{multi_channel_encoder.5} parent=11 // pred_check_branch
        %167 = sbr.rel (%p165) target = $region20
      $region19: #{multi_channel_encoder.5} parent=11 // pred_region
        _
      $region20: #{multi_channel_encoder.5} parent=11 // pred_fallthru
        _
      // Predicated region
      $region21: #{multi_channel_encoder.5} parent=11 // pred_check
        %p168 = pneg %p100
      $region22: #{multi_channel_encoder.5} parent=11 // pred_check_branch
        %170 = sbr.rel (%p168) target = $region24
      $region23: #{multi_channel_encoder.5} parent=11 // pred_region
        _
      $region24: #{multi_channel_encoder.5} parent=11 // pred_fallthru
        _
      // Predicated region
      $region25: #{multi_channel_encoder.5} parent=11 // pred_check
        %p171 = pneg %p121
      $region26: #{multi_channel_encoder.5} parent=11 // pred_check_branch
        %173 = sbr.rel (%p171) target = $region28
      $region27: #{multi_channel_encoder.5} parent=11 // pred_region
        _
      $region28: #{multi_channel_encoder.5} parent=11 // pred_fallthru
        _
    $region12: #{multi_channel_encoder.5} parent=5 // pred_fallthru
      _
    %p174 = scmp.lt.s32.totalorder %s11, 2
    // Predicated region
    $region29: #{multi_channel_encoder.5} parent=5 // pred_check
      %p175 = pneg %p174
    $region30: #{multi_channel_encoder.5} parent=5 // pred_check_branch
      %177 = sbr.rel (%p175) target = $region32
    $region31: #{multi_channel_encoder.5} parent=5 // pred_region
      // Predicated region
      $region33: #{multi_channel_encoder.5} parent=31 // pred_check
        %p178 = pneg %p31
      $region34: #{multi_channel_encoder.5} parent=31 // pred_check_branch
        %180 = sbr.rel (%p178) target = $region36
      $region35: #{multi_channel_encoder.5} parent=31 // pred_region
        %p181 = scmp.lt.s32.totalorder %s11, 1
        %s182 = scalar_select %p181, %s11, 1
        %s183 = smul.addr %s182, 2
        %s184 = smul.addr %s183, 4
        %s185 = scalar_lea.vmem %s0, %s184
      $region36: #{multi_channel_encoder.5} parent=31 // pred_fallthru
        _
    $region32: #{multi_channel_encoder.5} parent=5 // pred_fallthru
      _
    %p186 = scmp.le.s32.totalorder 1, %s11
    %p187 = scmp.lt.s32.totalorder %s11, 3
    %p188 = pnand %p186, %p187
    %p189 = pneg %p188
    // Predicated region
    $region37: #{multi_channel_encoder.5} parent=5 // pred_check
      _
    $region38: #{multi_channel_encoder.5} parent=5 // pred_check_branch
      %191 = sbr.rel (%p188) target = $region40
    $region39: #{multi_channel_encoder.5} parent=5 // pred_region
      %s192 = ssub.s32 %s11, 1
      %p193 = scmp.lt.s32.totalorder %s16, 1
      %s194 = scalar_select %p193, %s16, 1
      %s195 = smul.addr %s194, 2
      %s196 = smul.addr %s195, 4
      %s197 = scalar_lea.vmem %s0, %s196
      %p198 = pneg %p37
      %p199 = pneg %p34
      %p200 = pneg %p58
      %p201 = pneg %p55
      %p202 = pneg %p79
      %p203 = pneg %p76
      %p204 = pneg %p100
      %p205 = pneg %p97
      %p206 = pneg %p121
      %p207 = pneg %p118
      %p208 = pneg %p147
      %p209 = pneg %p144
      %p210 = scmp.lt.s32.totalorder %s16, 1
      %s211 = scalar_select %p210, %s16, 1
      %s212 = smul.addr %s211, 2
      %s213 = smul.addr %s212, 8
      %s214 = scalar_lea.vmem %s5, %s213
      %p215 = scmp.lt.s32.totalorder %s16, 1
      %s216 = scalar_select %p215, %s16, 1
      %s217 = smul.addr %s216, 2
      %s218 = smul.addr %s217, 4
      %s219 = scalar_lea.vmem %s0, %s218
      %p220 = scmp.lt.s32.totalorder %s16, 1
      %s221 = scalar_select %p220, %s16, 1
      %s222 = smul.addr %s221, 2
      %s223 = smul.addr %s222, 8
      %s224 = scalar_lea.vmem %s5, %s223
      %v228 = vlaneseq
      %v229 = vshrl.u32 %v228, 7
      %v230 = vadd.s32 %v229, 8
      %v231 = vand.u32 %v229, 3
      %v232 = vand.u32 %v230, 3
      %vm233 = vcmp.lt.s32.totalorder %v231, 3
      %vm234 = vcmp.lt.s32.totalorder %v232, 3
      %vm235 = vcmp.gt.s32.totalorder %v231, 0
      %vm236 = vcmp.gt.s32.totalorder %v232, 0
      %vm237 = vcmask 519168
      %238 = vst.msk [vmem:[#allocation2] sm:$0xf] %vm237, 0
      %vm239 = vcmask 523268
      %240 = vst.msk [vmem:[#allocation2 + $0x8] sm:$0xf0] %vm239, 0
      %v241 = vld [vmem:[%s219] sm:$0xf]
      %v242 = vld [vmem:[%s219 + $0x4] sm:$0xf]
      %v245 = vunpack.c.l.b16 %v241
      %v246 = vunpack.c.l.b16 %v242
      %v247 = vpack.c.b16 %v245, %v245
      %v248 = vpack.c.b16 %v246, %v246
      %251 = vst.msk [vmem:[#allocation2] sm:$0xf0] %vm239, %v247
      %252 = vst.msk [vmem:[#allocation2 + $0x8] sm:$0xf] %vm237, %v248
      %v253 = vld [vmem:[#allocation2] sm:$0xfe]
      %v254 = vld [vmem:[#allocation2 + $0x8] sm:$0x3]
      %v255 = vsel %vm235, 1, 0
      %v256 = vsel %vm236, 1, 0
      %vm257 = vcmp.eq.s32.totalorder %v255, 1
      %vm258 = vcmp.eq.s32.totalorder %v256, 1
      %vm259 = vmpackc.low %vm257, %vm257
      %vm260 = vmpackc.low %vm258, %vm258
      %v261 = vsel %vm259, 65537, 0
      %v262 = vsel %vm260, 65537, 0
      %v263 = vunpack.c.l.b16 %v261
      %v264 = vunpack.c.l.b16 %v262
      %v265 = vpack.c.b16 %v264, %v263
      %v267 = vshrl.u32 %v265, 16
      %v269 = vrot.slane %v267, 6
      %v270 = vshll.u32 %v265, 16
      %v272 = vrot.slane %v270, 7
      %v273 = vor.u32 %v269, %v272
      %vm274 = vcmp.ne.s16.totalorder %v273, 0
      %v275 = vsel %vm274, %v253, 0
      %v276 = vsel %vm274, %v254, 0
      %vm277 = vsmask.f32 6400
      %v279 = vshrl.u32 %v275, 16
      %v281 = vrot.slane %v279, 1
      %v282 = vshll.u32 %v275, 16
      %v284 = vrot.slane %v282, 2
      %v285 = vor.u32 %v281, %v284
      %v287 = vshrl.u32 %v276, 16
      %v289 = vrot.slane %v287, 1
      %v290 = vshll.u32 %v276, 16
      %v292 = vrot.slane %v290, 2
      %v293 = vor.u32 %v289, %v292
      %v294 = vsel %vm277, %v285, %v293
      %vm296 = vcmask 523264
      %297 = vst.msk [vmem:[#allocation4] sm:$0xff] %vm296, %v294
      %v298 = vld [vmem:[#allocation2] sm:$0xfc]
      %v299 = vld [vmem:[#allocation2 + $0x8] sm:$0x3]
      %vm302 = vcmask 1045504
      %v303 = vrot.slane %v298, 2
      %v304 = vrot.slane %v299, 2
      %v305 = vsel %vm302, %v303, %v304
      %306 = vrot.lane.b32.xlu0 %v305, 64
      %v307 = vpop.permute.xlu0 %306
      %vm309 = vcmask 1048064
      %310 = vst.msk [vmem:[#allocation4] sm:$0xff] %vm309, %v307
      %v311 = vld [vmem:[#allocation2] sm:$0xfc]
      %v312 = vld [vmem:[#allocation2 + $0x8] sm:$0x7]
      %v313 = vsel %vm233, 1, 0
      %v314 = vsel %vm234, 1, 0
      %vm315 = vcmp.eq.s32.totalorder %v313, 1
      %vm316 = vcmp.eq.s32.totalorder %v314, 1
      %vm317 = vmpackc.low %vm315, %vm315
      %vm318 = vmpackc.low %vm316, %vm316
      %v319 = vsel %vm317, 65537, 0
      %v320 = vsel %vm318, 65537, 0
      %v321 = vunpack.c.l.b16 %v319
      %v322 = vunpack.c.l.b16 %v320
      %v323 = vpack.c.b16 %v322, %v321
      %v325 = vshrl.u32 %v323, 16
      %v327 = vrot.slane %v325, 5
      %v328 = vshll.u32 %v323, 16
      %v330 = vrot.slane %v328, 6
      %v331 = vor.u32 %v327, %v330
      %vm332 = vcmp.ne.s16.totalorder %v331, 0
      %v333 = vsel %vm332, %v311, 0
      %v334 = vsel %vm332, %v312, 0
      %vm335 = vsmask.f32 5376
      %v337 = vshrl.u32 %v333, 16
      %v339 = vrot.slane %v337, 2
      %v340 = vshll.u32 %v333, 16
      %v342 = vrot.slane %v340, 3
      %v343 = vor.u32 %v339, %v342
      %v345 = vshrl.u32 %v334, 16
      %v347 = vrot.slane %v345, 2
      %v348 = vshll.u32 %v334, 16
      %v350 = vrot.slane %v348, 3
      %v351 = vor.u32 %v347, %v350
      %v352 = vsel %vm335, %v343, %v351
      %354 = vst.msk [vmem:[#allocation4 + $0x8] sm:$0xff] %vm296, %v352
      %v355 = vld [vmem:[#allocation2] sm:$0xf8]
      %v356 = vld [vmem:[#allocation2 + $0x8] sm:$0xf]
      %v357 = vrot.slane %v267, 4
      %v358 = vrot.slane %v270, 5
      %v359 = vor.u32 %v357, %v358
      %vm360 = vcmp.ne.s16.totalorder %v359, 0
      %v361 = vsel %vm360, %v355, 0
      %v362 = vsel %vm360, %v356, 0
      %vm363 = vsmask.f32 4352
      %v365 = vshrl.u32 %v361, 16
      %v367 = vrot.slane %v365, 3
      %v368 = vshll.u32 %v361, 16
      %v370 = vrot.slane %v368, 4
      %v371 = vor.u32 %v367, %v370
      %v373 = vshrl.u32 %v362, 16
      %v375 = vrot.slane %v373, 3
      %v376 = vshll.u32 %v362, 16
      %v378 = vrot.slane %v376, 4
      %v379 = vor.u32 %v375, %v378
      %v380 = vsel %vm363, %v371, %v379
      %381 = vrot.lane.b32.xlu0 %v380, 64
      %v382 = vpop.permute.xlu0 %381
      %384 = vst.msk [vmem:[#allocation4 + $0x8] sm:$0xff] %vm309, %v382
      %v385 = vld [vmem:[#allocation2] sm:$0xf0]
      %v386 = vld [vmem:[#allocation2 + $0x8] sm:$0xf]
      %vm389 = vcmask 1043456
      %v390 = vrot.slane %v385, 4
      %v391 = vrot.slane %v386, 4
      %v392 = vsel %vm389, %v390, %v391
      %394 = vst.msk [vmem:[#allocation4 + $0x10] sm:$0xff] %vm296, %v392
      %v395 = vld [vmem:[#allocation2] sm:$0xf0]
      %v396 = vld [vmem:[#allocation2 + $0x8] sm:$0x1f]
      %v397 = vrot.slane %v325, 3
      %v398 = vrot.slane %v328, 4
      %v399 = vor.u32 %v397, %v398
      %vm400 = vcmp.ne.s16.totalorder %v399, 0
      %v401 = vsel %vm400, %v395, 0
      %v402 = vsel %vm400, %v396, 0
      %vm403 = vsmask.f32 3328
      %v405 = vshrl.u32 %v401, 16
      %v407 = vrot.slane %v405, 4
      %v408 = vshll.u32 %v401, 16
      %v410 = vrot.slane %v408, 5
      %v411 = vor.u32 %v407, %v410
      %v413 = vshrl.u32 %v402, 16
      %v415 = vrot.slane %v413, 4
      %v416 = vshll.u32 %v402, 16
      %v418 = vrot.slane %v416, 5
      %v419 = vor.u32 %v415, %v418
      %v420 = vsel %vm403, %v411, %v419
      %421 = vrot.lane.b32.xlu0 %v420, 64
      %v422 = vpop.permute.xlu0 %421
      %424 = vst.msk [vmem:[#allocation4 + $0x10] sm:$0xff] %vm309, %v422
      %v425 = vld [vmem:[#allocation2] sm:$0xe0]
      %v426 = vld [vmem:[#allocation2 + $0x8] sm:$0x3f]
      %v427 = vrot.slane %v267, 2
      %v428 = vrot.slane %v270, 3
      %v429 = vor.u32 %v427, %v428
      %vm430 = vcmp.ne.s16.totalorder %v429, 0
      %v431 = vsel %vm430, %v425, 0
      %v432 = vsel %vm430, %v426, 0
      %vm433 = vsmask.f32 2304
      %v435 = vshrl.u32 %v431, 16
      %v437 = vrot.slane %v435, 5
      %v438 = vshll.u32 %v431, 16
      %v440 = vrot.slane %v438, 6
      %v441 = vor.u32 %v437, %v440
      %v443 = vshrl.u32 %v432, 16
      %v445 = vrot.slane %v443, 5
      %v446 = vshll.u32 %v432, 16
      %v448 = vrot.slane %v446, 6
      %v449 = vor.u32 %v445, %v448
      %v450 = vsel %vm433, %v441, %v449
      %452 = vst.msk [vmem:[#allocation4 + $0x18] sm:$0xff] %vm296, %v450
      %v453 = vld [vmem:[#allocation2] sm:$0xc0]
      %v454 = vld [vmem:[#allocation2 + $0x8] sm:$0x3f]
      %vm457 = vcmask 1041408
      %v458 = vrot.slane %v453, 6
      %v459 = vrot.slane %v454, 6
      %v460 = vsel %vm457, %v458, %v459
      %461 = vrot.lane.b32.xlu0 %v460, 64
      %v462 = vpop.permute.xlu0 %461
      %464 = vst.msk [vmem:[#allocation4 + $0x18] sm:$0xff] %vm309, %v462
      %v465 = vld [vmem:[#allocation2] sm:$0xc0]
      %v466 = vld [vmem:[#allocation2 + $0x8] sm:$0x7f]
      %v467 = vrot.slane %v325, 1
      %v468 = vrot.slane %v328, 2
      %v469 = vor.u32 %v467, %v468
      %vm470 = vcmp.ne.s16.totalorder %v469, 0
      %v471 = vsel %vm470, %v465, 0
      %v472 = vsel %vm470, %v466, 0
      %vm473 = vsmask.f32 1280
      %v475 = vshrl.u32 %v471, 16
      %v477 = vrot.slane %v475, 6
      %v478 = vshll.u32 %v471, 16
      %v480 = vrot.slane %v478, 7
      %v481 = vor.u32 %v477, %v480
      %v483 = vshrl.u32 %v472, 16
      %v485 = vrot.slane %v483, 6
      %v486 = vshll.u32 %v472, 16
      %v488 = vrot.slane %v486, 7
      %v489 = vor.u32 %v485, %v488
      %v490 = vsel %vm473, %v481, %v489
      %492 = vst.msk [vmem:[#allocation4 + $0x20] sm:$0xff] %vm296, %v490
      %v493 = vld [vmem:[#allocation4] sm:$0xff]
      %v494 = vld [vmem:[#allocation4 + $0x8] sm:$0xff]
      %v495 = vld [vmem:[#allocation4 + $0x10] sm:$0xff]
      %v496 = vld [vmem:[#allocation4 + $0x18] sm:$0xff]
      %v497 = vld [vmem:[#allocation4 + $0x20] sm:$0xff]
      %v498 = vld [vmem:[%s1] sm:$0xf]
      %v499 = vld [vmem:[%s1 + $0x4] sm:$0xf]
      %v500 = vld [vmem:[%s1 + $0x8] sm:$0xf]
      %v501 = vld [vmem:[%s1 + $0xc] sm:$0xf]
      %v502 = vld [vmem:[%s1 + $0x10] sm:$0xf]
      %v503 = vld [vmem:[%s1 + $0x14] sm:$0xf]
      %v504 = vld [vmem:[%s1 + $0x18] sm:$0xf]
      %v505 = vld [vmem:[%s1 + $0x1c] sm:$0xf]
      %v506 = vld [vmem:[%s1 + $0x20] sm:$0xf]
      %v507 = vld [vmem:[%s1 + $0x24] sm:$0xf]
      %v508 = vld [vmem:[%s1 + $0x28] sm:$0xf]
      %v509 = vld [vmem:[%s1 + $0x2c] sm:$0xf]
      %v510 = vld [vmem:[%s1 + $0x30] sm:$0xf]
      %v511 = vld [vmem:[%s1 + $0x34] sm:$0xf]
      %v512 = vld [vmem:[%s1 + $0x38] sm:$0xf]
      %v513 = vld [vmem:[%s1 + $0x3c] sm:$0xf]
      %v514 = vld [vmem:[%s1 + $0x40] sm:$0xf]
      %v515 = vld [vmem:[%s1 + $0x44] sm:$0xf]
      %v516 = vld [vmem:[%s1 + $0x48] sm:$0xf]
      %v517 = vld [vmem:[%s1 + $0x4c] sm:$0xf]
      %v518 = vld [vmem:[%s1 + $0x50] sm:$0xf]
      %v519 = vld [vmem:[%s1 + $0x54] sm:$0xf]
      %v520 = vld [vmem:[%s1 + $0x58] sm:$0xf]
      %v521 = vld [vmem:[%s1 + $0x5c] sm:$0xf]
      %v522 = vld [vmem:[%s1 + $0x60] sm:$0xf]
      %v523 = vld [vmem:[%s1 + $0x64] sm:$0xf]
      %v524 = vld [vmem:[%s1 + $0x68] sm:$0xf]
      %v525 = vld [vmem:[%s1 + $0x6c] sm:$0xf]
      %v526 = vld [vmem:[%s1 + $0x70] sm:$0xf]
      %v527 = vld [vmem:[%s1 + $0x74] sm:$0xf]
      %v528 = vld [vmem:[%s1 + $0x78] sm:$0xf]
      %v529 = vld [vmem:[%s1 + $0x7c] sm:$0xf]
      %v530 = vld [vmem:[%s1 + $0x80] sm:$0xf]
      %v531 = vld [vmem:[%s1 + $0x84] sm:$0xf]
      %v532 = vld [vmem:[%s1 + $0x88] sm:$0xf]
      %v533 = vld [vmem:[%s1 + $0x8c] sm:$0xf]
      %v534 = vld [vmem:[%s1 + $0x90] sm:$0xf]
      %v535 = vld [vmem:[%s1 + $0x94] sm:$0xf]
      %v536 = vld [vmem:[%s1 + $0x98] sm:$0xf]
      %v537 = vld [vmem:[%s1 + $0x9c] sm:$0xf]
      %v538 = vld [vmem:[%s1 + $0xa0] sm:$0xf]
      %v539 = vld [vmem:[%s1 + $0xa4] sm:$0xf]
      %v540 = vld [vmem:[%s1 + $0xa8] sm:$0xf]
      %v541 = vld [vmem:[%s1 + $0xac] sm:$0xf]
      %v542 = vld [vmem:[%s1 + $0xb0] sm:$0xf]
      %v543 = vld [vmem:[%s1 + $0xb4] sm:$0xf]
      %v544 = vld [vmem:[%s1 + $0xb8] sm:$0xf]
      %v545 = vld [vmem:[%s1 + $0xbc] sm:$0xf]
      %v546 = vld [vmem:[%s1 + $0xc0] sm:$0xf]
      %v547 = vld [vmem:[%s1 + $0xc4] sm:$0xf]
      %v548 = vld [vmem:[%s1 + $0xc8] sm:$0xf]
      %v549 = vld [vmem:[%s1 + $0xcc] sm:$0xf]
      %v550 = vld [vmem:[%s1 + $0xd0] sm:$0xf]
      %v551 = vld [vmem:[%s1 + $0xd4] sm:$0xf]
      %v552 = vld [vmem:[%s1 + $0xd8] sm:$0xf]
      %v553 = vld [vmem:[%s1 + $0xdc] sm:$0xf]
      %v554 = vld [vmem:[%s1 + $0xe0] sm:$0xf]
      %v555 = vld [vmem:[%s1 + $0xe4] sm:$0xf]
      %v556 = vld [vmem:[%s1 + $0xe8] sm:$0xf]
      %v557 = vld [vmem:[%s1 + $0xec] sm:$0xf]
      %v558 = vld [vmem:[%s1 + $0xf0] sm:$0xf]
      %v559 = vld [vmem:[%s1 + $0xf4] sm:$0xf]
      %v560 = vld [vmem:[%s1 + $0xf8] sm:$0xf]
      %v561 = vld [vmem:[%s1 + $0xfc] sm:$0xf]
      %v562 = vld [vmem:[%s1 + $0x100] sm:$0xf]
      %v563 = vld [vmem:[%s1 + $0x104] sm:$0xf]
      %v564 = vld [vmem:[%s1 + $0x108] sm:$0xf]
      %v565 = vld [vmem:[%s1 + $0x10c] sm:$0xf]
      %v566 = vld [vmem:[%s1 + $0x110] sm:$0xf]
      %v567 = vld [vmem:[%s1 + $0x114] sm:$0xf]
      %v568 = vld [vmem:[%s1 + $0x118] sm:$0xf]
      %v569 = vld [vmem:[%s1 + $0x11c] sm:$0xf]
      %v570 = vld [vmem:[%s2] sm:$0x1]
      %v572 = vlaneseq
      %v573 = vshrl.u32 %v572, 7
      %v574 = vsub.s32 0, %v573
      %v575 = vrot.slane %v570, %v574
      %v649 = vunpack.c.l.b16 %v498
      %v650 = vunpack.c.l.b16 %v499
      %v651 = vunpack.c.l.b16 %v500
      %v652 = vunpack.c.l.b16 %v501
      %v653 = vunpack.c.l.b16 %v502
      %v654 = vunpack.c.l.b16 %v503
      %v655 = vunpack.c.l.b16 %v504
      %v656 = vunpack.c.l.b16 %v505
      %v657 = vunpack.c.l.b16 %v506
      %v658 = vunpack.c.l.b16 %v507
      %v659 = vunpack.c.l.b16 %v508
      %v660 = vunpack.c.l.b16 %v509
      %v661 = vunpack.c.l.b16 %v510
      %v662 = vunpack.c.l.b16 %v511
      %v663 = vunpack.c.l.b16 %v512
      %v664 = vunpack.c.l.b16 %v513
      %v665 = vunpack.c.l.b16 %v514
      %v666 = vunpack.c.l.b16 %v515
      %v667 = vunpack.c.l.b16 %v516
      %v668 = vunpack.c.l.b16 %v517
      %v669 = vunpack.c.l.b16 %v518
      %v670 = vunpack.c.l.b16 %v519
      %v671 = vunpack.c.l.b16 %v520
      %v672 = vunpack.c.l.b16 %v521
      %v673 = vunpack.c.l.b16 %v522
      %v674 = vunpack.c.l.b16 %v523
      %v675 = vunpack.c.l.b16 %v524
      %v676 = vunpack.c.l.b16 %v525
      %v677 = vunpack.c.l.b16 %v526
      %v678 = vunpack.c.l.b16 %v527
      %v679 = vunpack.c.l.b16 %v528
      %v680 = vunpack.c.l.b16 %v529
      %v681 = vunpack.c.l.b16 %v530
      %v682 = vunpack.c.l.b16 %v531
      %v683 = vunpack.c.l.b16 %v532
      %v684 = vunpack.c.l.b16 %v533
      %v685 = vunpack.c.l.b16 %v534
      %v686 = vunpack.c.l.b16 %v535
      %v687 = vunpack.c.l.b16 %v536
      %v688 = vunpack.c.l.b16 %v537
      %v689 = vunpack.c.l.b16 %v538
      %v690 = vunpack.c.l.b16 %v539
      %v691 = vunpack.c.l.b16 %v540
      %v692 = vunpack.c.l.b16 %v541
      %v693 = vunpack.c.l.b16 %v542
      %v694 = vunpack.c.l.b16 %v543
      %v695 = vunpack.c.l.b16 %v544
      %v696 = vunpack.c.l.b16 %v545
      %v697 = vunpack.c.l.b16 %v546
      %v698 = vunpack.c.l.b16 %v547
      %v699 = vunpack.c.l.b16 %v548
      %v700 = vunpack.c.l.b16 %v549
      %v701 = vunpack.c.l.b16 %v550
      %v702 = vunpack.c.l.b16 %v551
      %v703 = vunpack.c.l.b16 %v552
      %v704 = vunpack.c.l.b16 %v553
      %v705 = vunpack.c.l.b16 %v554
      %v706 = vunpack.c.l.b16 %v555
      %v707 = vunpack.c.l.b16 %v556
      %v708 = vunpack.c.l.b16 %v557
      %v709 = vunpack.c.l.b16 %v558
      %v710 = vunpack.c.l.b16 %v559
      %v711 = vunpack.c.l.b16 %v560
      %v712 = vunpack.c.l.b16 %v561
      %v713 = vunpack.c.l.b16 %v562
      %v714 = vunpack.c.l.b16 %v563
      %v715 = vunpack.c.l.b16 %v564
      %v716 = vunpack.c.l.b16 %v565
      %v717 = vunpack.c.l.b16 %v566
      %v718 = vunpack.c.l.b16 %v567
      %v719 = vunpack.c.l.b16 %v568
      %v720 = vunpack.c.l.b16 %v569
      %v721 = vpack.c.b16 %v650, %v649
      %v722 = vpack.c.b16 %v652, %v651
      %v723 = vpack.c.b16 %v654, %v653
      %v724 = vpack.c.b16 %v656, %v655
      %v725 = vpack.c.b16 %v658, %v657
      %v726 = vpack.c.b16 %v660, %v659
      %v727 = vpack.c.b16 %v662, %v661
      %v728 = vpack.c.b16 %v664, %v663
      %v729 = vpack.c.b16 %v666, %v665
      %v730 = vpack.c.b16 %v668, %v667
      %v731 = vpack.c.b16 %v670, %v669
      %v732 = vpack.c.b16 %v672, %v671
      %v733 = vpack.c.b16 %v674, %v673
      %v734 = vpack.c.b16 %v676, %v675
      %v735 = vpack.c.b16 %v678, %v677
      %v736 = vpack.c.b16 %v680, %v679
      %v737 = vpack.c.b16 %v682, %v681
      %v738 = vpack.c.b16 %v684, %v683
      %v739 = vpack.c.b16 %v686, %v685
      %v740 = vpack.c.b16 %v688, %v687
      %v741 = vpack.c.b16 %v690, %v689
      %v742 = vpack.c.b16 %v692, %v691
      %v743 = vpack.c.b16 %v694, %v693
      %v744 = vpack.c.b16 %v696, %v695
      %v745 = vpack.c.b16 %v698, %v697
      %v746 = vpack.c.b16 %v700, %v699
      %v747 = vpack.c.b16 %v702, %v701
      %v748 = vpack.c.b16 %v704, %v703
      %v749 = vpack.c.b16 %v706, %v705
      %v750 = vpack.c.b16 %v708, %v707
      %v751 = vpack.c.b16 %v710, %v709
      %v752 = vpack.c.b16 %v712, %v711
      %v753 = vpack.c.b16 %v714, %v713
      %v754 = vpack.c.b16 %v716, %v715
      %v755 = vpack.c.b16 %v718, %v717
      %v756 = vpack.c.b16 %v720, %v719
      %v794 = vsel %vm296, %v497, 0
      %796 = vmatprep.subr.bf16.mxu0 0
      %797 = vmatpush1.bf16.msra.mxu0 %v721
      %798 = vmatprep.subr.bf16.mxu0 0
      %799 = vmatpush1.bf16.msra.mxu0 %v722
      %800 = vmatprep.subr.bf16.mxu0 0
      %801 = vmatpush1.bf16.msra.mxu0 %v723
      %802 = vmatprep.subr.bf16.mxu0 0
      %803 = vmatpush1.bf16.msra.mxu0 %v724
      %804 = vmatprep.subr.bf16.mxu0 0
      %805 = vmatpush1.bf16.msra.mxu0 %v725
      %806 = vmatprep.subr.bf16.mxu0 0
      %807 = vmatpush1.bf16.msra.mxu0 %v726
      %808 = vmatprep.subr.bf16.mxu0 0
      %809 = vmatpush1.bf16.msra.mxu0 %v727
      %810 = vmatprep.subr.bf16.mxu0 0
      %811 = vmatpush1.bf16.msra.mxu0 %v728
      %812 = vmatprep.subr.bf16.mxu0 0
      %813 = vmatpush1.bf16.msra.mxu0 %v729
      %814 = vmatprep.subr.bf16.mxu0 0
      %815 = vmatpush1.bf16.msra.mxu0 %v730
      %816 = vmatprep.subr.bf16.mxu0 0
      %817 = vmatpush1.bf16.msra.mxu0 %v731
      %818 = vmatprep.subr.bf16.mxu0 0
      %819 = vmatpush1.bf16.msra.mxu0 %v732
      %820 = vmatprep.subr.bf16.mxu0 0
      %821 = vmatpush1.bf16.msra.mxu0 %v733
      %822 = vmatprep.subr.bf16.mxu0 0
      %823 = vmatpush1.bf16.msra.mxu0 %v734
      %824 = vmatprep.subr.bf16.mxu0 0
      %825 = vmatpush1.bf16.msra.mxu0 %v735
      %826 = vmatprep.subr.bf16.mxu0 0
      %827 = vmatpush1.bf16.msra.mxu0 %v736
      %828 = vmatprep.mubr.bf16.mxu0 %v494
      %829 = vmatmul.mubr.bf16.gmra.mrb[0].mxu0 %v493
      %v830 = vpop.f32.mrb[0].mxu0
      %v831 = vadd.f32 %v575, %v830
      %v832 = vpop.f32.mrb[0].mxu0
      %v833 = vpop.f32.mrb[0].mxu0
      %v834 = vadd.f32 %v575, %v833
      %v835 = vpop.f32.mrb[0].mxu0
      %836 = vdwg.mxu0
      %837 = vmatprep.subr.bf16.mxu0 0
      %838 = vmatpush1.bf16.msra.mxu0 %v737
      %839 = vmatprep.subr.bf16.mxu0 0
      %840 = vmatpush1.bf16.msra.mxu0 %v738
      %841 = vmatprep.subr.bf16.mxu0 0
      %842 = vmatpush1.bf16.msra.mxu0 %v739
      %843 = vmatprep.subr.bf16.mxu0 0
      %844 = vmatpush1.bf16.msra.mxu0 %v740
      %845 = vmatprep.subr.bf16.mxu0 0
      %846 = vmatpush1.bf16.msra.mxu0 %v741
      %847 = vmatprep.subr.bf16.mxu0 0
      %848 = vmatpush1.bf16.msra.mxu0 %v742
      %849 = vmatprep.subr.bf16.mxu0 0
      %850 = vmatpush1.bf16.msra.mxu0 %v743
      %851 = vmatprep.subr.bf16.mxu0 0
      %852 = vmatpush1.bf16.msra.mxu0 %v744
      %853 = vmatprep.subr.bf16.mxu0 0
      %854 = vmatpush1.bf16.msra.mxu0 %v745
      %855 = vmatprep.subr.bf16.mxu0 0
      %856 = vmatpush1.bf16.msra.mxu0 %v746
      %857 = vmatprep.subr.bf16.mxu0 0
      %858 = vmatpush1.bf16.msra.mxu0 %v747
      %859 = vmatprep.subr.bf16.mxu0 0
      %860 = vmatpush1.bf16.msra.mxu0 %v748
      %861 = vmatprep.subr.bf16.mxu0 0
      %862 = vmatpush1.bf16.msra.mxu0 %v749
      %863 = vmatprep.subr.bf16.mxu0 0
      %864 = vmatpush1.bf16.msra.mxu0 %v750
      %865 = vmatprep.subr.bf16.mxu0 0
      %866 = vmatpush1.bf16.msra.mxu0 %v751
      %867 = vmatprep.subr.bf16.mxu0 0
      %868 = vmatpush1.bf16.msra.mxu0 %v752
      %869 = vmatprep.mubr.bf16.mxu0 %v496
      %870 = vmatmul.mubr.bf16.gmra.mrb[0].mxu0 %v495
      %v871 = vpop.f32.mrb[0].mxu0
      %v872 = vadd.f32 %v831, %v871
      %v873 = vpop.f32.mrb[0].mxu0
      %v874 = vpop.f32.mrb[0].mxu0
      %v875 = vadd.f32 %v834, %v874
      %v876 = vpop.f32.mrb[0].mxu0
      %877 = vdwg.mxu0
      %878 = vmatprep.subr.bf16.mxu0 0
      %879 = vmatpush1.bf16.msra.mxu0 %v753
      %880 = vmatprep.subr.bf16.mxu0 0
      %881 = vmatpush1.bf16.msra.mxu0 %v754
      %882 = vmatprep.subr.bf16.mxu0 0
      %883 = vmatpush1.bf16.msra.mxu0 %v755
      %884 = vmatprep.subr.bf16.mxu0 0
      %885 = vmatpush1.bf16.msra.mxu0 %v756
      %886 = vmatprep.subr.bf16.mxu0 0
      %887 = vmatpush1.bf16.msra.mxu0 0
      %888 = vmatprep.subr.bf16.mxu0 0
      %889 = vmatpush1.bf16.msra.mxu0 0
      %890 = vmatprep.subr.bf16.mxu0 0
      %891 = vmatpush1.bf16.msra.mxu0 0
      %892 = vmatprep.subr.bf16.mxu0 0
      %893 = vmatpush1.bf16.msra.mxu0 0
      %894 = vmatprep.subr.bf16.mxu0 0
      %895 = vmatpush1.bf16.msra.mxu0 0
      %896 = vmatprep.subr.bf16.mxu0 0
      %897 = vmatpush1.bf16.msra.mxu0 0
      %898 = vmatprep.subr.bf16.mxu0 0
      %899 = vmatpush1.bf16.msra.mxu0 0
      %900 = vmatprep.subr.bf16.mxu0 0
      %901 = vmatpush1.bf16.msra.mxu0 0
      %902 = vmatprep.subr.bf16.mxu0 0
      %903 = vmatpush1.bf16.msra.mxu0 0
      %904 = vmatprep.subr.bf16.mxu0 0
      %905 = vmatpush1.bf16.msra.mxu0 0
      %906 = vmatprep.subr.bf16.mxu0 0
      %907 = vmatpush1.bf16.msra.mxu0 0
      %908 = vmatprep.subr.bf16.mxu0 0
      %909 = vmatpush1.bf16.msra.mxu0 0
      %910 = vmatprep.mubr.bf16.mxu0 0
      %911 = vmatmul.mubr.bf16.gmra.mrb[0].mxu0 %v794
      %v912 = vpop.f32.mrb[0].mxu0
      %v913 = vadd.f32 %v872, %v912
      %v914 = vpop.f32.mrb[0].mxu0
      %v915 = vpop.f32.mrb[0].mxu0
      %v916 = vadd.f32 %v875, %v915
      %v917 = vpop.f32.mrb[0].mxu0
      %918 = vdwg.mxu0
      %v919 = vmax.f32 %v913, 0.0
      %v920 = vmax.f32 %v916, 0.0
      %921 = vst [vmem:[#allocation3] sm:$0xf] 0
      %922 = vst [vmem:[#allocation3 + $0x8] sm:$0xf0] 0
      %v923 = vpack.c.bf16 %v920, %v919
      %v925 = vrot.slane %v923, 4
      %927 = vst [vmem:[#allocation3] sm:$0xf0] %v925
      %928 = vst [vmem:[#allocation3 + $0x8] sm:$0xf] %v925
      %v929 = vld [vmem:[#allocation3] sm:$0xfe]
      %v930 = vld [vmem:[#allocation3 + $0x8] sm:$0x3]
      %v931 = vsel %vm274, %v929, 0
      %v932 = vsel %vm274, %v930, 0
      %v934 = vshrl.u32 %v931, 16
      %v936 = vrot.slane %v934, 1
      %v937 = vshll.u32 %v931, 16
      %v939 = vrot.slane %v937, 2
      %v940 = vor.u32 %v936, %v939
      %v942 = vshrl.u32 %v932, 16
      %v944 = vrot.slane %v942, 1
      %v945 = vshll.u32 %v932, 16
      %v947 = vrot.slane %v945, 2
      %v948 = vor.u32 %v944, %v947
      %v949 = vsel %vm277, %v940, %v948
      %951 = vst [vmem:[#allocation5] sm:$0xff] %v949
      %v952 = vld [vmem:[#allocation3] sm:$0xfc]
      %v953 = vld [vmem:[#allocation3 + $0x8] sm:$0x3]
      %v956 = vrot.slane %v952, 2
      %v957 = vrot.slane %v953, 2
      %v958 = vsel %vm302, %v956, %v957
      %960 = vst [vmem:[#allocation5 + $0x8] sm:$0xff] %v958
      %v961 = vld [vmem:[#allocation3] sm:$0xfc]
      %v962 = vld [vmem:[#allocation3 + $0x8] sm:$0x7]
      %v963 = vsel %vm332, %v961, 0
      %v964 = vsel %vm332, %v962, 0
      %v966 = vshrl.u32 %v963, 16
      %v968 = vrot.slane %v966, 2
      %v969 = vshll.u32 %v963, 16
      %v971 = vrot.slane %v969, 3
      %v972 = vor.u32 %v968, %v971
      %v974 = vshrl.u32 %v964, 16
      %v976 = vrot.slane %v974, 2
      %v977 = vshll.u32 %v964, 16
      %v979 = vrot.slane %v977, 3
      %v980 = vor.u32 %v976, %v979
      %v981 = vsel %vm335, %v972, %v980
      %983 = vst [vmem:[#allocation5 + $0x10] sm:$0xff] %v981
      %v984 = vld [vmem:[#allocation3] sm:$0xf8]
      %v985 = vld [vmem:[#allocation3 + $0x8] sm:$0xf]
      %v986 = vsel %vm360, %v984, 0
      %v987 = vsel %vm360, %v985, 0
      %v989 = vshrl.u32 %v986, 16
      %v991 = vrot.slane %v989, 3
      %v992 = vshll.u32 %v986, 16
      %v994 = vrot.slane %v992, 4
      %v995 = vor.u32 %v991, %v994
      %v997 = vshrl.u32 %v987, 16
      %v999 = vrot.slane %v997, 3
      %v1000 = vshll.u32 %v987, 16
      %v1002 = vrot.slane %v1000, 4
      %v1003 = vor.u32 %v999, %v1002
      %v1004 = vsel %vm363, %v995, %v1003
      %1006 = vst [vmem:[#allocation5 + $0x18] sm:$0xff] %v1004
      %v1007 = vld [vmem:[#allocation3] sm:$0xf0]
      %v1008 = vld [vmem:[#allocation3 + $0x8] sm:$0xf]
      %v1011 = vrot.slane %v1007, 4
      %v1012 = vrot.slane %v1008, 4
      %v1013 = vsel %vm389, %v1011, %v1012
      %1015 = vst [vmem:[#allocation5 + $0x20] sm:$0xff] %v1013
      %v1016 = vld [vmem:[#allocation3] sm:$0xf0]
      %v1017 = vld [vmem:[#allocation3 + $0x8] sm:$0x1f]
      %v1018 = vsel %vm400, %v1016, 0
      %v1019 = vsel %vm400, %v1017, 0
      %v1021 = vshrl.u32 %v1018, 16
      %v1023 = vrot.slane %v1021, 4
      %v1024 = vshll.u32 %v1018, 16
      %v1026 = vrot.slane %v1024, 5
      %v1027 = vor.u32 %v1023, %v1026
      %v1029 = vshrl.u32 %v1019, 16
      %v1031 = vrot.slane %v1029, 4
      %v1032 = vshll.u32 %v1019, 16
      %v1034 = vrot.slane %v1032, 5
      %v1035 = vor.u32 %v1031, %v1034
      %v1036 = vsel %vm403, %v1027, %v1035
      %1038 = vst [vmem:[#allocation5 + $0x28] sm:$0xff] %v1036
      %v1039 = vld [vmem:[#allocation3] sm:$0xe0]
      %v1040 = vld [vmem:[#allocation3 + $0x8] sm:$0x3f]
      %v1041 = vsel %vm430, %v1039, 0
      %v1042 = vsel %vm430, %v1040, 0
      %v1044 = vshrl.u32 %v1041, 16
      %v1046 = vrot.slane %v1044, 5
      %v1047 = vshll.u32 %v1041, 16
      %v1049 = vrot.slane %v1047, 6
      %v1050 = vor.u32 %v1046, %v1049
      %v1052 = vshrl.u32 %v1042, 16
      %v1054 = vrot.slane %v1052, 5
      %v1055 = vshll.u32 %v1042, 16
      %v1057 = vrot.slane %v1055, 6
      %v1058 = vor.u32 %v1054, %v1057
      %v1059 = vsel %vm433, %v1050, %v1058
      %1061 = vst [vmem:[#allocation5 + $0x30] sm:$0xff] %v1059
      %v1062 = vld [vmem:[#allocation3] sm:$0xc0]
      %v1063 = vld [vmem:[#allocation3 + $0x8] sm:$0x3f]
      %v1066 = vrot.slane %v1062, 6
      %v1067 = vrot.slane %v1063, 6
      %v1068 = vsel %vm457, %v1066, %v1067
      %1070 = vst [vmem:[#allocation5 + $0x38] sm:$0xff] %v1068
      %v1071 = vld [vmem:[#allocation3] sm:$0xc0]
      %v1072 = vld [vmem:[#allocation3 + $0x8] sm:$0x7f]
      %v1073 = vsel %vm470, %v1071, 0
      %v1074 = vsel %vm470, %v1072, 0
      %v1076 = vshrl.u32 %v1073, 16
      %v1078 = vrot.slane %v1076, 6
      %v1079 = vshll.u32 %v1073, 16
      %v1081 = vrot.slane %v1079, 7
      %v1082 = vor.u32 %v1078, %v1081
      %v1084 = vshrl.u32 %v1074, 16
      %v1086 = vrot.slane %v1084, 6
      %v1087 = vshll.u32 %v1074, 16
      %v1089 = vrot.slane %v1087, 7
      %v1090 = vor.u32 %v1086, %v1089
      %v1091 = vsel %vm473, %v1082, %v1090
      %1093 = vst [vmem:[#allocation5 + $0x40] sm:$0xff] %v1091
      %v1094 = vld [vmem:[#allocation5] sm:$0xff]
      %v1095 = vld [vmem:[#allocation5 + $0x8] sm:$0xff]
      %v1096 = vld [vmem:[#allocation5 + $0x10] sm:$0xff]
      %v1097 = vld [vmem:[#allocation5 + $0x18] sm:$0xff]
      %v1098 = vld [vmem:[#allocation5 + $0x20] sm:$0xff]
      %v1099 = vld [vmem:[#allocation5 + $0x28] sm:$0xff]
      %v1100 = vld [vmem:[#allocation5 + $0x30] sm:$0xff]
      %v1101 = vld [vmem:[#allocation5 + $0x38] sm:$0xff]
      %v1102 = vld [vmem:[#allocation5 + $0x40] sm:$0xff]
      %v1103 = vld [vmem:[%s3] sm:$0xf]
      %v1104 = vld [vmem:[%s3 + $0x4] sm:$0xf]
      %v1105 = vld [vmem:[%s3 + $0x8] sm:$0xf]
      %v1106 = vld [vmem:[%s3 + $0xc] sm:$0xf]
      %v1107 = vld [vmem:[%s3 + $0x10] sm:$0xf]
      %v1108 = vld [vmem:[%s3 + $0x14] sm:$0xf]
      %v1109 = vld [vmem:[%s3 + $0x18] sm:$0xf]
      %v1110 = vld [vmem:[%s3 + $0x1c] sm:$0xf]
      %v1111 = vld [vmem:[%s3 + $0x20] sm:$0xf]
      %v1112 = vld [vmem:[%s3 + $0x24] sm:$0xf]
      %v1113 = vld [vmem:[%s3 + $0x28] sm:$0xf]
      %v1114 = vld [vmem:[%s3 + $0x2c] sm:$0xf]
      %v1115 = vld [vmem:[%s3 + $0x30] sm:$0xf]
      %v1116 = vld [vmem:[%s3 + $0x34] sm:$0xf]
      %v1117 = vld [vmem:[%s3 + $0x38] sm:$0xf]
      %v1118 = vld [vmem:[%s3 + $0x3c] sm:$0xf]
      %v1119 = vld [vmem:[%s3 + $0x40] sm:$0xf]
      %v1120 = vld [vmem:[%s3 + $0x44] sm:$0xf]
      %v1121 = vld [vmem:[%s3 + $0x48] sm:$0xf]
      %v1122 = vld [vmem:[%s3 + $0x4c] sm:$0xf]
      %v1123 = vld [vmem:[%s3 + $0x50] sm:$0xf]
      %v1124 = vld [vmem:[%s3 + $0x54] sm:$0xf]
      %v1125 = vld [vmem:[%s3 + $0x58] sm:$0xf]
      %v1126 = vld [vmem:[%s3 + $0x5c] sm:$0xf]
      %v1127 = vld [vmem:[%s3 + $0x60] sm:$0xf]
      %v1128 = vld [vmem:[%s3 + $0x64] sm:$0xf]
      %v1129 = vld [vmem:[%s3 + $0x68] sm:$0xf]
      %v1130 = vld [vmem:[%s3 + $0x6c] sm:$0xf]
      %v1131 = vld [vmem:[%s3 + $0x70] sm:$0xf]
      %v1132 = vld [vmem:[%s3 + $0x74] sm:$0xf]
      %v1133 = vld [vmem:[%s3 + $0x78] sm:$0xf]
      %v1134 = vld [vmem:[%s3 + $0x7c] sm:$0xf]
      %v1135 = vld [vmem:[%s3 + $0x80] sm:$0xf]
      %v1136 = vld [vmem:[%s3 + $0x84] sm:$0xf]
      %v1137 = vld [vmem:[%s3 + $0x88] sm:$0xf]
      %v1138 = vld [vmem:[%s3 + $0x8c] sm:$0xf]
      %v1139 = vld [vmem:[%s3 + $0x90] sm:$0xf]
      %v1140 = vld [vmem:[%s3 + $0x94] sm:$0xf]
      %v1141 = vld [vmem:[%s3 + $0x98] sm:$0xf]
      %v1142 = vld [vmem:[%s3 + $0x9c] sm:$0xf]
      %v1143 = vld [vmem:[%s3 + $0xa0] sm:$0xf]
      %v1144 = vld [vmem:[%s3 + $0xa4] sm:$0xf]
      %v1145 = vld [vmem:[%s3 + $0xa8] sm:$0xf]
      %v1146 = vld [vmem:[%s3 + $0xac] sm:$0xf]
      %v1147 = vld [vmem:[%s3 + $0xb0] sm:$0xf]
      %v1148 = vld [vmem:[%s3 + $0xb4] sm:$0xf]
      %v1149 = vld [vmem:[%s3 + $0xb8] sm:$0xf]
      %v1150 = vld [vmem:[%s3 + $0xbc] sm:$0xf]
      %v1151 = vld [vmem:[%s3 + $0xc0] sm:$0xf]
      %v1152 = vld [vmem:[%s3 + $0xc4] sm:$0xf]
      %v1153 = vld [vmem:[%s3 + $0xc8] sm:$0xf]
      %v1154 = vld [vmem:[%s3 + $0xcc] sm:$0xf]
      %v1155 = vld [vmem:[%s3 + $0xd0] sm:$0xf]
      %v1156 = vld [vmem:[%s3 + $0xd4] sm:$0xf]
      %v1157 = vld [vmem:[%s3 + $0xd8] sm:$0xf]
      %v1158 = vld [vmem:[%s3 + $0xdc] sm:$0xf]
      %v1159 = vld [vmem:[%s3 + $0xe0] sm:$0xf]
      %v1160 = vld [vmem:[%s3 + $0xe4] sm:$0xf]
      %v1161 = vld [vmem:[%s3 + $0xe8] sm:$0xf]
      %v1162 = vld [vmem:[%s3 + $0xec] sm:$0xf]
      %v1163 = vld [vmem:[%s3 + $0xf0] sm:$0xf]
      %v1164 = vld [vmem:[%s3 + $0xf4] sm:$0xf]
      %v1165 = vld [vmem:[%s3 + $0xf8] sm:$0xf]
      %v1166 = vld [vmem:[%s3 + $0xfc] sm:$0xf]
      %v1167 = vld [vmem:[%s3 + $0x100] sm:$0xf]
      %v1168 = vld [vmem:[%s3 + $0x104] sm:$0xf]
      %v1169 = vld [vmem:[%s3 + $0x108] sm:$0xf]
      %v1170 = vld [vmem:[%s3 + $0x10c] sm:$0xf]
      %v1171 = vld [vmem:[%s3 + $0x110] sm:$0xf]
      %v1172 = vld [vmem:[%s3 + $0x114] sm:$0xf]
      %v1173 = vld [vmem:[%s3 + $0x118] sm:$0xf]
      %v1174 = vld [vmem:[%s3 + $0x11c] sm:$0xf]
      %v1175 = vld [vmem:[%s3 + $0x120] sm:$0xf]
      %v1176 = vld [vmem:[%s3 + $0x124] sm:$0xf]
      %v1177 = vld [vmem:[%s3 + $0x128] sm:$0xf]
      %v1178 = vld [vmem:[%s3 + $0x12c] sm:$0xf]
      %v1179 = vld [vmem:[%s3 + $0x130] sm:$0xf]
      %v1180 = vld [vmem:[%s3 + $0x134] sm:$0xf]
      %v1181 = vld [vmem:[%s3 + $0x138] sm:$0xf]
      %v1182 = vld [vmem:[%s3 + $0x13c] sm:$0xf]
      %v1183 = vld [vmem:[%s3 + $0x140] sm:$0xf]
      %v1184 = vld [vmem:[%s3 + $0x144] sm:$0xf]
      %v1185 = vld [vmem:[%s3 + $0x148] sm:$0xf]
      %v1186 = vld [vmem:[%s3 + $0x14c] sm:$0xf]
      %v1187 = vld [vmem:[%s3 + $0x150] sm:$0xf]
      %v1188 = vld [vmem:[%s3 + $0x154] sm:$0xf]
      %v1189 = vld [vmem:[%s3 + $0x158] sm:$0xf]
      %v1190 = vld [vmem:[%s3 + $0x15c] sm:$0xf]
      %v1191 = vld [vmem:[%s3 + $0x160] sm:$0xf]
      %v1192 = vld [vmem:[%s3 + $0x164] sm:$0xf]
      %v1193 = vld [vmem:[%s3 + $0x168] sm:$0xf]
      %v1194 = vld [vmem:[%s3 + $0x16c] sm:$0xf]
      %v1195 = vld [vmem:[%s3 + $0x170] sm:$0xf]
      %v1196 = vld [vmem:[%s3 + $0x174] sm:$0xf]
      %v1197 = vld [vmem:[%s3 + $0x178] sm:$0xf]
      %v1198 = vld [vmem:[%s3 + $0x17c] sm:$0xf]
      %v1199 = vld [vmem:[%s3 + $0x180] sm:$0xf]
      %v1200 = vld [vmem:[%s3 + $0x184] sm:$0xf]
      %v1201 = vld [vmem:[%s3 + $0x188] sm:$0xf]
      %v1202 = vld [vmem:[%s3 + $0x18c] sm:$0xf]
      %v1203 = vld [vmem:[%s3 + $0x190] sm:$0xf]
      %v1204 = vld [vmem:[%s3 + $0x194] sm:$0xf]
      %v1205 = vld [vmem:[%s3 + $0x198] sm:$0xf]
      %v1206 = vld [vmem:[%s3 + $0x19c] sm:$0xf]
      %v1207 = vld [vmem:[%s3 + $0x1a0] sm:$0xf]
      %v1208 = vld [vmem:[%s3 + $0x1a4] sm:$0xf]
      %v1209 = vld [vmem:[%s3 + $0x1a8] sm:$0xf]
      %v1210 = vld [vmem:[%s3 + $0x1ac] sm:$0xf]
      %v1211 = vld [vmem:[%s3 + $0x1b0] sm:$0xf]
      %v1212 = vld [vmem:[%s3 + $0x1b4] sm:$0xf]
      %v1213 = vld [vmem:[%s3 + $0x1b8] sm:$0xf]
      %v1214 = vld [vmem:[%s3 + $0x1bc] sm:$0xf]
      %v1215 = vld [vmem:[%s3 + $0x1c0] sm:$0xf]
      %v1216 = vld [vmem:[%s3 + $0x1c4] sm:$0xf]
      %v1217 = vld [vmem:[%s3 + $0x1c8] sm:$0xf]
      %v1218 = vld [vmem:[%s3 + $0x1cc] sm:$0xf]
      %v1219 = vld [vmem:[%s3 + $0x1d0] sm:$0xf]
      %v1220 = vld [vmem:[%s3 + $0x1d4] sm:$0xf]
      %v1221 = vld [vmem:[%s3 + $0x1d8] sm:$0xf]
      %v1222 = vld [vmem:[%s3 + $0x1dc] sm:$0xf]
      %v1223 = vld [vmem:[%s3 + $0x1e0] sm:$0xf]
      %v1224 = vld [vmem:[%s3 + $0x1e4] sm:$0xf]
      %v1225 = vld [vmem:[%s3 + $0x1e8] sm:$0xf]
      %v1226 = vld [vmem:[%s3 + $0x1ec] sm:$0xf]
      %v1227 = vld [vmem:[%s3 + $0x1f0] sm:$0xf]
      %v1228 = vld [vmem:[%s3 + $0x1f4] sm:$0xf]
      %v1229 = vld [vmem:[%s3 + $0x1f8] sm:$0xf]
      %v1230 = vld [vmem:[%s3 + $0x1fc] sm:$0xf]
      %v1231 = vld [vmem:[%s3 + $0x200] sm:$0xf]
      %v1232 = vld [vmem:[%s3 + $0x204] sm:$0xf]
      %v1233 = vld [vmem:[%s3 + $0x208] sm:$0xf]
      %v1234 = vld [vmem:[%s3 + $0x20c] sm:$0xf]
      %v1235 = vld [vmem:[%s3 + $0x210] sm:$0xf]
      %v1236 = vld [vmem:[%s3 + $0x214] sm:$0xf]
      %v1237 = vld [vmem:[%s3 + $0x218] sm:$0xf]
      %v1238 = vld [vmem:[%s3 + $0x21c] sm:$0xf]
      %v1239 = vld [vmem:[%s3 + $0x220] sm:$0xf]
      %v1240 = vld [vmem:[%s3 + $0x224] sm:$0xf]
      %v1241 = vld [vmem:[%s3 + $0x228] sm:$0xf]
      %v1242 = vld [vmem:[%s3 + $0x22c] sm:$0xf]
      %v1243 = vld [vmem:[%s3 + $0x230] sm:$0xf]
      %v1244 = vld [vmem:[%s3 + $0x234] sm:$0xf]
      %v1245 = vld [vmem:[%s3 + $0x238] sm:$0xf]
      %v1246 = vld [vmem:[%s3 + $0x23c] sm:$0xf]
      %v1247 = vld [vmem:[%s4] sm:$0x1]
      %v1249 = vlaneseq
      %v1250 = vshrl.u32 %v1249, 7
      %v1251 = vsub.s32 0, %v1250
      %v1252 = vrot.slane %v1247, %v1251
      %v1398 = vunpack.c.l.b16 %v1103
      %v1399 = vunpack.c.l.b16 %v1104
      %v1400 = vunpack.c.l.b16 %v1105
      %v1401 = vunpack.c.l.b16 %v1106
      %v1402 = vunpack.c.l.b16 %v1107
      %v1403 = vunpack.c.l.b16 %v1108
      %v1404 = vunpack.c.l.b16 %v1109
      %v1405 = vunpack.c.l.b16 %v1110
      %v1406 = vunpack.c.l.b16 %v1111
      %v1407 = vunpack.c.l.b16 %v1112
      %v1408 = vunpack.c.l.b16 %v1113
      %v1409 = vunpack.c.l.b16 %v1114
      %v1410 = vunpack.c.l.b16 %v1115
      %v1411 = vunpack.c.l.b16 %v1116
      %v1412 = vunpack.c.l.b16 %v1117
      %v1413 = vunpack.c.l.b16 %v1118
      %v1414 = vunpack.c.l.b16 %v1119
      %v1415 = vunpack.c.l.b16 %v1120
      %v1416 = vunpack.c.l.b16 %v1121
      %v1417 = vunpack.c.l.b16 %v1122
      %v1418 = vunpack.c.l.b16 %v1123
      %v1419 = vunpack.c.l.b16 %v1124
      %v1420 = vunpack.c.l.b16 %v1125
      %v1421 = vunpack.c.l.b16 %v1126
      %v1422 = vunpack.c.l.b16 %v1127
      %v1423 = vunpack.c.l.b16 %v1128
      %v1424 = vunpack.c.l.b16 %v1129
      %v1425 = vunpack.c.l.b16 %v1130
      %v1426 = vunpack.c.l.b16 %v1131
      %v1427 = vunpack.c.l.b16 %v1132
      %v1428 = vunpack.c.l.b16 %v1133
      %v1429 = vunpack.c.l.b16 %v1134
      %v1430 = vunpack.c.l.b16 %v1135
      %v1431 = vunpack.c.l.b16 %v1136
      %v1432 = vunpack.c.l.b16 %v1137
      %v1433 = vunpack.c.l.b16 %v1138
      %v1434 = vunpack.c.l.b16 %v1139
      %v1435 = vunpack.c.l.b16 %v1140
      %v1436 = vunpack.c.l.b16 %v1141
      %v1437 = vunpack.c.l.b16 %v1142
      %v1438 = vunpack.c.l.b16 %v1143
      %v1439 = vunpack.c.l.b16 %v1144
      %v1440 = vunpack.c.l.b16 %v1145
      %v1441 = vunpack.c.l.b16 %v1146
      %v1442 = vunpack.c.l.b16 %v1147
      %v1443 = vunpack.c.l.b16 %v1148
      %v1444 = vunpack.c.l.b16 %v1149
      %v1445 = vunpack.c.l.b16 %v1150
      %v1446 = vunpack.c.l.b16 %v1151
      %v1447 = vunpack.c.l.b16 %v1152
      %v1448 = vunpack.c.l.b16 %v1153
      %v1449 = vunpack.c.l.b16 %v1154
      %v1450 = vunpack.c.l.b16 %v1155
      %v1451 = vunpack.c.l.b16 %v1156
      %v1452 = vunpack.c.l.b16 %v1157
      %v1453 = vunpack.c.l.b16 %v1158
      %v1454 = vunpack.c.l.b16 %v1159
      %v1455 = vunpack.c.l.b16 %v1160
      %v1456 = vunpack.c.l.b16 %v1161
      %v1457 = vunpack.c.l.b16 %v1162
      %v1458 = vunpack.c.l.b16 %v1163
      %v1459 = vunpack.c.l.b16 %v1164
      %v1460 = vunpack.c.l.b16 %v1165
      %v1461 = vunpack.c.l.b16 %v1166
      %v1462 = vunpack.c.l.b16 %v1167
      %v1463 = vunpack.c.l.b16 %v1168
      %v1464 = vunpack.c.l.b16 %v1169
      %v1465 = vunpack.c.l.b16 %v1170
      %v1466 = vunpack.c.l.b16 %v1171
      %v1467 = vunpack.c.l.b16 %v1172
      %v1468 = vunpack.c.l.b16 %v1173
      %v1469 = vunpack.c.l.b16 %v1174
      %v1470 = vunpack.c.l.b16 %v1175
      %v1471 = vunpack.c.l.b16 %v1176
      %v1472 = vunpack.c.l.b16 %v1177
      %v1473 = vunpack.c.l.b16 %v1178
      %v1474 = vunpack.c.l.b16 %v1179
      %v1475 = vunpack.c.l.b16 %v1180
      %v1476 = vunpack.c.l.b16 %v1181
      %v1477 = vunpack.c.l.b16 %v1182
      %v1478 = vunpack.c.l.b16 %v1183
      %v1479 = vunpack.c.l.b16 %v1184
      %v1480 = vunpack.c.l.b16 %v1185
      %v1481 = vunpack.c.l.b16 %v1186
      %v1482 = vunpack.c.l.b16 %v1187
      %v1483 = vunpack.c.l.b16 %v1188
      %v1484 = vunpack.c.l.b16 %v1189
      %v1485 = vunpack.c.l.b16 %v1190
      %v1486 = vunpack.c.l.b16 %v1191
      %v1487 = vunpack.c.l.b16 %v1192
      %v1488 = vunpack.c.l.b16 %v1193
      %v1489 = vunpack.c.l.b16 %v1194
      %v1490 = vunpack.c.l.b16 %v1195
      %v1491 = vunpack.c.l.b16 %v1196
      %v1492 = vunpack.c.l.b16 %v1197
      %v1493 = vunpack.c.l.b16 %v1198
      %v1494 = vunpack.c.l.b16 %v1199
      %v1495 = vunpack.c.l.b16 %v1200
      %v1496 = vunpack.c.l.b16 %v1201
      %v1497 = vunpack.c.l.b16 %v1202
      %v1498 = vunpack.c.l.b16 %v1203
      %v1499 = vunpack.c.l.b16 %v1204
      %v1500 = vunpack.c.l.b16 %v1205
      %v1501 = vunpack.c.l.b16 %v1206
      %v1502 = vunpack.c.l.b16 %v1207
      %v1503 = vunpack.c.l.b16 %v1208
      %v1504 = vunpack.c.l.b16 %v1209
      %v1505 = vunpack.c.l.b16 %v1210
      %v1506 = vunpack.c.l.b16 %v1211
      %v1507 = vunpack.c.l.b16 %v1212
      %v1508 = vunpack.c.l.b16 %v1213
      %v1509 = vunpack.c.l.b16 %v1214
      %v1510 = vunpack.c.l.b16 %v1215
      %v1511 = vunpack.c.l.b16 %v1216
      %v1512 = vunpack.c.l.b16 %v1217
      %v1513 = vunpack.c.l.b16 %v1218
      %v1514 = vunpack.c.l.b16 %v1219
      %v1515 = vunpack.c.l.b16 %v1220
      %v1516 = vunpack.c.l.b16 %v1221
      %v1517 = vunpack.c.l.b16 %v1222
      %v1518 = vunpack.c.l.b16 %v1223
      %v1519 = vunpack.c.l.b16 %v1224
      %v1520 = vunpack.c.l.b16 %v1225
      %v1521 = vunpack.c.l.b16 %v1226
      %v1522 = vunpack.c.l.b16 %v1227
      %v1523 = vunpack.c.l.b16 %v1228
      %v1524 = vunpack.c.l.b16 %v1229
      %v1525 = vunpack.c.l.b16 %v1230
      %v1526 = vunpack.c.l.b16 %v1231
      %v1527 = vunpack.c.l.b16 %v1232
      %v1528 = vunpack.c.l.b16 %v1233
      %v1529 = vunpack.c.l.b16 %v1234
      %v1530 = vunpack.c.l.b16 %v1235
      %v1531 = vunpack.c.l.b16 %v1236
      %v1532 = vunpack.c.l.b16 %v1237
      %v1533 = vunpack.c.l.b16 %v1238
      %v1534 = vunpack.c.l.b16 %v1239
      %v1535 = vunpack.c.l.b16 %v1240
      %v1536 = vunpack.c.l.b16 %v1241
      %v1537 = vunpack.c.l.b16 %v1242
      %v1538 = vunpack.c.l.b16 %v1243
      %v1539 = vunpack.c.l.b16 %v1244
      %v1540 = vunpack.c.l.b16 %v1245
      %v1541 = vunpack.c.l.b16 %v1246
      %v1542 = vpack.c.b16 %v1399, %v1398
      %v1543 = vpack.c.b16 %v1401, %v1400
      %v1544 = vpack.c.b16 %v1403, %v1402
      %v1545 = vpack.c.b16 %v1405, %v1404
      %v1546 = vpack.c.b16 %v1407, %v1406
      %v1547 = vpack.c.b16 %v1409, %v1408
      %v1548 = vpack.c.b16 %v1411, %v1410
      %v1549 = vpack.c.b16 %v1413, %v1412
      %v1550 = vpack.c.b16 %v1415, %v1414
      %v1551 = vpack.c.b16 %v1417, %v1416
      %v1552 = vpack.c.b16 %v1419, %v1418
      %v1553 = vpack.c.b16 %v1421, %v1420
      %v1554 = vpack.c.b16 %v1423, %v1422
      %v1555 = vpack.c.b16 %v1425, %v1424
      %v1556 = vpack.c.b16 %v1427, %v1426
      %v1557 = vpack.c.b16 %v1429, %v1428
      %v1558 = vpack.c.b16 %v1431, %v1430
      %v1559 = vpack.c.b16 %v1433, %v1432
      %v1560 = vpack.c.b16 %v1435, %v1434
      %v1561 = vpack.c.b16 %v1437, %v1436
      %v1562 = vpack.c.b16 %v1439, %v1438
      %v1563 = vpack.c.b16 %v1441, %v1440
      %v1564 = vpack.c.b16 %v1443, %v1442
      %v1565 = vpack.c.b16 %v1445, %v1444
      %v1566 = vpack.c.b16 %v1447, %v1446
      %v1567 = vpack.c.b16 %v1449, %v1448
      %v1568 = vpack.c.b16 %v1451, %v1450
      %v1569 = vpack.c.b16 %v1453, %v1452
      %v1570 = vpack.c.b16 %v1455, %v1454
      %v1571 = vpack.c.b16 %v1457, %v1456
      %v1572 = vpack.c.b16 %v1459, %v1458
      %v1573 = vpack.c.b16 %v1461, %v1460
      %v1574 = vpack.c.b16 %v1463, %v1462
      %v1575 = vpack.c.b16 %v1465, %v1464
      %v1576 = vpack.c.b16 %v1467, %v1466
      %v1577 = vpack.c.b16 %v1469, %v1468
      %v1578 = vpack.c.b16 %v1471, %v1470
      %v1579 = vpack.c.b16 %v1473, %v1472
      %v1580 = vpack.c.b16 %v1475, %v1474
      %v1581 = vpack.c.b16 %v1477, %v1476
      %v1582 = vpack.c.b16 %v1479, %v1478
      %v1583 = vpack.c.b16 %v1481, %v1480
      %v1584 = vpack.c.b16 %v1483, %v1482
      %v1585 = vpack.c.b16 %v1485, %v1484
      %v1586 = vpack.c.b16 %v1487, %v1486
      %v1587 = vpack.c.b16 %v1489, %v1488
      %v1588 = vpack.c.b16 %v1491, %v1490
      %v1589 = vpack.c.b16 %v1493, %v1492
      %v1590 = vpack.c.b16 %v1495, %v1494
      %v1591 = vpack.c.b16 %v1497, %v1496
      %v1592 = vpack.c.b16 %v1499, %v1498
      %v1593 = vpack.c.b16 %v1501, %v1500
      %v1594 = vpack.c.b16 %v1503, %v1502
      %v1595 = vpack.c.b16 %v1505, %v1504
      %v1596 = vpack.c.b16 %v1507, %v1506
      %v1597 = vpack.c.b16 %v1509, %v1508
      %v1598 = vpack.c.b16 %v1511, %v1510
      %v1599 = vpack.c.b16 %v1513, %v1512
      %v1600 = vpack.c.b16 %v1515, %v1514
      %v1601 = vpack.c.b16 %v1517, %v1516
      %v1602 = vpack.c.b16 %v1519, %v1518
      %v1603 = vpack.c.b16 %v1521, %v1520
      %v1604 = vpack.c.b16 %v1523, %v1522
      %v1605 = vpack.c.b16 %v1525, %v1524
      %v1606 = vpack.c.b16 %v1527, %v1526
      %v1607 = vpack.c.b16 %v1529, %v1528
      %v1608 = vpack.c.b16 %v1531, %v1530
      %v1609 = vpack.c.b16 %v1533, %v1532
      %v1610 = vpack.c.b16 %v1535, %v1534
      %v1611 = vpack.c.b16 %v1537, %v1536
      %v1612 = vpack.c.b16 %v1539, %v1538
      %v1613 = vpack.c.b16 %v1541, %v1540
      %1686 = vmatprep.subr.bf16.mxu0 0
      %1687 = vmatpush1.bf16.msra.mxu0 %v1542
      %1688 = vmatprep.subr.bf16.mxu0 0
      %1689 = vmatpush1.bf16.msra.mxu0 %v1543
      %1690 = vmatprep.subr.bf16.mxu0 0
      %1691 = vmatpush1.bf16.msra.mxu0 %v1544
      %1692 = vmatprep.subr.bf16.mxu0 0
      %1693 = vmatpush1.bf16.msra.mxu0 %v1545
      %1694 = vmatprep.subr.bf16.mxu0 0
      %1695 = vmatpush1.bf16.msra.mxu0 %v1546
      %1696 = vmatprep.subr.bf16.mxu0 0
      %1697 = vmatpush1.bf16.msra.mxu0 %v1547
      %1698 = vmatprep.subr.bf16.mxu0 0
      %1699 = vmatpush1.bf16.msra.mxu0 %v1548
      %1700 = vmatprep.subr.bf16.mxu0 0
      %1701 = vmatpush1.bf16.msra.mxu0 %v1549
      %1702 = vmatprep.subr.bf16.mxu0 0
      %1703 = vmatpush1.bf16.msra.mxu0 %v1550
      %1704 = vmatprep.subr.bf16.mxu0 0
      %1705 = vmatpush1.bf16.msra.mxu0 %v1551
      %1706 = vmatprep.subr.bf16.mxu0 0
      %1707 = vmatpush1.bf16.msra.mxu0 %v1552
      %1708 = vmatprep.subr.bf16.mxu0 0
      %1709 = vmatpush1.bf16.msra.mxu0 %v1553
      %1710 = vmatprep.subr.bf16.mxu0 0
      %1711 = vmatpush1.bf16.msra.mxu0 %v1554
      %1712 = vmatprep.subr.bf16.mxu0 0
      %1713 = vmatpush1.bf16.msra.mxu0 %v1555
      %1714 = vmatprep.subr.bf16.mxu0 0
      %1715 = vmatpush1.bf16.msra.mxu0 %v1556
      %1716 = vmatprep.subr.bf16.mxu0 0
      %1717 = vmatpush1.bf16.msra.mxu0 %v1557
      %1718 = vmatprep.mubr.bf16.mxu0 %v1095
      %1719 = vmatmul.mubr.bf16.gmra.mrb[0].mxu0 %v1094
      %v1720 = vpop.f32.mrb[0].mxu0
      %v1721 = vadd.f32 %v1252, %v1720
      %v1722 = vpop.f32.mrb[0].mxu0
      %v1723 = vpop.f32.mrb[0].mxu0
      %v1724 = vadd.f32 %v1252, %v1723
      %v1725 = vpop.f32.mrb[0].mxu0
      %1726 = vdwg.mxu0
      %1727 = vmatprep.subr.bf16.mxu0 0
      %1728 = vmatpush1.bf16.msra.mxu0 %v1558
      %1729 = vmatprep.subr.bf16.mxu0 0
      %1730 = vmatpush1.bf16.msra.mxu0 %v1559
      %1731 = vmatprep.subr.bf16.mxu0 0
      %1732 = vmatpush1.bf16.msra.mxu0 %v1560
      %1733 = vmatprep.subr.bf16.mxu0 0
      %1734 = vmatpush1.bf16.msra.mxu0 %v1561
      %1735 = vmatprep.subr.bf16.mxu0 0
      %1736 = vmatpush1.bf16.msra.mxu0 %v1562
      %1737 = vmatprep.subr.bf16.mxu0 0
      %1738 = vmatpush1.bf16.msra.mxu0 %v1563
      %1739 = vmatprep.subr.bf16.mxu0 0
      %1740 = vmatpush1.bf16.msra.mxu0 %v1564
      %1741 = vmatprep.subr.bf16.mxu0 0
      %1742 = vmatpush1.bf16.msra.mxu0 %v1565
      %1743 = vmatprep.subr.bf16.mxu0 0
      %1744 = vmatpush1.bf16.msra.mxu0 %v1566
      %1745 = vmatprep.subr.bf16.mxu0 0
      %1746 = vmatpush1.bf16.msra.mxu0 %v1567
      %1747 = vmatprep.subr.bf16.mxu0 0
      %1748 = vmatpush1.bf16.msra.mxu0 %v1568
      %1749 = vmatprep.subr.bf16.mxu0 0
      %1750 = vmatpush1.bf16.msra.mxu0 %v1569
      %1751 = vmatprep.subr.bf16.mxu0 0
      %1752 = vmatpush1.bf16.msra.mxu0 %v1570
      %1753 = vmatprep.subr.bf16.mxu0 0
      %1754 = vmatpush1.bf16.msra.mxu0 %v1571
      %1755 = vmatprep.subr.bf16.mxu0 0
      %1756 = vmatpush1.bf16.msra.mxu0 %v1572
      %1757 = vmatprep.subr.bf16.mxu0 0
      %1758 = vmatpush1.bf16.msra.mxu0 %v1573
      %1759 = vmatprep.mubr.bf16.mxu0 %v1097
      %1760 = vmatmul.mubr.bf16.gmra.mrb[0].mxu0 %v1096
      %v1761 = vpop.f32.mrb[0].mxu0
      %v1762 = vadd.f32 %v1721, %v1761
      %v1763 = vpop.f32.mrb[0].mxu0
      %v1764 = vpop.f32.mrb[0].mxu0
      %v1765 = vadd.f32 %v1724, %v1764
      %v1766 = vpop.f32.mrb[0].mxu0
      %1767 = vdwg.mxu0
      %1768 = vmatprep.subr.bf16.mxu0 0
      %1769 = vmatpush1.bf16.msra.mxu0 %v1574
      %1770 = vmatprep.subr.bf16.mxu0 0
      %1771 = vmatpush1.bf16.msra.mxu0 %v1575
      %1772 = vmatprep.subr.bf16.mxu0 0
      %1773 = vmatpush1.bf16.msra.mxu0 %v1576
      %1774 = vmatprep.subr.bf16.mxu0 0
      %1775 = vmatpush1.bf16.msra.mxu0 %v1577
      %1776 = vmatprep.subr.bf16.mxu0 0
      %1777 = vmatpush1.bf16.msra.mxu0 %v1578
      %1778 = vmatprep.subr.bf16.mxu0 0
      %1779 = vmatpush1.bf16.msra.mxu0 %v1579
      %1780 = vmatprep.subr.bf16.mxu0 0
      %1781 = vmatpush1.bf16.msra.mxu0 %v1580
      %1782 = vmatprep.subr.bf16.mxu0 0
      %1783 = vmatpush1.bf16.msra.mxu0 %v1581
      %1784 = vmatprep.subr.bf16.mxu0 0
      %1785 = vmatpush1.bf16.msra.mxu0 %v1582
      %1786 = vmatprep.subr.bf16.mxu0 0
      %1787 = vmatpush1.bf16.msra.mxu0 %v1583
      %1788 = vmatprep.subr.bf16.mxu0 0
      %1789 = vmatpush1.bf16.msra.mxu0 %v1584
      %1790 = vmatprep.subr.bf16.mxu0 0
      %1791 = vmatpush1.bf16.msra.mxu0 %v1585
      %1792 = vmatprep.subr.bf16.mxu0 0
      %1793 = vmatpush1.bf16.msra.mxu0 %v1586
      %1794 = vmatprep.subr.bf16.mxu0 0
      %1795 = vmatpush1.bf16.msra.mxu0 %v1587
      %1796 = vmatprep.subr.bf16.mxu0 0
      %1797 = vmatpush1.bf16.msra.mxu0 %v1588
      %1798 = vmatprep.subr.bf16.mxu0 0
      %1799 = vmatpush1.bf16.msra.mxu0 %v1589
      %1800 = vmatprep.mubr.bf16.mxu0 %v1099
      %1801 = vmatmul.mubr.bf16.gmra.mrb[0].mxu0 %v1098
      %v1802 = vpop.f32.mrb[0].mxu0
      %v1803 = vadd.f32 %v1762, %v1802
      %v1804 = vpop.f32.mrb[0].mxu0
      %v1805 = vpop.f32.mrb[0].mxu0
      %v1806 = vadd.f32 %v1765, %v1805
      %v1807 = vpop.f32.mrb[0].mxu0
      %1808 = vdwg.mxu0
      %1809 = vmatprep.subr.bf16.mxu0 0
      %1810 = vmatpush1.bf16.msra.mxu0 %v1590
      %1811 = vmatprep.subr.bf16.mxu0 0
      %1812 = vmatpush1.bf16.msra.mxu0 %v1591
      %1813 = vmatprep.subr.bf16.mxu0 0
      %1814 = vmatpush1.bf16.msra.mxu0 %v1592
      %1815 = vmatprep.subr.bf16.mxu0 0
      %1816 = vmatpush1.bf16.msra.mxu0 %v1593
      %1817 = vmatprep.subr.bf16.mxu0 0
      %1818 = vmatpush1.bf16.msra.mxu0 %v1594
      %1819 = vmatprep.subr.bf16.mxu0 0
      %1820 = vmatpush1.bf16.msra.mxu0 %v1595
      %1821 = vmatprep.subr.bf16.mxu0 0
      %1822 = vmatpush1.bf16.msra.mxu0 %v1596
      %1823 = vmatprep.subr.bf16.mxu0 0
      %1824 = vmatpush1.bf16.msra.mxu0 %v1597
      %1825 = vmatprep.subr.bf16.mxu0 0
      %1826 = vmatpush1.bf16.msra.mxu0 %v1598
      %1827 = vmatprep.subr.bf16.mxu0 0
      %1828 = vmatpush1.bf16.msra.mxu0 %v1599
      %1829 = vmatprep.subr.bf16.mxu0 0
      %1830 = vmatpush1.bf16.msra.mxu0 %v1600
      %1831 = vmatprep.subr.bf16.mxu0 0
      %1832 = vmatpush1.bf16.msra.mxu0 %v1601
      %1833 = vmatprep.subr.bf16.mxu0 0
      %1834 = vmatpush1.bf16.msra.mxu0 %v1602
      %1835 = vmatprep.subr.bf16.mxu0 0
      %1836 = vmatpush1.bf16.msra.mxu0 %v1603
      %1837 = vmatprep.subr.bf16.mxu0 0
      %1838 = vmatpush1.bf16.msra.mxu0 %v1604
      %1839 = vmatprep.subr.bf16.mxu0 0
      %1840 = vmatpush1.bf16.msra.mxu0 %v1605
      %1841 = vmatprep.mubr.bf16.mxu0 %v1101
      %1842 = vmatmul.mubr.bf16.gmra.mrb[0].mxu0 %v1100
      %v1843 = vpop.f32.mrb[0].mxu0
      %v1844 = vadd.f32 %v1803, %v1843
      %v1845 = vpop.f32.mrb[0].mxu0
      %v1846 = vpop.f32.mrb[0].mxu0
      %v1847 = vadd.f32 %v1806, %v1846
      %v1848 = vpop.f32.mrb[0].mxu0
      %1849 = vdwg.mxu0
      %1850 = vmatprep.subr.bf16.mxu0 0
      %1851 = vmatpush1.bf16.msra.mxu0 %v1606
      %1852 = vmatprep.subr.bf16.mxu0 0
      %1853 = vmatpush1.bf16.msra.mxu0 %v1607
      %1854 = vmatprep.subr.bf16.mxu0 0
      %1855 = vmatpush1.bf16.msra.mxu0 %v1608
      %1856 = vmatprep.subr.bf16.mxu0 0
      %1857 = vmatpush1.bf16.msra.mxu0 %v1609
      %1858 = vmatprep.subr.bf16.mxu0 0
      %1859 = vmatpush1.bf16.msra.mxu0 %v1610
      %1860 = vmatprep.subr.bf16.mxu0 0
      %1861 = vmatpush1.bf16.msra.mxu0 %v1611
      %1862 = vmatprep.subr.bf16.mxu0 0
      %1863 = vmatpush1.bf16.msra.mxu0 %v1612
      %1864 = vmatprep.subr.bf16.mxu0 0
      %1865 = vmatpush1.bf16.msra.mxu0 %v1613
      %1866 = vmatprep.subr.bf16.mxu0 0
      %1867 = vmatpush1.bf16.msra.mxu0 0
      %1868 = vmatprep.subr.bf16.mxu0 0
      %1869 = vmatpush1.bf16.msra.mxu0 0
      %1870 = vmatprep.subr.bf16.mxu0 0
      %1871 = vmatpush1.bf16.msra.mxu0 0
      %1872 = vmatprep.subr.bf16.mxu0 0
      %1873 = vmatpush1.bf16.msra.mxu0 0
      %1874 = vmatprep.subr.bf16.mxu0 0
      %1875 = vmatpush1.bf16.msra.mxu0 0
      %1876 = vmatprep.subr.bf16.mxu0 0
      %1877 = vmatpush1.bf16.msra.mxu0 0
      %1878 = vmatprep.subr.bf16.mxu0 0
      %1879 = vmatpush1.bf16.msra.mxu0 0
      %1880 = vmatprep.subr.bf16.mxu0 0
      %1881 = vmatpush1.bf16.msra.mxu0 0
      %1882 = vmatprep.mubr.bf16.mxu0 0
      %1883 = vmatmul.mubr.bf16.gmra.mrb[0].mxu0 %v1102
      %v1884 = vpop.f32.mrb[0].mxu0
      %v1885 = vadd.f32 %v1844, %v1884
      %v1886 = vpop.f32.mrb[0].mxu0
      %v1887 = vpop.f32.mrb[0].mxu0
      %v1888 = vadd.f32 %v1847, %v1887
      %v1889 = vpop.f32.mrb[0].mxu0
      %1890 = vdwg.mxu0
      %v1891 = vmax.f32 %v1885, 0.0
      %v1892 = vmax.f32 %v1888, 0.0
      %1893 = vst [vmem:[%s224] sm:$0xff] %v1891
      %1894 = vst [vmem:[%s224 + $0x8] sm:$0xff] %v1892
      %p1895 = scmp.lt.s32.totalorder %s16, 1
      %s1896 = scalar_select %p1895, %s16, 1
      %s1897 = smul.addr %s1896, 2
      %s1898 = smul.addr %s1897, 8
      %s1899 = scalar_lea.vmem %s5, %s1898
      // Predicated region
      $region41: #{multi_channel_encoder.5} parent=39 // pred_check
        %p1900 = pneg %p144
      $region42: #{multi_channel_encoder.5} parent=39 // pred_check_branch
        %1902 = sbr.rel (%p1900) target = $region44
      $region43: #{multi_channel_encoder.5} parent=39 // pred_region
        _
      $region44: #{multi_channel_encoder.5} parent=39 // pred_fallthru
        _
    $region40: #{multi_channel_encoder.5} parent=5 // pred_fallthru
      _
    %p1903 = scmp.le.s32.totalorder 2, %s11
    // Predicated region
    $region45: #{multi_channel_encoder.5} parent=5 // pred_check
      %p1904 = pneg %p1903
    $region46: #{multi_channel_encoder.5} parent=5 // pred_check_branch
      %1906 = sbr.rel (%p1904) target = $region48
    $region47: #{multi_channel_encoder.5} parent=5 // pred_region
      %s1907 = ssub.s32 %s11, 2
      // Predicated region
      $region49: #{multi_channel_encoder.5} parent=47 // pred_check
        %p1908 = pneg %p150
      $region50: #{multi_channel_encoder.5} parent=47 // pred_check_branch
        %1910 = sbr.rel (%p1908) target = $region52
      $region51: #{multi_channel_encoder.5} parent=47 // pred_region
        %p1911 = scmp.lt.s32.totalorder %s17, 1
        %s1912 = scalar_select %p1911, %s17, 1
        %s1913 = smul.addr %s1912, 2
        %s1914 = smul.addr %s1913, 8
        %s1915 = scalar_lea.vmem %s5, %s1914
      $region52: #{multi_channel_encoder.5} parent=47 // pred_fallthru
        _
    $region48: #{multi_channel_encoder.5} parent=5 // pred_fallthru
      _
  $region6: #{multi_channel_encoder.5} parent=0 // loop_footer
    %s15 = sadd.s32 1, %s11
  $region7: #{multi_channel_encoder.5} parent=0 // loop_footer_branch
    %10 = sbr.rel target = $region3
  $region8: #{multi_channel_encoder.5} parent=0 // loop_exit
    _

// kernel: multi_channel_encoder.3
$region0: #{multi_channel_encoder.3}
  #allocation0 [shape = 'u32[]', space=smem, size = 0x4, offset = 0x4, fixed_abs, tag = 'smem constant byte address 0x4 - core index']
  #allocation1 [shape = 'u32[144,128]{1,0:T(1,128)}', space=vmem, size = 0x12000, scoped, tag = 'internal scratch']
  #allocation2 [shape = 'bf16[304,8]{1,0:T(16,128)(2,1)}', space=vmem, size = 0x13000, scoped, tag = 'scratch operand']
  #allocation3 [shape = 'bf16[304,32]{1,0:T(16,128)(2,1)}', space=vmem, size = 0x13000, scoped, tag = 'scratch operand']
  #allocation4 [shape = 'bf16[256,72]{1,0:T(16,128)(2,1)}', space=vmem, size = 0x10000, scoped, tag = 'scratch operand']
  #allocation5 [shape = 'bf16[256,288]{1,0:T(16,128)(2,1)}', space=vmem, size = 0x30000, scoped, tag = 'scratch operand']
  %s0 = inlined_call_operand.vmem [shape: bf16[2,256,8], index: 0, kind: input, shape index: {}]
  %s1 = inlined_call_operand.vmem [shape: bf16[72,32], index: 1, kind: input, shape index: {}]
  %s2 = inlined_call_operand.vmem [shape: f32[1,32], index: 2, kind: input, shape index: {}]
  %s3 = inlined_call_operand.vmem [shape: bf16[288,32], index: 3, kind: input, shape index: {}]
  %s4 = inlined_call_operand.vmem [shape: f32[1,32], index: 4, kind: input, shape index: {}]
  %s5 = inlined_call_operand.vmem [shape: f32[2,256,32], index: 5, kind: output, shape index: {}]
  %s6 = sld [smem:[#allocation0]]
  $region53: #{multi_channel_encoder.3} parent=0
    _
  %s8 = ssub.s32 1, %s6
  %s9 = scalar_select 0, %s8, %s6
  loop: start=0, step=1, limit=4
  $region2: #{multi_channel_encoder.3} parent=0 // loop_pre_header
    _
  $region3: #{multi_channel_encoder.3} parent=0 // loop_header
    %s11 = sphi 0, %s15
    %p12 = scmp.ge.s32.totalorder %s11, 4
    %s21 = sphi 0, %s23
    %s24 = sphi 0, %s21
    %s25 = sphi 0, %s24
    %s41 = sphi 0, %s25
    %s45 = sphi 0, %s45
    %s47 = sphi 0, %s45
    %s48 = sphi 0, %s47
    %s62 = sphi 0, %s48
    %s66 = sphi 0, %s66
    %s68 = sphi 0, %s66
    %s69 = sphi 0, %s68
    %s83 = sphi 0, %s69
    %s87 = sphi 0, %s87
    %s89 = sphi 0, %s87
    %s90 = sphi 0, %s89
    %s104 = sphi 0, %s90
    %s108 = sphi 0, %s108
    %s110 = sphi 0, %s108
    %s111 = sphi 0, %s110
    %s125 = sphi 0, %s111
    %s131 = sphi 0, %s133
    %s134 = sphi 0, %s131
    %s135 = sphi 0, %s134
    %s151 = sphi 0, %s135
  $region4: #{multi_channel_encoder.3} parent=0 // loop_header_branch
    %14 = sbr.rel (%p12) target = $region8
  $region5: #{multi_channel_encoder.3} parent=0 // loop_body
    %s16 = ssub.s32 %s11, 1
    %s17 = ssub.s32 %s11, 2
    %s18 = sadd.s32 %s11, 1
    %s19 = ssub.s32 %s11, %s18
    %p20 = scmp.eq.s32.totalorder %s19, 0
    %s22 = sadd.s32 %s21, 1
    %s23 = scalar_select %p20, %s21, %s22
    %p26 = pneg %p20
    %p27 = scmp.eq.s32.totalorder %s11, 1
    %p28 = por %p26, %p27
    %p29 = scmp.ne.s32.totalorder %s21, %s24
    %p30 = scmp.eq.s32.totalorder %s11, 0
    %p31 = por %p29, %p30
    %p32 = scmp.ne.s32.totalorder %s21, %s24
    %p33 = scmp.eq.s32.totalorder %s16, 1
    %p34 = por %p32, %p33
    %p35 = scmp.ne.s32.totalorder %s24, %s25
    %p36 = scmp.eq.s32.totalorder %s16, 0
    %p37 = por %p35, %p36
    %p38 = scmp.ne.s32.totalorder %s24, %s25
    %p39 = scmp.eq.s32.totalorder %s17, 1
    %p40 = por %p38, %p39
    %p42 = scmp.ne.s32.totalorder %s25, %s41
    %p43 = scmp.eq.s32.totalorder %s17, 0
    %p44 = por %p42, %p43
    %s46 = sadd.s32 %s45, 1
    %p49 = scmp.eq.s32.totalorder %s11, 1
    %p50 = scmp.ne.s32.totalorder %s45, %s47
    %p51 = scmp.eq.s32.totalorder %s11, 0
    %p52 = por %p50, %p51
    %p53 = scmp.ne.s32.totalorder %s45, %s47
    %p54 = scmp.eq.s32.totalorder %s16, 1
    %p55 = por %p53, %p54
    %p56 = scmp.ne.s32.totalorder %s47, %s48
    %p57 = scmp.eq.s32.totalorder %s16, 0
    %p58 = por %p56, %p57
    %p59 = scmp.ne.s32.totalorder %s47, %s48
    %p60 = scmp.eq.s32.totalorder %s17, 1
    %p61 = por %p59, %p60
    %p63 = scmp.ne.s32.totalorder %s48, %s62
    %p64 = scmp.eq.s32.totalorder %s17, 0
    %p65 = por %p63, %p64
    %s67 = sadd.s32 %s66, 1
    %p70 = scmp.eq.s32.totalorder %s11, 1
    %p71 = scmp.ne.s32.totalorder %s66, %s68
    %p72 = scmp.eq.s32.totalorder %s11, 0
    %p73 = por %p71, %p72
    %p74 = scmp.ne.s32.totalorder %s66, %s68
    %p75 = scmp.eq.s32.totalorder %s16, 1
    %p76 = por %p74, %p75
    %p77 = scmp.ne.s32.totalorder %s68, %s69
    %p78 = scmp.eq.s32.totalorder %s16, 0
    %p79 = por %p77, %p78
    %p80 = scmp.ne.s32.totalorder %s68, %s69
    %p81 = scmp.eq.s32.totalorder %s17, 1
    %p82 = por %p80, %p81
    %p84 = scmp.ne.s32.totalorder %s69, %s83
    %p85 = scmp.eq.s32.totalorder %s17, 0
    %p86 = por %p84, %p85
    %s88 = sadd.s32 %s87, 1
    %p91 = scmp.eq.s32.totalorder %s11, 1
    %p92 = scmp.ne.s32.totalorder %s87, %s89
    %p93 = scmp.eq.s32.totalorder %s11, 0
    %p94 = por %p92, %p93
    %p95 = scmp.ne.s32.totalorder %s87, %s89
    %p96 = scmp.eq.s32.totalorder %s16, 1
    %p97 = por %p95, %p96
    %p98 = scmp.ne.s32.totalorder %s89, %s90
    %p99 = scmp.eq.s32.totalorder %s16, 0
    %p100 = por %p98, %p99
    %p101 = scmp.ne.s32.totalorder %s89, %s90
    %p102 = scmp.eq.s32.totalorder %s17, 1
    %p103 = por %p101, %p102
    %p105 = scmp.ne.s32.totalorder %s90, %s104
    %p106 = scmp.eq.s32.totalorder %s17, 0
    %p107 = por %p105, %p106
    %s109 = sadd.s32 %s108, 1
    %p112 = scmp.eq.s32.totalorder %s11, 1
    %p113 = scmp.ne.s32.totalorder %s108, %s110
    %p114 = scmp.eq.s32.totalorder %s11, 0
    %p115 = por %p113, %p114
    %p116 = scmp.ne.s32.totalorder %s108, %s110
    %p117 = scmp.eq.s32.totalorder %s16, 1
    %p118 = por %p116, %p117
    %p119 = scmp.ne.s32.totalorder %s110, %s111
    %p120 = scmp.eq.s32.totalorder %s16, 0
    %p121 = por %p119, %p120
    %p122 = scmp.ne.s32.totalorder %s110, %s111
    %p123 = scmp.eq.s32.totalorder %s17, 1
    %p124 = por %p122, %p123
    %p126 = scmp.ne.s32.totalorder %s111, %s125
    %p127 = scmp.eq.s32.totalorder %s17, 0
    %p128 = por %p126, %p127
    %s129 = ssub.s32 %s11, %s18
    %p130 = scmp.eq.s32.totalorder %s129, 0
    %s132 = sadd.s32 %s131, 1
    %s133 = scalar_select %p130, %s131, %s132
    %p136 = pneg %p130
    %p137 = scmp.eq.s32.totalorder %s11, 1
    %p138 = por %p136, %p137
    %p139 = scmp.ne.s32.totalorder %s131, %s134
    %p140 = scmp.eq.s32.totalorder %s11, 0
    %p141 = por %p139, %p140
    %p142 = scmp.ne.s32.totalorder %s131, %s134
    %p143 = scmp.eq.s32.totalorder %s16, 1
    %p144 = por %p142, %p143
    %p145 = scmp.ne.s32.totalorder %s134, %s135
    %p146 = scmp.eq.s32.totalorder %s16, 0
    %p147 = por %p145, %p146
    %p148 = scmp.ne.s32.totalorder %s134, %s135
    %p149 = scmp.eq.s32.totalorder %s17, 1
    %p150 = por %p148, %p149
    %p152 = scmp.ne.s32.totalorder %s135, %s151
    %p153 = scmp.eq.s32.totalorder %s17, 0
    %p154 = por %p152, %p153
    %p155 = scmp.le.s32.totalorder 1, %s11
    %p156 = scmp.lt.s32.totalorder %s11, 3
    %p157 = pnand %p155, %p156
    %p158 = pneg %p157
    // Predicated region
    $region9: #{multi_channel_encoder.3} parent=5 // pred_check
      _
    $region10: #{multi_channel_encoder.3} parent=5 // pred_check_branch
      %160 = sbr.rel (%p157) target = $region12
    $region11: #{multi_channel_encoder.3} parent=5 // pred_region
      %s161 = ssub.s32 %s11, 1
      // Predicated region
      $region13: #{multi_channel_encoder.3} parent=11 // pred_check
        %p162 = pneg %p58
      $region14: #{multi_channel_encoder.3} parent=11 // pred_check_branch
        %164 = sbr.rel (%p162) target = $region16
      $region15: #{multi_channel_encoder.3} parent=11 // pred_region
        _
      $region16: #{multi_channel_encoder.3} parent=11 // pred_fallthru
        _
      // Predicated region
      $region17: #{multi_channel_encoder.3} parent=11 // pred_check
        %p165 = pneg %p79
      $region18: #{multi_channel_encoder.3} parent=11 // pred_check_branch
        %167 = sbr.rel (%p165) target = $region20
      $region19: #{multi_channel_encoder.3} parent=11 // pred_region
        _
      $region20: #{multi_channel_encoder.3} parent=11 // pred_fallthru
        _
      // Predicated region
      $region21: #{multi_channel_encoder.3} parent=11 // pred_check
        %p168 = pneg %p100
      $region22: #{multi_channel_encoder.3} parent=11 // pred_check_branch
        %170 = sbr.rel (%p168) target = $region24
      $region23: #{multi_channel_encoder.3} parent=11 // pred_region
        _
      $region24: #{multi_channel_encoder.3} parent=11 // pred_fallthru
        _
      // Predicated region
      $region25: #{multi_channel_encoder.3} parent=11 // pred_check
        %p171 = pneg %p121
      $region26: #{multi_channel_encoder.3} parent=11 // pred_check_branch
        %173 = sbr.rel (%p171) target = $region28
      $region27: #{multi_channel_encoder.3} parent=11 // pred_region
        _
      $region28: #{multi_channel_encoder.3} parent=11 // pred_fallthru
        _
    $region12: #{multi_channel_encoder.3} parent=5 // pred_fallthru
      _
    %p174 = scmp.lt.s32.totalorder %s11, 2
    // Predicated region
    $region29: #{multi_channel_encoder.3} parent=5 // pred_check
      %p175 = pneg %p174
    $region30: #{multi_channel_encoder.3} parent=5 // pred_check_branch
      %177 = sbr.rel (%p175) target = $region32
    $region31: #{multi_channel_encoder.3} parent=5 // pred_region
      // Predicated region
      $region33: #{multi_channel_encoder.3} parent=31 // pred_check
        %p178 = pneg %p31
      $region34: #{multi_channel_encoder.3} parent=31 // pred_check_branch
        %180 = sbr.rel (%p178) target = $region36
      $region35: #{multi_channel_encoder.3} parent=31 // pred_region
        %p181 = scmp.lt.s32.totalorder %s11, 1
        %s182 = scalar_select %p181, %s11, 1
        %s183 = smul.addr %s182, 32
        %s184 = smul.addr %s183, 4
        %s185 = scalar_lea.vmem %s0, %s184
      $region36: #{multi_channel_encoder.3} parent=31 // pred_fallthru
        _
    $region32: #{multi_channel_encoder.3} parent=5 // pred_fallthru
      _
    %p186 = scmp.le.s32.totalorder 1, %s11
    %p187 = scmp.lt.s32.totalorder %s11, 3
    %p188 = pnand %p186, %p187
    %p189 = pneg %p188
    // Predicated region
    $region37: #{multi_channel_encoder.3} parent=5 // pred_check
      _
    $region38: #{multi_channel_encoder.3} parent=5 // pred_check_branch
      %191 = sbr.rel (%p188) target = $region40
    $region39: #{multi_channel_encoder.3} parent=5 // pred_region
      %s192 = ssub.s32 %s11, 1
      %p193 = scmp.lt.s32.totalorder %s16, 1
      %s194 = scalar_select %p193, %s16, 1
      %s195 = smul.addr %s194, 32
      %s196 = smul.addr %s195, 4
      %s197 = scalar_lea.vmem %s0, %s196
      %p198 = pneg %p37
      %p199 = pneg %p34
      %p200 = pneg %p58
      %p201 = pneg %p55
      %p202 = pneg %p79
      %p203 = pneg %p76
      %p204 = pneg %p100
      %p205 = pneg %p97
      %p206 = pneg %p121
      %p207 = pneg %p118
      %p208 = pneg %p147
      %p209 = pneg %p144
      %p210 = scmp.lt.s32.totalorder %s16, 1
      %s211 = scalar_select %p210, %s16, 1
      %s212 = smul.addr %s211, 32
      %s213 = smul.addr %s212, 8
      %s214 = scalar_lea.vmem %s5, %s213
      %p215 = scmp.lt.s32.totalorder %s16, 1
      %s216 = scalar_select %p215, %s16, 1
      %s217 = smul.addr %s216, 32
      %s218 = smul.addr %s217, 4
      %s219 = scalar_lea.vmem %s0, %s218
      %p220 = scmp.lt.s32.totalorder %s16, 1
      %s221 = scalar_select %p220, %s16, 1
      %s222 = smul.addr %s221, 32
      %s223 = smul.addr %s222, 8
      %s224 = scalar_lea.vmem %s5, %s223
      %v228 = vlaneseq
      %v229 = vshrl.u32 %v228, 7
      %v230 = vadd.s32 %v229, 8
      %v231 = vadd.s32 %v229, 16
      %v232 = vadd.s32 %v229, 24
      %v233 = vadd.s32 %v229, 32
      %v234 = vadd.s32 %v229, 40
      %v235 = vadd.s32 %v229, 48
      %v236 = vadd.s32 %v229, 56
      %v237 = vadd.s32 %v229, 64
      %v238 = vadd.s32 %v229, 72
      %v239 = vadd.s32 %v229, 80
      %v240 = vadd.s32 %v229, 88
      %v241 = vadd.s32 %v229, 96
      %v242 = vadd.s32 %v229, 104
      %v243 = vadd.s32 %v229, 112
      %v244 = vadd.s32 %v229, 120
      %v245 = vadd.s32 %v229, 128
      %v246 = vadd.s32 %v229, 136
      %v247 = vadd.s32 %v229, 144
      %v248 = vadd.s32 %v229, 152
      %v249 = vadd.s32 %v229, 160
      %v250 = vadd.s32 %v229, 168
      %v251 = vadd.s32 %v229, 176
      %v252 = vadd.s32 %v229, 184
      %v253 = vadd.s32 %v229, 192
      %v254 = vadd.s32 %v229, 200
      %v255 = vadd.s32 %v229, 208
      %v256 = vadd.s32 %v229, 216
      %v257 = vadd.s32 %v229, 224
      %v258 = vadd.s32 %v229, 232
      %v259 = vadd.s32 %v229, 240
      %v260 = vadd.s32 %v229, 248
      %v261 = vand.u32 %v229, 15
      %v262 = vand.u32 %v230, 15
      %v263 = vand.u32 %v231, 15
      %v264 = vand.u32 %v232, 15
      %v265 = vand.u32 %v233, 15
      %v266 = vand.u32 %v234, 15
      %v267 = vand.u32 %v235, 15
      %v268 = vand.u32 %v236, 15
      %v269 = vand.u32 %v237, 15
      %v270 = vand.u32 %v238, 15
      %v271 = vand.u32 %v239, 15
      %v272 = vand.u32 %v240, 15
      %v273 = vand.u32 %v241, 15
      %v274 = vand.u32 %v242, 15
      %v275 = vand.u32 %v243, 15
      %v276 = vand.u32 %v244, 15
      %v277 = vand.u32 %v245, 15
      %v278 = vand.u32 %v246, 15
      %v279 = vand.u32 %v247, 15
      %v280 = vand.u32 %v248, 15
      %v281 = vand.u32 %v249, 15
      %v282 = vand.u32 %v250, 15
      %v283 = vand.u32 %v251, 15
      %v284 = vand.u32 %v252, 15
      %v285 = vand.u32 %v253, 15
      %v286 = vand.u32 %v254, 15
      %v287 = vand.u32 %v255, 15
      %v288 = vand.u32 %v256, 15
      %v289 = vand.u32 %v257, 15
      %v290 = vand.u32 %v258, 15
      %v291 = vand.u32 %v259, 15
      %v292 = vand.u32 %v260, 15
      %vm293 = vcmp.lt.s32.totalorder %v261, 15
      %vm294 = vcmp.lt.s32.totalorder %v262, 15
      %vm295 = vcmp.lt.s32.totalorder %v263, 15
      %vm296 = vcmp.lt.s32.totalorder %v264, 15
      %vm297 = vcmp.lt.s32.totalorder %v265, 15
      %vm298 = vcmp.lt.s32.totalorder %v266, 15
      %vm299 = vcmp.lt.s32.totalorder %v267, 15
      %vm300 = vcmp.lt.s32.totalorder %v268, 15
      %vm301 = vcmp.lt.s32.totalorder %v269, 15
      %vm302 = vcmp.lt.s32.totalorder %v270, 15
      %vm303 = vcmp.lt.s32.totalorder %v271, 15
      %vm304 = vcmp.lt.s32.totalorder %v272, 15
      %vm305 = vcmp.lt.s32.totalorder %v273, 15
      %vm306 = vcmp.lt.s32.totalorder %v274, 15
      %vm307 = vcmp.lt.s32.totalorder %v275, 15
      %vm308 = vcmp.lt.s32.totalorder %v276, 15
      %vm309 = vcmp.lt.s32.totalorder %v277, 15
      %vm310 = vcmp.lt.s32.totalorder %v278, 15
      %vm311 = vcmp.lt.s32.totalorder %v279, 15
      %vm312 = vcmp.lt.s32.totalorder %v280, 15
      %vm313 = vcmp.lt.s32.totalorder %v281, 15
      %vm314 = vcmp.lt.s32.totalorder %v282, 15
      %vm315 = vcmp.lt.s32.totalorder %v283, 15
      %vm316 = vcmp.lt.s32.totalorder %v284, 15
      %vm317 = vcmp.lt.s32.totalorder %v285, 15
      %vm318 = vcmp.lt.s32.totalorder %v286, 15
      %vm319 = vcmp.lt.s32.totalorder %v287, 15
      %vm320 = vcmp.lt.s32.totalorder %v288, 15
      %vm321 = vcmp.lt.s32.totalorder %v289, 15
      %vm322 = vcmp.lt.s32.totalorder %v290, 15
      %vm323 = vcmp.lt.s32.totalorder %v291, 15
      %vm324 = vcmp.lt.s32.totalorder %v292, 15
      %vm325 = vcmp.gt.s32.totalorder %v261, 0
      %vm326 = vcmp.gt.s32.totalorder %v262, 0
      %vm327 = vcmp.gt.s32.totalorder %v263, 0
      %vm328 = vcmp.gt.s32.totalorder %v264, 0
      %vm329 = vcmp.gt.s32.totalorder %v265, 0
      %vm330 = vcmp.gt.s32.totalorder %v266, 0
      %vm331 = vcmp.gt.s32.totalorder %v267, 0
      %vm332 = vcmp.gt.s32.totalorder %v268, 0
      %vm333 = vcmp.gt.s32.totalorder %v269, 0
      %vm334 = vcmp.gt.s32.totalorder %v270, 0
      %vm335 = vcmp.gt.s32.totalorder %v271, 0
      %vm336 = vcmp.gt.s32.totalorder %v272, 0
      %vm337 = vcmp.gt.s32.totalorder %v273, 0
      %vm338 = vcmp.gt.s32.totalorder %v274, 0
      %vm339 = vcmp.gt.s32.totalorder %v275, 0
      %vm340 = vcmp.gt.s32.totalorder %v276, 0
      %vm341 = vcmp.gt.s32.totalorder %v277, 0
      %vm342 = vcmp.gt.s32.totalorder %v278, 0
      %vm343 = vcmp.gt.s32.totalorder %v279, 0
      %vm344 = vcmp.gt.s32.totalorder %v280, 0
      %vm345 = vcmp.gt.s32.totalorder %v281, 0
      %vm346 = vcmp.gt.s32.totalorder %v282, 0
      %vm347 = vcmp.gt.s32.totalorder %v283, 0
      %vm348 = vcmp.gt.s32.totalorder %v284, 0
      %vm349 = vcmp.gt.s32.totalorder %v285, 0
      %vm350 = vcmp.gt.s32.totalorder %v286, 0
      %vm351 = vcmp.gt.s32.totalorder %v287, 0
      %vm352 = vcmp.gt.s32.totalorder %v288, 0
      %vm353 = vcmp.gt.s32.totalorder %v289, 0
      %vm354 = vcmp.gt.s32.totalorder %v290, 0
      %vm355 = vcmp.gt.s32.totalorder %v291, 0
      %vm356 = vcmp.gt.s32.totalorder %v292, 0
      %vm357 = vcmask 64512
      %358 = vst.msk [vmem:[#allocation2] sm:$0xff] %vm357, 0
      %vm359 = vcmask 60416
      %360 = vst.msk [vmem:[#allocation2 + $0x8] sm:$0xf] %vm359, 0
      %vm361 = vcmask 64516
      %362 = vst.msk [vmem:[#allocation2 + $0x88] sm:$0xf0] %vm361, 0
      %363 = vst.msk [vmem:[#allocation2 + $0x90] sm:$0xff] %vm357, 0
      %v364 = vld [vmem:[%s219] sm:$0xf]
      %v365 = vld [vmem:[%s219 + $0x4] sm:$0xf]
      %v366 = vld [vmem:[%s219 + $0x8] sm:$0xf]
      %v367 = vld [vmem:[%s219 + $0xc] sm:$0xf]
      %v368 = vld [vmem:[%s219 + $0x10] sm:$0xf]
      %v369 = vld [vmem:[%s219 + $0x14] sm:$0xf]
      %v370 = vld [vmem:[%s219 + $0x18] sm:$0xf]
      %v371 = vld [vmem:[%s219 + $0x1c] sm:$0xf]
      %v372 = vld [vmem:[%s219 + $0x20] sm:$0xf]
      %v373 = vld [vmem:[%s219 + $0x24] sm:$0xf]
      %v374 = vld [vmem:[%s219 + $0x28] sm:$0xf]
      %v375 = vld [vmem:[%s219 + $0x2c] sm:$0xf]
      %v376 = vld [vmem:[%s219 + $0x30] sm:$0xf]
      %v377 = vld [vmem:[%s219 + $0x34] sm:$0xf]
      %v378 = vld [vmem:[%s219 + $0x38] sm:$0xf]
      %v379 = vld [vmem:[%s219 + $0x3c] sm:$0xf]
      %v380 = vld [vmem:[%s219 + $0x40] sm:$0xf]
      %v381 = vld [vmem:[%s219 + $0x44] sm:$0xf]
      %v382 = vld [vmem:[%s219 + $0x48] sm:$0xf]
      %v383 = vld [vmem:[%s219 + $0x4c] sm:$0xf]
      %v384 = vld [vmem:[%s219 + $0x50] sm:$0xf]
      %v385 = vld [vmem:[%s219 + $0x54] sm:$0xf]
      %v386 = vld [vmem:[%s219 + $0x58] sm:$0xf]
      %v387 = vld [vmem:[%s219 + $0x5c] sm:$0xf]
      %v388 = vld [vmem:[%s219 + $0x60] sm:$0xf]
      %v389 = vld [vmem:[%s219 + $0x64] sm:$0xf]
      %v390 = vld [vmem:[%s219 + $0x68] sm:$0xf]
      %v391 = vld [vmem:[%s219 + $0x6c] sm:$0xf]
      %v392 = vld [vmem:[%s219 + $0x70] sm:$0xf]
      %v393 = vld [vmem:[%s219 + $0x74] sm:$0xf]
      %v394 = vld [vmem:[%s219 + $0x78] sm:$0xf]
      %v395 = vld [vmem:[%s219 + $0x7c] sm:$0xf]
      %v428 = vunpack.c.l.b16 %v364
      %v429 = vunpack.c.l.b16 %v365
      %v430 = vunpack.c.l.b16 %v366
      %v431 = vunpack.c.l.b16 %v367
      %v432 = vunpack.c.l.b16 %v368
      %v433 = vunpack.c.l.b16 %v369
      %v434 = vunpack.c.l.b16 %v370
      %v435 = vunpack.c.l.b16 %v371
      %v436 = vunpack.c.l.b16 %v372
      %v437 = vunpack.c.l.b16 %v373
      %v438 = vunpack.c.l.b16 %v374
      %v439 = vunpack.c.l.b16 %v375
      %v440 = vunpack.c.l.b16 %v376
      %v441 = vunpack.c.l.b16 %v377
      %v442 = vunpack.c.l.b16 %v378
      %v443 = vunpack.c.l.b16 %v379
      %v444 = vunpack.c.l.b16 %v380
      %v445 = vunpack.c.l.b16 %v381
      %v446 = vunpack.c.l.b16 %v382
      %v447 = vunpack.c.l.b16 %v383
      %v448 = vunpack.c.l.b16 %v384
      %v449 = vunpack.c.l.b16 %v385
      %v450 = vunpack.c.l.b16 %v386
      %v451 = vunpack.c.l.b16 %v387
      %v452 = vunpack.c.l.b16 %v388
      %v453 = vunpack.c.l.b16 %v389
      %v454 = vunpack.c.l.b16 %v390
      %v455 = vunpack.c.l.b16 %v391
      %v456 = vunpack.c.l.b16 %v392
      %v457 = vunpack.c.l.b16 %v393
      %v458 = vunpack.c.l.b16 %v394
      %v459 = vunpack.c.l.b16 %v395
      %v460 = vpack.c.b16 %v428, %v428
      %v461 = vpack.c.b16 %v430, %v429
      %v462 = vpack.c.b16 %v432, %v431
      %v463 = vpack.c.b16 %v434, %v433
      %v464 = vpack.c.b16 %v436, %v435
      %v465 = vpack.c.b16 %v438, %v437
      %v466 = vpack.c.b16 %v440, %v439
      %v467 = vpack.c.b16 %v442, %v441
      %v468 = vpack.c.b16 %v444, %v443
      %v469 = vpack.c.b16 %v446, %v445
      %v470 = vpack.c.b16 %v448, %v447
      %v471 = vpack.c.b16 %v450, %v449
      %v472 = vpack.c.b16 %v452, %v451
      %v473 = vpack.c.b16 %v454, %v453
      %v474 = vpack.c.b16 %v456, %v455
      %v475 = vpack.c.b16 %v458, %v457
      %v476 = vpack.c.b16 %v459, %v459
      %494 = vst.msk [vmem:[#allocation2 + $0x8] sm:$0xf0] %vm361, %v460
      %495 = vst.msk [vmem:[#allocation2 + $0x10] sm:$0xff] %vm357, %v461
      %496 = vst.msk [vmem:[#allocation2 + $0x18] sm:$0xff] %vm357, %v462
      %497 = vst.msk [vmem:[#allocation2 + $0x20] sm:$0xff] %vm357, %v463
      %498 = vst.msk [vmem:[#allocation2 + $0x28] sm:$0xff] %vm357, %v464
      %499 = vst.msk [vmem:[#allocation2 + $0x30] sm:$0xff] %vm357, %v465
      %500 = vst.msk [vmem:[#allocation2 + $0x38] sm:$0xff] %vm357, %v466
      %501 = vst.msk [vmem:[#allocation2 + $0x40] sm:$0xff] %vm357, %v467
      %502 = vst.msk [vmem:[#allocation2 + $0x48] sm:$0xff] %vm357, %v468
      %503 = vst.msk [vmem:[#allocation2 + $0x50] sm:$0xff] %vm357, %v469
      %504 = vst.msk [vmem:[#allocation2 + $0x58] sm:$0xff] %vm357, %v470
      %505 = vst.msk [vmem:[#allocation2 + $0x60] sm:$0xff] %vm357, %v471
      %506 = vst.msk [vmem:[#allocation2 + $0x68] sm:$0xff] %vm357, %v472
      %507 = vst.msk [vmem:[#allocation2 + $0x70] sm:$0xff] %vm357, %v473
      %508 = vst.msk [vmem:[#allocation2 + $0x78] sm:$0xff] %vm357, %v474
      %509 = vst.msk [vmem:[#allocation2 + $0x80] sm:$0xff] %vm357, %v475
      %510 = vst.msk [vmem:[#allocation2 + $0x88] sm:$0xf] %vm359, %v476
      %v511 = vld [vmem:[#allocation2] sm:$0xf8]
      %v512 = vld [vmem:[#allocation2 + $0x8] sm:$0xff]
      %v513 = vld [vmem:[#allocation2 + $0x10] sm:$0xff]
      %v514 = vld [vmem:[#allocation2 + $0x18] sm:$0xff]
      %v515 = vld [vmem:[#allocation2 + $0x20] sm:$0xff]
      %v516 = vld [vmem:[#allocation2 + $0x28] sm:$0xff]
      %v517 = vld [vmem:[#allocation2 + $0x30] sm:$0xff]
      %v518 = vld [vmem:[#allocation2 + $0x38] sm:$0xff]
      %v519 = vld [vmem:[#allocation2 + $0x40] sm:$0xff]
      %v520 = vld [vmem:[#allocation2 + $0x48] sm:$0xff]
      %v521 = vld [vmem:[#allocation2 + $0x50] sm:$0xff]
      %v522 = vld [vmem:[#allocation2 + $0x58] sm:$0xff]
      %v523 = vld [vmem:[#allocation2 + $0x60] sm:$0xff]
      %v524 = vld [vmem:[#allocation2 + $0x68] sm:$0xff]
      %v525 = vld [vmem:[#allocation2 + $0x70] sm:$0xff]
      %v526 = vld [vmem:[#allocation2 + $0x78] sm:$0xff]
      %v527 = vld [vmem:[#allocation2 + $0x80] sm:$0xf]
      %v528 = vsel %vm325, 1, 0
      %v529 = vsel %vm326, 1, 0
      %v530 = vsel %vm327, 1, 0
      %v531 = vsel %vm328, 1, 0
      %v532 = vsel %vm329, 1, 0
      %v533 = vsel %vm330, 1, 0
      %v534 = vsel %vm331, 1, 0
      %v535 = vsel %vm332, 1, 0
      %v536 = vsel %vm333, 1, 0
      %v537 = vsel %vm334, 1, 0
      %v538 = vsel %vm335, 1, 0
      %v539 = vsel %vm336, 1, 0
      %v540 = vsel %vm337, 1, 0
      %v541 = vsel %vm338, 1, 0
      %v542 = vsel %vm339, 1, 0
      %v543 = vsel %vm340, 1, 0
      %v544 = vsel %vm341, 1, 0
      %v545 = vsel %vm342, 1, 0
      %v546 = vsel %vm343, 1, 0
      %v547 = vsel %vm344, 1, 0
      %v548 = vsel %vm345, 1, 0
      %v549 = vsel %vm346, 1, 0
      %v550 = vsel %vm347, 1, 0
      %v551 = vsel %vm348, 1, 0
      %v552 = vsel %vm349, 1, 0
      %v553 = vsel %vm350, 1, 0
      %v554 = vsel %vm351, 1, 0
      %v555 = vsel %vm352, 1, 0
      %v556 = vsel %vm353, 1, 0
      %v557 = vsel %vm354, 1, 0
      %v558 = vsel %vm355, 1, 0
      %v559 = vsel %vm356, 1, 0
      %vm560 = vcmp.eq.s32.totalorder %v528, 1
      %vm561 = vcmp.eq.s32.totalorder %v529, 1
      %vm562 = vcmp.eq.s32.totalorder %v530, 1
      %vm563 = vcmp.eq.s32.totalorder %v531, 1
      %vm564 = vcmp.eq.s32.totalorder %v532, 1
      %vm565 = vcmp.eq.s32.totalorder %v533, 1
      %vm566 = vcmp.eq.s32.totalorder %v534, 1
      %vm567 = vcmp.eq.s32.totalorder %v535, 1
      %vm568 = vcmp.eq.s32.totalorder %v536, 1
      %vm569 = vcmp.eq.s32.totalorder %v537, 1
      %vm570 = vcmp.eq.s32.totalorder %v538, 1
      %vm571 = vcmp.eq.s32.totalorder %v539, 1
      %vm572 = vcmp.eq.s32.totalorder %v540, 1
      %vm573 = vcmp.eq.s32.totalorder %v541, 1
      %vm574 = vcmp.eq.s32.totalorder %v542, 1
      %vm575 = vcmp.eq.s32.totalorder %v543, 1
      %vm576 = vcmp.eq.s32.totalorder %v544, 1
      %vm577 = vcmp.eq.s32.totalorder %v545, 1
      %vm578 = vcmp.eq.s32.totalorder %v546, 1
      %vm579 = vcmp.eq.s32.totalorder %v547, 1
      %vm580 = vcmp.eq.s32.totalorder %v548, 1
      %vm581 = vcmp.eq.s32.totalorder %v549, 1
      %vm582 = vcmp.eq.s32.totalorder %v550, 1
      %vm583 = vcmp.eq.s32.totalorder %v551, 1
      %vm584 = vcmp.eq.s32.totalorder %v552, 1
      %vm585 = vcmp.eq.s32.totalorder %v553, 1
      %vm586 = vcmp.eq.s32.totalorder %v554, 1
      %vm587 = vcmp.eq.s32.totalorder %v555, 1
      %vm588 = vcmp.eq.s32.totalorder %v556, 1
      %vm589 = vcmp.eq.s32.totalorder %v557, 1
      %vm590 = vcmp.eq.s32.totalorder %v558, 1
      %vm591 = vcmp.eq.s32.totalorder %v559, 1
      %vm592 = vmpackc.low %vm560, %vm560
      %vm593 = vmpackc.low %vm561, %vm561
      %vm594 = vmpackc.low %vm562, %vm562
      %vm595 = vmpackc.low %vm563, %vm563
      %vm596 = vmpackc.low %vm564, %vm564
      %vm597 = vmpackc.low %vm565, %vm565
      %vm598 = vmpackc.low %vm566, %vm566
      %vm599 = vmpackc.low %vm567, %vm567
      %vm600 = vmpackc.low %vm568, %vm568
      %vm601 = vmpackc.low %vm569, %vm569
      %vm602 = vmpackc.low %vm570, %vm570
      %vm603 = vmpackc.low %vm571, %vm571
      %vm604 = vmpackc.low %vm572, %vm572
      %vm605 = vmpackc.low %vm573, %vm573
      %vm606 = vmpackc.low %vm574, %vm574
      %vm607 = vmpackc.low %vm575, %vm575
      %vm608 = vmpackc.low %vm576, %vm576
      %vm609 = vmpackc.low %vm577, %vm577
      %vm610 = vmpackc.low %vm578, %vm578
      %vm611 = vmpackc.low %vm579, %vm579
      %vm612 = vmpackc.low %vm580, %vm580
      %vm613 = vmpackc.low %vm581, %vm581
      %vm614 = vmpackc.low %vm582, %vm582
      %vm615 = vmpackc.low %vm583, %vm583
      %vm616 = vmpackc.low %vm584, %vm584
      %vm617 = vmpackc.low %vm585, %vm585
      %vm618 = vmpackc.low %vm586, %vm586
      %vm619 = vmpackc.low %vm587, %vm587
      %vm620 = vmpackc.low %vm588, %vm588
      %vm621 = vmpackc.low %vm589, %vm589
      %vm622 = vmpackc.low %vm590, %vm590
      %vm623 = vmpackc.low %vm591, %vm591
      %v624 = vsel %vm592, 65537, 0
      %v625 = vsel %vm593, 65537, 0
      %v626 = vsel %vm594, 65537, 0
      %v627 = vsel %vm595, 65537, 0
      %v628 = vsel %vm596, 65537, 0
      %v629 = vsel %vm597, 65537, 0
      %v630 = vsel %vm598, 65537, 0
      %v631 = vsel %vm599, 65537, 0
      %v632 = vsel %vm600, 65537, 0
      %v633 = vsel %vm601, 65537, 0
      %v634 = vsel %vm602, 65537, 0
      %v635 = vsel %vm603, 65537, 0
      %v636 = vsel %vm604, 65537, 0
      %v637 = vsel %vm605, 65537, 0
      %v638 = vsel %vm606, 65537, 0
      %v639 = vsel %vm607, 65537, 0
      %v640 = vsel %vm608, 65537, 0
      %v641 = vsel %vm609, 65537, 0
      %v642 = vsel %vm610, 65537, 0
      %v643 = vsel %vm611, 65537, 0
      %v644 = vsel %vm612, 65537, 0
      %v645 = vsel %vm613, 65537, 0
      %v646 = vsel %vm614, 65537, 0
      %v647 = vsel %vm615, 65537, 0
      %v648 = vsel %vm616, 65537, 0
      %v649 = vsel %vm617, 65537, 0
      %v650 = vsel %vm618, 65537, 0
      %v651 = vsel %vm619, 65537, 0
      %v652 = vsel %vm620, 65537, 0
      %v653 = vsel %vm621, 65537, 0
      %v654 = vsel %vm622, 65537, 0
      %v655 = vsel %vm623, 65537, 0
      %v656 = vunpack.c.l.b16 %v624
      %v657 = vunpack.c.l.b16 %v625
      %v658 = vunpack.c.l.b16 %v626
      %v659 = vunpack.c.l.b16 %v627
      %v660 = vunpack.c.l.b16 %v628
      %v661 = vunpack.c.l.b16 %v629
      %v662 = vunpack.c.l.b16 %v630
      %v663 = vunpack.c.l.b16 %v631
      %v664 = vunpack.c.l.b16 %v632
      %v665 = vunpack.c.l.b16 %v633
      %v666 = vunpack.c.l.b16 %v634
      %v667 = vunpack.c.l.b16 %v635
      %v668 = vunpack.c.l.b16 %v636
      %v669 = vunpack.c.l.b16 %v637
      %v670 = vunpack.c.l.b16 %v638
      %v671 = vunpack.c.l.b16 %v639
      %v672 = vunpack.c.l.b16 %v640
      %v673 = vunpack.c.l.b16 %v641
      %v674 = vunpack.c.l.b16 %v642
      %v675 = vunpack.c.l.b16 %v643
      %v676 = vunpack.c.l.b16 %v644
      %v677 = vunpack.c.l.b16 %v645
      %v678 = vunpack.c.l.b16 %v646
      %v679 = vunpack.c.l.b16 %v647
      %v680 = vunpack.c.l.b16 %v648
      %v681 = vunpack.c.l.b16 %v649
      %v682 = vunpack.c.l.b16 %v650
      %v683 = vunpack.c.l.b16 %v651
      %v684 = vunpack.c.l.b16 %v652
      %v685 = vunpack.c.l.b16 %v653
      %v686 = vunpack.c.l.b16 %v654
      %v687 = vunpack.c.l.b16 %v655
      %v688 = vpack.c.b16 %v657, %v656
      %v689 = vpack.c.b16 %v659, %v658
      %v690 = vpack.c.b16 %v661, %v660
      %v691 = vpack.c.b16 %v663, %v662
      %v692 = vpack.c.b16 %v665, %v664
      %v693 = vpack.c.b16 %v667, %v666
      %v694 = vpack.c.b16 %v669, %v668
      %v695 = vpack.c.b16 %v671, %v670
      %v696 = vpack.c.b16 %v673, %v672
      %v697 = vpack.c.b16 %v675, %v674
      %v698 = vpack.c.b16 %v677, %v676
      %v699 = vpack.c.b16 %v679, %v678
      %v700 = vpack.c.b16 %v681, %v680
      %v701 = vpack.c.b16 %v683, %v682
      %v702 = vpack.c.b16 %v685, %v684
      %v703 = vpack.c.b16 %v687, %v686
      %vm704 = vsmask.f32 3328
      %v706 = vshrl.u32 %v688, 16
      %v708 = vrot.slane %v706, 4
      %v709 = vshll.u32 %v688, 16
      %v711 = vrot.slane %v709, 5
      %v712 = vor.u32 %v708, %v711
      %v714 = vshrl.u32 %v689, 16
      %v716 = vrot.slane %v714, 4
      %v717 = vshll.u32 %v689, 16
      %v719 = vrot.slane %v717, 5
      %v720 = vor.u32 %v716, %v719
      %v721 = vsel %vm704, %v712, %v720
      %v723 = vshrl.u32 %v690, 16
      %v725 = vrot.slane %v723, 4
      %v726 = vshll.u32 %v690, 16
      %v728 = vrot.slane %v726, 5
      %v729 = vor.u32 %v725, %v728
      %v730 = vsel %vm704, %v720, %v729
      %v732 = vshrl.u32 %v691, 16
      %v734 = vrot.slane %v732, 4
      %v735 = vshll.u32 %v691, 16
      %v737 = vrot.slane %v735, 5
      %v738 = vor.u32 %v734, %v737
      %v739 = vsel %vm704, %v729, %v738
      %v741 = vshrl.u32 %v692, 16
      %v743 = vrot.slane %v741, 4
      %v744 = vshll.u32 %v692, 16
      %v746 = vrot.slane %v744, 5
      %v747 = vor.u32 %v743, %v746
      %v748 = vsel %vm704, %v738, %v747
      %v750 = vshrl.u32 %v693, 16
      %v752 = vrot.slane %v750, 4
      %v753 = vshll.u32 %v693, 16
      %v755 = vrot.slane %v753, 5
      %v756 = vor.u32 %v752, %v755
      %v757 = vsel %vm704, %v747, %v756
      %v759 = vshrl.u32 %v694, 16
      %v761 = vrot.slane %v759, 4
      %v762 = vshll.u32 %v694, 16
      %v764 = vrot.slane %v762, 5
      %v765 = vor.u32 %v761, %v764
      %v766 = vsel %vm704, %v756, %v765
      %v768 = vshrl.u32 %v695, 16
      %v770 = vrot.slane %v768, 4
      %v771 = vshll.u32 %v695, 16
      %v773 = vrot.slane %v771, 5
      %v774 = vor.u32 %v770, %v773
      %v775 = vsel %vm704, %v765, %v774
      %v777 = vshrl.u32 %v696, 16
      %v779 = vrot.slane %v777, 4
      %v780 = vshll.u32 %v696, 16
      %v782 = vrot.slane %v780, 5
      %v783 = vor.u32 %v779, %v782
      %v784 = vsel %vm704, %v774, %v783
      %v786 = vshrl.u32 %v697, 16
      %v788 = vrot.slane %v786, 4
      %v789 = vshll.u32 %v697, 16
      %v791 = vrot.slane %v789, 5
      %v792 = vor.u32 %v788, %v791
      %v793 = vsel %vm704, %v783, %v792
      %v795 = vshrl.u32 %v698, 16
      %v797 = vrot.slane %v795, 4
      %v798 = vshll.u32 %v698, 16
      %v800 = vrot.slane %v798, 5
      %v801 = vor.u32 %v797, %v800
      %v802 = vsel %vm704, %v792, %v801
      %v804 = vshrl.u32 %v699, 16
      %v806 = vrot.slane %v804, 4
      %v807 = vshll.u32 %v699, 16
      %v809 = vrot.slane %v807, 5
      %v810 = vor.u32 %v806, %v809
      %v811 = vsel %vm704, %v801, %v810
      %v813 = vshrl.u32 %v700, 16
      %v815 = vrot.slane %v813, 4
      %v816 = vshll.u32 %v700, 16
      %v818 = vrot.slane %v816, 5
      %v819 = vor.u32 %v815, %v818
      %v820 = vsel %vm704, %v810, %v819
      %v822 = vshrl.u32 %v701, 16
      %v824 = vrot.slane %v822, 4
      %v825 = vshll.u32 %v701, 16
      %v827 = vrot.slane %v825, 5
      %v828 = vor.u32 %v824, %v827
      %v829 = vsel %vm704, %v819, %v828
      %v831 = vshrl.u32 %v702, 16
      %v833 = vrot.slane %v831, 4
      %v834 = vshll.u32 %v702, 16
      %v836 = vrot.slane %v834, 5
      %v837 = vor.u32 %v833, %v836
      %v838 = vsel %vm704, %v828, %v837
      %v840 = vshrl.u32 %v703, 16
      %v842 = vrot.slane %v840, 4
      %v843 = vshll.u32 %v703, 16
      %v845 = vrot.slane %v843, 5
      %v846 = vor.u32 %v842, %v845
      %v847 = vsel %vm704, %v837, %v846
      %vm848 = vcmp.ne.s16.totalorder %v712, 0
      %vm849 = vcmp.ne.s16.totalorder %v721, 0
      %vm850 = vcmp.ne.s16.totalorder %v730, 0
      %vm851 = vcmp.ne.s16.totalorder %v739, 0
      %vm852 = vcmp.ne.s16.totalorder %v748, 0
      %vm853 = vcmp.ne.s16.totalorder %v757, 0
      %vm854 = vcmp.ne.s16.totalorder %v766, 0
      %vm855 = vcmp.ne.s16.totalorder %v775, 0
      %vm856 = vcmp.ne.s16.totalorder %v784, 0
      %vm857 = vcmp.ne.s16.totalorder %v793, 0
      %vm858 = vcmp.ne.s16.totalorder %v802, 0
      %vm859 = vcmp.ne.s16.totalorder %v811, 0
      %vm860 = vcmp.ne.s16.totalorder %v820, 0
      %vm861 = vcmp.ne.s16.totalorder %v829, 0
      %vm862 = vcmp.ne.s16.totalorder %v838, 0
      %vm863 = vcmp.ne.s16.totalorder %v847, 0
      %vm864 = vcmp.ne.s16.totalorder %v846, 0
      %v865 = vsel %vm848, %v511, 0
      %v866 = vsel %vm849, %v512, 0
      %v867 = vsel %vm850, %v513, 0
      %v868 = vsel %vm851, %v514, 0
      %v869 = vsel %vm852, %v515, 0
      %v870 = vsel %vm853, %v516, 0
      %v871 = vsel %vm854, %v517, 0
      %v872 = vsel %vm855, %v518, 0
      %v873 = vsel %vm856, %v519, 0
      %v874 = vsel %vm857, %v520, 0
      %v875 = vsel %vm858, %v521, 0
      %v876 = vsel %vm859, %v522, 0
      %v877 = vsel %vm860, %v523, 0
      %v878 = vsel %vm861, %v524, 0
      %v879 = vsel %vm862, %v525, 0
      %v880 = vsel %vm863, %v526, 0
      %v881 = vsel %vm864, %v527, 0
      %vm882 = vsmask.f32 4352
      %v884 = vshrl.u32 %v865, 16
      %v886 = vrot.slane %v884, 3
      %v887 = vshll.u32 %v865, 16
      %v889 = vrot.slane %v887, 4
      %v890 = vor.u32 %v886, %v889
      %v892 = vshrl.u32 %v866, 16
      %v894 = vrot.slane %v892, 3
      %v895 = vshll.u32 %v866, 16
      %v897 = vrot.slane %v895, 4
      %v898 = vor.u32 %v894, %v897
      %v899 = vsel %vm882, %v890, %v898
      %v901 = vshrl.u32 %v867, 16
      %v903 = vrot.slane %v901, 3
      %v904 = vshll.u32 %v867, 16
      %v906 = vrot.slane %v904, 4
      %v907 = vor.u32 %v903, %v906
      %v908 = vsel %vm882, %v898, %v907
      %v910 = vshrl.u32 %v868, 16
      %v912 = vrot.slane %v910, 3
      %v913 = vshll.u32 %v868, 16
      %v915 = vrot.slane %v913, 4
      %v916 = vor.u32 %v912, %v915
      %v917 = vsel %vm882, %v907, %v916
      %v919 = vshrl.u32 %v869, 16
      %v921 = vrot.slane %v919, 3
      %v922 = vshll.u32 %v869, 16
      %v924 = vrot.slane %v922, 4
      %v925 = vor.u32 %v921, %v924
      %v926 = vsel %vm882, %v916, %v925
      %v928 = vshrl.u32 %v870, 16
      %v930 = vrot.slane %v928, 3
      %v931 = vshll.u32 %v870, 16
      %v933 = vrot.slane %v931, 4
      %v934 = vor.u32 %v930, %v933
      %v935 = vsel %vm882, %v925, %v934
      %v937 = vshrl.u32 %v871, 16
      %v939 = vrot.slane %v937, 3
      %v940 = vshll.u32 %v871, 16
      %v942 = vrot.slane %v940, 4
      %v943 = vor.u32 %v939, %v942
      %v944 = vsel %vm882, %v934, %v943
      %v946 = vshrl.u32 %v872, 16
      %v948 = vrot.slane %v946, 3
      %v949 = vshll.u32 %v872, 16
      %v951 = vrot.slane %v949, 4
      %v952 = vor.u32 %v948, %v951
      %v953 = vsel %vm882, %v943, %v952
      %v955 = vshrl.u32 %v873, 16
      %v957 = vrot.slane %v955, 3
      %v958 = vshll.u32 %v873, 16
      %v960 = vrot.slane %v958, 4
      %v961 = vor.u32 %v957, %v960
      %v962 = vsel %vm882, %v952, %v961
      %v964 = vshrl.u32 %v874, 16
      %v966 = vrot.slane %v964, 3
      %v967 = vshll.u32 %v874, 16
      %v969 = vrot.slane %v967, 4
      %v970 = vor.u32 %v966, %v969
      %v971 = vsel %vm882, %v961, %v970
      %v973 = vshrl.u32 %v875, 16
      %v975 = vrot.slane %v973, 3
      %v976 = vshll.u32 %v875, 16
      %v978 = vrot.slane %v976, 4
      %v979 = vor.u32 %v975, %v978
      %v980 = vsel %vm882, %v970, %v979
      %v982 = vshrl.u32 %v876, 16
      %v984 = vrot.slane %v982, 3
      %v985 = vshll.u32 %v876, 16
      %v987 = vrot.slane %v985, 4
      %v988 = vor.u32 %v984, %v987
      %v989 = vsel %vm882, %v979, %v988
      %v991 = vshrl.u32 %v877, 16
      %v993 = vrot.slane %v991, 3
      %v994 = vshll.u32 %v877, 16
      %v996 = vrot.slane %v994, 4
      %v997 = vor.u32 %v993, %v996
      %v998 = vsel %vm882, %v988, %v997
      %v1000 = vshrl.u32 %v878, 16
      %v1002 = vrot.slane %v1000, 3
      %v1003 = vshll.u32 %v878, 16
      %v1005 = vrot.slane %v1003, 4
      %v1006 = vor.u32 %v1002, %v1005
      %v1007 = vsel %vm882, %v997, %v1006
      %v1009 = vshrl.u32 %v879, 16
      %v1011 = vrot.slane %v1009, 3
      %v1012 = vshll.u32 %v879, 16
      %v1014 = vrot.slane %v1012, 4
      %v1015 = vor.u32 %v1011, %v1014
      %v1016 = vsel %vm882, %v1006, %v1015
      %v1018 = vshrl.u32 %v880, 16
      %v1020 = vrot.slane %v1018, 3
      %v1021 = vshll.u32 %v880, 16
      %v1023 = vrot.slane %v1021, 4
      %v1024 = vor.u32 %v1020, %v1023
      %v1025 = vsel %vm882, %v1015, %v1024
      %v1027 = vshrl.u32 %v881, 16
      %v1029 = vrot.slane %v1027, 3
      %v1030 = vshll.u32 %v881, 16
      %v1032 = vrot.slane %v1030, 4
      %v1033 = vor.u32 %v1029, %v1032
      %v1034 = vsel %vm882, %v1024, %v1033
      %1051 = vst.msk [vmem:[#allocation4] sm:$0xff] %vm357, %v899
      %1052 = vst.msk [vmem:[#allocation4 + $0x8] sm:$0xff] %vm357, %v908
      %1053 = vst.msk [vmem:[#allocation4 + $0x10] sm:$0xff] %vm357, %v917
      %1054 = vst.msk [vmem:[#allocation4 + $0x18] sm:$0xff] %vm357, %v926
      %1055 = vst.msk [vmem:[#allocation4 + $0x20] sm:$0xff] %vm357, %v935
      %1056 = vst.msk [vmem:[#allocation4 + $0x28] sm:$0xff] %vm357, %v944
      %1057 = vst.msk [vmem:[#allocation4 + $0x30] sm:$0xff] %vm357, %v953
      %1058 = vst.msk [vmem:[#allocation4 + $0x38] sm:$0xff] %vm357, %v962
      %1059 = vst.msk [vmem:[#allocation4 + $0x40] sm:$0xff] %vm357, %v971
      %1060 = vst.msk [vmem:[#allocation4 + $0x48] sm:$0xff] %vm357, %v980
      %1061 = vst.msk [vmem:[#allocation4 + $0x50] sm:$0xff] %vm357, %v989
      %1062 = vst.msk [vmem:[#allocation4 + $0x58] sm:$0xff] %vm357, %v998
      %1063 = vst.msk [vmem:[#allocation4 + $0x60] sm:$0xff] %vm357, %v1007
      %1064 = vst.msk [vmem:[#allocation4 + $0x68] sm:$0xff] %vm357, %v1016
      %1065 = vst.msk [vmem:[#allocation4 + $0x70] sm:$0xff] %vm357, %v1025
      %1066 = vst.msk [vmem:[#allocation4 + $0x78] sm:$0xff] %vm357, %v1034
      %v1067 = vld [vmem:[#allocation2] sm:$0xf0]
      %v1068 = vld [vmem:[#allocation2 + $0x8] sm:$0xff]
      %v1069 = vld [vmem:[#allocation2 + $0x10] sm:$0xff]
      %v1070 = vld [vmem:[#allocation2 + $0x18] sm:$0xff]
      %v1071 = vld [vmem:[#allocation2 + $0x20] sm:$0xff]
      %v1072 = vld [vmem:[#allocation2 + $0x28] sm:$0xff]
      %v1073 = vld [vmem:[#allocation2 + $0x30] sm:$0xff]
      %v1074 = vld [vmem:[#allocation2 + $0x38] sm:$0xff]
      %v1075 = vld [vmem:[#allocation2 + $0x40] sm:$0xff]
      %v1076 = vld [vmem:[#allocation2 + $0x48] sm:$0xff]
      %v1077 = vld [vmem:[#allocation2 + $0x50] sm:$0xff]
      %v1078 = vld [vmem:[#allocation2 + $0x58] sm:$0xff]
      %v1079 = vld [vmem:[#allocation2 + $0x60] sm:$0xff]
      %v1080 = vld [vmem:[#allocation2 + $0x68] sm:$0xff]
      %v1081 = vld [vmem:[#allocation2 + $0x70] sm:$0xff]
      %v1082 = vld [vmem:[#allocation2 + $0x78] sm:$0xff]
      %v1083 = vld [vmem:[#allocation2 + $0x80] sm:$0xf]
      %vm1101 = vcmask 1043456
      %v1102 = vrot.slane %v1067, 4
      %v1103 = vrot.slane %v1068, 4
      %v1104 = vsel %vm1101, %v1102, %v1103
      %v1105 = vrot.slane %v1069, 4
      %v1106 = vsel %vm1101, %v1103, %v1105
      %v1107 = vrot.slane %v1070, 4
      %v1108 = vsel %vm1101, %v1105, %v1107
      %v1109 = vrot.slane %v1071, 4
      %v1110 = vsel %vm1101, %v1107, %v1109
      %v1111 = vrot.slane %v1072, 4
      %v1112 = vsel %vm1101, %v1109, %v1111
      %v1113 = vrot.slane %v1073, 4
      %v1114 = vsel %vm1101, %v1111, %v1113
      %v1115 = vrot.slane %v1074, 4
      %v1116 = vsel %vm1101, %v1113, %v1115
      %v1117 = vrot.slane %v1075, 4
      %v1118 = vsel %vm1101, %v1115, %v1117
      %v1119 = vrot.slane %v1076, 4
      %v1120 = vsel %vm1101, %v1117, %v1119
      %v1121 = vrot.slane %v1077, 4
      %v1122 = vsel %vm1101, %v1119, %v1121
      %v1123 = vrot.slane %v1078, 4
      %v1124 = vsel %vm1101, %v1121, %v1123
      %v1125 = vrot.slane %v1079, 4
      %v1126 = vsel %vm1101, %v1123, %v1125
      %v1127 = vrot.slane %v1080, 4
      %v1128 = vsel %vm1101, %v1125, %v1127
      %v1129 = vrot.slane %v1081, 4
      %v1130 = vsel %vm1101, %v1127, %v1129
      %v1131 = vrot.slane %v1082, 4
      %v1132 = vsel %vm1101, %v1129, %v1131
      %v1133 = vrot.slane %v1083, 4
      %v1134 = vsel %vm1101, %v1131, %v1133
      %1135 = vrot.lane.b32.xlu0 %v1104, 8
      %v1136 = vpop.permute.xlu0 %1135
      %1137 = vrot.lane.b32.xlu0 %v1106, 8
      %v1138 = vpop.permute.xlu0 %1137
      %1139 = vrot.lane.b32.xlu0 %v1108, 8
      %v1140 = vpop.permute.xlu0 %1139
      %1141 = vrot.lane.b32.xlu0 %v1110, 8
      %v1142 = vpop.permute.xlu0 %1141
      %1143 = vrot.lane.b32.xlu0 %v1112, 8
      %v1144 = vpop.permute.xlu0 %1143
      %1145 = vrot.lane.b32.xlu0 %v1114, 8
      %v1146 = vpop.permute.xlu0 %1145
      %1147 = vrot.lane.b32.xlu0 %v1116, 8
      %v1148 = vpop.permute.xlu0 %1147
      %1149 = vrot.lane.b32.xlu0 %v1118, 8
      %v1150 = vpop.permute.xlu0 %1149
      %1151 = vrot.lane.b32.xlu0 %v1120, 8
      %v1152 = vpop.permute.xlu0 %1151
      %1153 = vrot.lane.b32.xlu0 %v1122, 8
      %v1154 = vpop.permute.xlu0 %1153
      %1155 = vrot.lane.b32.xlu0 %v1124, 8
      %v1156 = vpop.permute.xlu0 %1155
      %1157 = vrot.lane.b32.xlu0 %v1126, 8
      %v1158 = vpop.permute.xlu0 %1157
      %1159 = vrot.lane.b32.xlu0 %v1128, 8
      %v1160 = vpop.permute.xlu0 %1159
      %1161 = vrot.lane.b32.xlu0 %v1130, 8
      %v1162 = vpop.permute.xlu0 %1161
      %1163 = vrot.lane.b32.xlu0 %v1132, 8
      %v1164 = vpop.permute.xlu0 %1163
      %1165 = vrot.lane.b32.xlu0 %v1134, 8
      %v1166 = vpop.permute.xlu0 %1165
      %vm1183 = vcmask 130112
      %1184 = vst.msk [vmem:[#allocation4] sm:$0xff] %vm1183, %v1136
      %1185 = vst.msk [vmem:[#allocation4 + $0x8] sm:$0xff] %vm1183, %v1138
      %1186 = vst.msk [vmem:[#allocation4 + $0x10] sm:$0xff] %vm1183, %v1140
      %1187 = vst.msk [vmem:[#allocation4 + $0x18] sm:$0xff] %vm1183, %v1142
      %1188 = vst.msk [vmem:[#allocation4 + $0x20] sm:$0xff] %vm1183, %v1144
      %1189 = vst.msk [vmem:[#allocation4 + $0x28] sm:$0xff] %vm1183, %v1146
      %1190 = vst.msk [vmem:[#allocation4 + $0x30] sm:$0xff] %vm1183, %v1148
      %1191 = vst.msk [vmem:[#allocation4 + $0x38] sm:$0xff] %vm1183, %v1150
      %1192 = vst.msk [vmem:[#allocation4 + $0x40] sm:$0xff] %vm1183, %v1152
      %1193 = vst.msk [vmem:[#allocation4 + $0x48] sm:$0xff] %vm1183, %v1154
      %1194 = vst.msk [vmem:[#allocation4 + $0x50] sm:$0xff] %vm1183, %v1156
      %1195 = vst.msk [vmem:[#allocation4 + $0x58] sm:$0xff] %vm1183, %v1158
      %1196 = vst.msk [vmem:[#allocation4 + $0x60] sm:$0xff] %vm1183, %v1160
      %1197 = vst.msk [vmem:[#allocation4 + $0x68] sm:$0xff] %vm1183, %v1162
      %1198 = vst.msk [vmem:[#allocation4 + $0x70] sm:$0xff] %vm1183, %v1164
      %1199 = vst.msk [vmem:[#allocation4 + $0x78] sm:$0xff] %vm1183, %v1166
      %v1200 = vld [vmem:[#allocation2] sm:$0xf0]
      %v1201 = vld [vmem:[#allocation2 + $0x8] sm:$0xff]
      %v1202 = vld [vmem:[#allocation2 + $0x10] sm:$0xff]
      %v1203 = vld [vmem:[#allocation2 + $0x18] sm:$0xff]
      %v1204 = vld [vmem:[#allocation2 + $0x20] sm:$0xff]
      %v1205 = vld [vmem:[#allocation2 + $0x28] sm:$0xff]
      %v1206 = vld [vmem:[#allocation2 + $0x30] sm:$0xff]
      %v1207 = vld [vmem:[#allocation2 + $0x38] sm:$0xff]
      %v1208 = vld [vmem:[#allocation2 + $0x40] sm:$0xff]
      %v1209 = vld [vmem:[#allocation2 + $0x48] sm:$0xff]
      %v1210 = vld [vmem:[#allocation2 + $0x50] sm:$0xff]
      %v1211 = vld [vmem:[#allocation2 + $0x58] sm:$0xff]
      %v1212 = vld [vmem:[#allocation2 + $0x60] sm:$0xff]
      %v1213 = vld [vmem:[#allocation2 + $0x68] sm:$0xff]
      %v1214 = vld [vmem:[#allocation2 + $0x70] sm:$0xff]
      %v1215 = vld [vmem:[#allocation2 + $0x78] sm:$0xff]
      %v1216 = vld [vmem:[#allocation2 + $0x80] sm:$0x1f]
      %v1217 = vsel %vm293, 1, 0
      %v1218 = vsel %vm294, 1, 0
      %v1219 = vsel %vm295, 1, 0
      %v1220 = vsel %vm296, 1, 0
      %v1221 = vsel %vm297, 1, 0
      %v1222 = vsel %vm298, 1, 0
      %v1223 = vsel %vm299, 1, 0
      %v1224 = vsel %vm300, 1, 0
      %v1225 = vsel %vm301, 1, 0
      %v1226 = vsel %vm302, 1, 0
      %v1227 = vsel %vm303, 1, 0
      %v1228 = vsel %vm304, 1, 0
      %v1229 = vsel %vm305, 1, 0
      %v1230 = vsel %vm306, 1, 0
      %v1231 = vsel %vm307, 1, 0
      %v1232 = vsel %vm308, 1, 0
      %v1233 = vsel %vm309, 1, 0
      %v1234 = vsel %vm310, 1, 0
      %v1235 = vsel %vm311, 1, 0
      %v1236 = vsel %vm312, 1, 0
      %v1237 = vsel %vm313, 1, 0
      %v1238 = vsel %vm314, 1, 0
      %v1239 = vsel %vm315, 1, 0
      %v1240 = vsel %vm316, 1, 0
      %v1241 = vsel %vm317, 1, 0
      %v1242 = vsel %vm318, 1, 0
      %v1243 = vsel %vm319, 1, 0
      %v1244 = vsel %vm320, 1, 0
      %v1245 = vsel %vm321, 1, 0
      %v1246 = vsel %vm322, 1, 0
      %v1247 = vsel %vm323, 1, 0
      %v1248 = vsel %vm324, 1, 0
      %vm1249 = vcmp.eq.s32.totalorder %v1217, 1
      %vm1250 = vcmp.eq.s32.totalorder %v1218, 1
      %vm1251 = vcmp.eq.s32.totalorder %v1219, 1
      %vm1252 = vcmp.eq.s32.totalorder %v1220, 1
      %vm1253 = vcmp.eq.s32.totalorder %v1221, 1
      %vm1254 = vcmp.eq.s32.totalorder %v1222, 1
      %vm1255 = vcmp.eq.s32.totalorder %v1223, 1
      %vm1256 = vcmp.eq.s32.totalorder %v1224, 1
      %vm1257 = vcmp.eq.s32.totalorder %v1225, 1
      %vm1258 = vcmp.eq.s32.totalorder %v1226, 1
      %vm1259 = vcmp.eq.s32.totalorder %v1227, 1
      %vm1260 = vcmp.eq.s32.totalorder %v1228, 1
      %vm1261 = vcmp.eq.s32.totalorder %v1229, 1
      %vm1262 = vcmp.eq.s32.totalorder %v1230, 1
      %vm1263 = vcmp.eq.s32.totalorder %v1231, 1
      %vm1264 = vcmp.eq.s32.totalorder %v1232, 1
      %vm1265 = vcmp.eq.s32.totalorder %v1233, 1
      %vm1266 = vcmp.eq.s32.totalorder %v1234, 1
      %vm1267 = vcmp.eq.s32.totalorder %v1235, 1
      %vm1268 = vcmp.eq.s32.totalorder %v1236, 1
      %vm1269 = vcmp.eq.s32.totalorder %v1237, 1
      %vm1270 = vcmp.eq.s32.totalorder %v1238, 1
      %vm1271 = vcmp.eq.s32.totalorder %v1239, 1
      %vm1272 = vcmp.eq.s32.totalorder %v1240, 1
      %vm1273 = vcmp.eq.s32.totalorder %v1241, 1
      %vm1274 = vcmp.eq.s32.totalorder %v1242, 1
      %vm1275 = vcmp.eq.s32.totalorder %v1243, 1
      %vm1276 = vcmp.eq.s32.totalorder %v1244, 1
      %vm1277 = vcmp.eq.s32.totalorder %v1245, 1
      %vm1278 = vcmp.eq.s32.totalorder %v1246, 1
      %vm1279 = vcmp.eq.s32.totalorder %v1247, 1
      %vm1280 = vcmp.eq.s32.totalorder %v1248, 1
      %vm1281 = vmpackc.low %vm1249, %vm1249
      %vm1282 = vmpackc.low %vm1250, %vm1250
      %vm1283 = vmpackc.low %vm1251, %vm1251
      %vm1284 = vmpackc.low %vm1252, %vm1252
      %vm1285 = vmpackc.low %vm1253, %vm1253
      %vm1286 = vmpackc.low %vm1254, %vm1254
      %vm1287 = vmpackc.low %vm1255, %vm1255
      %vm1288 = vmpackc.low %vm1256, %vm1256
      %vm1289 = vmpackc.low %vm1257, %vm1257
      %vm1290 = vmpackc.low %vm1258, %vm1258
      %vm1291 = vmpackc.low %vm1259, %vm1259
      %vm1292 = vmpackc.low %vm1260, %vm1260
      %vm1293 = vmpackc.low %vm1261, %vm1261
      %vm1294 = vmpackc.low %vm1262, %vm1262
      %vm1295 = vmpackc.low %vm1263, %vm1263
      %vm1296 = vmpackc.low %vm1264, %vm1264
      %vm1297 = vmpackc.low %vm1265, %vm1265
      %vm1298 = vmpackc.low %vm1266, %vm1266
      %vm1299 = vmpackc.low %vm1267, %vm1267
      %vm1300 = vmpackc.low %vm1268, %vm1268
      %vm1301 = vmpackc.low %vm1269, %vm1269
      %vm1302 = vmpackc.low %vm1270, %vm1270
      %vm1303 = vmpackc.low %vm1271, %vm1271
      %vm1304 = vmpackc.low %vm1272, %vm1272
      %vm1305 = vmpackc.low %vm1273, %vm1273
      %vm1306 = vmpackc.low %vm1274, %vm1274
      %vm1307 = vmpackc.low %vm1275, %vm1275
      %vm1308 = vmpackc.low %vm1276, %vm1276
      %vm1309 = vmpackc.low %vm1277, %vm1277
      %vm1310 = vmpackc.low %vm1278, %vm1278
      %vm1311 = vmpackc.low %vm1279, %vm1279
      %vm1312 = vmpackc.low %vm1280, %vm1280
      %v1313 = vsel %vm1281, 65537, 0
      %v1314 = vsel %vm1282, 65537, 0
      %v1315 = vsel %vm1283, 65537, 0
      %v1316 = vsel %vm1284, 65537, 0
      %v1317 = vsel %vm1285, 65537, 0
      %v1318 = vsel %vm1286, 65537, 0
      %v1319 = vsel %vm1287, 65537, 0
      %v1320 = vsel %vm1288, 65537, 0
      %v1321 = vsel %vm1289, 65537, 0
      %v1322 = vsel %vm1290, 65537, 0
      %v1323 = vsel %vm1291, 65537, 0
      %v1324 = vsel %vm1292, 65537, 0
      %v1325 = vsel %vm1293, 65537, 0
      %v1326 = vsel %vm1294, 65537, 0
      %v1327 = vsel %vm1295, 65537, 0
      %v1328 = vsel %vm1296, 65537, 0
      %v1329 = vsel %vm1297, 65537, 0
      %v1330 = vsel %vm1298, 65537, 0
      %v1331 = vsel %vm1299, 65537, 0
      %v1332 = vsel %vm1300, 65537, 0
      %v1333 = vsel %vm1301, 65537, 0
      %v1334 = vsel %vm1302, 65537, 0
      %v1335 = vsel %vm1303, 65537, 0
      %v1336 = vsel %vm1304, 65537, 0
      %v1337 = vsel %vm1305, 65537, 0
      %v1338 = vsel %vm1306, 65537, 0
      %v1339 = vsel %vm1307, 65537, 0
      %v1340 = vsel %vm1308, 65537, 0
      %v1341 = vsel %vm1309, 65537, 0
      %v1342 = vsel %vm1310, 65537, 0
      %v1343 = vsel %vm1311, 65537, 0
      %v1344 = vsel %vm1312, 65537, 0
      %v1345 = vunpack.c.l.b16 %v1313
      %v1346 = vunpack.c.l.b16 %v1314
      %v1347 = vunpack.c.l.b16 %v1315
      %v1348 = vunpack.c.l.b16 %v1316
      %v1349 = vunpack.c.l.b16 %v1317
      %v1350 = vunpack.c.l.b16 %v1318
      %v1351 = vunpack.c.l.b16 %v1319
      %v1352 = vunpack.c.l.b16 %v1320
      %v1353 = vunpack.c.l.b16 %v1321
      %v1354 = vunpack.c.l.b16 %v1322
      %v1355 = vunpack.c.l.b16 %v1323
      %v1356 = vunpack.c.l.b16 %v1324
      %v1357 = vunpack.c.l.b16 %v1325
      %v1358 = vunpack.c.l.b16 %v1326
      %v1359 = vunpack.c.l.b16 %v1327
      %v1360 = vunpack.c.l.b16 %v1328
      %v1361 = vunpack.c.l.b16 %v1329
      %v1362 = vunpack.c.l.b16 %v1330
      %v1363 = vunpack.c.l.b16 %v1331
      %v1364 = vunpack.c.l.b16 %v1332
      %v1365 = vunpack.c.l.b16 %v1333
      %v1366 = vunpack.c.l.b16 %v1334
      %v1367 = vunpack.c.l.b16 %v1335
      %v1368 = vunpack.c.l.b16 %v1336
      %v1369 = vunpack.c.l.b16 %v1337
      %v1370 = vunpack.c.l.b16 %v1338
      %v1371 = vunpack.c.l.b16 %v1339
      %v1372 = vunpack.c.l.b16 %v1340
      %v1373 = vunpack.c.l.b16 %v1341
      %v1374 = vunpack.c.l.b16 %v1342
      %v1375 = vunpack.c.l.b16 %v1343
      %v1376 = vunpack.c.l.b16 %v1344
      %v1377 = vpack.c.b16 %v1346, %v1345
      %v1378 = vpack.c.b16 %v1348, %v1347
      %v1379 = vpack.c.b16 %v1350, %v1349
      %v1380 = vpack.c.b16 %v1352, %v1351
      %v1381 = vpack.c.b16 %v1354, %v1353
      %v1382 = vpack.c.b16 %v1356, %v1355
      %v1383 = vpack.c.b16 %v1358, %v1357
      %v1384 = vpack.c.b16 %v1360, %v1359
      %v1385 = vpack.c.b16 %v1362, %v1361
      %v1386 = vpack.c.b16 %v1364, %v1363
      %v1387 = vpack.c.b16 %v1366, %v1365
      %v1388 = vpack.c.b16 %v1368, %v1367
      %v1389 = vpack.c.b16 %v1370, %v1369
      %v1390 = vpack.c.b16 %v1372, %v1371
      %v1391 = vpack.c.b16 %v1374, %v1373
      %v1392 = vpack.c.b16 %v1376, %v1375
      %v1394 = vshrl.u32 %v1377, 16
      %v1396 = vrot.slane %v1394, 3
      %v1397 = vshll.u32 %v1377, 16
      %v1399 = vrot.slane %v1397, 4
      %v1400 = vor.u32 %v1396, %v1399
      %v1402 = vshrl.u32 %v1378, 16
      %v1404 = vrot.slane %v1402, 3
      %v1405 = vshll.u32 %v1378, 16
      %v1407 = vrot.slane %v1405, 4
      %v1408 = vor.u32 %v1404, %v1407
      %v1409 = vsel %vm882, %v1400, %v1408
      %v1411 = vshrl.u32 %v1379, 16
      %v1413 = vrot.slane %v1411, 3
      %v1414 = vshll.u32 %v1379, 16
      %v1416 = vrot.slane %v1414, 4
      %v1417 = vor.u32 %v1413, %v1416
      %v1418 = vsel %vm882, %v1408, %v1417
      %v1420 = vshrl.u32 %v1380, 16
      %v1422 = vrot.slane %v1420, 3
      %v1423 = vshll.u32 %v1380, 16
      %v1425 = vrot.slane %v1423, 4
      %v1426 = vor.u32 %v1422, %v1425
      %v1427 = vsel %vm882, %v1417, %v1426
      %v1429 = vshrl.u32 %v1381, 16
      %v1431 = vrot.slane %v1429, 3
      %v1432 = vshll.u32 %v1381, 16
      %v1434 = vrot.slane %v1432, 4
      %v1435 = vor.u32 %v1431, %v1434
      %v1436 = vsel %vm882, %v1426, %v1435
      %v1438 = vshrl.u32 %v1382, 16
      %v1440 = vrot.slane %v1438, 3
      %v1441 = vshll.u32 %v1382, 16
      %v1443 = vrot.slane %v1441, 4
      %v1444 = vor.u32 %v1440, %v1443
      %v1445 = vsel %vm882, %v1435, %v1444
      %v1447 = vshrl.u32 %v1383, 16
      %v1449 = vrot.slane %v1447, 3
      %v1450 = vshll.u32 %v1383, 16
      %v1452 = vrot.slane %v1450, 4
      %v1453 = vor.u32 %v1449, %v1452
      %v1454 = vsel %vm882, %v1444, %v1453
      %v1456 = vshrl.u32 %v1384, 16
      %v1458 = vrot.slane %v1456, 3
      %v1459 = vshll.u32 %v1384, 16
      %v1461 = vrot.slane %v1459, 4
      %v1462 = vor.u32 %v1458, %v1461
      %v1463 = vsel %vm882, %v1453, %v1462
      %v1465 = vshrl.u32 %v1385, 16
      %v1467 = vrot.slane %v1465, 3
      %v1468 = vshll.u32 %v1385, 16
      %v1470 = vrot.slane %v1468, 4
      %v1471 = vor.u32 %v1467, %v1470
      %v1472 = vsel %vm882, %v1462, %v1471
      %v1474 = vshrl.u32 %v1386, 16
      %v1476 = vrot.slane %v1474, 3
      %v1477 = vshll.u32 %v1386, 16
      %v1479 = vrot.slane %v1477, 4
      %v1480 = vor.u32 %v1476, %v1479
      %v1481 = vsel %vm882, %v1471, %v1480
      %v1483 = vshrl.u32 %v1387, 16
      %v1485 = vrot.slane %v1483, 3
      %v1486 = vshll.u32 %v1387, 16
      %v1488 = vrot.slane %v1486, 4
      %v1489 = vor.u32 %v1485, %v1488
      %v1490 = vsel %vm882, %v1480, %v1489
      %v1492 = vshrl.u32 %v1388, 16
      %v1494 = vrot.slane %v1492, 3
      %v1495 = vshll.u32 %v1388, 16
      %v1497 = vrot.slane %v1495, 4
      %v1498 = vor.u32 %v1494, %v1497
      %v1499 = vsel %vm882, %v1489, %v1498
      %v1501 = vshrl.u32 %v1389, 16
      %v1503 = vrot.slane %v1501, 3
      %v1504 = vshll.u32 %v1389, 16
      %v1506 = vrot.slane %v1504, 4
      %v1507 = vor.u32 %v1503, %v1506
      %v1508 = vsel %vm882, %v1498, %v1507
      %v1510 = vshrl.u32 %v1390, 16
      %v1512 = vrot.slane %v1510, 3
      %v1513 = vshll.u32 %v1390, 16
      %v1515 = vrot.slane %v1513, 4
      %v1516 = vor.u32 %v1512, %v1515
      %v1517 = vsel %vm882, %v1507, %v1516
      %v1519 = vshrl.u32 %v1391, 16
      %v1521 = vrot.slane %v1519, 3
      %v1522 = vshll.u32 %v1391, 16
      %v1524 = vrot.slane %v1522, 4
      %v1525 = vor.u32 %v1521, %v1524
      %v1526 = vsel %vm882, %v1516, %v1525
      %v1528 = vshrl.u32 %v1392, 16
      %v1530 = vrot.slane %v1528, 3
      %v1531 = vshll.u32 %v1392, 16
      %v1533 = vrot.slane %v1531, 4
      %v1534 = vor.u32 %v1530, %v1533
      %v1535 = vsel %vm882, %v1525, %v1534
      %vm1536 = vcmp.ne.s16.totalorder %v1400, 0
      %vm1537 = vcmp.ne.s16.totalorder %v1409, 0
      %vm1538 = vcmp.ne.s16.totalorder %v1418, 0
      %vm1539 = vcmp.ne.s16.totalorder %v1427, 0
      %vm1540 = vcmp.ne.s16.totalorder %v1436, 0
      %vm1541 = vcmp.ne.s16.totalorder %v1445, 0
      %vm1542 = vcmp.ne.s16.totalorder %v1454, 0
      %vm1543 = vcmp.ne.s16.totalorder %v1463, 0
      %vm1544 = vcmp.ne.s16.totalorder %v1472, 0
      %vm1545 = vcmp.ne.s16.totalorder %v1481, 0
      %vm1546 = vcmp.ne.s16.totalorder %v1490, 0
      %vm1547 = vcmp.ne.s16.totalorder %v1499, 0
      %vm1548 = vcmp.ne.s16.totalorder %v1508, 0
      %vm1549 = vcmp.ne.s16.totalorder %v1517, 0
      %vm1550 = vcmp.ne.s16.totalorder %v1526, 0
      %vm1551 = vcmp.ne.s16.totalorder %v1535, 0
      %vm1552 = vcmp.ne.s16.totalorder %v1534, 0
      %v1553 = vsel %vm1536, %v1200, 0
      %v1554 = vsel %vm1537, %v1201, 0
      %v1555 = vsel %vm1538, %v1202, 0
      %v1556 = vsel %vm1539, %v1203, 0
      %v1557 = vsel %vm1540, %v1204, 0
      %v1558 = vsel %vm1541, %v1205, 0
      %v1559 = vsel %vm1542, %v1206, 0
      %v1560 = vsel %vm1543, %v1207, 0
      %v1561 = vsel %vm1544, %v1208, 0
      %v1562 = vsel %vm1545, %v1209, 0
      %v1563 = vsel %vm1546, %v1210, 0
      %v1564 = vsel %vm1547, %v1211, 0
      %v1565 = vsel %vm1548, %v1212, 0
      %v1566 = vsel %vm1549, %v1213, 0
      %v1567 = vsel %vm1550, %v1214, 0
      %v1568 = vsel %vm1551, %v1215, 0
      %v1569 = vsel %vm1552, %v1216, 0
      %v1571 = vshrl.u32 %v1553, 16
      %v1573 = vrot.slane %v1571, 4
      %v1574 = vshll.u32 %v1553, 16
      %v1576 = vrot.slane %v1574, 5
      %v1577 = vor.u32 %v1573, %v1576
      %v1579 = vshrl.u32 %v1554, 16
      %v1581 = vrot.slane %v1579, 4
      %v1582 = vshll.u32 %v1554, 16
      %v1584 = vrot.slane %v1582, 5
      %v1585 = vor.u32 %v1581, %v1584
      %v1586 = vsel %vm704, %v1577, %v1585
      %v1588 = vshrl.u32 %v1555, 16
      %v1590 = vrot.slane %v1588, 4
      %v1591 = vshll.u32 %v1555, 16
      %v1593 = vrot.slane %v1591, 5
      %v1594 = vor.u32 %v1590, %v1593
      %v1595 = vsel %vm704, %v1585, %v1594
      %v1597 = vshrl.u32 %v1556, 16
      %v1599 = vrot.slane %v1597, 4
      %v1600 = vshll.u32 %v1556, 16
      %v1602 = vrot.slane %v1600, 5
      %v1603 = vor.u32 %v1599, %v1602
      %v1604 = vsel %vm704, %v1594, %v1603
      %v1606 = vshrl.u32 %v1557, 16
      %v1608 = vrot.slane %v1606, 4
      %v1609 = vshll.u32 %v1557, 16
      %v1611 = vrot.slane %v1609, 5
      %v1612 = vor.u32 %v1608, %v1611
      %v1613 = vsel %vm704, %v1603, %v1612
      %v1615 = vshrl.u32 %v1558, 16
      %v1617 = vrot.slane %v1615, 4
      %v1618 = vshll.u32 %v1558, 16
      %v1620 = vrot.slane %v1618, 5
      %v1621 = vor.u32 %v1617, %v1620
      %v1622 = vsel %vm704, %v1612, %v1621
      %v1624 = vshrl.u32 %v1559, 16
      %v1626 = vrot.slane %v1624, 4
      %v1627 = vshll.u32 %v1559, 16
      %v1629 = vrot.slane %v1627, 5
      %v1630 = vor.u32 %v1626, %v1629
      %v1631 = vsel %vm704, %v1621, %v1630
      %v1633 = vshrl.u32 %v1560, 16
      %v1635 = vrot.slane %v1633, 4
      %v1636 = vshll.u32 %v1560, 16
      %v1638 = vrot.slane %v1636, 5
      %v1639 = vor.u32 %v1635, %v1638
      %v1640 = vsel %vm704, %v1630, %v1639
      %v1642 = vshrl.u32 %v1561, 16
      %v1644 = vrot.slane %v1642, 4
      %v1645 = vshll.u32 %v1561, 16
      %v1647 = vrot.slane %v1645, 5
      %v1648 = vor.u32 %v1644, %v1647
      %v1649 = vsel %vm704, %v1639, %v1648
      %v1651 = vshrl.u32 %v1562, 16
      %v1653 = vrot.slane %v1651, 4
      %v1654 = vshll.u32 %v1562, 16
      %v1656 = vrot.slane %v1654, 5
      %v1657 = vor.u32 %v1653, %v1656
      %v1658 = vsel %vm704, %v1648, %v1657
      %v1660 = vshrl.u32 %v1563, 16
      %v1662 = vrot.slane %v1660, 4
      %v1663 = vshll.u32 %v1563, 16
      %v1665 = vrot.slane %v1663, 5
      %v1666 = vor.u32 %v1662, %v1665
      %v1667 = vsel %vm704, %v1657, %v1666
      %v1669 = vshrl.u32 %v1564, 16
      %v1671 = vrot.slane %v1669, 4
      %v1672 = vshll.u32 %v1564, 16
      %v1674 = vrot.slane %v1672, 5
      %v1675 = vor.u32 %v1671, %v1674
      %v1676 = vsel %vm704, %v1666, %v1675
      %v1678 = vshrl.u32 %v1565, 16
      %v1680 = vrot.slane %v1678, 4
      %v1681 = vshll.u32 %v1565, 16
      %v1683 = vrot.slane %v1681, 5
      %v1684 = vor.u32 %v1680, %v1683
      %v1685 = vsel %vm704, %v1675, %v1684
      %v1687 = vshrl.u32 %v1566, 16
      %v1689 = vrot.slane %v1687, 4
      %v1690 = vshll.u32 %v1566, 16
      %v1692 = vrot.slane %v1690, 5
      %v1693 = vor.u32 %v1689, %v1692
      %v1694 = vsel %vm704, %v1684, %v1693
      %v1696 = vshrl.u32 %v1567, 16
      %v1698 = vrot.slane %v1696, 4
      %v1699 = vshll.u32 %v1567, 16
      %v1701 = vrot.slane %v1699, 5
      %v1702 = vor.u32 %v1698, %v1701
      %v1703 = vsel %vm704, %v1693, %v1702
      %v1705 = vshrl.u32 %v1568, 16
      %v1707 = vrot.slane %v1705, 4
      %v1708 = vshll.u32 %v1568, 16
      %v1710 = vrot.slane %v1708, 5
      %v1711 = vor.u32 %v1707, %v1710
      %v1712 = vsel %vm704, %v1702, %v1711
      %v1714 = vshrl.u32 %v1569, 16
      %v1716 = vrot.slane %v1714, 4
      %v1717 = vshll.u32 %v1569, 16
      %v1719 = vrot.slane %v1717, 5
      %v1720 = vor.u32 %v1716, %v1719
      %v1721 = vsel %vm704, %v1711, %v1720
      %1722 = vrot.lane.b32.xlu0 %v1586, 16
      %v1723 = vpop.permute.xlu0 %1722
      %1724 = vrot.lane.b32.xlu0 %v1595, 16
      %v1725 = vpop.permute.xlu0 %1724
      %1726 = vrot.lane.b32.xlu0 %v1604, 16
      %v1727 = vpop.permute.xlu0 %1726
      %1728 = vrot.lane.b32.xlu0 %v1613, 16
      %v1729 = vpop.permute.xlu0 %1728
      %1730 = vrot.lane.b32.xlu0 %v1622, 16
      %v1731 = vpop.permute.xlu0 %1730
      %1732 = vrot.lane.b32.xlu0 %v1631, 16
      %v1733 = vpop.permute.xlu0 %1732
      %1734 = vrot.lane.b32.xlu0 %v1640, 16
      %v1735 = vpop.permute.xlu0 %1734
      %1736 = vrot.lane.b32.xlu0 %v1649, 16
      %v1737 = vpop.permute.xlu0 %1736
      %1738 = vrot.lane.b32.xlu0 %v1658, 16
      %v1739 = vpop.permute.xlu0 %1738
      %1740 = vrot.lane.b32.xlu0 %v1667, 16
      %v1741 = vpop.permute.xlu0 %1740
      %1742 = vrot.lane.b32.xlu0 %v1676, 16
      %v1743 = vpop.permute.xlu0 %1742
      %1744 = vrot.lane.b32.xlu0 %v1685, 16
      %v1745 = vpop.permute.xlu0 %1744
      %1746 = vrot.lane.b32.xlu0 %v1694, 16
      %v1747 = vpop.permute.xlu0 %1746
      %1748 = vrot.lane.b32.xlu0 %v1703, 16
      %v1749 = vpop.permute.xlu0 %1748
      %1750 = vrot.lane.b32.xlu0 %v1712, 16
      %v1751 = vpop.permute.xlu0 %1750
      %1752 = vrot.lane.b32.xlu0 %v1721, 16
      %v1753 = vpop.permute.xlu0 %1752
      %vm1770 = vcmask 195712
      %1771 = vst.msk [vmem:[#allocation4] sm:$0xff] %vm1770, %v1723
      %1772 = vst.msk [vmem:[#allocation4 + $0x8] sm:$0xff] %vm1770, %v1725
      %1773 = vst.msk [vmem:[#allocation4 + $0x10] sm:$0xff] %vm1770, %v1727
      %1774 = vst.msk [vmem:[#allocation4 + $0x18] sm:$0xff] %vm1770, %v1729
      %1775 = vst.msk [vmem:[#allocation4 + $0x20] sm:$0xff] %vm1770, %v1731
      %1776 = vst.msk [vmem:[#allocation4 + $0x28] sm:$0xff] %vm1770, %v1733
      %1777 = vst.msk [vmem:[#allocation4 + $0x30] sm:$0xff] %vm1770, %v1735
      %1778 = vst.msk [vmem:[#allocation4 + $0x38] sm:$0xff] %vm1770, %v1737
      %1779 = vst.msk [vmem:[#allocation4 + $0x40] sm:$0xff] %vm1770, %v1739
      %1780 = vst.msk [vmem:[#allocation4 + $0x48] sm:$0xff] %vm1770, %v1741
      %1781 = vst.msk [vmem:[#allocation4 + $0x50] sm:$0xff] %vm1770, %v1743
      %1782 = vst.msk [vmem:[#allocation4 + $0x58] sm:$0xff] %vm1770, %v1745
      %1783 = vst.msk [vmem:[#allocation4 + $0x60] sm:$0xff] %vm1770, %v1747
      %1784 = vst.msk [vmem:[#allocation4 + $0x68] sm:$0xff] %vm1770, %v1749
      %1785 = vst.msk [vmem:[#allocation4 + $0x70] sm:$0xff] %vm1770, %v1751
      %1786 = vst.msk [vmem:[#allocation4 + $0x78] sm:$0xff] %vm1770, %v1753
      %v1787 = vld [vmem:[#allocation2 + $0x8] sm:$0xf8]
      %v1788 = vld [vmem:[#allocation2 + $0x10] sm:$0xff]
      %v1789 = vld [vmem:[#allocation2 + $0x18] sm:$0xff]
      %v1790 = vld [vmem:[#allocation2 + $0x20] sm:$0xff]
      %v1791 = vld [vmem:[#allocation2 + $0x28] sm:$0xff]
      %v1792 = vld [vmem:[#allocation2 + $0x30] sm:$0xff]
      %v1793 = vld [vmem:[#allocation2 + $0x38] sm:$0xff]
      %v1794 = vld [vmem:[#allocation2 + $0x40] sm:$0xff]
      %v1795 = vld [vmem:[#allocation2 + $0x48] sm:$0xff]
      %v1796 = vld [vmem:[#allocation2 + $0x50] sm:$0xff]
      %v1797 = vld [vmem:[#allocation2 + $0x58] sm:$0xff]
      %v1798 = vld [vmem:[#allocation2 + $0x60] sm:$0xff]
      %v1799 = vld [vmem:[#allocation2 + $0x68] sm:$0xff]
      %v1800 = vld [vmem:[#allocation2 + $0x70] sm:$0xff]
      %v1801 = vld [vmem:[#allocation2 + $0x78] sm:$0xff]
      %v1802 = vld [vmem:[#allocation2 + $0x80] sm:$0xff]
      %v1803 = vld [vmem:[#allocation2 + $0x88] sm:$0xf]
      %v1804 = vsel %vm848, %v1787, 0
      %v1805 = vsel %vm849, %v1788, 0
      %v1806 = vsel %vm850, %v1789, 0
      %v1807 = vsel %vm851, %v1790, 0
      %v1808 = vsel %vm852, %v1791, 0
      %v1809 = vsel %vm853, %v1792, 0
      %v1810 = vsel %vm854, %v1793, 0
      %v1811 = vsel %vm855, %v1794, 0
      %v1812 = vsel %vm856, %v1795, 0
      %v1813 = vsel %vm857, %v1796, 0
      %v1814 = vsel %vm858, %v1797, 0
      %v1815 = vsel %vm859, %v1798, 0
      %v1816 = vsel %vm860, %v1799, 0
      %v1817 = vsel %vm861, %v1800, 0
      %v1818 = vsel %vm862, %v1801, 0
      %v1819 = vsel %vm863, %v1802, 0
      %v1820 = vsel %vm864, %v1803, 0
      %v1822 = vshrl.u32 %v1804, 16
      %v1824 = vrot.slane %v1822, 3
      %v1825 = vshll.u32 %v1804, 16
      %v1827 = vrot.slane %v1825, 4
      %v1828 = vor.u32 %v1824, %v1827
      %v1830 = vshrl.u32 %v1805, 16
      %v1832 = vrot.slane %v1830, 3
      %v1833 = vshll.u32 %v1805, 16
      %v1835 = vrot.slane %v1833, 4
      %v1836 = vor.u32 %v1832, %v1835
      %v1837 = vsel %vm882, %v1828, %v1836
      %v1839 = vshrl.u32 %v1806, 16
      %v1841 = vrot.slane %v1839, 3
      %v1842 = vshll.u32 %v1806, 16
      %v1844 = vrot.slane %v1842, 4
      %v1845 = vor.u32 %v1841, %v1844
      %v1846 = vsel %vm882, %v1836, %v1845
      %v1848 = vshrl.u32 %v1807, 16
      %v1850 = vrot.slane %v1848, 3
      %v1851 = vshll.u32 %v1807, 16
      %v1853 = vrot.slane %v1851, 4
      %v1854 = vor.u32 %v1850, %v1853
      %v1855 = vsel %vm882, %v1845, %v1854
      %v1857 = vshrl.u32 %v1808, 16
      %v1859 = vrot.slane %v1857, 3
      %v1860 = vshll.u32 %v1808, 16
      %v1862 = vrot.slane %v1860, 4
      %v1863 = vor.u32 %v1859, %v1862
      %v1864 = vsel %vm882, %v1854, %v1863
      %v1866 = vshrl.u32 %v1809, 16
      %v1868 = vrot.slane %v1866, 3
      %v1869 = vshll.u32 %v1809, 16
      %v1871 = vrot.slane %v1869, 4
      %v1872 = vor.u32 %v1868, %v1871
      %v1873 = vsel %vm882, %v1863, %v1872
      %v1875 = vshrl.u32 %v1810, 16
      %v1877 = vrot.slane %v1875, 3
      %v1878 = vshll.u32 %v1810, 16
      %v1880 = vrot.slane %v1878, 4
      %v1881 = vor.u32 %v1877, %v1880
      %v1882 = vsel %vm882, %v1872, %v1881
      %v1884 = vshrl.u32 %v1811, 16
      %v1886 = vrot.slane %v1884, 3
      %v1887 = vshll.u32 %v1811, 16
      %v1889 = vrot.slane %v1887, 4
      %v1890 = vor.u32 %v1886, %v1889
      %v1891 = vsel %vm882, %v1881, %v1890
      %v1893 = vshrl.u32 %v1812, 16
      %v1895 = vrot.slane %v1893, 3
      %v1896 = vshll.u32 %v1812, 16
      %v1898 = vrot.slane %v1896, 4
      %v1899 = vor.u32 %v1895, %v1898
      %v1900 = vsel %vm882, %v1890, %v1899
      %v1902 = vshrl.u32 %v1813, 16
      %v1904 = vrot.slane %v1902, 3
      %v1905 = vshll.u32 %v1813, 16
      %v1907 = vrot.slane %v1905, 4
      %v1908 = vor.u32 %v1904, %v1907
      %v1909 = vsel %vm882, %v1899, %v1908
      %v1911 = vshrl.u32 %v1814, 16
      %v1913 = vrot.slane %v1911, 3
      %v1914 = vshll.u32 %v1814, 16
      %v1916 = vrot.slane %v1914, 4
      %v1917 = vor.u32 %v1913, %v1916
      %v1918 = vsel %vm882, %v1908, %v1917
      %v1920 = vshrl.u32 %v1815, 16
      %v1922 = vrot.slane %v1920, 3
      %v1923 = vshll.u32 %v1815, 16
      %v1925 = vrot.slane %v1923, 4
      %v1926 = vor.u32 %v1922, %v1925
      %v1927 = vsel %vm882, %v1917, %v1926
      %v1929 = vshrl.u32 %v1816, 16
      %v1931 = vrot.slane %v1929, 3
      %v1932 = vshll.u32 %v1816, 16
      %v1934 = vrot.slane %v1932, 4
      %v1935 = vor.u32 %v1931, %v1934
      %v1936 = vsel %vm882, %v1926, %v1935
      %v1938 = vshrl.u32 %v1817, 16
      %v1940 = vrot.slane %v1938, 3
      %v1941 = vshll.u32 %v1817, 16
      %v1943 = vrot.slane %v1941, 4
      %v1944 = vor.u32 %v1940, %v1943
      %v1945 = vsel %vm882, %v1935, %v1944
      %v1947 = vshrl.u32 %v1818, 16
      %v1949 = vrot.slane %v1947, 3
      %v1950 = vshll.u32 %v1818, 16
      %v1952 = vrot.slane %v1950, 4
      %v1953 = vor.u32 %v1949, %v1952
      %v1954 = vsel %vm882, %v1944, %v1953
      %v1956 = vshrl.u32 %v1819, 16
      %v1958 = vrot.slane %v1956, 3
      %v1959 = vshll.u32 %v1819, 16
      %v1961 = vrot.slane %v1959, 4
      %v1962 = vor.u32 %v1958, %v1961
      %v1963 = vsel %vm882, %v1953, %v1962
      %v1965 = vshrl.u32 %v1820, 16
      %v1967 = vrot.slane %v1965, 3
      %v1968 = vshll.u32 %v1820, 16
      %v1970 = vrot.slane %v1968, 4
      %v1971 = vor.u32 %v1967, %v1970
      %v1972 = vsel %vm882, %v1962, %v1971
      %1973 = vrot.lane.b32.xlu0 %v1837, 24
      %v1974 = vpop.permute.xlu0 %1973
      %1975 = vrot.lane.b32.xlu0 %v1846, 24
      %v1976 = vpop.permute.xlu0 %1975
      %1977 = vrot.lane.b32.xlu0 %v1855, 24
      %v1978 = vpop.permute.xlu0 %1977
      %1979 = vrot.lane.b32.xlu0 %v1864, 24
      %v1980 = vpop.permute.xlu0 %1979
      %1981 = vrot.lane.b32.xlu0 %v1873, 24
      %v1982 = vpop.permute.xlu0 %1981
      %1983 = vrot.lane.b32.xlu0 %v1882, 24
      %v1984 = vpop.permute.xlu0 %1983
      %1985 = vrot.lane.b32.xlu0 %v1891, 24
      %v1986 = vpop.permute.xlu0 %1985
      %1987 = vrot.lane.b32.xlu0 %v1900, 24
      %v1988 = vpop.permute.xlu0 %1987
      %1989 = vrot.lane.b32.xlu0 %v1909, 24
      %v1990 = vpop.permute.xlu0 %1989
      %1991 = vrot.lane.b32.xlu0 %v1918, 24
      %v1992 = vpop.permute.xlu0 %1991
      %1993 = vrot.lane.b32.xlu0 %v1927, 24
      %v1994 = vpop.permute.xlu0 %1993
      %1995 = vrot.lane.b32.xlu0 %v1936, 24
      %v1996 = vpop.permute.xlu0 %1995
      %1997 = vrot.lane.b32.xlu0 %v1945, 24
      %v1998 = vpop.permute.xlu0 %1997
      %1999 = vrot.lane.b32.xlu0 %v1954, 24
      %v2000 = vpop.permute.xlu0 %1999
      %2001 = vrot.lane.b32.xlu0 %v1963, 24
      %v2002 = vpop.permute.xlu0 %2001
      %2003 = vrot.lane.b32.xlu0 %v1972, 24
      %v2004 = vpop.permute.xlu0 %2003
      %vm2021 = vcmask 261312
      %2022 = vst.msk [vmem:[#allocation4] sm:$0xff] %vm2021, %v1974
      %2023 = vst.msk [vmem:[#allocation4 + $0x8] sm:$0xff] %vm2021, %v1976
      %2024 = vst.msk [vmem:[#allocation4 + $0x10] sm:$0xff] %vm2021, %v1978
      %2025 = vst.msk [vmem:[#allocation4 + $0x18] sm:$0xff] %vm2021, %v1980
      %2026 = vst.msk [vmem:[#allocation4 + $0x20] sm:$0xff] %vm2021, %v1982
      %2027 = vst.msk [vmem:[#allocation4 + $0x28] sm:$0xff] %vm2021, %v1984
      %2028 = vst.msk [vmem:[#allocation4 + $0x30] sm:$0xff] %vm2021, %v1986
      %2029 = vst.msk [vmem:[#allocation4 + $0x38] sm:$0xff] %vm2021, %v1988
      %2030 = vst.msk [vmem:[#allocation4 + $0x40] sm:$0xff] %vm2021, %v1990
      %2031 = vst.msk [vmem:[#allocation4 + $0x48] sm:$0xff] %vm2021, %v1992
      %2032 = vst.msk [vmem:[#allocation4 + $0x50] sm:$0xff] %vm2021, %v1994
      %2033 = vst.msk [vmem:[#allocation4 + $0x58] sm:$0xff] %vm2021, %v1996
      %2034 = vst.msk [vmem:[#allocation4 + $0x60] sm:$0xff] %vm2021, %v1998
      %2035 = vst.msk [vmem:[#allocation4 + $0x68] sm:$0xff] %vm2021, %v2000
      %2036 = vst.msk [vmem:[#allocation4 + $0x70] sm:$0xff] %vm2021, %v2002
      %2037 = vst.msk [vmem:[#allocation4 + $0x78] sm:$0xff] %vm2021, %v2004
      %v2038 = vld [vmem:[#allocation2 + $0x8] sm:$0xf0]
      %v2039 = vld [vmem:[#allocation2 + $0x10] sm:$0xff]
      %v2040 = vld [vmem:[#allocation2 + $0x18] sm:$0xff]
      %v2041 = vld [vmem:[#allocation2 + $0x20] sm:$0xff]
      %v2042 = vld [vmem:[#allocation2 + $0x28] sm:$0xff]
      %v2043 = vld [vmem:[#allocation2 + $0x30] sm:$0xff]
      %v2044 = vld [vmem:[#allocation2 + $0x38] sm:$0xff]
      %v2045 = vld [vmem:[#allocation2 + $0x40] sm:$0xff]
      %v2046 = vld [vmem:[#allocation2 + $0x48] sm:$0xff]
      %v2047 = vld [vmem:[#allocation2 + $0x50] sm:$0xff]
      %v2048 = vld [vmem:[#allocation2 + $0x58] sm:$0xff]
      %v2049 = vld [vmem:[#allocation2 + $0x60] sm:$0xff]
      %v2050 = vld [vmem:[#allocation2 + $0x68] sm:$0xff]
      %v2051 = vld [vmem:[#allocation2 + $0x70] sm:$0xff]
      %v2052 = vld [vmem:[#allocation2 + $0x78] sm:$0xff]
      %v2053 = vld [vmem:[#allocation2 + $0x80] sm:$0xff]
      %v2054 = vld [vmem:[#allocation2 + $0x88] sm:$0xf]
      %v2072 = vrot.slane %v2038, 4
      %v2073 = vrot.slane %v2039, 4
      %v2074 = vsel %vm1101, %v2072, %v2073
      %v2075 = vrot.slane %v2040, 4
      %v2076 = vsel %vm1101, %v2073, %v2075
      %v2077 = vrot.slane %v2041, 4
      %v2078 = vsel %vm1101, %v2075, %v2077
      %v2079 = vrot.slane %v2042, 4
      %v2080 = vsel %vm1101, %v2077, %v2079
      %v2081 = vrot.slane %v2043, 4
      %v2082 = vsel %vm1101, %v2079, %v2081
      %v2083 = vrot.slane %v2044, 4
      %v2084 = vsel %vm1101, %v2081, %v2083
      %v2085 = vrot.slane %v2045, 4
      %v2086 = vsel %vm1101, %v2083, %v2085
      %v2087 = vrot.slane %v2046, 4
      %v2088 = vsel %vm1101, %v2085, %v2087
      %v2089 = vrot.slane %v2047, 4
      %v2090 = vsel %vm1101, %v2087, %v2089
      %v2091 = vrot.slane %v2048, 4
      %v2092 = vsel %vm1101, %v2089, %v2091
      %v2093 = vrot.slane %v2049, 4
      %v2094 = vsel %vm1101, %v2091, %v2093
      %v2095 = vrot.slane %v2050, 4
      %v2096 = vsel %vm1101, %v2093, %v2095
      %v2097 = vrot.slane %v2051, 4
      %v2098 = vsel %vm1101, %v2095, %v2097
      %v2099 = vrot.slane %v2052, 4
      %v2100 = vsel %vm1101, %v2097, %v2099
      %v2101 = vrot.slane %v2053, 4
      %v2102 = vsel %vm1101, %v2099, %v2101
      %v2103 = vrot.slane %v2054, 4
      %v2104 = vsel %vm1101, %v2101, %v2103
      %2105 = vrot.lane.b32.xlu0 %v2074, 32
      %v2106 = vpop.permute.xlu0 %2105
      %2107 = vrot.lane.b32.xlu0 %v2076, 32
      %v2108 = vpop.permute.xlu0 %2107
      %2109 = vrot.lane.b32.xlu0 %v2078, 32
      %v2110 = vpop.permute.xlu0 %2109
      %2111 = vrot.lane.b32.xlu0 %v2080, 32
      %v2112 = vpop.permute.xlu0 %2111
      %2113 = vrot.lane.b32.xlu0 %v2082, 32
      %v2114 = vpop.permute.xlu0 %2113
      %2115 = vrot.lane.b32.xlu0 %v2084, 32
      %v2116 = vpop.permute.xlu0 %2115
      %2117 = vrot.lane.b32.xlu0 %v2086, 32
      %v2118 = vpop.permute.xlu0 %2117
      %2119 = vrot.lane.b32.xlu0 %v2088, 32
      %v2120 = vpop.permute.xlu0 %2119
      %2121 = vrot.lane.b32.xlu0 %v2090, 32
      %v2122 = vpop.permute.xlu0 %2121
      %2123 = vrot.lane.b32.xlu0 %v2092, 32
      %v2124 = vpop.permute.xlu0 %2123
      %2125 = vrot.lane.b32.xlu0 %v2094, 32
      %v2126 = vpop.permute.xlu0 %2125
      %2127 = vrot.lane.b32.xlu0 %v2096, 32
      %v2128 = vpop.permute.xlu0 %2127
      %2129 = vrot.lane.b32.xlu0 %v2098, 32
      %v2130 = vpop.permute.xlu0 %2129
      %2131 = vrot.lane.b32.xlu0 %v2100, 32
      %v2132 = vpop.permute.xlu0 %2131
      %2133 = vrot.lane.b32.xlu0 %v2102, 32
      %v2134 = vpop.permute.xlu0 %2133
      %2135 = vrot.lane.b32.xlu0 %v2104, 32
      %v2136 = vpop.permute.xlu0 %2135
      %vm2153 = vcmask 326912
      %2154 = vst.msk [vmem:[#allocation4] sm:$0xff] %vm2153, %v2106
      %2155 = vst.msk [vmem:[#allocation4 + $0x8] sm:$0xff] %vm2153, %v2108
      %2156 = vst.msk [vmem:[#allocation4 + $0x10] sm:$0xff] %vm2153, %v2110
      %2157 = vst.msk [vmem:[#allocation4 + $0x18] sm:$0xff] %vm2153, %v2112
      %2158 = vst.msk [vmem:[#allocation4 + $0x20] sm:$0xff] %vm2153, %v2114
      %2159 = vst.msk [vmem:[#allocation4 + $0x28] sm:$0xff] %vm2153, %v2116
      %2160 = vst.msk [vmem:[#allocation4 + $0x30] sm:$0xff] %vm2153, %v2118
      %2161 = vst.msk [vmem:[#allocation4 + $0x38] sm:$0xff] %vm2153, %v2120
      %2162 = vst.msk [vmem:[#allocation4 + $0x40] sm:$0xff] %vm2153, %v2122
      %2163 = vst.msk [vmem:[#allocation4 + $0x48] sm:$0xff] %vm2153, %v2124
      %2164 = vst.msk [vmem:[#allocation4 + $0x50] sm:$0xff] %vm2153, %v2126
      %2165 = vst.msk [vmem:[#allocation4 + $0x58] sm:$0xff] %vm2153, %v2128
      %2166 = vst.msk [vmem:[#allocation4 + $0x60] sm:$0xff] %vm2153, %v2130
      %2167 = vst.msk [vmem:[#allocation4 + $0x68] sm:$0xff] %vm2153, %v2132
      %2168 = vst.msk [vmem:[#allocation4 + $0x70] sm:$0xff] %vm2153, %v2134
      %2169 = vst.msk [vmem:[#allocation4 + $0x78] sm:$0xff] %vm2153, %v2136
      %v2170 = vld [vmem:[#allocation2 + $0x8] sm:$0xf0]
      %v2171 = vld [vmem:[#allocation2 + $0x10] sm:$0xff]
      %v2172 = vld [vmem:[#allocation2 + $0x18] sm:$0xff]
      %v2173 = vld [vmem:[#allocation2 + $0x20] sm:$0xff]
      %v2174 = vld [vmem:[#allocation2 + $0x28] sm:$0xff]
      %v2175 = vld [vmem:[#allocation2 + $0x30] sm:$0xff]
      %v2176 = vld [vmem:[#allocation2 + $0x38] sm:$0xff]
      %v2177 = vld [vmem:[#allocation2 + $0x40] sm:$0xff]
      %v2178 = vld [vmem:[#allocation2 + $0x48] sm:$0xff]
      %v2179 = vld [vmem:[#allocation2 + $0x50] sm:$0xff]
      %v2180 = vld [vmem:[#allocation2 + $0x58] sm:$0xff]
      %v2181 = vld [vmem:[#allocation2 + $0x60] sm:$0xff]
      %v2182 = vld [vmem:[#allocation2 + $0x68] sm:$0xff]
      %v2183 = vld [vmem:[#allocation2 + $0x70] sm:$0xff]
      %v2184 = vld [vmem:[#allocation2 + $0x78] sm:$0xff]
      %v2185 = vld [vmem:[#allocation2 + $0x80] sm:$0xff]
      %v2186 = vld [vmem:[#allocation2 + $0x88] sm:$0x1f]
      %v2187 = vsel %vm1536, %v2170, 0
      %v2188 = vsel %vm1537, %v2171, 0
      %v2189 = vsel %vm1538, %v2172, 0
      %v2190 = vsel %vm1539, %v2173, 0
      %v2191 = vsel %vm1540, %v2174, 0
      %v2192 = vsel %vm1541, %v2175, 0
      %v2193 = vsel %vm1542, %v2176, 0
      %v2194 = vsel %vm1543, %v2177, 0
      %v2195 = vsel %vm1544, %v2178, 0
      %v2196 = vsel %vm1545, %v2179, 0
      %v2197 = vsel %vm1546, %v2180, 0
      %v2198 = vsel %vm1547, %v2181, 0
      %v2199 = vsel %vm1548, %v2182, 0
      %v2200 = vsel %vm1549, %v2183, 0
      %v2201 = vsel %vm1550, %v2184, 0
      %v2202 = vsel %vm1551, %v2185, 0
      %v2203 = vsel %vm1552, %v2186, 0
      %v2205 = vshrl.u32 %v2187, 16
      %v2207 = vrot.slane %v2205, 4
      %v2208 = vshll.u32 %v2187, 16
      %v2210 = vrot.slane %v2208, 5
      %v2211 = vor.u32 %v2207, %v2210
      %v2213 = vshrl.u32 %v2188, 16
      %v2215 = vrot.slane %v2213, 4
      %v2216 = vshll.u32 %v2188, 16
      %v2218 = vrot.slane %v2216, 5
      %v2219 = vor.u32 %v2215, %v2218
      %v2220 = vsel %vm704, %v2211, %v2219
      %v2222 = vshrl.u32 %v2189, 16
      %v2224 = vrot.slane %v2222, 4
      %v2225 = vshll.u32 %v2189, 16
      %v2227 = vrot.slane %v2225, 5
      %v2228 = vor.u32 %v2224, %v2227
      %v2229 = vsel %vm704, %v2219, %v2228
      %v2231 = vshrl.u32 %v2190, 16
      %v2233 = vrot.slane %v2231, 4
      %v2234 = vshll.u32 %v2190, 16
      %v2236 = vrot.slane %v2234, 5
      %v2237 = vor.u32 %v2233, %v2236
      %v2238 = vsel %vm704, %v2228, %v2237
      %v2240 = vshrl.u32 %v2191, 16
      %v2242 = vrot.slane %v2240, 4
      %v2243 = vshll.u32 %v2191, 16
      %v2245 = vrot.slane %v2243, 5
      %v2246 = vor.u32 %v2242, %v2245
      %v2247 = vsel %vm704, %v2237, %v2246
      %v2249 = vshrl.u32 %v2192, 16
      %v2251 = vrot.slane %v2249, 4
      %v2252 = vshll.u32 %v2192, 16
      %v2254 = vrot.slane %v2252, 5
      %v2255 = vor.u32 %v2251, %v2254
      %v2256 = vsel %vm704, %v2246, %v2255
      %v2258 = vshrl.u32 %v2193, 16
      %v2260 = vrot.slane %v2258, 4
      %v2261 = vshll.u32 %v2193, 16
      %v2263 = vrot.slane %v2261, 5
      %v2264 = vor.u32 %v2260, %v2263
      %v2265 = vsel %vm704, %v2255, %v2264
      %v2267 = vshrl.u32 %v2194, 16
      %v2269 = vrot.slane %v2267, 4
      %v2270 = vshll.u32 %v2194, 16
      %v2272 = vrot.slane %v2270, 5
      %v2273 = vor.u32 %v2269, %v2272
      %v2274 = vsel %vm704, %v2264, %v2273
      %v2276 = vshrl.u32 %v2195, 16
      %v2278 = vrot.slane %v2276, 4
      %v2279 = vshll.u32 %v2195, 16
      %v2281 = vrot.slane %v2279, 5
      %v2282 = vor.u32 %v2278, %v2281
      %v2283 = vsel %vm704, %v2273, %v2282
      %v2285 = vshrl.u32 %v2196, 16
      %v2287 = vrot.slane %v2285, 4
      %v2288 = vshll.u32 %v2196, 16
      %v2290 = vrot.slane %v2288, 5
      %v2291 = vor.u32 %v2287, %v2290
      %v2292 = vsel %vm704, %v2282, %v2291
      %v2294 = vshrl.u32 %v2197, 16
      %v2296 = vrot.slane %v2294, 4
      %v2297 = vshll.u32 %v2197, 16
      %v2299 = vrot.slane %v2297, 5
      %v2300 = vor.u32 %v2296, %v2299
      %v2301 = vsel %vm704, %v2291, %v2300
      %v2303 = vshrl.u32 %v2198, 16
      %v2305 = vrot.slane %v2303, 4
      %v2306 = vshll.u32 %v2198, 16
      %v2308 = vrot.slane %v2306, 5
      %v2309 = vor.u32 %v2305, %v2308
      %v2310 = vsel %vm704, %v2300, %v2309
      %v2312 = vshrl.u32 %v2199, 16
      %v2314 = vrot.slane %v2312, 4
      %v2315 = vshll.u32 %v2199, 16
      %v2317 = vrot.slane %v2315, 5
      %v2318 = vor.u32 %v2314, %v2317
      %v2319 = vsel %vm704, %v2309, %v2318
      %v2321 = vshrl.u32 %v2200, 16
      %v2323 = vrot.slane %v2321, 4
      %v2324 = vshll.u32 %v2200, 16
      %v2326 = vrot.slane %v2324, 5
      %v2327 = vor.u32 %v2323, %v2326
      %v2328 = vsel %vm704, %v2318, %v2327
      %v2330 = vshrl.u32 %v2201, 16
      %v2332 = vrot.slane %v2330, 4
      %v2333 = vshll.u32 %v2201, 16
      %v2335 = vrot.slane %v2333, 5
      %v2336 = vor.u32 %v2332, %v2335
      %v2337 = vsel %vm704, %v2327, %v2336
      %v2339 = vshrl.u32 %v2202, 16
      %v2341 = vrot.slane %v2339, 4
      %v2342 = vshll.u32 %v2202, 16
      %v2344 = vrot.slane %v2342, 5
      %v2345 = vor.u32 %v2341, %v2344
      %v2346 = vsel %vm704, %v2336, %v2345
      %v2348 = vshrl.u32 %v2203, 16
      %v2350 = vrot.slane %v2348, 4
      %v2351 = vshll.u32 %v2203, 16
      %v2353 = vrot.slane %v2351, 5
      %v2354 = vor.u32 %v2350, %v2353
      %v2355 = vsel %vm704, %v2345, %v2354
      %2356 = vrot.lane.b32.xlu0 %v2220, 40
      %v2357 = vpop.permute.xlu0 %2356
      %2358 = vrot.lane.b32.xlu0 %v2229, 40
      %v2359 = vpop.permute.xlu0 %2358
      %2360 = vrot.lane.b32.xlu0 %v2238, 40
      %v2361 = vpop.permute.xlu0 %2360
      %2362 = vrot.lane.b32.xlu0 %v2247, 40
      %v2363 = vpop.permute.xlu0 %2362
      %2364 = vrot.lane.b32.xlu0 %v2256, 40
      %v2365 = vpop.permute.xlu0 %2364
      %2366 = vrot.lane.b32.xlu0 %v2265, 40
      %v2367 = vpop.permute.xlu0 %2366
      %2368 = vrot.lane.b32.xlu0 %v2274, 40
      %v2369 = vpop.permute.xlu0 %2368
      %2370 = vrot.lane.b32.xlu0 %v2283, 40
      %v2371 = vpop.permute.xlu0 %2370
      %2372 = vrot.lane.b32.xlu0 %v2292, 40
      %v2373 = vpop.permute.xlu0 %2372
      %2374 = vrot.lane.b32.xlu0 %v2301, 40
      %v2375 = vpop.permute.xlu0 %2374
      %2376 = vrot.lane.b32.xlu0 %v2310, 40
      %v2377 = vpop.permute.xlu0 %2376
      %2378 = vrot.lane.b32.xlu0 %v2319, 40
      %v2379 = vpop.permute.xlu0 %2378
      %2380 = vrot.lane.b32.xlu0 %v2328, 40
      %v2381 = vpop.permute.xlu0 %2380
      %2382 = vrot.lane.b32.xlu0 %v2337, 40
      %v2383 = vpop.permute.xlu0 %2382
      %2384 = vrot.lane.b32.xlu0 %v2346, 40
      %v2385 = vpop.permute.xlu0 %2384
      %2386 = vrot.lane.b32.xlu0 %v2355, 40
      %v2387 = vpop.permute.xlu0 %2386
      %vm2404 = vcmask 392512
      %2405 = vst.msk [vmem:[#allocation4] sm:$0xff] %vm2404, %v2357
      %2406 = vst.msk [vmem:[#allocation4 + $0x8] sm:$0xff] %vm2404, %v2359
      %2407 = vst.msk [vmem:[#allocation4 + $0x10] sm:$0xff] %vm2404, %v2361
      %2408 = vst.msk [vmem:[#allocation4 + $0x18] sm:$0xff] %vm2404, %v2363
      %2409 = vst.msk [vmem:[#allocation4 + $0x20] sm:$0xff] %vm2404, %v2365
      %2410 = vst.msk [vmem:[#allocation4 + $0x28] sm:$0xff] %vm2404, %v2367
      %2411 = vst.msk [vmem:[#allocation4 + $0x30] sm:$0xff] %vm2404, %v2369
      %2412 = vst.msk [vmem:[#allocation4 + $0x38] sm:$0xff] %vm2404, %v2371
      %2413 = vst.msk [vmem:[#allocation4 + $0x40] sm:$0xff] %vm2404, %v2373
      %2414 = vst.msk [vmem:[#allocation4 + $0x48] sm:$0xff] %vm2404, %v2375
      %2415 = vst.msk [vmem:[#allocation4 + $0x50] sm:$0xff] %vm2404, %v2377
      %2416 = vst.msk [vmem:[#allocation4 + $0x58] sm:$0xff] %vm2404, %v2379
      %2417 = vst.msk [vmem:[#allocation4 + $0x60] sm:$0xff] %vm2404, %v2381
      %2418 = vst.msk [vmem:[#allocation4 + $0x68] sm:$0xff] %vm2404, %v2383
      %2419 = vst.msk [vmem:[#allocation4 + $0x70] sm:$0xff] %vm2404, %v2385
      %2420 = vst.msk [vmem:[#allocation4 + $0x78] sm:$0xff] %vm2404, %v2387
      %v2421 = vld [vmem:[#allocation2 + $0x10] sm:$0xf8]
      %v2422 = vld [vmem:[#allocation2 + $0x18] sm:$0xff]
      %v2423 = vld [vmem:[#allocation2 + $0x20] sm:$0xff]
      %v2424 = vld [vmem:[#allocation2 + $0x28] sm:$0xff]
      %v2425 = vld [vmem:[#allocation2 + $0x30] sm:$0xff]
      %v2426 = vld [vmem:[#allocation2 + $0x38] sm:$0xff]
      %v2427 = vld [vmem:[#allocation2 + $0x40] sm:$0xff]
      %v2428 = vld [vmem:[#allocation2 + $0x48] sm:$0xff]
      %v2429 = vld [vmem:[#allocation2 + $0x50] sm:$0xff]
      %v2430 = vld [vmem:[#allocation2 + $0x58] sm:$0xff]
      %v2431 = vld [vmem:[#allocation2 + $0x60] sm:$0xff]
      %v2432 = vld [vmem:[#allocation2 + $0x68] sm:$0xff]
      %v2433 = vld [vmem:[#allocation2 + $0x70] sm:$0xff]
      %v2434 = vld [vmem:[#allocation2 + $0x78] sm:$0xff]
      %v2435 = vld [vmem:[#allocation2 + $0x80] sm:$0xff]
      %v2436 = vld [vmem:[#allocation2 + $0x88] sm:$0xff]
      %v2437 = vld [vmem:[#allocation2 + $0x90] sm:$0xf]
      %v2438 = vsel %vm848, %v2421, 0
      %v2439 = vsel %vm849, %v2422, 0
      %v2440 = vsel %vm850, %v2423, 0
      %v2441 = vsel %vm851, %v2424, 0
      %v2442 = vsel %vm852, %v2425, 0
      %v2443 = vsel %vm853, %v2426, 0
      %v2444 = vsel %vm854, %v2427, 0
      %v2445 = vsel %vm855, %v2428, 0
      %v2446 = vsel %vm856, %v2429, 0
      %v2447 = vsel %vm857, %v2430, 0
      %v2448 = vsel %vm858, %v2431, 0
      %v2449 = vsel %vm859, %v2432, 0
      %v2450 = vsel %vm860, %v2433, 0
      %v2451 = vsel %vm861, %v2434, 0
      %v2452 = vsel %vm862, %v2435, 0
      %v2453 = vsel %vm863, %v2436, 0
      %v2454 = vsel %vm864, %v2437, 0
      %v2456 = vshrl.u32 %v2438, 16
      %v2458 = vrot.slane %v2456, 3
      %v2459 = vshll.u32 %v2438, 16
      %v2461 = vrot.slane %v2459, 4
      %v2462 = vor.u32 %v2458, %v2461
      %v2464 = vshrl.u32 %v2439, 16
      %v2466 = vrot.slane %v2464, 3
      %v2467 = vshll.u32 %v2439, 16
      %v2469 = vrot.slane %v2467, 4
      %v2470 = vor.u32 %v2466, %v2469
      %v2471 = vsel %vm882, %v2462, %v2470
      %v2473 = vshrl.u32 %v2440, 16
      %v2475 = vrot.slane %v2473, 3
      %v2476 = vshll.u32 %v2440, 16
      %v2478 = vrot.slane %v2476, 4
      %v2479 = vor.u32 %v2475, %v2478
      %v2480 = vsel %vm882, %v2470, %v2479
      %v2482 = vshrl.u32 %v2441, 16
      %v2484 = vrot.slane %v2482, 3
      %v2485 = vshll.u32 %v2441, 16
      %v2487 = vrot.slane %v2485, 4
      %v2488 = vor.u32 %v2484, %v2487
      %v2489 = vsel %vm882, %v2479, %v2488
      %v2491 = vshrl.u32 %v2442, 16
      %v2493 = vrot.slane %v2491, 3
      %v2494 = vshll.u32 %v2442, 16
      %v2496 = vrot.slane %v2494, 4
      %v2497 = vor.u32 %v2493, %v2496
      %v2498 = vsel %vm882, %v2488, %v2497
      %v2500 = vshrl.u32 %v2443, 16
      %v2502 = vrot.slane %v2500, 3
      %v2503 = vshll.u32 %v2443, 16
      %v2505 = vrot.slane %v2503, 4
      %v2506 = vor.u32 %v2502, %v2505
      %v2507 = vsel %vm882, %v2497, %v2506
      %v2509 = vshrl.u32 %v2444, 16
      %v2511 = vrot.slane %v2509, 3
      %v2512 = vshll.u32 %v2444, 16
      %v2514 = vrot.slane %v2512, 4
      %v2515 = vor.u32 %v2511, %v2514
      %v2516 = vsel %vm882, %v2506, %v2515
      %v2518 = vshrl.u32 %v2445, 16
      %v2520 = vrot.slane %v2518, 3
      %v2521 = vshll.u32 %v2445, 16
      %v2523 = vrot.slane %v2521, 4
      %v2524 = vor.u32 %v2520, %v2523
      %v2525 = vsel %vm882, %v2515, %v2524
      %v2527 = vshrl.u32 %v2446, 16
      %v2529 = vrot.slane %v2527, 3
      %v2530 = vshll.u32 %v2446, 16
      %v2532 = vrot.slane %v2530, 4
      %v2533 = vor.u32 %v2529, %v2532
      %v2534 = vsel %vm882, %v2524, %v2533
      %v2536 = vshrl.u32 %v2447, 16
      %v2538 = vrot.slane %v2536, 3
      %v2539 = vshll.u32 %v2447, 16
      %v2541 = vrot.slane %v2539, 4
      %v2542 = vor.u32 %v2538, %v2541
      %v2543 = vsel %vm882, %v2533, %v2542
      %v2545 = vshrl.u32 %v2448, 16
      %v2547 = vrot.slane %v2545, 3
      %v2548 = vshll.u32 %v2448, 16
      %v2550 = vrot.slane %v2548, 4
      %v2551 = vor.u32 %v2547, %v2550
      %v2552 = vsel %vm882, %v2542, %v2551
      %v2554 = vshrl.u32 %v2449, 16
      %v2556 = vrot.slane %v2554, 3
      %v2557 = vshll.u32 %v2449, 16
      %v2559 = vrot.slane %v2557, 4
      %v2560 = vor.u32 %v2556, %v2559
      %v2561 = vsel %vm882, %v2551, %v2560
      %v2563 = vshrl.u32 %v2450, 16
      %v2565 = vrot.slane %v2563, 3
      %v2566 = vshll.u32 %v2450, 16
      %v2568 = vrot.slane %v2566, 4
      %v2569 = vor.u32 %v2565, %v2568
      %v2570 = vsel %vm882, %v2560, %v2569
      %v2572 = vshrl.u32 %v2451, 16
      %v2574 = vrot.slane %v2572, 3
      %v2575 = vshll.u32 %v2451, 16
      %v2577 = vrot.slane %v2575, 4
      %v2578 = vor.u32 %v2574, %v2577
      %v2579 = vsel %vm882, %v2569, %v2578
      %v2581 = vshrl.u32 %v2452, 16
      %v2583 = vrot.slane %v2581, 3
      %v2584 = vshll.u32 %v2452, 16
      %v2586 = vrot.slane %v2584, 4
      %v2587 = vor.u32 %v2583, %v2586
      %v2588 = vsel %vm882, %v2578, %v2587
      %v2590 = vshrl.u32 %v2453, 16
      %v2592 = vrot.slane %v2590, 3
      %v2593 = vshll.u32 %v2453, 16
      %v2595 = vrot.slane %v2593, 4
      %v2596 = vor.u32 %v2592, %v2595
      %v2597 = vsel %vm882, %v2587, %v2596
      %v2599 = vshrl.u32 %v2454, 16
      %v2601 = vrot.slane %v2599, 3
      %v2602 = vshll.u32 %v2454, 16
      %v2604 = vrot.slane %v2602, 4
      %v2605 = vor.u32 %v2601, %v2604
      %v2606 = vsel %vm882, %v2596, %v2605
      %2607 = vrot.lane.b32.xlu0 %v2471, 48
      %v2608 = vpop.permute.xlu0 %2607
      %2609 = vrot.lane.b32.xlu0 %v2480, 48
      %v2610 = vpop.permute.xlu0 %2609
      %2611 = vrot.lane.b32.xlu0 %v2489, 48
      %v2612 = vpop.permute.xlu0 %2611
      %2613 = vrot.lane.b32.xlu0 %v2498, 48
      %v2614 = vpop.permute.xlu0 %2613
      %2615 = vrot.lane.b32.xlu0 %v2507, 48
      %v2616 = vpop.permute.xlu0 %2615
      %2617 = vrot.lane.b32.xlu0 %v2516, 48
      %v2618 = vpop.permute.xlu0 %2617
      %2619 = vrot.lane.b32.xlu0 %v2525, 48
      %v2620 = vpop.permute.xlu0 %2619
      %2621 = vrot.lane.b32.xlu0 %v2534, 48
      %v2622 = vpop.permute.xlu0 %2621
      %2623 = vrot.lane.b32.xlu0 %v2543, 48
      %v2624 = vpop.permute.xlu0 %2623
      %2625 = vrot.lane.b32.xlu0 %v2552, 48
      %v2626 = vpop.permute.xlu0 %2625
      %2627 = vrot.lane.b32.xlu0 %v2561, 48
      %v2628 = vpop.permute.xlu0 %2627
      %2629 = vrot.lane.b32.xlu0 %v2570, 48
      %v2630 = vpop.permute.xlu0 %2629
      %2631 = vrot.lane.b32.xlu0 %v2579, 48
      %v2632 = vpop.permute.xlu0 %2631
      %2633 = vrot.lane.b32.xlu0 %v2588, 48
      %v2634 = vpop.permute.xlu0 %2633
      %2635 = vrot.lane.b32.xlu0 %v2597, 48
      %v2636 = vpop.permute.xlu0 %2635
      %2637 = vrot.lane.b32.xlu0 %v2606, 48
      %v2638 = vpop.permute.xlu0 %2637
      %vm2655 = vcmask 458112
      %2656 = vst.msk [vmem:[#allocation4] sm:$0xff] %vm2655, %v2608
      %2657 = vst.msk [vmem:[#allocation4 + $0x8] sm:$0xff] %vm2655, %v2610
      %2658 = vst.msk [vmem:[#allocation4 + $0x10] sm:$0xff] %vm2655, %v2612
      %2659 = vst.msk [vmem:[#allocation4 + $0x18] sm:$0xff] %vm2655, %v2614
      %2660 = vst.msk [vmem:[#allocation4 + $0x20] sm:$0xff] %vm2655, %v2616
      %2661 = vst.msk [vmem:[#allocation4 + $0x28] sm:$0xff] %vm2655, %v2618
      %2662 = vst.msk [vmem:[#allocation4 + $0x30] sm:$0xff] %vm2655, %v2620
      %2663 = vst.msk [vmem:[#allocation4 + $0x38] sm:$0xff] %vm2655, %v2622
      %2664 = vst.msk [vmem:[#allocation4 + $0x40] sm:$0xff] %vm2655, %v2624
      %2665 = vst.msk [vmem:[#allocation4 + $0x48] sm:$0xff] %vm2655, %v2626
      %2666 = vst.msk [vmem:[#allocation4 + $0x50] sm:$0xff] %vm2655, %v2628
      %2667 = vst.msk [vmem:[#allocation4 + $0x58] sm:$0xff] %vm2655, %v2630
      %2668 = vst.msk [vmem:[#allocation4 + $0x60] sm:$0xff] %vm2655, %v2632
      %2669 = vst.msk [vmem:[#allocation4 + $0x68] sm:$0xff] %vm2655, %v2634
      %2670 = vst.msk [vmem:[#allocation4 + $0x70] sm:$0xff] %vm2655, %v2636
      %2671 = vst.msk [vmem:[#allocation4 + $0x78] sm:$0xff] %vm2655, %v2638
      %v2672 = vld [vmem:[#allocation2 + $0x10] sm:$0xf0]
      %v2673 = vld [vmem:[#allocation2 + $0x18] sm:$0xff]
      %v2674 = vld [vmem:[#allocation2 + $0x20] sm:$0xff]
      %v2675 = vld [vmem:[#allocation2 + $0x28] sm:$0xff]
      %v2676 = vld [vmem:[#allocation2 + $0x30] sm:$0xff]
      %v2677 = vld [vmem:[#allocation2 + $0x38] sm:$0xff]
      %v2678 = vld [vmem:[#allocation2 + $0x40] sm:$0xff]
      %v2679 = vld [vmem:[#allocation2 + $0x48] sm:$0xff]
      %v2680 = vld [vmem:[#allocation2 + $0x50] sm:$0xff]
      %v2681 = vld [vmem:[#allocation2 + $0x58] sm:$0xff]
      %v2682 = vld [vmem:[#allocation2 + $0x60] sm:$0xff]
      %v2683 = vld [vmem:[#allocation2 + $0x68] sm:$0xff]
      %v2684 = vld [vmem:[#allocation2 + $0x70] sm:$0xff]
      %v2685 = vld [vmem:[#allocation2 + $0x78] sm:$0xff]
      %v2686 = vld [vmem:[#allocation2 + $0x80] sm:$0xff]
      %v2687 = vld [vmem:[#allocation2 + $0x88] sm:$0xff]
      %v2688 = vld [vmem:[#allocation2 + $0x90] sm:$0xf]
      %v2706 = vrot.slane %v2672, 4
      %v2707 = vrot.slane %v2673, 4
      %v2708 = vsel %vm1101, %v2706, %v2707
      %v2709 = vrot.slane %v2674, 4
      %v2710 = vsel %vm1101, %v2707, %v2709
      %v2711 = vrot.slane %v2675, 4
      %v2712 = vsel %vm1101, %v2709, %v2711
      %v2713 = vrot.slane %v2676, 4
      %v2714 = vsel %vm1101, %v2711, %v2713
      %v2715 = vrot.slane %v2677, 4
      %v2716 = vsel %vm1101, %v2713, %v2715
      %v2717 = vrot.slane %v2678, 4
      %v2718 = vsel %vm1101, %v2715, %v2717
      %v2719 = vrot.slane %v2679, 4
      %v2720 = vsel %vm1101, %v2717, %v2719
      %v2721 = vrot.slane %v2680, 4
      %v2722 = vsel %vm1101, %v2719, %v2721
      %v2723 = vrot.slane %v2681, 4
      %v2724 = vsel %vm1101, %v2721, %v2723
      %v2725 = vrot.slane %v2682, 4
      %v2726 = vsel %vm1101, %v2723, %v2725
      %v2727 = vrot.slane %v2683, 4
      %v2728 = vsel %vm1101, %v2725, %v2727
      %v2729 = vrot.slane %v2684, 4
      %v2730 = vsel %vm1101, %v2727, %v2729
      %v2731 = vrot.slane %v2685, 4
      %v2732 = vsel %vm1101, %v2729, %v2731
      %v2733 = vrot.slane %v2686, 4
      %v2734 = vsel %vm1101, %v2731, %v2733
      %v2735 = vrot.slane %v2687, 4
      %v2736 = vsel %vm1101, %v2733, %v2735
      %v2737 = vrot.slane %v2688, 4
      %v2738 = vsel %vm1101, %v2735, %v2737
      %2739 = vrot.lane.b32.xlu0 %v2708, 56
      %v2740 = vpop.permute.xlu0 %2739
      %2741 = vrot.lane.b32.xlu0 %v2710, 56
      %v2742 = vpop.permute.xlu0 %2741
      %2743 = vrot.lane.b32.xlu0 %v2712, 56
      %v2744 = vpop.permute.xlu0 %2743
      %2745 = vrot.lane.b32.xlu0 %v2714, 56
      %v2746 = vpop.permute.xlu0 %2745
      %2747 = vrot.lane.b32.xlu0 %v2716, 56
      %v2748 = vpop.permute.xlu0 %2747
      %2749 = vrot.lane.b32.xlu0 %v2718, 56
      %v2750 = vpop.permute.xlu0 %2749
      %2751 = vrot.lane.b32.xlu0 %v2720, 56
      %v2752 = vpop.permute.xlu0 %2751
      %2753 = vrot.lane.b32.xlu0 %v2722, 56
      %v2754 = vpop.permute.xlu0 %2753
      %2755 = vrot.lane.b32.xlu0 %v2724, 56
      %v2756 = vpop.permute.xlu0 %2755
      %2757 = vrot.lane.b32.xlu0 %v2726, 56
      %v2758 = vpop.permute.xlu0 %2757
      %2759 = vrot.lane.b32.xlu0 %v2728, 56
      %v2760 = vpop.permute.xlu0 %2759
      %2761 = vrot.lane.b32.xlu0 %v2730, 56
      %v2762 = vpop.permute.xlu0 %2761
      %2763 = vrot.lane.b32.xlu0 %v2732, 56
      %v2764 = vpop.permute.xlu0 %2763
      %2765 = vrot.lane.b32.xlu0 %v2734, 56
      %v2766 = vpop.permute.xlu0 %2765
      %2767 = vrot.lane.b32.xlu0 %v2736, 56
      %v2768 = vpop.permute.xlu0 %2767
      %2769 = vrot.lane.b32.xlu0 %v2738, 56
      %v2770 = vpop.permute.xlu0 %2769
      %vm2787 = vcmask 523712
      %2788 = vst.msk [vmem:[#allocation4] sm:$0xff] %vm2787, %v2740
      %2789 = vst.msk [vmem:[#allocation4 + $0x8] sm:$0xff] %vm2787, %v2742
      %2790 = vst.msk [vmem:[#allocation4 + $0x10] sm:$0xff] %vm2787, %v2744
      %2791 = vst.msk [vmem:[#allocation4 + $0x18] sm:$0xff] %vm2787, %v2746
      %2792 = vst.msk [vmem:[#allocation4 + $0x20] sm:$0xff] %vm2787, %v2748
      %2793 = vst.msk [vmem:[#allocation4 + $0x28] sm:$0xff] %vm2787, %v2750
      %2794 = vst.msk [vmem:[#allocation4 + $0x30] sm:$0xff] %vm2787, %v2752
      %2795 = vst.msk [vmem:[#allocation4 + $0x38] sm:$0xff] %vm2787, %v2754
      %2796 = vst.msk [vmem:[#allocation4 + $0x40] sm:$0xff] %vm2787, %v2756
      %2797 = vst.msk [vmem:[#allocation4 + $0x48] sm:$0xff] %vm2787, %v2758
      %2798 = vst.msk [vmem:[#allocation4 + $0x50] sm:$0xff] %vm2787, %v2760
      %2799 = vst.msk [vmem:[#allocation4 + $0x58] sm:$0xff] %vm2787, %v2762
      %2800 = vst.msk [vmem:[#allocation4 + $0x60] sm:$0xff] %vm2787, %v2764
      %2801 = vst.msk [vmem:[#allocation4 + $0x68] sm:$0xff] %vm2787, %v2766
      %2802 = vst.msk [vmem:[#allocation4 + $0x70] sm:$0xff] %vm2787, %v2768
      %2803 = vst.msk [vmem:[#allocation4 + $0x78] sm:$0xff] %vm2787, %v2770
      %v2804 = vld [vmem:[#allocation2 + $0x10] sm:$0xf0]
      %v2805 = vld [vmem:[#allocation2 + $0x18] sm:$0xff]
      %v2806 = vld [vmem:[#allocation2 + $0x20] sm:$0xff]
      %v2807 = vld [vmem:[#allocation2 + $0x28] sm:$0xff]
      %v2808 = vld [vmem:[#allocation2 + $0x30] sm:$0xff]
      %v2809 = vld [vmem:[#allocation2 + $0x38] sm:$0xff]
      %v2810 = vld [vmem:[#allocation2 + $0x40] sm:$0xff]
      %v2811 = vld [vmem:[#allocation2 + $0x48] sm:$0xff]
      %v2812 = vld [vmem:[#allocation2 + $0x50] sm:$0xff]
      %v2813 = vld [vmem:[#allocation2 + $0x58] sm:$0xff]
      %v2814 = vld [vmem:[#allocation2 + $0x60] sm:$0xff]
      %v2815 = vld [vmem:[#allocation2 + $0x68] sm:$0xff]
      %v2816 = vld [vmem:[#allocation2 + $0x70] sm:$0xff]
      %v2817 = vld [vmem:[#allocation2 + $0x78] sm:$0xff]
      %v2818 = vld [vmem:[#allocation2 + $0x80] sm:$0xff]
      %v2819 = vld [vmem:[#allocation2 + $0x88] sm:$0xff]
      %v2820 = vld [vmem:[#allocation2 + $0x90] sm:$0x1f]
      %v2821 = vsel %vm1536, %v2804, 0
      %v2822 = vsel %vm1537, %v2805, 0
      %v2823 = vsel %vm1538, %v2806, 0
      %v2824 = vsel %vm1539, %v2807, 0
      %v2825 = vsel %vm1540, %v2808, 0
      %v2826 = vsel %vm1541, %v2809, 0
      %v2827 = vsel %vm1542, %v2810, 0
      %v2828 = vsel %vm1543, %v2811, 0
      %v2829 = vsel %vm1544, %v2812, 0
      %v2830 = vsel %vm1545, %v2813, 0
      %v2831 = vsel %vm1546, %v2814, 0
      %v2832 = vsel %vm1547, %v2815, 0
      %v2833 = vsel %vm1548, %v2816, 0
      %v2834 = vsel %vm1549, %v2817, 0
      %v2835 = vsel %vm1550, %v2818, 0
      %v2836 = vsel %vm1551, %v2819, 0
      %v2837 = vsel %vm1552, %v2820, 0
      %v2839 = vshrl.u32 %v2821, 16
      %v2841 = vrot.slane %v2839, 4
      %v2842 = vshll.u32 %v2821, 16
      %v2844 = vrot.slane %v2842, 5
      %v2845 = vor.u32 %v2841, %v2844
      %v2847 = vshrl.u32 %v2822, 16
      %v2849 = vrot.slane %v2847, 4
      %v2850 = vshll.u32 %v2822, 16
      %v2852 = vrot.slane %v2850, 5
      %v2853 = vor.u32 %v2849, %v2852
      %v2854 = vsel %vm704, %v2845, %v2853
      %v2856 = vshrl.u32 %v2823, 16
      %v2858 = vrot.slane %v2856, 4
      %v2859 = vshll.u32 %v2823, 16
      %v2861 = vrot.slane %v2859, 5
      %v2862 = vor.u32 %v2858, %v2861
      %v2863 = vsel %vm704, %v2853, %v2862
      %v2865 = vshrl.u32 %v2824, 16
      %v2867 = vrot.slane %v2865, 4
      %v2868 = vshll.u32 %v2824, 16
      %v2870 = vrot.slane %v2868, 5
      %v2871 = vor.u32 %v2867, %v2870
      %v2872 = vsel %vm704, %v2862, %v2871
      %v2874 = vshrl.u32 %v2825, 16
      %v2876 = vrot.slane %v2874, 4
      %v2877 = vshll.u32 %v2825, 16
      %v2879 = vrot.slane %v2877, 5
      %v2880 = vor.u32 %v2876, %v2879
      %v2881 = vsel %vm704, %v2871, %v2880
      %v2883 = vshrl.u32 %v2826, 16
      %v2885 = vrot.slane %v2883, 4
      %v2886 = vshll.u32 %v2826, 16
      %v2888 = vrot.slane %v2886, 5
      %v2889 = vor.u32 %v2885, %v2888
      %v2890 = vsel %vm704, %v2880, %v2889
      %v2892 = vshrl.u32 %v2827, 16
      %v2894 = vrot.slane %v2892, 4
      %v2895 = vshll.u32 %v2827, 16
      %v2897 = vrot.slane %v2895, 5
      %v2898 = vor.u32 %v2894, %v2897
      %v2899 = vsel %vm704, %v2889, %v2898
      %v2901 = vshrl.u32 %v2828, 16
      %v2903 = vrot.slane %v2901, 4
      %v2904 = vshll.u32 %v2828, 16
      %v2906 = vrot.slane %v2904, 5
      %v2907 = vor.u32 %v2903, %v2906
      %v2908 = vsel %vm704, %v2898, %v2907
      %v2910 = vshrl.u32 %v2829, 16
      %v2912 = vrot.slane %v2910, 4
      %v2913 = vshll.u32 %v2829, 16
      %v2915 = vrot.slane %v2913, 5
      %v2916 = vor.u32 %v2912, %v2915
      %v2917 = vsel %vm704, %v2907, %v2916
      %v2919 = vshrl.u32 %v2830, 16
      %v2921 = vrot.slane %v2919, 4
      %v2922 = vshll.u32 %v2830, 16
      %v2924 = vrot.slane %v2922, 5
      %v2925 = vor.u32 %v2921, %v2924
      %v2926 = vsel %vm704, %v2916, %v2925
      %v2928 = vshrl.u32 %v2831, 16
      %v2930 = vrot.slane %v2928, 4
      %v2931 = vshll.u32 %v2831, 16
      %v2933 = vrot.slane %v2931, 5
      %v2934 = vor.u32 %v2930, %v2933
      %v2935 = vsel %vm704, %v2925, %v2934
      %v2937 = vshrl.u32 %v2832, 16
      %v2939 = vrot.slane %v2937, 4
      %v2940 = vshll.u32 %v2832, 16
      %v2942 = vrot.slane %v2940, 5
      %v2943 = vor.u32 %v2939, %v2942
      %v2944 = vsel %vm704, %v2934, %v2943
      %v2946 = vshrl.u32 %v2833, 16
      %v2948 = vrot.slane %v2946, 4
      %v2949 = vshll.u32 %v2833, 16
      %v2951 = vrot.slane %v2949, 5
      %v2952 = vor.u32 %v2948, %v2951
      %v2953 = vsel %vm704, %v2943, %v2952
      %v2955 = vshrl.u32 %v2834, 16
      %v2957 = vrot.slane %v2955, 4
      %v2958 = vshll.u32 %v2834, 16
      %v2960 = vrot.slane %v2958, 5
      %v2961 = vor.u32 %v2957, %v2960
      %v2962 = vsel %vm704, %v2952, %v2961
      %v2964 = vshrl.u32 %v2835, 16
      %v2966 = vrot.slane %v2964, 4
      %v2967 = vshll.u32 %v2835, 16
      %v2969 = vrot.slane %v2967, 5
      %v2970 = vor.u32 %v2966, %v2969
      %v2971 = vsel %vm704, %v2961, %v2970
      %v2973 = vshrl.u32 %v2836, 16
      %v2975 = vrot.slane %v2973, 4
      %v2976 = vshll.u32 %v2836, 16
      %v2978 = vrot.slane %v2976, 5
      %v2979 = vor.u32 %v2975, %v2978
      %v2980 = vsel %vm704, %v2970, %v2979
      %v2982 = vshrl.u32 %v2837, 16
      %v2984 = vrot.slane %v2982, 4
      %v2985 = vshll.u32 %v2837, 16
      %v2987 = vrot.slane %v2985, 5
      %v2988 = vor.u32 %v2984, %v2987
      %v2989 = vsel %vm704, %v2979, %v2988
      %2990 = vrot.lane.b32.xlu0 %v2854, 64
      %v2991 = vpop.permute.xlu0 %2990
      %2992 = vrot.lane.b32.xlu0 %v2863, 64
      %v2993 = vpop.permute.xlu0 %2992
      %2994 = vrot.lane.b32.xlu0 %v2872, 64
      %v2995 = vpop.permute.xlu0 %2994
      %2996 = vrot.lane.b32.xlu0 %v2881, 64
      %v2997 = vpop.permute.xlu0 %2996
      %2998 = vrot.lane.b32.xlu0 %v2890, 64
      %v2999 = vpop.permute.xlu0 %2998
      %3000 = vrot.lane.b32.xlu0 %v2899, 64
      %v3001 = vpop.permute.xlu0 %3000
      %3002 = vrot.lane.b32.xlu0 %v2908, 64
      %v3003 = vpop.permute.xlu0 %3002
      %3004 = vrot.lane.b32.xlu0 %v2917, 64
      %v3005 = vpop.permute.xlu0 %3004
      %3006 = vrot.lane.b32.xlu0 %v2926, 64
      %v3007 = vpop.permute.xlu0 %3006
      %3008 = vrot.lane.b32.xlu0 %v2935, 64
      %v3009 = vpop.permute.xlu0 %3008
      %3010 = vrot.lane.b32.xlu0 %v2944, 64
      %v3011 = vpop.permute.xlu0 %3010
      %3012 = vrot.lane.b32.xlu0 %v2953, 64
      %v3013 = vpop.permute.xlu0 %3012
      %3014 = vrot.lane.b32.xlu0 %v2962, 64
      %v3015 = vpop.permute.xlu0 %3014
      %3016 = vrot.lane.b32.xlu0 %v2971, 64
      %v3017 = vpop.permute.xlu0 %3016
      %3018 = vrot.lane.b32.xlu0 %v2980, 64
      %v3019 = vpop.permute.xlu0 %3018
      %3020 = vrot.lane.b32.xlu0 %v2989, 64
      %v3021 = vpop.permute.xlu0 %3020
      %vm3038 = vcmask 589312
      %3039 = vst.msk [vmem:[#allocation4] sm:$0xff] %vm3038, %v2991
      %3040 = vst.msk [vmem:[#allocation4 + $0x8] sm:$0xff] %vm3038, %v2993
      %3041 = vst.msk [vmem:[#allocation4 + $0x10] sm:$0xff] %vm3038, %v2995
      %3042 = vst.msk [vmem:[#allocation4 + $0x18] sm:$0xff] %vm3038, %v2997
      %3043 = vst.msk [vmem:[#allocation4 + $0x20] sm:$0xff] %vm3038, %v2999
      %3044 = vst.msk [vmem:[#allocation4 + $0x28] sm:$0xff] %vm3038, %v3001
      %3045 = vst.msk [vmem:[#allocation4 + $0x30] sm:$0xff] %vm3038, %v3003
      %3046 = vst.msk [vmem:[#allocation4 + $0x38] sm:$0xff] %vm3038, %v3005
      %3047 = vst.msk [vmem:[#allocation4 + $0x40] sm:$0xff] %vm3038, %v3007
      %3048 = vst.msk [vmem:[#allocation4 + $0x48] sm:$0xff] %vm3038, %v3009
      %3049 = vst.msk [vmem:[#allocation4 + $0x50] sm:$0xff] %vm3038, %v3011
      %3050 = vst.msk [vmem:[#allocation4 + $0x58] sm:$0xff] %vm3038, %v3013
      %3051 = vst.msk [vmem:[#allocation4 + $0x60] sm:$0xff] %vm3038, %v3015
      %3052 = vst.msk [vmem:[#allocation4 + $0x68] sm:$0xff] %vm3038, %v3017
      %3053 = vst.msk [vmem:[#allocation4 + $0x70] sm:$0xff] %vm3038, %v3019
      %3054 = vst.msk [vmem:[#allocation4 + $0x78] sm:$0xff] %vm3038, %v3021
      %v3055 = vld [vmem:[#allocation4] sm:$0xff]
      %v3056 = vld [vmem:[#allocation4 + $0x8] sm:$0xff]
      %v3057 = vld [vmem:[#allocation4 + $0x10] sm:$0xff]
      %v3058 = vld [vmem:[#allocation4 + $0x18] sm:$0xff]
      %v3059 = vld [vmem:[#allocation4 + $0x20] sm:$0xff]
      %v3060 = vld [vmem:[#allocation4 + $0x28] sm:$0xff]
      %v3061 = vld [vmem:[#allocation4 + $0x30] sm:$0xff]
      %v3062 = vld [vmem:[#allocation4 + $0x38] sm:$0xff]
      %v3063 = vld [vmem:[#allocation4 + $0x40] sm:$0xff]
      %v3064 = vld [vmem:[#allocation4 + $0x48] sm:$0xff]
      %v3065 = vld [vmem:[#allocation4 + $0x50] sm:$0xff]
      %v3066 = vld [vmem:[#allocation4 + $0x58] sm:$0xff]
      %v3067 = vld [vmem:[#allocation4 + $0x60] sm:$0xff]
      %v3068 = vld [vmem:[#allocation4 + $0x68] sm:$0xff]
      %v3069 = vld [vmem:[#allocation4 + $0x70] sm:$0xff]
      %v3070 = vld [vmem:[#allocation4 + $0x78] sm:$0xff]
      %v3071 = vld [vmem:[%s1] sm:$0xf]
      %v3072 = vld [vmem:[%s1 + $0x4] sm:$0xf]
      %v3073 = vld [vmem:[%s1 + $0x8] sm:$0xf]
      %v3074 = vld [vmem:[%s1 + $0xc] sm:$0xf]
      %v3075 = vld [vmem:[%s1 + $0x10] sm:$0xf]
      %v3076 = vld [vmem:[%s1 + $0x14] sm:$0xf]
      %v3077 = vld [vmem:[%s1 + $0x18] sm:$0xf]
      %v3078 = vld [vmem:[%s1 + $0x1c] sm:$0xf]
      %v3079 = vld [vmem:[%s1 + $0x20] sm:$0xf]
      %v3080 = vld [vmem:[%s2] sm:$0x1]
      %v3082 = vlaneseq
      %v3083 = vshrl.u32 %v3082, 7
      %v3084 = vsub.s32 0, %v3083
      %v3085 = vrot.slane %v3080, %v3084
      %v3096 = vunpack.c.l.b16 %v3071
      %v3097 = vunpack.c.l.b16 %v3072
      %v3098 = vunpack.c.l.b16 %v3073
      %v3099 = vunpack.c.l.b16 %v3074
      %v3100 = vunpack.c.l.b16 %v3075
      %v3101 = vunpack.c.l.b16 %v3076
      %v3102 = vunpack.c.l.b16 %v3077
      %v3103 = vunpack.c.l.b16 %v3078
      %v3104 = vunpack.c.l.b16 %v3079
      %v3105 = vpack.c.b16 %v3097, %v3096
      %v3106 = vpack.c.b16 %v3099, %v3098
      %v3107 = vpack.c.b16 %v3101, %v3100
      %v3108 = vpack.c.b16 %v3103, %v3102
      %v3109 = vpack.c.b16 %v3104, %v3104
      %vm3114 = vcmask 588800
      %v3116 = vsel %vm3114, %v3055, 0
      %v3119 = vsel %vm3114, %v3056, 0
      %v3122 = vsel %vm3114, %v3057, 0
      %v3125 = vsel %vm3114, %v3058, 0
      %v3128 = vsel %vm3114, %v3059, 0
      %v3131 = vsel %vm3114, %v3060, 0
      %v3134 = vsel %vm3114, %v3061, 0
      %v3137 = vsel %vm3114, %v3062, 0
      %v3140 = vsel %vm3114, %v3063, 0
      %v3143 = vsel %vm3114, %v3064, 0
      %v3146 = vsel %vm3114, %v3065, 0
      %v3149 = vsel %vm3114, %v3066, 0
      %v3152 = vsel %vm3114, %v3067, 0
      %v3155 = vsel %vm3114, %v3068, 0
      %v3158 = vsel %vm3114, %v3069, 0
      %v3161 = vsel %vm3114, %v3070, 0
      %vm3163 = vcmask 1043456
      %v3165 = vsel %vm3163, %v3109, 0
      %3167 = vmatprep.subr.bf16.mxu0 0
      %3168 = vmatpush1.bf16.msra.mxu0 %v3105
      %3169 = vmatprep.subr.bf16.mxu0 0
      %3170 = vmatpush1.bf16.msra.mxu0 %v3106
      %3171 = vmatprep.subr.bf16.mxu0 0
      %3172 = vmatpush1.bf16.msra.mxu0 %v3107
      %3173 = vmatprep.subr.bf16.mxu0 0
      %3174 = vmatpush1.bf16.msra.mxu0 %v3108
      %3175 = vmatprep.subr.bf16.mxu0 0
      %3176 = vmatpush1.bf16.msra.mxu0 %v3165
      %3177 = vmatprep.subr.bf16.mxu0 0
      %3178 = vmatpush1.bf16.msra.mxu0 0
      %3179 = vmatprep.subr.bf16.mxu0 0
      %3180 = vmatpush1.bf16.msra.mxu0 0
      %3181 = vmatprep.subr.bf16.mxu0 0
      %3182 = vmatpush1.bf16.msra.mxu0 0
      %3183 = vmatprep.subr.bf16.mxu0 0
      %3184 = vmatpush1.bf16.msra.mxu0 0
      %3185 = vmatprep.subr.bf16.mxu0 0
      %3186 = vmatpush1.bf16.msra.mxu0 0
      %3187 = vmatprep.subr.bf16.mxu0 0
      %3188 = vmatpush1.bf16.msra.mxu0 0
      %3189 = vmatprep.subr.bf16.mxu0 0
      %3190 = vmatpush1.bf16.msra.mxu0 0
      %3191 = vmatprep.subr.bf16.mxu0 0
      %3192 = vmatpush1.bf16.msra.mxu0 0
      %3193 = vmatprep.subr.bf16.mxu0 0
      %3194 = vmatpush1.bf16.msra.mxu0 0
      %3195 = vmatprep.subr.bf16.mxu0 0
      %3196 = vmatpush1.bf16.msra.mxu0 0
      %3197 = vmatprep.subr.bf16.mxu0 0
      %3198 = vmatpush1.bf16.msra.mxu0 0
      %3199 = vmatprep.mubr.bf16.mxu0 0
      %3200 = vmatmul.mubr.bf16.gmra.mrb[0].mxu0 %v3116
      %v3201 = vpop.f32.mrb[0].mxu0
      %v3202 = vadd.f32 %v3085, %v3201
      %v3203 = vpop.f32.mrb[0].mxu0
      %v3204 = vpop.f32.mrb[0].mxu0
      %v3205 = vadd.f32 %v3085, %v3204
      %v3206 = vpop.f32.mrb[0].mxu0
      %3207 = vmatprep.mubr.bf16.mxu0 0
      %3208 = vmatmul.mubr.bf16.gmra.mrb[0].mxu0 %v3119
      %v3209 = vpop.f32.mrb[0].mxu0
      %v3210 = vadd.f32 %v3085, %v3209
      %v3211 = vpop.f32.mrb[0].mxu0
      %v3212 = vpop.f32.mrb[0].mxu0
      %v3213 = vadd.f32 %v3085, %v3212
      %v3214 = vpop.f32.mrb[0].mxu0
      %3215 = vmatprep.mubr.bf16.mxu0 0
      %3216 = vmatmul.mubr.bf16.gmra.mrb[0].mxu0 %v3122
      %v3217 = vpop.f32.mrb[0].mxu0
      %v3218 = vadd.f32 %v3085, %v3217
      %v3219 = vpop.f32.mrb[0].mxu0
      %v3220 = vpop.f32.mrb[0].mxu0
      %v3221 = vadd.f32 %v3085, %v3220
      %v3222 = vpop.f32.mrb[0].mxu0
      %3223 = vmatprep.mubr.bf16.mxu0 0
      %3224 = vmatmul.mubr.bf16.gmra.mrb[0].mxu0 %v3125
      %v3225 = vpop.f32.mrb[0].mxu0
      %v3226 = vadd.f32 %v3085, %v3225
      %v3227 = vpop.f32.mrb[0].mxu0
      %v3228 = vpop.f32.mrb[0].mxu0
      %v3229 = vadd.f32 %v3085, %v3228
      %v3230 = vpop.f32.mrb[0].mxu0
      %3231 = vmatprep.mubr.bf16.mxu0 0
      %3232 = vmatmul.mubr.bf16.gmra.mrb[0].mxu0 %v3128
      %v3233 = vpop.f32.mrb[0].mxu0
      %v3234 = vadd.f32 %v3085, %v3233
      %v3235 = vpop.f32.mrb[0].mxu0
      %v3236 = vpop.f32.mrb[0].mxu0
      %v3237 = vadd.f32 %v3085, %v3236
      %v3238 = vpop.f32.mrb[0].mxu0
      %3239 = vmatprep.mubr.bf16.mxu0 0
      %3240 = vmatmul.mubr.bf16.gmra.mrb[0].mxu0 %v3131
      %v3241 = vpop.f32.mrb[0].mxu0
      %v3242 = vadd.f32 %v3085, %v3241
      %v3243 = vpop.f32.mrb[0].mxu0
      %v3244 = vpop.f32.mrb[0].mxu0
      %v3245 = vadd.f32 %v3085, %v3244
      %v3246 = vpop.f32.mrb[0].mxu0
      %3247 = vmatprep.mubr.bf16.mxu0 0
      %3248 = vmatmul.mubr.bf16.gmra.mrb[0].mxu0 %v3134
      %v3249 = vpop.f32.mrb[0].mxu0
      %v3250 = vadd.f32 %v3085, %v3249
      %v3251 = vpop.f32.mrb[0].mxu0
      %v3252 = vpop.f32.mrb[0].mxu0
      %v3253 = vadd.f32 %v3085, %v3252
      %v3254 = vpop.f32.mrb[0].mxu0
      %3255 = vmatprep.mubr.bf16.mxu0 0
      %3256 = vmatmul.mubr.bf16.gmra.mrb[0].mxu0 %v3137
      %v3257 = vpop.f32.mrb[0].mxu0
      %v3258 = vadd.f32 %v3085, %v3257
      %v3259 = vpop.f32.mrb[0].mxu0
      %v3260 = vpop.f32.mrb[0].mxu0
      %v3261 = vadd.f32 %v3085, %v3260
      %v3262 = vpop.f32.mrb[0].mxu0
      %3263 = vmatprep.mubr.bf16.mxu0 0
      %3264 = vmatmul.mubr.bf16.gmra.mrb[0].mxu0 %v3140
      %v3265 = vpop.f32.mrb[0].mxu0
      %v3266 = vadd.f32 %v3085, %v3265
      %v3267 = vpop.f32.mrb[0].mxu0
      %v3268 = vpop.f32.mrb[0].mxu0
      %v3269 = vadd.f32 %v3085, %v3268
      %v3270 = vpop.f32.mrb[0].mxu0
      %3271 = vmatprep.mubr.bf16.mxu0 0
      %3272 = vmatmul.mubr.bf16.gmra.mrb[0].mxu0 %v3143
      %v3273 = vpop.f32.mrb[0].mxu0
      %v3274 = vadd.f32 %v3085, %v3273
      %v3275 = vpop.f32.mrb[0].mxu0
      %v3276 = vpop.f32.mrb[0].mxu0
      %v3277 = vadd.f32 %v3085, %v3276
      %v3278 = vpop.f32.mrb[0].mxu0
      %3279 = vmatprep.mubr.bf16.mxu0 0
      %3280 = vmatmul.mubr.bf16.gmra.mrb[0].mxu0 %v3146
      %v3281 = vpop.f32.mrb[0].mxu0
      %v3282 = vadd.f32 %v3085, %v3281
      %v3283 = vpop.f32.mrb[0].mxu0
      %v3284 = vpop.f32.mrb[0].mxu0
      %v3285 = vadd.f32 %v3085, %v3284
      %v3286 = vpop.f32.mrb[0].mxu0
      %3287 = vmatprep.mubr.bf16.mxu0 0
      %3288 = vmatmul.mubr.bf16.gmra.mrb[0].mxu0 %v3149
      %v3289 = vpop.f32.mrb[0].mxu0
      %v3290 = vadd.f32 %v3085, %v3289
      %v3291 = vpop.f32.mrb[0].mxu0
      %v3292 = vpop.f32.mrb[0].mxu0
      %v3293 = vadd.f32 %v3085, %v3292
      %v3294 = vpop.f32.mrb[0].mxu0
      %3295 = vmatprep.mubr.bf16.mxu0 0
      %3296 = vmatmul.mubr.bf16.gmra.mrb[0].mxu0 %v3152
      %v3297 = vpop.f32.mrb[0].mxu0
      %v3298 = vadd.f32 %v3085, %v3297
      %v3299 = vpop.f32.mrb[0].mxu0
      %v3300 = vpop.f32.mrb[0].mxu0
      %v3301 = vadd.f32 %v3085, %v3300
      %v3302 = vpop.f32.mrb[0].mxu0
      %3303 = vmatprep.mubr.bf16.mxu0 0
      %3304 = vmatmul.mubr.bf16.gmra.mrb[0].mxu0 %v3155
      %v3305 = vpop.f32.mrb[0].mxu0
      %v3306 = vadd.f32 %v3085, %v3305
      %v3307 = vpop.f32.mrb[0].mxu0
      %v3308 = vpop.f32.mrb[0].mxu0
      %v3309 = vadd.f32 %v3085, %v3308
      %v3310 = vpop.f32.mrb[0].mxu0
      %3311 = vmatprep.mubr.bf16.mxu0 0
      %3312 = vmatmul.mubr.bf16.gmra.mrb[0].mxu0 %v3158
      %v3313 = vpop.f32.mrb[0].mxu0
      %v3314 = vadd.f32 %v3085, %v3313
      %v3315 = vpop.f32.mrb[0].mxu0
      %v3316 = vpop.f32.mrb[0].mxu0
      %v3317 = vadd.f32 %v3085, %v3316
      %v3318 = vpop.f32.mrb[0].mxu0
      %3319 = vmatprep.mubr.bf16.mxu0 0
      %3320 = vmatmul.mubr.bf16.gmra.mrb[0].mxu0 %v3161
      %v3321 = vpop.f32.mrb[0].mxu0
      %v3322 = vadd.f32 %v3085, %v3321
      %v3323 = vpop.f32.mrb[0].mxu0
      %v3324 = vpop.f32.mrb[0].mxu0
      %v3325 = vadd.f32 %v3085, %v3324
      %v3326 = vpop.f32.mrb[0].mxu0
      %3327 = vdwg.mxu0
      %v3328 = vmax.f32 %v3202, 0.0
      %v3329 = vmax.f32 %v3205, 0.0
      %v3330 = vmax.f32 %v3210, 0.0
      %v3331 = vmax.f32 %v3213, 0.0
      %v3332 = vmax.f32 %v3218, 0.0
      %v3333 = vmax.f32 %v3221, 0.0
      %v3334 = vmax.f32 %v3226, 0.0
      %v3335 = vmax.f32 %v3229, 0.0
      %v3336 = vmax.f32 %v3234, 0.0
      %v3337 = vmax.f32 %v3237, 0.0
      %v3338 = vmax.f32 %v3242, 0.0
      %v3339 = vmax.f32 %v3245, 0.0
      %v3340 = vmax.f32 %v3250, 0.0
      %v3341 = vmax.f32 %v3253, 0.0
      %v3342 = vmax.f32 %v3258, 0.0
      %v3343 = vmax.f32 %v3261, 0.0
      %v3344 = vmax.f32 %v3266, 0.0
      %v3345 = vmax.f32 %v3269, 0.0
      %v3346 = vmax.f32 %v3274, 0.0
      %v3347 = vmax.f32 %v3277, 0.0
      %v3348 = vmax.f32 %v3282, 0.0
      %v3349 = vmax.f32 %v3285, 0.0
      %v3350 = vmax.f32 %v3290, 0.0
      %v3351 = vmax.f32 %v3293, 0.0
      %v3352 = vmax.f32 %v3298, 0.0
      %v3353 = vmax.f32 %v3301, 0.0
      %v3354 = vmax.f32 %v3306, 0.0
      %v3355 = vmax.f32 %v3309, 0.0
      %v3356 = vmax.f32 %v3314, 0.0
      %v3357 = vmax.f32 %v3317, 0.0
      %v3358 = vmax.f32 %v3322, 0.0
      %v3359 = vmax.f32 %v3325, 0.0
      %vm3360 = vcmask 261120
      %3361 = vst.msk [vmem:[#allocation3] sm:$0xff] %vm3360, 0
      %vm3362 = vcmask 257024
      %3363 = vst.msk [vmem:[#allocation3 + $0x8] sm:$0xf] %vm3362, 0
      %vm3364 = vcmask 261124
      %3365 = vst.msk [vmem:[#allocation3 + $0x88] sm:$0xf0] %vm3364, 0
      %3366 = vst.msk [vmem:[#allocation3 + $0x90] sm:$0xff] %vm3360, 0
      %v3367 = vpack.c.bf16 %v3329, %v3328
      %v3368 = vpack.c.bf16 %v3331, %v3330
      %v3369 = vpack.c.bf16 %v3333, %v3332
      %v3370 = vpack.c.bf16 %v3335, %v3334
      %v3371 = vpack.c.bf16 %v3337, %v3336
      %v3372 = vpack.c.bf16 %v3339, %v3338
      %v3373 = vpack.c.bf16 %v3341, %v3340
      %v3374 = vpack.c.bf16 %v3343, %v3342
      %v3375 = vpack.c.bf16 %v3345, %v3344
      %v3376 = vpack.c.bf16 %v3347, %v3346
      %v3377 = vpack.c.bf16 %v3349, %v3348
      %v3378 = vpack.c.bf16 %v3351, %v3350
      %v3379 = vpack.c.bf16 %v3353, %v3352
      %v3380 = vpack.c.bf16 %v3355, %v3354
      %v3381 = vpack.c.bf16 %v3357, %v3356
      %v3382 = vpack.c.bf16 %v3359, %v3358
      %v3399 = vrot.slane %v3367, 4
      %v3400 = vrot.slane %v3368, 4
      %v3401 = vsel %vm1101, %v3399, %v3400
      %v3402 = vrot.slane %v3369, 4
      %v3403 = vsel %vm1101, %v3400, %v3402
      %v3404 = vrot.slane %v3370, 4
      %v3405 = vsel %vm1101, %v3402, %v3404
      %v3406 = vrot.slane %v3371, 4
      %v3407 = vsel %vm1101, %v3404, %v3406
      %v3408 = vrot.slane %v3372, 4
      %v3409 = vsel %vm1101, %v3406, %v3408
      %v3410 = vrot.slane %v3373, 4
      %v3411 = vsel %vm1101, %v3408, %v3410
      %v3412 = vrot.slane %v3374, 4
      %v3413 = vsel %vm1101, %v3410, %v3412
      %v3414 = vrot.slane %v3375, 4
      %v3415 = vsel %vm1101, %v3412, %v3414
      %v3416 = vrot.slane %v3376, 4
      %v3417 = vsel %vm1101, %v3414, %v3416
      %v3418 = vrot.slane %v3377, 4
      %v3419 = vsel %vm1101, %v3416, %v3418
      %v3420 = vrot.slane %v3378, 4
      %v3421 = vsel %vm1101, %v3418, %v3420
      %v3422 = vrot.slane %v3379, 4
      %v3423 = vsel %vm1101, %v3420, %v3422
      %v3424 = vrot.slane %v3380, 4
      %v3425 = vsel %vm1101, %v3422, %v3424
      %v3426 = vrot.slane %v3381, 4
      %v3427 = vsel %vm1101, %v3424, %v3426
      %v3428 = vrot.slane %v3382, 4
      %v3429 = vsel %vm1101, %v3426, %v3428
      %3447 = vst.msk [vmem:[#allocation3 + $0x8] sm:$0xf0] %vm3364, %v3399
      %3448 = vst.msk [vmem:[#allocation3 + $0x10] sm:$0xff] %vm3360, %v3401
      %3449 = vst.msk [vmem:[#allocation3 + $0x18] sm:$0xff] %vm3360, %v3403
      %3450 = vst.msk [vmem:[#allocation3 + $0x20] sm:$0xff] %vm3360, %v3405
      %3451 = vst.msk [vmem:[#allocation3 + $0x28] sm:$0xff] %vm3360, %v3407
      %3452 = vst.msk [vmem:[#allocation3 + $0x30] sm:$0xff] %vm3360, %v3409
      %3453 = vst.msk [vmem:[#allocation3 + $0x38] sm:$0xff] %vm3360, %v3411
      %3454 = vst.msk [vmem:[#allocation3 + $0x40] sm:$0xff] %vm3360, %v3413
      %3455 = vst.msk [vmem:[#allocation3 + $0x48] sm:$0xff] %vm3360, %v3415
      %3456 = vst.msk [vmem:[#allocation3 + $0x50] sm:$0xff] %vm3360, %v3417
      %3457 = vst.msk [vmem:[#allocation3 + $0x58] sm:$0xff] %vm3360, %v3419
      %3458 = vst.msk [vmem:[#allocation3 + $0x60] sm:$0xff] %vm3360, %v3421
      %3459 = vst.msk [vmem:[#allocation3 + $0x68] sm:$0xff] %vm3360, %v3423
      %3460 = vst.msk [vmem:[#allocation3 + $0x70] sm:$0xff] %vm3360, %v3425
      %3461 = vst.msk [vmem:[#allocation3 + $0x78] sm:$0xff] %vm3360, %v3427
      %3462 = vst.msk [vmem:[#allocation3 + $0x80] sm:$0xff] %vm3360, %v3429
      %3463 = vst.msk [vmem:[#allocation3 + $0x88] sm:$0xf] %vm3362, %v3428
      %v3464 = vld [vmem:[#allocation3] sm:$0xf8]
      %v3465 = vld [vmem:[#allocation3 + $0x8] sm:$0xff]
      %v3466 = vld [vmem:[#allocation3 + $0x10] sm:$0xff]
      %v3467 = vld [vmem:[#allocation3 + $0x18] sm:$0xff]
      %v3468 = vld [vmem:[#allocation3 + $0x20] sm:$0xff]
      %v3469 = vld [vmem:[#allocation3 + $0x28] sm:$0xff]
      %v3470 = vld [vmem:[#allocation3 + $0x30] sm:$0xff]
      %v3471 = vld [vmem:[#allocation3 + $0x38] sm:$0xff]
      %v3472 = vld [vmem:[#allocation3 + $0x40] sm:$0xff]
      %v3473 = vld [vmem:[#allocation3 + $0x48] sm:$0xff]
      %v3474 = vld [vmem:[#allocation3 + $0x50] sm:$0xff]
      %v3475 = vld [vmem:[#allocation3 + $0x58] sm:$0xff]
      %v3476 = vld [vmem:[#allocation3 + $0x60] sm:$0xff]
      %v3477 = vld [vmem:[#allocation3 + $0x68] sm:$0xff]
      %v3478 = vld [vmem:[#allocation3 + $0x70] sm:$0xff]
      %v3479 = vld [vmem:[#allocation3 + $0x78] sm:$0xff]
      %v3480 = vld [vmem:[#allocation3 + $0x80] sm:$0xf]
      %v3481 = vsel %vm848, %v3464, 0
      %v3482 = vsel %vm849, %v3465, 0
      %v3483 = vsel %vm850, %v3466, 0
      %v3484 = vsel %vm851, %v3467, 0
      %v3485 = vsel %vm852, %v3468, 0
      %v3486 = vsel %vm853, %v3469, 0
      %v3487 = vsel %vm854, %v3470, 0
      %v3488 = vsel %vm855, %v3471, 0
      %v3489 = vsel %vm856, %v3472, 0
      %v3490 = vsel %vm857, %v3473, 0
      %v3491 = vsel %vm858, %v3474, 0
      %v3492 = vsel %vm859, %v3475, 0
      %v3493 = vsel %vm860, %v3476, 0
      %v3494 = vsel %vm861, %v3477, 0
      %v3495 = vsel %vm862, %v3478, 0
      %v3496 = vsel %vm863, %v3479, 0
      %v3497 = vsel %vm864, %v3480, 0
      %v3499 = vshrl.u32 %v3481, 16
      %v3501 = vrot.slane %v3499, 3
      %v3502 = vshll.u32 %v3481, 16
      %v3504 = vrot.slane %v3502, 4
      %v3505 = vor.u32 %v3501, %v3504
      %v3507 = vshrl.u32 %v3482, 16
      %v3509 = vrot.slane %v3507, 3
      %v3510 = vshll.u32 %v3482, 16
      %v3512 = vrot.slane %v3510, 4
      %v3513 = vor.u32 %v3509, %v3512
      %v3514 = vsel %vm882, %v3505, %v3513
      %v3516 = vshrl.u32 %v3483, 16
      %v3518 = vrot.slane %v3516, 3
      %v3519 = vshll.u32 %v3483, 16
      %v3521 = vrot.slane %v3519, 4
      %v3522 = vor.u32 %v3518, %v3521
      %v3523 = vsel %vm882, %v3513, %v3522
      %v3525 = vshrl.u32 %v3484, 16
      %v3527 = vrot.slane %v3525, 3
      %v3528 = vshll.u32 %v3484, 16
      %v3530 = vrot.slane %v3528, 4
      %v3531 = vor.u32 %v3527, %v3530
      %v3532 = vsel %vm882, %v3522, %v3531
      %v3534 = vshrl.u32 %v3485, 16
      %v3536 = vrot.slane %v3534, 3
      %v3537 = vshll.u32 %v3485, 16
      %v3539 = vrot.slane %v3537, 4
      %v3540 = vor.u32 %v3536, %v3539
      %v3541 = vsel %vm882, %v3531, %v3540
      %v3543 = vshrl.u32 %v3486, 16
      %v3545 = vrot.slane %v3543, 3
      %v3546 = vshll.u32 %v3486, 16
      %v3548 = vrot.slane %v3546, 4
      %v3549 = vor.u32 %v3545, %v3548
      %v3550 = vsel %vm882, %v3540, %v3549
      %v3552 = vshrl.u32 %v3487, 16
      %v3554 = vrot.slane %v3552, 3
      %v3555 = vshll.u32 %v3487, 16
      %v3557 = vrot.slane %v3555, 4
      %v3558 = vor.u32 %v3554, %v3557
      %v3559 = vsel %vm882, %v3549, %v3558
      %v3561 = vshrl.u32 %v3488, 16
      %v3563 = vrot.slane %v3561, 3
      %v3564 = vshll.u32 %v3488, 16
      %v3566 = vrot.slane %v3564, 4
      %v3567 = vor.u32 %v3563, %v3566
      %v3568 = vsel %vm882, %v3558, %v3567
      %v3570 = vshrl.u32 %v3489, 16
      %v3572 = vrot.slane %v3570, 3
      %v3573 = vshll.u32 %v3489, 16
      %v3575 = vrot.slane %v3573, 4
      %v3576 = vor.u32 %v3572, %v3575
      %v3577 = vsel %vm882, %v3567, %v3576
      %v3579 = vshrl.u32 %v3490, 16
      %v3581 = vrot.slane %v3579, 3
      %v3582 = vshll.u32 %v3490, 16
      %v3584 = vrot.slane %v3582, 4
      %v3585 = vor.u32 %v3581, %v3584
      %v3586 = vsel %vm882, %v3576, %v3585
      %v3588 = vshrl.u32 %v3491, 16
      %v3590 = vrot.slane %v3588, 3
      %v3591 = vshll.u32 %v3491, 16
      %v3593 = vrot.slane %v3591, 4
      %v3594 = vor.u32 %v3590, %v3593
      %v3595 = vsel %vm882, %v3585, %v3594
      %v3597 = vshrl.u32 %v3492, 16
      %v3599 = vrot.slane %v3597, 3
      %v3600 = vshll.u32 %v3492, 16
      %v3602 = vrot.slane %v3600, 4
      %v3603 = vor.u32 %v3599, %v3602
      %v3604 = vsel %vm882, %v3594, %v3603
      %v3606 = vshrl.u32 %v3493, 16
      %v3608 = vrot.slane %v3606, 3
      %v3609 = vshll.u32 %v3493, 16
      %v3611 = vrot.slane %v3609, 4
      %v3612 = vor.u32 %v3608, %v3611
      %v3613 = vsel %vm882, %v3603, %v3612
      %v3615 = vshrl.u32 %v3494, 16
      %v3617 = vrot.slane %v3615, 3
      %v3618 = vshll.u32 %v3494, 16
      %v3620 = vrot.slane %v3618, 4
      %v3621 = vor.u32 %v3617, %v3620
      %v3622 = vsel %vm882, %v3612, %v3621
      %v3624 = vshrl.u32 %v3495, 16
      %v3626 = vrot.slane %v3624, 3
      %v3627 = vshll.u32 %v3495, 16
      %v3629 = vrot.slane %v3627, 4
      %v3630 = vor.u32 %v3626, %v3629
      %v3631 = vsel %vm882, %v3621, %v3630
      %v3633 = vshrl.u32 %v3496, 16
      %v3635 = vrot.slane %v3633, 3
      %v3636 = vshll.u32 %v3496, 16
      %v3638 = vrot.slane %v3636, 4
      %v3639 = vor.u32 %v3635, %v3638
      %v3640 = vsel %vm882, %v3630, %v3639
      %v3642 = vshrl.u32 %v3497, 16
      %v3644 = vrot.slane %v3642, 3
      %v3645 = vshll.u32 %v3497, 16
      %v3647 = vrot.slane %v3645, 4
      %v3648 = vor.u32 %v3644, %v3647
      %v3649 = vsel %vm882, %v3639, %v3648
      %3666 = vst.msk [vmem:[#allocation5] sm:$0xff] %vm3360, %v3514
      %3667 = vst.msk [vmem:[#allocation5 + $0x18] sm:$0xff] %vm3360, %v3523
      %3668 = vst.msk [vmem:[#allocation5 + $0x30] sm:$0xff] %vm3360, %v3532
      %3669 = vst.msk [vmem:[#allocation5 + $0x48] sm:$0xff] %vm3360, %v3541
      %3670 = vst.msk [vmem:[#allocation5 + $0x60] sm:$0xff] %vm3360, %v3550
      %3671 = vst.msk [vmem:[#allocation5 + $0x78] sm:$0xff] %vm3360, %v3559
      %3672 = vst.msk [vmem:[#allocation5 + $0x90] sm:$0xff] %vm3360, %v3568
      %3673 = vst.msk [vmem:[#allocation5 + $0xa8] sm:$0xff] %vm3360, %v3577
      %3674 = vst.msk [vmem:[#allocation5 + $0xc0] sm:$0xff] %vm3360, %v3586
      %3675 = vst.msk [vmem:[#allocation5 + $0xd8] sm:$0xff] %vm3360, %v3595
      %3676 = vst.msk [vmem:[#allocation5 + $0xf0] sm:$0xff] %vm3360, %v3604
      %3677 = vst.msk [vmem:[#allocation5 + $0x108] sm:$0xff] %vm3360, %v3613
      %3678 = vst.msk [vmem:[#allocation5 + $0x120] sm:$0xff] %vm3360, %v3622
      %3679 = vst.msk [vmem:[#allocation5 + $0x138] sm:$0xff] %vm3360, %v3631
      %3680 = vst.msk [vmem:[#allocation5 + $0x150] sm:$0xff] %vm3360, %v3640
      %3681 = vst.msk [vmem:[#allocation5 + $0x168] sm:$0xff] %vm3360, %v3649
      %v3682 = vld [vmem:[#allocation3] sm:$0xf0]
      %v3683 = vld [vmem:[#allocation3 + $0x8] sm:$0xff]
      %v3684 = vld [vmem:[#allocation3 + $0x10] sm:$0xff]
      %v3685 = vld [vmem:[#allocation3 + $0x18] sm:$0xff]
      %v3686 = vld [vmem:[#allocation3 + $0x20] sm:$0xff]
      %v3687 = vld [vmem:[#allocation3 + $0x28] sm:$0xff]
      %v3688 = vld [vmem:[#allocation3 + $0x30] sm:$0xff]
      %v3689 = vld [vmem:[#allocation3 + $0x38] sm:$0xff]
      %v3690 = vld [vmem:[#allocation3 + $0x40] sm:$0xff]
      %v3691 = vld [vmem:[#allocation3 + $0x48] sm:$0xff]
      %v3692 = vld [vmem:[#allocation3 + $0x50] sm:$0xff]
      %v3693 = vld [vmem:[#allocation3 + $0x58] sm:$0xff]
      %v3694 = vld [vmem:[#allocation3 + $0x60] sm:$0xff]
      %v3695 = vld [vmem:[#allocation3 + $0x68] sm:$0xff]
      %v3696 = vld [vmem:[#allocation3 + $0x70] sm:$0xff]
      %v3697 = vld [vmem:[#allocation3 + $0x78] sm:$0xff]
      %v3698 = vld [vmem:[#allocation3 + $0x80] sm:$0xf]
      %v3716 = vrot.slane %v3682, 4
      %v3717 = vrot.slane %v3683, 4
      %v3718 = vsel %vm1101, %v3716, %v3717
      %v3719 = vrot.slane %v3684, 4
      %v3720 = vsel %vm1101, %v3717, %v3719
      %v3721 = vrot.slane %v3685, 4
      %v3722 = vsel %vm1101, %v3719, %v3721
      %v3723 = vrot.slane %v3686, 4
      %v3724 = vsel %vm1101, %v3721, %v3723
      %v3725 = vrot.slane %v3687, 4
      %v3726 = vsel %vm1101, %v3723, %v3725
      %v3727 = vrot.slane %v3688, 4
      %v3728 = vsel %vm1101, %v3725, %v3727
      %v3729 = vrot.slane %v3689, 4
      %v3730 = vsel %vm1101, %v3727, %v3729
      %v3731 = vrot.slane %v3690, 4
      %v3732 = vsel %vm1101, %v3729, %v3731
      %v3733 = vrot.slane %v3691, 4
      %v3734 = vsel %vm1101, %v3731, %v3733
      %v3735 = vrot.slane %v3692, 4
      %v3736 = vsel %vm1101, %v3733, %v3735
      %v3737 = vrot.slane %v3693, 4
      %v3738 = vsel %vm1101, %v3735, %v3737
      %v3739 = vrot.slane %v3694, 4
      %v3740 = vsel %vm1101, %v3737, %v3739
      %v3741 = vrot.slane %v3695, 4
      %v3742 = vsel %vm1101, %v3739, %v3741
      %v3743 = vrot.slane %v3696, 4
      %v3744 = vsel %vm1101, %v3741, %v3743
      %v3745 = vrot.slane %v3697, 4
      %v3746 = vsel %vm1101, %v3743, %v3745
      %v3747 = vrot.slane %v3698, 4
      %v3748 = vsel %vm1101, %v3745, %v3747
      %3749 = vrot.lane.b32.xlu0 %v3718, 32
      %v3750 = vpop.permute.xlu0 %3749
      %3751 = vrot.lane.b32.xlu0 %v3720, 32
      %v3752 = vpop.permute.xlu0 %3751
      %3753 = vrot.lane.b32.xlu0 %v3722, 32
      %v3754 = vpop.permute.xlu0 %3753
      %3755 = vrot.lane.b32.xlu0 %v3724, 32
      %v3756 = vpop.permute.xlu0 %3755
      %3757 = vrot.lane.b32.xlu0 %v3726, 32
      %v3758 = vpop.permute.xlu0 %3757
      %3759 = vrot.lane.b32.xlu0 %v3728, 32
      %v3760 = vpop.permute.xlu0 %3759
      %3761 = vrot.lane.b32.xlu0 %v3730, 32
      %v3762 = vpop.permute.xlu0 %3761
      %3763 = vrot.lane.b32.xlu0 %v3732, 32
      %v3764 = vpop.permute.xlu0 %3763
      %3765 = vrot.lane.b32.xlu0 %v3734, 32
      %v3766 = vpop.permute.xlu0 %3765
      %3767 = vrot.lane.b32.xlu0 %v3736, 32
      %v3768 = vpop.permute.xlu0 %3767
      %3769 = vrot.lane.b32.xlu0 %v3738, 32
      %v3770 = vpop.permute.xlu0 %3769
      %3771 = vrot.lane.b32.xlu0 %v3740, 32
      %v3772 = vpop.permute.xlu0 %3771
      %3773 = vrot.lane.b32.xlu0 %v3742, 32
      %v3774 = vpop.permute.xlu0 %3773
      %3775 = vrot.lane.b32.xlu0 %v3744, 32
      %v3776 = vpop.permute.xlu0 %3775
      %3777 = vrot.lane.b32.xlu0 %v3746, 32
      %v3778 = vpop.permute.xlu0 %3777
      %3779 = vrot.lane.b32.xlu0 %v3748, 32
      %v3780 = vpop.permute.xlu0 %3779
      %vm3797 = vcmask 523520
      %3798 = vst.msk [vmem:[#allocation5] sm:$0xff] %vm3797, %v3750
      %3799 = vst.msk [vmem:[#allocation5 + $0x18] sm:$0xff] %vm3797, %v3752
      %3800 = vst.msk [vmem:[#allocation5 + $0x30] sm:$0xff] %vm3797, %v3754
      %3801 = vst.msk [vmem:[#allocation5 + $0x48] sm:$0xff] %vm3797, %v3756
      %3802 = vst.msk [vmem:[#allocation5 + $0x60] sm:$0xff] %vm3797, %v3758
      %3803 = vst.msk [vmem:[#allocation5 + $0x78] sm:$0xff] %vm3797, %v3760
      %3804 = vst.msk [vmem:[#allocation5 + $0x90] sm:$0xff] %vm3797, %v3762
      %3805 = vst.msk [vmem:[#allocation5 + $0xa8] sm:$0xff] %vm3797, %v3764
      %3806 = vst.msk [vmem:[#allocation5 + $0xc0] sm:$0xff] %vm3797, %v3766
      %3807 = vst.msk [vmem:[#allocation5 + $0xd8] sm:$0xff] %vm3797, %v3768
      %3808 = vst.msk [vmem:[#allocation5 + $0xf0] sm:$0xff] %vm3797, %v3770
      %3809 = vst.msk [vmem:[#allocation5 + $0x108] sm:$0xff] %vm3797, %v3772
      %3810 = vst.msk [vmem:[#allocation5 + $0x120] sm:$0xff] %vm3797, %v3774
      %3811 = vst.msk [vmem:[#allocation5 + $0x138] sm:$0xff] %vm3797, %v3776
      %3812 = vst.msk [vmem:[#allocation5 + $0x150] sm:$0xff] %vm3797, %v3778
      %3813 = vst.msk [vmem:[#allocation5 + $0x168] sm:$0xff] %vm3797, %v3780
      %v3814 = vld [vmem:[#allocation3] sm:$0xf0]
      %v3815 = vld [vmem:[#allocation3 + $0x8] sm:$0xff]
      %v3816 = vld [vmem:[#allocation3 + $0x10] sm:$0xff]
      %v3817 = vld [vmem:[#allocation3 + $0x18] sm:$0xff]
      %v3818 = vld [vmem:[#allocation3 + $0x20] sm:$0xff]
      %v3819 = vld [vmem:[#allocation3 + $0x28] sm:$0xff]
      %v3820 = vld [vmem:[#allocation3 + $0x30] sm:$0xff]
      %v3821 = vld [vmem:[#allocation3 + $0x38] sm:$0xff]
      %v3822 = vld [vmem:[#allocation3 + $0x40] sm:$0xff]
      %v3823 = vld [vmem:[#allocation3 + $0x48] sm:$0xff]
      %v3824 = vld [vmem:[#allocation3 + $0x50] sm:$0xff]
      %v3825 = vld [vmem:[#allocation3 + $0x58] sm:$0xff]
      %v3826 = vld [vmem:[#allocation3 + $0x60] sm:$0xff]
      %v3827 = vld [vmem:[#allocation3 + $0x68] sm:$0xff]
      %v3828 = vld [vmem:[#allocation3 + $0x70] sm:$0xff]
      %v3829 = vld [vmem:[#allocation3 + $0x78] sm:$0xff]
      %v3830 = vld [vmem:[#allocation3 + $0x80] sm:$0x1f]
      %v3831 = vsel %vm1536, %v3814, 0
      %v3832 = vsel %vm1537, %v3815, 0
      %v3833 = vsel %vm1538, %v3816, 0
      %v3834 = vsel %vm1539, %v3817, 0
      %v3835 = vsel %vm1540, %v3818, 0
      %v3836 = vsel %vm1541, %v3819, 0
      %v3837 = vsel %vm1542, %v3820, 0
      %v3838 = vsel %vm1543, %v3821, 0
      %v3839 = vsel %vm1544, %v3822, 0
      %v3840 = vsel %vm1545, %v3823, 0
      %v3841 = vsel %vm1546, %v3824, 0
      %v3842 = vsel %vm1547, %v3825, 0
      %v3843 = vsel %vm1548, %v3826, 0
      %v3844 = vsel %vm1549, %v3827, 0
      %v3845 = vsel %vm1550, %v3828, 0
      %v3846 = vsel %vm1551, %v3829, 0
      %v3847 = vsel %vm1552, %v3830, 0
      %v3849 = vshrl.u32 %v3831, 16
      %v3851 = vrot.slane %v3849, 4
      %v3852 = vshll.u32 %v3831, 16
      %v3854 = vrot.slane %v3852, 5
      %v3855 = vor.u32 %v3851, %v3854
      %v3857 = vshrl.u32 %v3832, 16
      %v3859 = vrot.slane %v3857, 4
      %v3860 = vshll.u32 %v3832, 16
      %v3862 = vrot.slane %v3860, 5
      %v3863 = vor.u32 %v3859, %v3862
      %v3864 = vsel %vm704, %v3855, %v3863
      %v3866 = vshrl.u32 %v3833, 16
      %v3868 = vrot.slane %v3866, 4
      %v3869 = vshll.u32 %v3833, 16
      %v3871 = vrot.slane %v3869, 5
      %v3872 = vor.u32 %v3868, %v3871
      %v3873 = vsel %vm704, %v3863, %v3872
      %v3875 = vshrl.u32 %v3834, 16
      %v3877 = vrot.slane %v3875, 4
      %v3878 = vshll.u32 %v3834, 16
      %v3880 = vrot.slane %v3878, 5
      %v3881 = vor.u32 %v3877, %v3880
      %v3882 = vsel %vm704, %v3872, %v3881
      %v3884 = vshrl.u32 %v3835, 16
      %v3886 = vrot.slane %v3884, 4
      %v3887 = vshll.u32 %v3835, 16
      %v3889 = vrot.slane %v3887, 5
      %v3890 = vor.u32 %v3886, %v3889
      %v3891 = vsel %vm704, %v3881, %v3890
      %v3893 = vshrl.u32 %v3836, 16
      %v3895 = vrot.slane %v3893, 4
      %v3896 = vshll.u32 %v3836, 16
      %v3898 = vrot.slane %v3896, 5
      %v3899 = vor.u32 %v3895, %v3898
      %v3900 = vsel %vm704, %v3890, %v3899
      %v3902 = vshrl.u32 %v3837, 16
      %v3904 = vrot.slane %v3902, 4
      %v3905 = vshll.u32 %v3837, 16
      %v3907 = vrot.slane %v3905, 5
      %v3908 = vor.u32 %v3904, %v3907
      %v3909 = vsel %vm704, %v3899, %v3908
      %v3911 = vshrl.u32 %v3838, 16
      %v3913 = vrot.slane %v3911, 4
      %v3914 = vshll.u32 %v3838, 16
      %v3916 = vrot.slane %v3914, 5
      %v3917 = vor.u32 %v3913, %v3916
      %v3918 = vsel %vm704, %v3908, %v3917
      %v3920 = vshrl.u32 %v3839, 16
      %v3922 = vrot.slane %v3920, 4
      %v3923 = vshll.u32 %v3839, 16
      %v3925 = vrot.slane %v3923, 5
      %v3926 = vor.u32 %v3922, %v3925
      %v3927 = vsel %vm704, %v3917, %v3926
      %v3929 = vshrl.u32 %v3840, 16
      %v3931 = vrot.slane %v3929, 4
      %v3932 = vshll.u32 %v3840, 16
      %v3934 = vrot.slane %v3932, 5
      %v3935 = vor.u32 %v3931, %v3934
      %v3936 = vsel %vm704, %v3926, %v3935
      %v3938 = vshrl.u32 %v3841, 16
      %v3940 = vrot.slane %v3938, 4
      %v3941 = vshll.u32 %v3841, 16
      %v3943 = vrot.slane %v3941, 5
      %v3944 = vor.u32 %v3940, %v3943
      %v3945 = vsel %vm704, %v3935, %v3944
      %v3947 = vshrl.u32 %v3842, 16
      %v3949 = vrot.slane %v3947, 4
      %v3950 = vshll.u32 %v3842, 16
      %v3952 = vrot.slane %v3950, 5
      %v3953 = vor.u32 %v3949, %v3952
      %v3954 = vsel %vm704, %v3944, %v3953
      %v3956 = vshrl.u32 %v3843, 16
      %v3958 = vrot.slane %v3956, 4
      %v3959 = vshll.u32 %v3843, 16
      %v3961 = vrot.slane %v3959, 5
      %v3962 = vor.u32 %v3958, %v3961
      %v3963 = vsel %vm704, %v3953, %v3962
      %v3965 = vshrl.u32 %v3844, 16
      %v3967 = vrot.slane %v3965, 4
      %v3968 = vshll.u32 %v3844, 16
      %v3970 = vrot.slane %v3968, 5
      %v3971 = vor.u32 %v3967, %v3970
      %v3972 = vsel %vm704, %v3962, %v3971
      %v3974 = vshrl.u32 %v3845, 16
      %v3976 = vrot.slane %v3974, 4
      %v3977 = vshll.u32 %v3845, 16
      %v3979 = vrot.slane %v3977, 5
      %v3980 = vor.u32 %v3976, %v3979
      %v3981 = vsel %vm704, %v3971, %v3980
      %v3983 = vshrl.u32 %v3846, 16
      %v3985 = vrot.slane %v3983, 4
      %v3986 = vshll.u32 %v3846, 16
      %v3988 = vrot.slane %v3986, 5
      %v3989 = vor.u32 %v3985, %v3988
      %v3990 = vsel %vm704, %v3980, %v3989
      %v3992 = vshrl.u32 %v3847, 16
      %v3994 = vrot.slane %v3992, 4
      %v3995 = vshll.u32 %v3847, 16
      %v3997 = vrot.slane %v3995, 5
      %v3998 = vor.u32 %v3994, %v3997
      %v3999 = vsel %vm704, %v3989, %v3998
      %4000 = vrot.lane.b32.xlu0 %v3864, 64
      %v4001 = vpop.permute.xlu0 %4000
      %4002 = vrot.lane.b32.xlu0 %v3873, 64
      %v4003 = vpop.permute.xlu0 %4002
      %4004 = vrot.lane.b32.xlu0 %v3882, 64
      %v4005 = vpop.permute.xlu0 %4004
      %4006 = vrot.lane.b32.xlu0 %v3891, 64
      %v4007 = vpop.permute.xlu0 %4006
      %4008 = vrot.lane.b32.xlu0 %v3900, 64
      %v4009 = vpop.permute.xlu0 %4008
      %4010 = vrot.lane.b32.xlu0 %v3909, 64
      %v4011 = vpop.permute.xlu0 %4010
      %4012 = vrot.lane.b32.xlu0 %v3918, 64
      %v4013 = vpop.permute.xlu0 %4012
      %4014 = vrot.lane.b32.xlu0 %v3927, 64
      %v4015 = vpop.permute.xlu0 %4014
      %4016 = vrot.lane.b32.xlu0 %v3936, 64
      %v4017 = vpop.permute.xlu0 %4016
      %4018 = vrot.lane.b32.xlu0 %v3945, 64
      %v4019 = vpop.permute.xlu0 %4018
      %4020 = vrot.lane.b32.xlu0 %v3954, 64
      %v4021 = vpop.permute.xlu0 %4020
      %4022 = vrot.lane.b32.xlu0 %v3963, 64
      %v4023 = vpop.permute.xlu0 %4022
      %4024 = vrot.lane.b32.xlu0 %v3972, 64
      %v4025 = vpop.permute.xlu0 %4024
      %4026 = vrot.lane.b32.xlu0 %v3981, 64
      %v4027 = vpop.permute.xlu0 %4026
      %4028 = vrot.lane.b32.xlu0 %v3990, 64
      %v4029 = vpop.permute.xlu0 %4028
      %4030 = vrot.lane.b32.xlu0 %v3999, 64
      %v4031 = vpop.permute.xlu0 %4030
      %vm4048 = vcmask 785920
      %4049 = vst.msk [vmem:[#allocation5] sm:$0xff] %vm4048, %v4001
      %4050 = vst.msk [vmem:[#allocation5 + $0x18] sm:$0xff] %vm4048, %v4003
      %4051 = vst.msk [vmem:[#allocation5 + $0x30] sm:$0xff] %vm4048, %v4005
      %4052 = vst.msk [vmem:[#allocation5 + $0x48] sm:$0xff] %vm4048, %v4007
      %4053 = vst.msk [vmem:[#allocation5 + $0x60] sm:$0xff] %vm4048, %v4009
      %4054 = vst.msk [vmem:[#allocation5 + $0x78] sm:$0xff] %vm4048, %v4011
      %4055 = vst.msk [vmem:[#allocation5 + $0x90] sm:$0xff] %vm4048, %v4013
      %4056 = vst.msk [vmem:[#allocation5 + $0xa8] sm:$0xff] %vm4048, %v4015
      %4057 = vst.msk [vmem:[#allocation5 + $0xc0] sm:$0xff] %vm4048, %v4017
      %4058 = vst.msk [vmem:[#allocation5 + $0xd8] sm:$0xff] %vm4048, %v4019
      %4059 = vst.msk [vmem:[#allocation5 + $0xf0] sm:$0xff] %vm4048, %v4021
      %4060 = vst.msk [vmem:[#allocation5 + $0x108] sm:$0xff] %vm4048, %v4023
      %4061 = vst.msk [vmem:[#allocation5 + $0x120] sm:$0xff] %vm4048, %v4025
      %4062 = vst.msk [vmem:[#allocation5 + $0x138] sm:$0xff] %vm4048, %v4027
      %4063 = vst.msk [vmem:[#allocation5 + $0x150] sm:$0xff] %vm4048, %v4029
      %4064 = vst.msk [vmem:[#allocation5 + $0x168] sm:$0xff] %vm4048, %v4031
      %v4065 = vld [vmem:[#allocation3 + $0x8] sm:$0xf8]
      %v4066 = vld [vmem:[#allocation3 + $0x10] sm:$0xff]
      %v4067 = vld [vmem:[#allocation3 + $0x18] sm:$0xff]
      %v4068 = vld [vmem:[#allocation3 + $0x20] sm:$0xff]
      %v4069 = vld [vmem:[#allocation3 + $0x28] sm:$0xff]
      %v4070 = vld [vmem:[#allocation3 + $0x30] sm:$0xff]
      %v4071 = vld [vmem:[#allocation3 + $0x38] sm:$0xff]
      %v4072 = vld [vmem:[#allocation3 + $0x40] sm:$0xff]
      %v4073 = vld [vmem:[#allocation3 + $0x48] sm:$0xff]
      %v4074 = vld [vmem:[#allocation3 + $0x50] sm:$0xff]
      %v4075 = vld [vmem:[#allocation3 + $0x58] sm:$0xff]
      %v4076 = vld [vmem:[#allocation3 + $0x60] sm:$0xff]
      %v4077 = vld [vmem:[#allocation3 + $0x68] sm:$0xff]
      %v4078 = vld [vmem:[#allocation3 + $0x70] sm:$0xff]
      %v4079 = vld [vmem:[#allocation3 + $0x78] sm:$0xff]
      %v4080 = vld [vmem:[#allocation3 + $0x80] sm:$0xff]
      %v4081 = vld [vmem:[#allocation3 + $0x88] sm:$0xf]
      %v4082 = vsel %vm848, %v4065, 0
      %v4083 = vsel %vm849, %v4066, 0
      %v4084 = vsel %vm850, %v4067, 0
      %v4085 = vsel %vm851, %v4068, 0
      %v4086 = vsel %vm852, %v4069, 0
      %v4087 = vsel %vm853, %v4070, 0
      %v4088 = vsel %vm854, %v4071, 0
      %v4089 = vsel %vm855, %v4072, 0
      %v4090 = vsel %vm856, %v4073, 0
      %v4091 = vsel %vm857, %v4074, 0
      %v4092 = vsel %vm858, %v4075, 0
      %v4093 = vsel %vm859, %v4076, 0
      %v4094 = vsel %vm860, %v4077, 0
      %v4095 = vsel %vm861, %v4078, 0
      %v4096 = vsel %vm862, %v4079, 0
      %v4097 = vsel %vm863, %v4080, 0
      %v4098 = vsel %vm864, %v4081, 0
      %v4100 = vshrl.u32 %v4082, 16
      %v4102 = vrot.slane %v4100, 3
      %v4103 = vshll.u32 %v4082, 16
      %v4105 = vrot.slane %v4103, 4
      %v4106 = vor.u32 %v4102, %v4105
      %v4108 = vshrl.u32 %v4083, 16
      %v4110 = vrot.slane %v4108, 3
      %v4111 = vshll.u32 %v4083, 16
      %v4113 = vrot.slane %v4111, 4
      %v4114 = vor.u32 %v4110, %v4113
      %v4115 = vsel %vm882, %v4106, %v4114
      %v4117 = vshrl.u32 %v4084, 16
      %v4119 = vrot.slane %v4117, 3
      %v4120 = vshll.u32 %v4084, 16
      %v4122 = vrot.slane %v4120, 4
      %v4123 = vor.u32 %v4119, %v4122
      %v4124 = vsel %vm882, %v4114, %v4123
      %v4126 = vshrl.u32 %v4085, 16
      %v4128 = vrot.slane %v4126, 3
      %v4129 = vshll.u32 %v4085, 16
      %v4131 = vrot.slane %v4129, 4
      %v4132 = vor.u32 %v4128, %v4131
      %v4133 = vsel %vm882, %v4123, %v4132
      %v4135 = vshrl.u32 %v4086, 16
      %v4137 = vrot.slane %v4135, 3
      %v4138 = vshll.u32 %v4086, 16
      %v4140 = vrot.slane %v4138, 4
      %v4141 = vor.u32 %v4137, %v4140
      %v4142 = vsel %vm882, %v4132, %v4141
      %v4144 = vshrl.u32 %v4087, 16
      %v4146 = vrot.slane %v4144, 3
      %v4147 = vshll.u32 %v4087, 16
      %v4149 = vrot.slane %v4147, 4
      %v4150 = vor.u32 %v4146, %v4149
      %v4151 = vsel %vm882, %v4141, %v4150
      %v4153 = vshrl.u32 %v4088, 16
      %v4155 = vrot.slane %v4153, 3
      %v4156 = vshll.u32 %v4088, 16
      %v4158 = vrot.slane %v4156, 4
      %v4159 = vor.u32 %v4155, %v4158
      %v4160 = vsel %vm882, %v4150, %v4159
      %v4162 = vshrl.u32 %v4089, 16
      %v4164 = vrot.slane %v4162, 3
      %v4165 = vshll.u32 %v4089, 16
      %v4167 = vrot.slane %v4165, 4
      %v4168 = vor.u32 %v4164, %v4167
      %v4169 = vsel %vm882, %v4159, %v4168
      %v4171 = vshrl.u32 %v4090, 16
      %v4173 = vrot.slane %v4171, 3
      %v4174 = vshll.u32 %v4090, 16
      %v4176 = vrot.slane %v4174, 4
      %v4177 = vor.u32 %v4173, %v4176
      %v4178 = vsel %vm882, %v4168, %v4177
      %v4180 = vshrl.u32 %v4091, 16
      %v4182 = vrot.slane %v4180, 3
      %v4183 = vshll.u32 %v4091, 16
      %v4185 = vrot.slane %v4183, 4
      %v4186 = vor.u32 %v4182, %v4185
      %v4187 = vsel %vm882, %v4177, %v4186
      %v4189 = vshrl.u32 %v4092, 16
      %v4191 = vrot.slane %v4189, 3
      %v4192 = vshll.u32 %v4092, 16
      %v4194 = vrot.slane %v4192, 4
      %v4195 = vor.u32 %v4191, %v4194
      %v4196 = vsel %vm882, %v4186, %v4195
      %v4198 = vshrl.u32 %v4093, 16
      %v4200 = vrot.slane %v4198, 3
      %v4201 = vshll.u32 %v4093, 16
      %v4203 = vrot.slane %v4201, 4
      %v4204 = vor.u32 %v4200, %v4203
      %v4205 = vsel %vm882, %v4195, %v4204
      %v4207 = vshrl.u32 %v4094, 16
      %v4209 = vrot.slane %v4207, 3
      %v4210 = vshll.u32 %v4094, 16
      %v4212 = vrot.slane %v4210, 4
      %v4213 = vor.u32 %v4209, %v4212
      %v4214 = vsel %vm882, %v4204, %v4213
      %v4216 = vshrl.u32 %v4095, 16
      %v4218 = vrot.slane %v4216, 3
      %v4219 = vshll.u32 %v4095, 16
      %v4221 = vrot.slane %v4219, 4
      %v4222 = vor.u32 %v4218, %v4221
      %v4223 = vsel %vm882, %v4213, %v4222
      %v4225 = vshrl.u32 %v4096, 16
      %v4227 = vrot.slane %v4225, 3
      %v4228 = vshll.u32 %v4096, 16
      %v4230 = vrot.slane %v4228, 4
      %v4231 = vor.u32 %v4227, %v4230
      %v4232 = vsel %vm882, %v4222, %v4231
      %v4234 = vshrl.u32 %v4097, 16
      %v4236 = vrot.slane %v4234, 3
      %v4237 = vshll.u32 %v4097, 16
      %v4239 = vrot.slane %v4237, 4
      %v4240 = vor.u32 %v4236, %v4239
      %v4241 = vsel %vm882, %v4231, %v4240
      %v4243 = vshrl.u32 %v4098, 16
      %v4245 = vrot.slane %v4243, 3
      %v4246 = vshll.u32 %v4098, 16
      %v4248 = vrot.slane %v4246, 4
      %v4249 = vor.u32 %v4245, %v4248
      %v4250 = vsel %vm882, %v4240, %v4249
      %4251 = vrot.lane.b32.xlu0 %v4115, 96
      %v4252 = vpop.permute.xlu0 %4251
      %4253 = vrot.lane.b32.xlu0 %v4124, 96
      %v4254 = vpop.permute.xlu0 %4253
      %4255 = vrot.lane.b32.xlu0 %v4133, 96
      %v4256 = vpop.permute.xlu0 %4255
      %4257 = vrot.lane.b32.xlu0 %v4142, 96
      %v4258 = vpop.permute.xlu0 %4257
      %4259 = vrot.lane.b32.xlu0 %v4151, 96
      %v4260 = vpop.permute.xlu0 %4259
      %4261 = vrot.lane.b32.xlu0 %v4160, 96
      %v4262 = vpop.permute.xlu0 %4261
      %4263 = vrot.lane.b32.xlu0 %v4169, 96
      %v4264 = vpop.permute.xlu0 %4263
      %4265 = vrot.lane.b32.xlu0 %v4178, 96
      %v4266 = vpop.permute.xlu0 %4265
      %4267 = vrot.lane.b32.xlu0 %v4187, 96
      %v4268 = vpop.permute.xlu0 %4267
      %4269 = vrot.lane.b32.xlu0 %v4196, 96
      %v4270 = vpop.permute.xlu0 %4269
      %4271 = vrot.lane.b32.xlu0 %v4205, 96
      %v4272 = vpop.permute.xlu0 %4271
      %4273 = vrot.lane.b32.xlu0 %v4214, 96
      %v4274 = vpop.permute.xlu0 %4273
      %4275 = vrot.lane.b32.xlu0 %v4223, 96
      %v4276 = vpop.permute.xlu0 %4275
      %4277 = vrot.lane.b32.xlu0 %v4232, 96
      %v4278 = vpop.permute.xlu0 %4277
      %4279 = vrot.lane.b32.xlu0 %v4241, 96
      %v4280 = vpop.permute.xlu0 %4279
      %4281 = vrot.lane.b32.xlu0 %v4250, 96
      %v4282 = vpop.permute.xlu0 %4281
      %vm4299 = vcmask 1048320
      %4300 = vst.msk [vmem:[#allocation5] sm:$0xff] %vm4299, %v4252
      %4301 = vst.msk [vmem:[#allocation5 + $0x18] sm:$0xff] %vm4299, %v4254
      %4302 = vst.msk [vmem:[#allocation5 + $0x30] sm:$0xff] %vm4299, %v4256
      %4303 = vst.msk [vmem:[#allocation5 + $0x48] sm:$0xff] %vm4299, %v4258
      %4304 = vst.msk [vmem:[#allocation5 + $0x60] sm:$0xff] %vm4299, %v4260
      %4305 = vst.msk [vmem:[#allocation5 + $0x78] sm:$0xff] %vm4299, %v4262
      %4306 = vst.msk [vmem:[#allocation5 + $0x90] sm:$0xff] %vm4299, %v4264
      %4307 = vst.msk [vmem:[#allocation5 + $0xa8] sm:$0xff] %vm4299, %v4266
      %4308 = vst.msk [vmem:[#allocation5 + $0xc0] sm:$0xff] %vm4299, %v4268
      %4309 = vst.msk [vmem:[#allocation5 + $0xd8] sm:$0xff] %vm4299, %v4270
      %4310 = vst.msk [vmem:[#allocation5 + $0xf0] sm:$0xff] %vm4299, %v4272
      %4311 = vst.msk [vmem:[#allocation5 + $0x108] sm:$0xff] %vm4299, %v4274
      %4312 = vst.msk [vmem:[#allocation5 + $0x120] sm:$0xff] %vm4299, %v4276
      %4313 = vst.msk [vmem:[#allocation5 + $0x138] sm:$0xff] %vm4299, %v4278
      %4314 = vst.msk [vmem:[#allocation5 + $0x150] sm:$0xff] %vm4299, %v4280
      %4315 = vst.msk [vmem:[#allocation5 + $0x168] sm:$0xff] %vm4299, %v4282
      %v4316 = vld [vmem:[#allocation3 + $0x8] sm:$0xf0]
      %v4317 = vld [vmem:[#allocation3 + $0x10] sm:$0xff]
      %v4318 = vld [vmem:[#allocation3 + $0x18] sm:$0xff]
      %v4319 = vld [vmem:[#allocation3 + $0x20] sm:$0xff]
      %v4320 = vld [vmem:[#allocation3 + $0x28] sm:$0xff]
      %v4321 = vld [vmem:[#allocation3 + $0x30] sm:$0xff]
      %v4322 = vld [vmem:[#allocation3 + $0x38] sm:$0xff]
      %v4323 = vld [vmem:[#allocation3 + $0x40] sm:$0xff]
      %v4324 = vld [vmem:[#allocation3 + $0x48] sm:$0xff]
      %v4325 = vld [vmem:[#allocation3 + $0x50] sm:$0xff]
      %v4326 = vld [vmem:[#allocation3 + $0x58] sm:$0xff]
      %v4327 = vld [vmem:[#allocation3 + $0x60] sm:$0xff]
      %v4328 = vld [vmem:[#allocation3 + $0x68] sm:$0xff]
      %v4329 = vld [vmem:[#allocation3 + $0x70] sm:$0xff]
      %v4330 = vld [vmem:[#allocation3 + $0x78] sm:$0xff]
      %v4331 = vld [vmem:[#allocation3 + $0x80] sm:$0xff]
      %v4332 = vld [vmem:[#allocation3 + $0x88] sm:$0xf]
      %v4350 = vrot.slane %v4316, 4
      %v4351 = vrot.slane %v4317, 4
      %v4352 = vsel %vm1101, %v4350, %v4351
      %v4353 = vrot.slane %v4318, 4
      %v4354 = vsel %vm1101, %v4351, %v4353
      %v4355 = vrot.slane %v4319, 4
      %v4356 = vsel %vm1101, %v4353, %v4355
      %v4357 = vrot.slane %v4320, 4
      %v4358 = vsel %vm1101, %v4355, %v4357
      %v4359 = vrot.slane %v4321, 4
      %v4360 = vsel %vm1101, %v4357, %v4359
      %v4361 = vrot.slane %v4322, 4
      %v4362 = vsel %vm1101, %v4359, %v4361
      %v4363 = vrot.slane %v4323, 4
      %v4364 = vsel %vm1101, %v4361, %v4363
      %v4365 = vrot.slane %v4324, 4
      %v4366 = vsel %vm1101, %v4363, %v4365
      %v4367 = vrot.slane %v4325, 4
      %v4368 = vsel %vm1101, %v4365, %v4367
      %v4369 = vrot.slane %v4326, 4
      %v4370 = vsel %vm1101, %v4367, %v4369
      %v4371 = vrot.slane %v4327, 4
      %v4372 = vsel %vm1101, %v4369, %v4371
      %v4373 = vrot.slane %v4328, 4
      %v4374 = vsel %vm1101, %v4371, %v4373
      %v4375 = vrot.slane %v4329, 4
      %v4376 = vsel %vm1101, %v4373, %v4375
      %v4377 = vrot.slane %v4330, 4
      %v4378 = vsel %vm1101, %v4375, %v4377
      %v4379 = vrot.slane %v4331, 4
      %v4380 = vsel %vm1101, %v4377, %v4379
      %v4381 = vrot.slane %v4332, 4
      %v4382 = vsel %vm1101, %v4379, %v4381
      %4399 = vst.msk [vmem:[#allocation5 + $0x8] sm:$0xff] %vm3360, %v4352
      %4400 = vst.msk [vmem:[#allocation5 + $0x20] sm:$0xff] %vm3360, %v4354
      %4401 = vst.msk [vmem:[#allocation5 + $0x38] sm:$0xff] %vm3360, %v4356
      %4402 = vst.msk [vmem:[#allocation5 + $0x50] sm:$0xff] %vm3360, %v4358
      %4403 = vst.msk [vmem:[#allocation5 + $0x68] sm:$0xff] %vm3360, %v4360
      %4404 = vst.msk [vmem:[#allocation5 + $0x80] sm:$0xff] %vm3360, %v4362
      %4405 = vst.msk [vmem:[#allocation5 + $0x98] sm:$0xff] %vm3360, %v4364
      %4406 = vst.msk [vmem:[#allocation5 + $0xb0] sm:$0xff] %vm3360, %v4366
      %4407 = vst.msk [vmem:[#allocation5 + $0xc8] sm:$0xff] %vm3360, %v4368
      %4408 = vst.msk [vmem:[#allocation5 + $0xe0] sm:$0xff] %vm3360, %v4370
      %4409 = vst.msk [vmem:[#allocation5 + $0xf8] sm:$0xff] %vm3360, %v4372
      %4410 = vst.msk [vmem:[#allocation5 + $0x110] sm:$0xff] %vm3360, %v4374
      %4411 = vst.msk [vmem:[#allocation5 + $0x128] sm:$0xff] %vm3360, %v4376
      %4412 = vst.msk [vmem:[#allocation5 + $0x140] sm:$0xff] %vm3360, %v4378
      %4413 = vst.msk [vmem:[#allocation5 + $0x158] sm:$0xff] %vm3360, %v4380
      %4414 = vst.msk [vmem:[#allocation5 + $0x170] sm:$0xff] %vm3360, %v4382
      %v4415 = vld [vmem:[#allocation3 + $0x8] sm:$0xf0]
      %v4416 = vld [vmem:[#allocation3 + $0x10] sm:$0xff]
      %v4417 = vld [vmem:[#allocation3 + $0x18] sm:$0xff]
      %v4418 = vld [vmem:[#allocation3 + $0x20] sm:$0xff]
      %v4419 = vld [vmem:[#allocation3 + $0x28] sm:$0xff]
      %v4420 = vld [vmem:[#allocation3 + $0x30] sm:$0xff]
      %v4421 = vld [vmem:[#allocation3 + $0x38] sm:$0xff]
      %v4422 = vld [vmem:[#allocation3 + $0x40] sm:$0xff]
      %v4423 = vld [vmem:[#allocation3 + $0x48] sm:$0xff]
      %v4424 = vld [vmem:[#allocation3 + $0x50] sm:$0xff]
      %v4425 = vld [vmem:[#allocation3 + $0x58] sm:$0xff]
      %v4426 = vld [vmem:[#allocation3 + $0x60] sm:$0xff]
      %v4427 = vld [vmem:[#allocation3 + $0x68] sm:$0xff]
      %v4428 = vld [vmem:[#allocation3 + $0x70] sm:$0xff]
      %v4429 = vld [vmem:[#allocation3 + $0x78] sm:$0xff]
      %v4430 = vld [vmem:[#allocation3 + $0x80] sm:$0xff]
      %v4431 = vld [vmem:[#allocation3 + $0x88] sm:$0x1f]
      %v4432 = vsel %vm1536, %v4415, 0
      %v4433 = vsel %vm1537, %v4416, 0
      %v4434 = vsel %vm1538, %v4417, 0
      %v4435 = vsel %vm1539, %v4418, 0
      %v4436 = vsel %vm1540, %v4419, 0
      %v4437 = vsel %vm1541, %v4420, 0
      %v4438 = vsel %vm1542, %v4421, 0
      %v4439 = vsel %vm1543, %v4422, 0
      %v4440 = vsel %vm1544, %v4423, 0
      %v4441 = vsel %vm1545, %v4424, 0
      %v4442 = vsel %vm1546, %v4425, 0
      %v4443 = vsel %vm1547, %v4426, 0
      %v4444 = vsel %vm1548, %v4427, 0
      %v4445 = vsel %vm1549, %v4428, 0
      %v4446 = vsel %vm1550, %v4429, 0
      %v4447 = vsel %vm1551, %v4430, 0
      %v4448 = vsel %vm1552, %v4431, 0
      %v4450 = vshrl.u32 %v4432, 16
      %v4452 = vrot.slane %v4450, 4
      %v4453 = vshll.u32 %v4432, 16
      %v4455 = vrot.slane %v4453, 5
      %v4456 = vor.u32 %v4452, %v4455
      %v4458 = vshrl.u32 %v4433, 16
      %v4460 = vrot.slane %v4458, 4
      %v4461 = vshll.u32 %v4433, 16
      %v4463 = vrot.slane %v4461, 5
      %v4464 = vor.u32 %v4460, %v4463
      %v4465 = vsel %vm704, %v4456, %v4464
      %v4467 = vshrl.u32 %v4434, 16
      %v4469 = vrot.slane %v4467, 4
      %v4470 = vshll.u32 %v4434, 16
      %v4472 = vrot.slane %v4470, 5
      %v4473 = vor.u32 %v4469, %v4472
      %v4474 = vsel %vm704, %v4464, %v4473
      %v4476 = vshrl.u32 %v4435, 16
      %v4478 = vrot.slane %v4476, 4
      %v4479 = vshll.u32 %v4435, 16
      %v4481 = vrot.slane %v4479, 5
      %v4482 = vor.u32 %v4478, %v4481
      %v4483 = vsel %vm704, %v4473, %v4482
      %v4485 = vshrl.u32 %v4436, 16
      %v4487 = vrot.slane %v4485, 4
      %v4488 = vshll.u32 %v4436, 16
      %v4490 = vrot.slane %v4488, 5
      %v4491 = vor.u32 %v4487, %v4490
      %v4492 = vsel %vm704, %v4482, %v4491
      %v4494 = vshrl.u32 %v4437, 16
      %v4496 = vrot.slane %v4494, 4
      %v4497 = vshll.u32 %v4437, 16
      %v4499 = vrot.slane %v4497, 5
      %v4500 = vor.u32 %v4496, %v4499
      %v4501 = vsel %vm704, %v4491, %v4500
      %v4503 = vshrl.u32 %v4438, 16
      %v4505 = vrot.slane %v4503, 4
      %v4506 = vshll.u32 %v4438, 16
      %v4508 = vrot.slane %v4506, 5
      %v4509 = vor.u32 %v4505, %v4508
      %v4510 = vsel %vm704, %v4500, %v4509
      %v4512 = vshrl.u32 %v4439, 16
      %v4514 = vrot.slane %v4512, 4
      %v4515 = vshll.u32 %v4439, 16
      %v4517 = vrot.slane %v4515, 5
      %v4518 = vor.u32 %v4514, %v4517
      %v4519 = vsel %vm704, %v4509, %v4518
      %v4521 = vshrl.u32 %v4440, 16
      %v4523 = vrot.slane %v4521, 4
      %v4524 = vshll.u32 %v4440, 16
      %v4526 = vrot.slane %v4524, 5
      %v4527 = vor.u32 %v4523, %v4526
      %v4528 = vsel %vm704, %v4518, %v4527
      %v4530 = vshrl.u32 %v4441, 16
      %v4532 = vrot.slane %v4530, 4
      %v4533 = vshll.u32 %v4441, 16
      %v4535 = vrot.slane %v4533, 5
      %v4536 = vor.u32 %v4532, %v4535
      %v4537 = vsel %vm704, %v4527, %v4536
      %v4539 = vshrl.u32 %v4442, 16
      %v4541 = vrot.slane %v4539, 4
      %v4542 = vshll.u32 %v4442, 16
      %v4544 = vrot.slane %v4542, 5
      %v4545 = vor.u32 %v4541, %v4544
      %v4546 = vsel %vm704, %v4536, %v4545
      %v4548 = vshrl.u32 %v4443, 16
      %v4550 = vrot.slane %v4548, 4
      %v4551 = vshll.u32 %v4443, 16
      %v4553 = vrot.slane %v4551, 5
      %v4554 = vor.u32 %v4550, %v4553
      %v4555 = vsel %vm704, %v4545, %v4554
      %v4557 = vshrl.u32 %v4444, 16
      %v4559 = vrot.slane %v4557, 4
      %v4560 = vshll.u32 %v4444, 16
      %v4562 = vrot.slane %v4560, 5
      %v4563 = vor.u32 %v4559, %v4562
      %v4564 = vsel %vm704, %v4554, %v4563
      %v4566 = vshrl.u32 %v4445, 16
      %v4568 = vrot.slane %v4566, 4
      %v4569 = vshll.u32 %v4445, 16
      %v4571 = vrot.slane %v4569, 5
      %v4572 = vor.u32 %v4568, %v4571
      %v4573 = vsel %vm704, %v4563, %v4572
      %v4575 = vshrl.u32 %v4446, 16
      %v4577 = vrot.slane %v4575, 4
      %v4578 = vshll.u32 %v4446, 16
      %v4580 = vrot.slane %v4578, 5
      %v4581 = vor.u32 %v4577, %v4580
      %v4582 = vsel %vm704, %v4572, %v4581
      %v4584 = vshrl.u32 %v4447, 16
      %v4586 = vrot.slane %v4584, 4
      %v4587 = vshll.u32 %v4447, 16
      %v4589 = vrot.slane %v4587, 5
      %v4590 = vor.u32 %v4586, %v4589
      %v4591 = vsel %vm704, %v4581, %v4590
      %v4593 = vshrl.u32 %v4448, 16
      %v4595 = vrot.slane %v4593, 4
      %v4596 = vshll.u32 %v4448, 16
      %v4598 = vrot.slane %v4596, 5
      %v4599 = vor.u32 %v4595, %v4598
      %v4600 = vsel %vm704, %v4590, %v4599
      %4601 = vrot.lane.b32.xlu0 %v4465, 32
      %v4602 = vpop.permute.xlu0 %4601
      %4603 = vrot.lane.b32.xlu0 %v4474, 32
      %v4604 = vpop.permute.xlu0 %4603
      %4605 = vrot.lane.b32.xlu0 %v4483, 32
      %v4606 = vpop.permute.xlu0 %4605
      %4607 = vrot.lane.b32.xlu0 %v4492, 32
      %v4608 = vpop.permute.xlu0 %4607
      %4609 = vrot.lane.b32.xlu0 %v4501, 32
      %v4610 = vpop.permute.xlu0 %4609
      %4611 = vrot.lane.b32.xlu0 %v4510, 32
      %v4612 = vpop.permute.xlu0 %4611
      %4613 = vrot.lane.b32.xlu0 %v4519, 32
      %v4614 = vpop.permute.xlu0 %4613
      %4615 = vrot.lane.b32.xlu0 %v4528, 32
      %v4616 = vpop.permute.xlu0 %4615
      %4617 = vrot.lane.b32.xlu0 %v4537, 32
      %v4618 = vpop.permute.xlu0 %4617
      %4619 = vrot.lane.b32.xlu0 %v4546, 32
      %v4620 = vpop.permute.xlu0 %4619
      %4621 = vrot.lane.b32.xlu0 %v4555, 32
      %v4622 = vpop.permute.xlu0 %4621
      %4623 = vrot.lane.b32.xlu0 %v4564, 32
      %v4624 = vpop.permute.xlu0 %4623
      %4625 = vrot.lane.b32.xlu0 %v4573, 32
      %v4626 = vpop.permute.xlu0 %4625
      %4627 = vrot.lane.b32.xlu0 %v4582, 32
      %v4628 = vpop.permute.xlu0 %4627
      %4629 = vrot.lane.b32.xlu0 %v4591, 32
      %v4630 = vpop.permute.xlu0 %4629
      %4631 = vrot.lane.b32.xlu0 %v4600, 32
      %v4632 = vpop.permute.xlu0 %4631
      %4649 = vst.msk [vmem:[#allocation5 + $0x8] sm:$0xff] %vm3797, %v4602
      %4650 = vst.msk [vmem:[#allocation5 + $0x20] sm:$0xff] %vm3797, %v4604
      %4651 = vst.msk [vmem:[#allocation5 + $0x38] sm:$0xff] %vm3797, %v4606
      %4652 = vst.msk [vmem:[#allocation5 + $0x50] sm:$0xff] %vm3797, %v4608
      %4653 = vst.msk [vmem:[#allocation5 + $0x68] sm:$0xff] %vm3797, %v4610
      %4654 = vst.msk [vmem:[#allocation5 + $0x80] sm:$0xff] %vm3797, %v4612
      %4655 = vst.msk [vmem:[#allocation5 + $0x98] sm:$0xff] %vm3797, %v4614
      %4656 = vst.msk [vmem:[#allocation5 + $0xb0] sm:$0xff] %vm3797, %v4616
      %4657 = vst.msk [vmem:[#allocation5 + $0xc8] sm:$0xff] %vm3797, %v4618
      %4658 = vst.msk [vmem:[#allocation5 + $0xe0] sm:$0xff] %vm3797, %v4620
      %4659 = vst.msk [vmem:[#allocation5 + $0xf8] sm:$0xff] %vm3797, %v4622
      %4660 = vst.msk [vmem:[#allocation5 + $0x110] sm:$0xff] %vm3797, %v4624
      %4661 = vst.msk [vmem:[#allocation5 + $0x128] sm:$0xff] %vm3797, %v4626
      %4662 = vst.msk [vmem:[#allocation5 + $0x140] sm:$0xff] %vm3797, %v4628
      %4663 = vst.msk [vmem:[#allocation5 + $0x158] sm:$0xff] %vm3797, %v4630
      %4664 = vst.msk [vmem:[#allocation5 + $0x170] sm:$0xff] %vm3797, %v4632
      %v4665 = vld [vmem:[#allocation3 + $0x10] sm:$0xf8]
      %v4666 = vld [vmem:[#allocation3 + $0x18] sm:$0xff]
      %v4667 = vld [vmem:[#allocation3 + $0x20] sm:$0xff]
      %v4668 = vld [vmem:[#allocation3 + $0x28] sm:$0xff]
      %v4669 = vld [vmem:[#allocation3 + $0x30] sm:$0xff]
      %v4670 = vld [vmem:[#allocation3 + $0x38] sm:$0xff]
      %v4671 = vld [vmem:[#allocation3 + $0x40] sm:$0xff]
      %v4672 = vld [vmem:[#allocation3 + $0x48] sm:$0xff]
      %v4673 = vld [vmem:[#allocation3 + $0x50] sm:$0xff]
      %v4674 = vld [vmem:[#allocation3 + $0x58] sm:$0xff]
      %v4675 = vld [vmem:[#allocation3 + $0x60] sm:$0xff]
      %v4676 = vld [vmem:[#allocation3 + $0x68] sm:$0xff]
      %v4677 = vld [vmem:[#allocation3 + $0x70] sm:$0xff]
      %v4678 = vld [vmem:[#allocation3 + $0x78] sm:$0xff]
      %v4679 = vld [vmem:[#allocation3 + $0x80] sm:$0xff]
      %v4680 = vld [vmem:[#allocation3 + $0x88] sm:$0xff]
      %v4681 = vld [vmem:[#allocation3 + $0x90] sm:$0xf]
      %v4682 = vsel %vm848, %v4665, 0
      %v4683 = vsel %vm849, %v4666, 0
      %v4684 = vsel %vm850, %v4667, 0
      %v4685 = vsel %vm851, %v4668, 0
      %v4686 = vsel %vm852, %v4669, 0
      %v4687 = vsel %vm853, %v4670, 0
      %v4688 = vsel %vm854, %v4671, 0
      %v4689 = vsel %vm855, %v4672, 0
      %v4690 = vsel %vm856, %v4673, 0
      %v4691 = vsel %vm857, %v4674, 0
      %v4692 = vsel %vm858, %v4675, 0
      %v4693 = vsel %vm859, %v4676, 0
      %v4694 = vsel %vm860, %v4677, 0
      %v4695 = vsel %vm861, %v4678, 0
      %v4696 = vsel %vm862, %v4679, 0
      %v4697 = vsel %vm863, %v4680, 0
      %v4698 = vsel %vm864, %v4681, 0
      %v4700 = vshrl.u32 %v4682, 16
      %v4702 = vrot.slane %v4700, 3
      %v4703 = vshll.u32 %v4682, 16
      %v4705 = vrot.slane %v4703, 4
      %v4706 = vor.u32 %v4702, %v4705
      %v4708 = vshrl.u32 %v4683, 16
      %v4710 = vrot.slane %v4708, 3
      %v4711 = vshll.u32 %v4683, 16
      %v4713 = vrot.slane %v4711, 4
      %v4714 = vor.u32 %v4710, %v4713
      %v4715 = vsel %vm882, %v4706, %v4714
      %v4717 = vshrl.u32 %v4684, 16
      %v4719 = vrot.slane %v4717, 3
      %v4720 = vshll.u32 %v4684, 16
      %v4722 = vrot.slane %v4720, 4
      %v4723 = vor.u32 %v4719, %v4722
      %v4724 = vsel %vm882, %v4714, %v4723
      %v4726 = vshrl.u32 %v4685, 16
      %v4728 = vrot.slane %v4726, 3
      %v4729 = vshll.u32 %v4685, 16
      %v4731 = vrot.slane %v4729, 4
      %v4732 = vor.u32 %v4728, %v4731
      %v4733 = vsel %vm882, %v4723, %v4732
      %v4735 = vshrl.u32 %v4686, 16
      %v4737 = vrot.slane %v4735, 3
      %v4738 = vshll.u32 %v4686, 16
      %v4740 = vrot.slane %v4738, 4
      %v4741 = vor.u32 %v4737, %v4740
      %v4742 = vsel %vm882, %v4732, %v4741
      %v4744 = vshrl.u32 %v4687, 16
      %v4746 = vrot.slane %v4744, 3
      %v4747 = vshll.u32 %v4687, 16
      %v4749 = vrot.slane %v4747, 4
      %v4750 = vor.u32 %v4746, %v4749
      %v4751 = vsel %vm882, %v4741, %v4750
      %v4753 = vshrl.u32 %v4688, 16
      %v4755 = vrot.slane %v4753, 3
      %v4756 = vshll.u32 %v4688, 16
      %v4758 = vrot.slane %v4756, 4
      %v4759 = vor.u32 %v4755, %v4758
      %v4760 = vsel %vm882, %v4750, %v4759
      %v4762 = vshrl.u32 %v4689, 16
      %v4764 = vrot.slane %v4762, 3
      %v4765 = vshll.u32 %v4689, 16
      %v4767 = vrot.slane %v4765, 4
      %v4768 = vor.u32 %v4764, %v4767
      %v4769 = vsel %vm882, %v4759, %v4768
      %v4771 = vshrl.u32 %v4690, 16
      %v4773 = vrot.slane %v4771, 3
      %v4774 = vshll.u32 %v4690, 16
      %v4776 = vrot.slane %v4774, 4
      %v4777 = vor.u32 %v4773, %v4776
      %v4778 = vsel %vm882, %v4768, %v4777
      %v4780 = vshrl.u32 %v4691, 16
      %v4782 = vrot.slane %v4780, 3
      %v4783 = vshll.u32 %v4691, 16
      %v4785 = vrot.slane %v4783, 4
      %v4786 = vor.u32 %v4782, %v4785
      %v4787 = vsel %vm882, %v4777, %v4786
      %v4789 = vshrl.u32 %v4692, 16
      %v4791 = vrot.slane %v4789, 3
      %v4792 = vshll.u32 %v4692, 16
      %v4794 = vrot.slane %v4792, 4
      %v4795 = vor.u32 %v4791, %v4794
      %v4796 = vsel %vm882, %v4786, %v4795
      %v4798 = vshrl.u32 %v4693, 16
      %v4800 = vrot.slane %v4798, 3
      %v4801 = vshll.u32 %v4693, 16
      %v4803 = vrot.slane %v4801, 4
      %v4804 = vor.u32 %v4800, %v4803
      %v4805 = vsel %vm882, %v4795, %v4804
      %v4807 = vshrl.u32 %v4694, 16
      %v4809 = vrot.slane %v4807, 3
      %v4810 = vshll.u32 %v4694, 16
      %v4812 = vrot.slane %v4810, 4
      %v4813 = vor.u32 %v4809, %v4812
      %v4814 = vsel %vm882, %v4804, %v4813
      %v4816 = vshrl.u32 %v4695, 16
      %v4818 = vrot.slane %v4816, 3
      %v4819 = vshll.u32 %v4695, 16
      %v4821 = vrot.slane %v4819, 4
      %v4822 = vor.u32 %v4818, %v4821
      %v4823 = vsel %vm882, %v4813, %v4822
      %v4825 = vshrl.u32 %v4696, 16
      %v4827 = vrot.slane %v4825, 3
      %v4828 = vshll.u32 %v4696, 16
      %v4830 = vrot.slane %v4828, 4
      %v4831 = vor.u32 %v4827, %v4830
      %v4832 = vsel %vm882, %v4822, %v4831
      %v4834 = vshrl.u32 %v4697, 16
      %v4836 = vrot.slane %v4834, 3
      %v4837 = vshll.u32 %v4697, 16
      %v4839 = vrot.slane %v4837, 4
      %v4840 = vor.u32 %v4836, %v4839
      %v4841 = vsel %vm882, %v4831, %v4840
      %v4843 = vshrl.u32 %v4698, 16
      %v4845 = vrot.slane %v4843, 3
      %v4846 = vshll.u32 %v4698, 16
      %v4848 = vrot.slane %v4846, 4
      %v4849 = vor.u32 %v4845, %v4848
      %v4850 = vsel %vm882, %v4840, %v4849
      %4851 = vrot.lane.b32.xlu0 %v4715, 64
      %v4852 = vpop.permute.xlu0 %4851
      %4853 = vrot.lane.b32.xlu0 %v4724, 64
      %v4854 = vpop.permute.xlu0 %4853
      %4855 = vrot.lane.b32.xlu0 %v4733, 64
      %v4856 = vpop.permute.xlu0 %4855
      %4857 = vrot.lane.b32.xlu0 %v4742, 64
      %v4858 = vpop.permute.xlu0 %4857
      %4859 = vrot.lane.b32.xlu0 %v4751, 64
      %v4860 = vpop.permute.xlu0 %4859
      %4861 = vrot.lane.b32.xlu0 %v4760, 64
      %v4862 = vpop.permute.xlu0 %4861
      %4863 = vrot.lane.b32.xlu0 %v4769, 64
      %v4864 = vpop.permute.xlu0 %4863
      %4865 = vrot.lane.b32.xlu0 %v4778, 64
      %v4866 = vpop.permute.xlu0 %4865
      %4867 = vrot.lane.b32.xlu0 %v4787, 64
      %v4868 = vpop.permute.xlu0 %4867
      %4869 = vrot.lane.b32.xlu0 %v4796, 64
      %v4870 = vpop.permute.xlu0 %4869
      %4871 = vrot.lane.b32.xlu0 %v4805, 64
      %v4872 = vpop.permute.xlu0 %4871
      %4873 = vrot.lane.b32.xlu0 %v4814, 64
      %v4874 = vpop.permute.xlu0 %4873
      %4875 = vrot.lane.b32.xlu0 %v4823, 64
      %v4876 = vpop.permute.xlu0 %4875
      %4877 = vrot.lane.b32.xlu0 %v4832, 64
      %v4878 = vpop.permute.xlu0 %4877
      %4879 = vrot.lane.b32.xlu0 %v4841, 64
      %v4880 = vpop.permute.xlu0 %4879
      %4881 = vrot.lane.b32.xlu0 %v4850, 64
      %v4882 = vpop.permute.xlu0 %4881
      %4899 = vst.msk [vmem:[#allocation5 + $0x8] sm:$0xff] %vm4048, %v4852
      %4900 = vst.msk [vmem:[#allocation5 + $0x20] sm:$0xff] %vm4048, %v4854
      %4901 = vst.msk [vmem:[#allocation5 + $0x38] sm:$0xff] %vm4048, %v4856
      %4902 = vst.msk [vmem:[#allocation5 + $0x50] sm:$0xff] %vm4048, %v4858
      %4903 = vst.msk [vmem:[#allocation5 + $0x68] sm:$0xff] %vm4048, %v4860
      %4904 = vst.msk [vmem:[#allocation5 + $0x80] sm:$0xff] %vm4048, %v4862
      %4905 = vst.msk [vmem:[#allocation5 + $0x98] sm:$0xff] %vm4048, %v4864
      %4906 = vst.msk [vmem:[#allocation5 + $0xb0] sm:$0xff] %vm4048, %v4866
      %4907 = vst.msk [vmem:[#allocation5 + $0xc8] sm:$0xff] %vm4048, %v4868
      %4908 = vst.msk [vmem:[#allocation5 + $0xe0] sm:$0xff] %vm4048, %v4870
      %4909 = vst.msk [vmem:[#allocation5 + $0xf8] sm:$0xff] %vm4048, %v4872
      %4910 = vst.msk [vmem:[#allocation5 + $0x110] sm:$0xff] %vm4048, %v4874
      %4911 = vst.msk [vmem:[#allocation5 + $0x128] sm:$0xff] %vm4048, %v4876
      %4912 = vst.msk [vmem:[#allocation5 + $0x140] sm:$0xff] %vm4048, %v4878
      %4913 = vst.msk [vmem:[#allocation5 + $0x158] sm:$0xff] %vm4048, %v4880
      %4914 = vst.msk [vmem:[#allocation5 + $0x170] sm:$0xff] %vm4048, %v4882
      %v4915 = vld [vmem:[#allocation3 + $0x10] sm:$0xf0]
      %v4916 = vld [vmem:[#allocation3 + $0x18] sm:$0xff]
      %v4917 = vld [vmem:[#allocation3 + $0x20] sm:$0xff]
      %v4918 = vld [vmem:[#allocation3 + $0x28] sm:$0xff]
      %v4919 = vld [vmem:[#allocation3 + $0x30] sm:$0xff]
      %v4920 = vld [vmem:[#allocation3 + $0x38] sm:$0xff]
      %v4921 = vld [vmem:[#allocation3 + $0x40] sm:$0xff]
      %v4922 = vld [vmem:[#allocation3 + $0x48] sm:$0xff]
      %v4923 = vld [vmem:[#allocation3 + $0x50] sm:$0xff]
      %v4924 = vld [vmem:[#allocation3 + $0x58] sm:$0xff]
      %v4925 = vld [vmem:[#allocation3 + $0x60] sm:$0xff]
      %v4926 = vld [vmem:[#allocation3 + $0x68] sm:$0xff]
      %v4927 = vld [vmem:[#allocation3 + $0x70] sm:$0xff]
      %v4928 = vld [vmem:[#allocation3 + $0x78] sm:$0xff]
      %v4929 = vld [vmem:[#allocation3 + $0x80] sm:$0xff]
      %v4930 = vld [vmem:[#allocation3 + $0x88] sm:$0xff]
      %v4931 = vld [vmem:[#allocation3 + $0x90] sm:$0xf]
      %v4949 = vrot.slane %v4915, 4
      %v4950 = vrot.slane %v4916, 4
      %v4951 = vsel %vm1101, %v4949, %v4950
      %v4952 = vrot.slane %v4917, 4
      %v4953 = vsel %vm1101, %v4950, %v4952
      %v4954 = vrot.slane %v4918, 4
      %v4955 = vsel %vm1101, %v4952, %v4954
      %v4956 = vrot.slane %v4919, 4
      %v4957 = vsel %vm1101, %v4954, %v4956
      %v4958 = vrot.slane %v4920, 4
      %v4959 = vsel %vm1101, %v4956, %v4958
      %v4960 = vrot.slane %v4921, 4
      %v4961 = vsel %vm1101, %v4958, %v4960
      %v4962 = vrot.slane %v4922, 4
      %v4963 = vsel %vm1101, %v4960, %v4962
      %v4964 = vrot.slane %v4923, 4
      %v4965 = vsel %vm1101, %v4962, %v4964
      %v4966 = vrot.slane %v4924, 4
      %v4967 = vsel %vm1101, %v4964, %v4966
      %v4968 = vrot.slane %v4925, 4
      %v4969 = vsel %vm1101, %v4966, %v4968
      %v4970 = vrot.slane %v4926, 4
      %v4971 = vsel %vm1101, %v4968, %v4970
      %v4972 = vrot.slane %v4927, 4
      %v4973 = vsel %vm1101, %v4970, %v4972
      %v4974 = vrot.slane %v4928, 4
      %v4975 = vsel %vm1101, %v4972, %v4974
      %v4976 = vrot.slane %v4929, 4
      %v4977 = vsel %vm1101, %v4974, %v4976
      %v4978 = vrot.slane %v4930, 4
      %v4979 = vsel %vm1101, %v4976, %v4978
      %v4980 = vrot.slane %v4931, 4
      %v4981 = vsel %vm1101, %v4978, %v4980
      %4982 = vrot.lane.b32.xlu0 %v4951, 96
      %v4983 = vpop.permute.xlu0 %4982
      %4984 = vrot.lane.b32.xlu0 %v4953, 96
      %v4985 = vpop.permute.xlu0 %4984
      %4986 = vrot.lane.b32.xlu0 %v4955, 96
      %v4987 = vpop.permute.xlu0 %4986
      %4988 = vrot.lane.b32.xlu0 %v4957, 96
      %v4989 = vpop.permute.xlu0 %4988
      %4990 = vrot.lane.b32.xlu0 %v4959, 96
      %v4991 = vpop.permute.xlu0 %4990
      %4992 = vrot.lane.b32.xlu0 %v4961, 96
      %v4993 = vpop.permute.xlu0 %4992
      %4994 = vrot.lane.b32.xlu0 %v4963, 96
      %v4995 = vpop.permute.xlu0 %4994
      %4996 = vrot.lane.b32.xlu0 %v4965, 96
      %v4997 = vpop.permute.xlu0 %4996
      %4998 = vrot.lane.b32.xlu0 %v4967, 96
      %v4999 = vpop.permute.xlu0 %4998
      %5000 = vrot.lane.b32.xlu0 %v4969, 96
      %v5001 = vpop.permute.xlu0 %5000
      %5002 = vrot.lane.b32.xlu0 %v4971, 96
      %v5003 = vpop.permute.xlu0 %5002
      %5004 = vrot.lane.b32.xlu0 %v4973, 96
      %v5005 = vpop.permute.xlu0 %5004
      %5006 = vrot.lane.b32.xlu0 %v4975, 96
      %v5007 = vpop.permute.xlu0 %5006
      %5008 = vrot.lane.b32.xlu0 %v4977, 96
      %v5009 = vpop.permute.xlu0 %5008
      %5010 = vrot.lane.b32.xlu0 %v4979, 96
      %v5011 = vpop.permute.xlu0 %5010
      %5012 = vrot.lane.b32.xlu0 %v4981, 96
      %v5013 = vpop.permute.xlu0 %5012
      %5030 = vst.msk [vmem:[#allocation5 + $0x8] sm:$0xff] %vm4299, %v4983
      %5031 = vst.msk [vmem:[#allocation5 + $0x20] sm:$0xff] %vm4299, %v4985
      %5032 = vst.msk [vmem:[#allocation5 + $0x38] sm:$0xff] %vm4299, %v4987
      %5033 = vst.msk [vmem:[#allocation5 + $0x50] sm:$0xff] %vm4299, %v4989
      %5034 = vst.msk [vmem:[#allocation5 + $0x68] sm:$0xff] %vm4299, %v4991
      %5035 = vst.msk [vmem:[#allocation5 + $0x80] sm:$0xff] %vm4299, %v4993
      %5036 = vst.msk [vmem:[#allocation5 + $0x98] sm:$0xff] %vm4299, %v4995
      %5037 = vst.msk [vmem:[#allocation5 + $0xb0] sm:$0xff] %vm4299, %v4997
      %5038 = vst.msk [vmem:[#allocation5 + $0xc8] sm:$0xff] %vm4299, %v4999
      %5039 = vst.msk [vmem:[#allocation5 + $0xe0] sm:$0xff] %vm4299, %v5001
      %5040 = vst.msk [vmem:[#allocation5 + $0xf8] sm:$0xff] %vm4299, %v5003
      %5041 = vst.msk [vmem:[#allocation5 + $0x110] sm:$0xff] %vm4299, %v5005
      %5042 = vst.msk [vmem:[#allocation5 + $0x128] sm:$0xff] %vm4299, %v5007
      %5043 = vst.msk [vmem:[#allocation5 + $0x140] sm:$0xff] %vm4299, %v5009
      %5044 = vst.msk [vmem:[#allocation5 + $0x158] sm:$0xff] %vm4299, %v5011
      %5045 = vst.msk [vmem:[#allocation5 + $0x170] sm:$0xff] %vm4299, %v5013
      %v5046 = vld [vmem:[#allocation3 + $0x10] sm:$0xf0]
      %v5047 = vld [vmem:[#allocation3 + $0x18] sm:$0xff]
      %v5048 = vld [vmem:[#allocation3 + $0x20] sm:$0xff]
      %v5049 = vld [vmem:[#allocation3 + $0x28] sm:$0xff]
      %v5050 = vld [vmem:[#allocation3 + $0x30] sm:$0xff]
      %v5051 = vld [vmem:[#allocation3 + $0x38] sm:$0xff]
      %v5052 = vld [vmem:[#allocation3 + $0x40] sm:$0xff]
      %v5053 = vld [vmem:[#allocation3 + $0x48] sm:$0xff]
      %v5054 = vld [vmem:[#allocation3 + $0x50] sm:$0xff]
      %v5055 = vld [vmem:[#allocation3 + $0x58] sm:$0xff]
      %v5056 = vld [vmem:[#allocation3 + $0x60] sm:$0xff]
      %v5057 = vld [vmem:[#allocation3 + $0x68] sm:$0xff]
      %v5058 = vld [vmem:[#allocation3 + $0x70] sm:$0xff]
      %v5059 = vld [vmem:[#allocation3 + $0x78] sm:$0xff]
      %v5060 = vld [vmem:[#allocation3 + $0x80] sm:$0xff]
      %v5061 = vld [vmem:[#allocation3 + $0x88] sm:$0xff]
      %v5062 = vld [vmem:[#allocation3 + $0x90] sm:$0x1f]
      %v5063 = vsel %vm1536, %v5046, 0
      %v5064 = vsel %vm1537, %v5047, 0
      %v5065 = vsel %vm1538, %v5048, 0
      %v5066 = vsel %vm1539, %v5049, 0
      %v5067 = vsel %vm1540, %v5050, 0
      %v5068 = vsel %vm1541, %v5051, 0
      %v5069 = vsel %vm1542, %v5052, 0
      %v5070 = vsel %vm1543, %v5053, 0
      %v5071 = vsel %vm1544, %v5054, 0
      %v5072 = vsel %vm1545, %v5055, 0
      %v5073 = vsel %vm1546, %v5056, 0
      %v5074 = vsel %vm1547, %v5057, 0
      %v5075 = vsel %vm1548, %v5058, 0
      %v5076 = vsel %vm1549, %v5059, 0
      %v5077 = vsel %vm1550, %v5060, 0
      %v5078 = vsel %vm1551, %v5061, 0
      %v5079 = vsel %vm1552, %v5062, 0
      %v5081 = vshrl.u32 %v5063, 16
      %v5083 = vrot.slane %v5081, 4
      %v5084 = vshll.u32 %v5063, 16
      %v5086 = vrot.slane %v5084, 5
      %v5087 = vor.u32 %v5083, %v5086
      %v5089 = vshrl.u32 %v5064, 16
      %v5091 = vrot.slane %v5089, 4
      %v5092 = vshll.u32 %v5064, 16
      %v5094 = vrot.slane %v5092, 5
      %v5095 = vor.u32 %v5091, %v5094
      %v5096 = vsel %vm704, %v5087, %v5095
      %v5098 = vshrl.u32 %v5065, 16
      %v5100 = vrot.slane %v5098, 4
      %v5101 = vshll.u32 %v5065, 16
      %v5103 = vrot.slane %v5101, 5
      %v5104 = vor.u32 %v5100, %v5103
      %v5105 = vsel %vm704, %v5095, %v5104
      %v5107 = vshrl.u32 %v5066, 16
      %v5109 = vrot.slane %v5107, 4
      %v5110 = vshll.u32 %v5066, 16
      %v5112 = vrot.slane %v5110, 5
      %v5113 = vor.u32 %v5109, %v5112
      %v5114 = vsel %vm704, %v5104, %v5113
      %v5116 = vshrl.u32 %v5067, 16
      %v5118 = vrot.slane %v5116, 4
      %v5119 = vshll.u32 %v5067, 16
      %v5121 = vrot.slane %v5119, 5
      %v5122 = vor.u32 %v5118, %v5121
      %v5123 = vsel %vm704, %v5113, %v5122
      %v5125 = vshrl.u32 %v5068, 16
      %v5127 = vrot.slane %v5125, 4
      %v5128 = vshll.u32 %v5068, 16
      %v5130 = vrot.slane %v5128, 5
      %v5131 = vor.u32 %v5127, %v5130
      %v5132 = vsel %vm704, %v5122, %v5131
      %v5134 = vshrl.u32 %v5069, 16
      %v5136 = vrot.slane %v5134, 4
      %v5137 = vshll.u32 %v5069, 16
      %v5139 = vrot.slane %v5137, 5
      %v5140 = vor.u32 %v5136, %v5139
      %v5141 = vsel %vm704, %v5131, %v5140
      %v5143 = vshrl.u32 %v5070, 16
      %v5145 = vrot.slane %v5143, 4
      %v5146 = vshll.u32 %v5070, 16
      %v5148 = vrot.slane %v5146, 5
      %v5149 = vor.u32 %v5145, %v5148
      %v5150 = vsel %vm704, %v5140, %v5149
      %v5152 = vshrl.u32 %v5071, 16
      %v5154 = vrot.slane %v5152, 4
      %v5155 = vshll.u32 %v5071, 16
      %v5157 = vrot.slane %v5155, 5
      %v5158 = vor.u32 %v5154, %v5157
      %v5159 = vsel %vm704, %v5149, %v5158
      %v5161 = vshrl.u32 %v5072, 16
      %v5163 = vrot.slane %v5161, 4
      %v5164 = vshll.u32 %v5072, 16
      %v5166 = vrot.slane %v5164, 5
      %v5167 = vor.u32 %v5163, %v5166
      %v5168 = vsel %vm704, %v5158, %v5167
      %v5170 = vshrl.u32 %v5073, 16
      %v5172 = vrot.slane %v5170, 4
      %v5173 = vshll.u32 %v5073, 16
      %v5175 = vrot.slane %v5173, 5
      %v5176 = vor.u32 %v5172, %v5175
      %v5177 = vsel %vm704, %v5167, %v5176
      %v5179 = vshrl.u32 %v5074, 16
      %v5181 = vrot.slane %v5179, 4
      %v5182 = vshll.u32 %v5074, 16
      %v5184 = vrot.slane %v5182, 5
      %v5185 = vor.u32 %v5181, %v5184
      %v5186 = vsel %vm704, %v5176, %v5185
      %v5188 = vshrl.u32 %v5075, 16
      %v5190 = vrot.slane %v5188, 4
      %v5191 = vshll.u32 %v5075, 16
      %v5193 = vrot.slane %v5191, 5
      %v5194 = vor.u32 %v5190, %v5193
      %v5195 = vsel %vm704, %v5185, %v5194
      %v5197 = vshrl.u32 %v5076, 16
      %v5199 = vrot.slane %v5197, 4
      %v5200 = vshll.u32 %v5076, 16
      %v5202 = vrot.slane %v5200, 5
      %v5203 = vor.u32 %v5199, %v5202
      %v5204 = vsel %vm704, %v5194, %v5203
      %v5206 = vshrl.u32 %v5077, 16
      %v5208 = vrot.slane %v5206, 4
      %v5209 = vshll.u32 %v5077, 16
      %v5211 = vrot.slane %v5209, 5
      %v5212 = vor.u32 %v5208, %v5211
      %v5213 = vsel %vm704, %v5203, %v5212
      %v5215 = vshrl.u32 %v5078, 16
      %v5217 = vrot.slane %v5215, 4
      %v5218 = vshll.u32 %v5078, 16
      %v5220 = vrot.slane %v5218, 5
      %v5221 = vor.u32 %v5217, %v5220
      %v5222 = vsel %vm704, %v5212, %v5221
      %v5224 = vshrl.u32 %v5079, 16
      %v5226 = vrot.slane %v5224, 4
      %v5227 = vshll.u32 %v5079, 16
      %v5229 = vrot.slane %v5227, 5
      %v5230 = vor.u32 %v5226, %v5229
      %v5231 = vsel %vm704, %v5221, %v5230
      %5248 = vst.msk [vmem:[#allocation5 + $0x10] sm:$0xff] %vm3360, %v5096
      %5249 = vst.msk [vmem:[#allocation5 + $0x28] sm:$0xff] %vm3360, %v5105
      %5250 = vst.msk [vmem:[#allocation5 + $0x40] sm:$0xff] %vm3360, %v5114
      %5251 = vst.msk [vmem:[#allocation5 + $0x58] sm:$0xff] %vm3360, %v5123
      %5252 = vst.msk [vmem:[#allocation5 + $0x70] sm:$0xff] %vm3360, %v5132
      %5253 = vst.msk [vmem:[#allocation5 + $0x88] sm:$0xff] %vm3360, %v5141
      %5254 = vst.msk [vmem:[#allocation5 + $0xa0] sm:$0xff] %vm3360, %v5150
      %5255 = vst.msk [vmem:[#allocation5 + $0xb8] sm:$0xff] %vm3360, %v5159
      %5256 = vst.msk [vmem:[#allocation5 + $0xd0] sm:$0xff] %vm3360, %v5168
      %5257 = vst.msk [vmem:[#allocation5 + $0xe8] sm:$0xff] %vm3360, %v5177
      %5258 = vst.msk [vmem:[#allocation5 + $0x100] sm:$0xff] %vm3360, %v5186
      %5259 = vst.msk [vmem:[#allocation5 + $0x118] sm:$0xff] %vm3360, %v5195
      %5260 = vst.msk [vmem:[#allocation5 + $0x130] sm:$0xff] %vm3360, %v5204
      %5261 = vst.msk [vmem:[#allocation5 + $0x148] sm:$0xff] %vm3360, %v5213
      %5262 = vst.msk [vmem:[#allocation5 + $0x160] sm:$0xff] %vm3360, %v5222
      %5263 = vst.msk [vmem:[#allocation5 + $0x178] sm:$0xff] %vm3360, %v5231
      %v5264 = vld [vmem:[#allocation5] sm:$0xff]
      %v5265 = vld [vmem:[#allocation5 + $0x8] sm:$0xff]
      %v5266 = vld [vmem:[#allocation5 + $0x10] sm:$0xff]
      %v5267 = vld [vmem:[#allocation5 + $0x18] sm:$0xff]
      %v5268 = vld [vmem:[#allocation5 + $0x20] sm:$0xff]
      %v5269 = vld [vmem:[#allocation5 + $0x28] sm:$0xff]
      %v5270 = vld [vmem:[#allocation5 + $0x30] sm:$0xff]
      %v5271 = vld [vmem:[#allocation5 + $0x38] sm:$0xff]
      %v5272 = vld [vmem:[#allocation5 + $0x40] sm:$0xff]
      %v5273 = vld [vmem:[#allocation5 + $0x48] sm:$0xff]
      %v5274 = vld [vmem:[#allocation5 + $0x50] sm:$0xff]
      %v5275 = vld [vmem:[#allocation5 + $0x58] sm:$0xff]
      %v5276 = vld [vmem:[#allocation5 + $0x60] sm:$0xff]
      %v5277 = vld [vmem:[#allocation5 + $0x68] sm:$0xff]
      %v5278 = vld [vmem:[#allocation5 + $0x70] sm:$0xff]
      %v5279 = vld [vmem:[#allocation5 + $0x78] sm:$0xff]
      %v5280 = vld [vmem:[#allocation5 + $0x80] sm:$0xff]
      %v5281 = vld [vmem:[#allocation5 + $0x88] sm:$0xff]
      %v5282 = vld [vmem:[#allocation5 + $0x90] sm:$0xff]
      %v5283 = vld [vmem:[#allocation5 + $0x98] sm:$0xff]
      %v5284 = vld [vmem:[#allocation5 + $0xa0] sm:$0xff]
      %v5285 = vld [vmem:[#allocation5 + $0xa8] sm:$0xff]
      %v5286 = vld [vmem:[#allocation5 + $0xb0] sm:$0xff]
      %v5287 = vld [vmem:[#allocation5 + $0xb8] sm:$0xff]
      %v5288 = vld [vmem:[#allocation5 + $0xc0] sm:$0xff]
      %v5289 = vld [vmem:[#allocation5 + $0xc8] sm:$0xff]
      %v5290 = vld [vmem:[#allocation5 + $0xd0] sm:$0xff]
      %v5291 = vld [vmem:[#allocation5 + $0xd8] sm:$0xff]
      %v5292 = vld [vmem:[#allocation5 + $0xe0] sm:$0xff]
      %v5293 = vld [vmem:[#allocation5 + $0xe8] sm:$0xff]
      %v5294 = vld [vmem:[#allocation5 + $0xf0] sm:$0xff]
      %v5295 = vld [vmem:[#allocation5 + $0xf8] sm:$0xff]
      %v5296 = vld [vmem:[#allocation5 + $0x100] sm:$0xff]
      %v5297 = vld [vmem:[#allocation5 + $0x108] sm:$0xff]
      %v5298 = vld [vmem:[#allocation5 + $0x110] sm:$0xff]
      %v5299 = vld [vmem:[#allocation5 + $0x118] sm:$0xff]
      %v5300 = vld [vmem:[#allocation5 + $0x120] sm:$0xff]
      %v5301 = vld [vmem:[#allocation5 + $0x128] sm:$0xff]
      %v5302 = vld [vmem:[#allocation5 + $0x130] sm:$0xff]
      %v5303 = vld [vmem:[#allocation5 + $0x138] sm:$0xff]
      %v5304 = vld [vmem:[#allocation5 + $0x140] sm:$0xff]
      %v5305 = vld [vmem:[#allocation5 + $0x148] sm:$0xff]
      %v5306 = vld [vmem:[#allocation5 + $0x150] sm:$0xff]
      %v5307 = vld [vmem:[#allocation5 + $0x158] sm:$0xff]
      %v5308 = vld [vmem:[#allocation5 + $0x160] sm:$0xff]
      %v5309 = vld [vmem:[#allocation5 + $0x168] sm:$0xff]
      %v5310 = vld [vmem:[#allocation5 + $0x170] sm:$0xff]
      %v5311 = vld [vmem:[#allocation5 + $0x178] sm:$0xff]
      %v5312 = vld [vmem:[%s3] sm:$0xf]
      %v5313 = vld [vmem:[%s3 + $0x4] sm:$0xf]
      %v5314 = vld [vmem:[%s3 + $0x8] sm:$0xf]
      %v5315 = vld [vmem:[%s3 + $0xc] sm:$0xf]
      %v5316 = vld [vmem:[%s3 + $0x10] sm:$0xf]
      %v5317 = vld [vmem:[%s3 + $0x14] sm:$0xf]
      %v5318 = vld [vmem:[%s3 + $0x18] sm:$0xf]
      %v5319 = vld [vmem:[%s3 + $0x1c] sm:$0xf]
      %v5320 = vld [vmem:[%s3 + $0x20] sm:$0xf]
      %v5321 = vld [vmem:[%s3 + $0x24] sm:$0xf]
      %v5322 = vld [vmem:[%s3 + $0x28] sm:$0xf]
      %v5323 = vld [vmem:[%s3 + $0x2c] sm:$0xf]
      %v5324 = vld [vmem:[%s3 + $0x30] sm:$0xf]
      %v5325 = vld [vmem:[%s3 + $0x34] sm:$0xf]
      %v5326 = vld [vmem:[%s3 + $0x38] sm:$0xf]
      %v5327 = vld [vmem:[%s3 + $0x3c] sm:$0xf]
      %v5328 = vld [vmem:[%s3 + $0x40] sm:$0xf]
      %v5329 = vld [vmem:[%s3 + $0x44] sm:$0xf]
      %v5330 = vld [vmem:[%s3 + $0x48] sm:$0xf]
      %v5331 = vld [vmem:[%s3 + $0x4c] sm:$0xf]
      %v5332 = vld [vmem:[%s3 + $0x50] sm:$0xf]
      %v5333 = vld [vmem:[%s3 + $0x54] sm:$0xf]
      %v5334 = vld [vmem:[%s3 + $0x58] sm:$0xf]
      %v5335 = vld [vmem:[%s3 + $0x5c] sm:$0xf]
      %v5336 = vld [vmem:[%s3 + $0x60] sm:$0xf]
      %v5337 = vld [vmem:[%s3 + $0x64] sm:$0xf]
      %v5338 = vld [vmem:[%s3 + $0x68] sm:$0xf]
      %v5339 = vld [vmem:[%s3 + $0x6c] sm:$0xf]
      %v5340 = vld [vmem:[%s3 + $0x70] sm:$0xf]
      %v5341 = vld [vmem:[%s3 + $0x74] sm:$0xf]
      %v5342 = vld [vmem:[%s3 + $0x78] sm:$0xf]
      %v5343 = vld [vmem:[%s3 + $0x7c] sm:$0xf]
      %v5344 = vld [vmem:[%s3 + $0x80] sm:$0xf]
      %v5345 = vld [vmem:[%s3 + $0x84] sm:$0xf]
      %v5346 = vld [vmem:[%s3 + $0x88] sm:$0xf]
      %v5347 = vld [vmem:[%s3 + $0x8c] sm:$0xf]
      %v5348 = vld [vmem:[%s4] sm:$0x1]
      %v5350 = vlaneseq
      %v5351 = vshrl.u32 %v5350, 7
      %v5352 = vsub.s32 0, %v5351
      %v5353 = vrot.slane %v5348, %v5352
      %v5391 = vunpack.c.l.b16 %v5312
      %v5392 = vunpack.c.l.b16 %v5313
      %v5393 = vunpack.c.l.b16 %v5314
      %v5394 = vunpack.c.l.b16 %v5315
      %v5395 = vunpack.c.l.b16 %v5316
      %v5396 = vunpack.c.l.b16 %v5317
      %v5397 = vunpack.c.l.b16 %v5318
      %v5398 = vunpack.c.l.b16 %v5319
      %v5399 = vunpack.c.l.b16 %v5320
      %v5400 = vunpack.c.l.b16 %v5321
      %v5401 = vunpack.c.l.b16 %v5322
      %v5402 = vunpack.c.l.b16 %v5323
      %v5403 = vunpack.c.l.b16 %v5324
      %v5404 = vunpack.c.l.b16 %v5325
      %v5405 = vunpack.c.l.b16 %v5326
      %v5406 = vunpack.c.l.b16 %v5327
      %v5407 = vunpack.c.l.b16 %v5328
      %v5408 = vunpack.c.l.b16 %v5329
      %v5409 = vunpack.c.l.b16 %v5330
      %v5410 = vunpack.c.l.b16 %v5331
      %v5411 = vunpack.c.l.b16 %v5332
      %v5412 = vunpack.c.l.b16 %v5333
      %v5413 = vunpack.c.l.b16 %v5334
      %v5414 = vunpack.c.l.b16 %v5335
      %v5415 = vunpack.c.l.b16 %v5336
      %v5416 = vunpack.c.l.b16 %v5337
      %v5417 = vunpack.c.l.b16 %v5338
      %v5418 = vunpack.c.l.b16 %v5339
      %v5419 = vunpack.c.l.b16 %v5340
      %v5420 = vunpack.c.l.b16 %v5341
      %v5421 = vunpack.c.l.b16 %v5342
      %v5422 = vunpack.c.l.b16 %v5343
      %v5423 = vunpack.c.l.b16 %v5344
      %v5424 = vunpack.c.l.b16 %v5345
      %v5425 = vunpack.c.l.b16 %v5346
      %v5426 = vunpack.c.l.b16 %v5347
      %v5427 = vpack.c.b16 %v5392, %v5391
      %v5428 = vpack.c.b16 %v5394, %v5393
      %v5429 = vpack.c.b16 %v5396, %v5395
      %v5430 = vpack.c.b16 %v5398, %v5397
      %v5431 = vpack.c.b16 %v5400, %v5399
      %v5432 = vpack.c.b16 %v5402, %v5401
      %v5433 = vpack.c.b16 %v5404, %v5403
      %v5434 = vpack.c.b16 %v5406, %v5405
      %v5435 = vpack.c.b16 %v5408, %v5407
      %v5436 = vpack.c.b16 %v5410, %v5409
      %v5437 = vpack.c.b16 %v5412, %v5411
      %v5438 = vpack.c.b16 %v5414, %v5413
      %v5439 = vpack.c.b16 %v5416, %v5415
      %v5440 = vpack.c.b16 %v5418, %v5417
      %v5441 = vpack.c.b16 %v5420, %v5419
      %v5442 = vpack.c.b16 %v5422, %v5421
      %v5443 = vpack.c.b16 %v5424, %v5423
      %v5444 = vpack.c.b16 %v5426, %v5425
      %v5464 = vsel %vm3360, %v5266, 0
      %v5467 = vsel %vm3360, %v5269, 0
      %v5470 = vsel %vm3360, %v5272, 0
      %v5473 = vsel %vm3360, %v5275, 0
      %v5476 = vsel %vm3360, %v5278, 0
      %v5479 = vsel %vm3360, %v5281, 0
      %v5482 = vsel %vm3360, %v5284, 0
      %v5485 = vsel %vm3360, %v5287, 0
      %v5488 = vsel %vm3360, %v5290, 0
      %v5491 = vsel %vm3360, %v5293, 0
      %v5494 = vsel %vm3360, %v5296, 0
      %v5497 = vsel %vm3360, %v5299, 0
      %v5500 = vsel %vm3360, %v5302, 0
      %v5503 = vsel %vm3360, %v5305, 0
      %v5506 = vsel %vm3360, %v5308, 0
      %v5509 = vsel %vm3360, %v5311, 0
      %5511 = vmatprep.subr.bf16.mxu0 0
      %5512 = vmatpush1.bf16.msra.mxu0 %v5427
      %5513 = vmatprep.subr.bf16.mxu0 0
      %5514 = vmatpush1.bf16.msra.mxu0 %v5428
      %5515 = vmatprep.subr.bf16.mxu0 0
      %5516 = vmatpush1.bf16.msra.mxu0 %v5429
      %5517 = vmatprep.subr.bf16.mxu0 0
      %5518 = vmatpush1.bf16.msra.mxu0 %v5430
      %5519 = vmatprep.subr.bf16.mxu0 0
      %5520 = vmatpush1.bf16.msra.mxu0 %v5431
      %5521 = vmatprep.subr.bf16.mxu0 0
      %5522 = vmatpush1.bf16.msra.mxu0 %v5432
      %5523 = vmatprep.subr.bf16.mxu0 0
      %5524 = vmatpush1.bf16.msra.mxu0 %v5433
      %5525 = vmatprep.subr.bf16.mxu0 0
      %5526 = vmatpush1.bf16.msra.mxu0 %v5434
      %5527 = vmatprep.subr.bf16.mxu0 0
      %5528 = vmatpush1.bf16.msra.mxu0 %v5435
      %5529 = vmatprep.subr.bf16.mxu0 0
      %5530 = vmatpush1.bf16.msra.mxu0 %v5436
      %5531 = vmatprep.subr.bf16.mxu0 0
      %5532 = vmatpush1.bf16.msra.mxu0 %v5437
      %5533 = vmatprep.subr.bf16.mxu0 0
      %5534 = vmatpush1.bf16.msra.mxu0 %v5438
      %5535 = vmatprep.subr.bf16.mxu0 0
      %5536 = vmatpush1.bf16.msra.mxu0 %v5439
      %5537 = vmatprep.subr.bf16.mxu0 0
      %5538 = vmatpush1.bf16.msra.mxu0 %v5440
      %5539 = vmatprep.subr.bf16.mxu0 0
      %5540 = vmatpush1.bf16.msra.mxu0 %v5441
      %5541 = vmatprep.subr.bf16.mxu0 0
      %5542 = vmatpush1.bf16.msra.mxu0 %v5442
      %5543 = vmatprep.mubr.bf16.mxu0 %v5265
      %5544 = vmatmul.mubr.bf16.gmra.mrb[0].mxu0 %v5264
      %v5545 = vpop.f32.mrb[0].mxu0
      %v5546 = vadd.f32 %v5353, %v5545
      %v5547 = vpop.f32.mrb[0].mxu0
      %v5548 = vpop.f32.mrb[0].mxu0
      %v5549 = vadd.f32 %v5353, %v5548
      %v5550 = vpop.f32.mrb[0].mxu0
      %5551 = vmatprep.mubr.bf16.mxu0 %v5268
      %5552 = vmatmul.mubr.bf16.gmra.mrb[0].mxu0 %v5267
      %v5553 = vpop.f32.mrb[0].mxu0
      %v5554 = vadd.f32 %v5353, %v5553
      %v5555 = vpop.f32.mrb[0].mxu0
      %v5556 = vpop.f32.mrb[0].mxu0
      %v5557 = vadd.f32 %v5353, %v5556
      %v5558 = vpop.f32.mrb[0].mxu0
      %5559 = vmatprep.mubr.bf16.mxu0 %v5271
      %5560 = vmatmul.mubr.bf16.gmra.mrb[0].mxu0 %v5270
      %v5561 = vpop.f32.mrb[0].mxu0
      %v5562 = vadd.f32 %v5353, %v5561
      %v5563 = vpop.f32.mrb[0].mxu0
      %v5564 = vpop.f32.mrb[0].mxu0
      %v5565 = vadd.f32 %v5353, %v5564
      %v5566 = vpop.f32.mrb[0].mxu0
      %5567 = vmatprep.mubr.bf16.mxu0 %v5274
      %5568 = vmatmul.mubr.bf16.gmra.mrb[0].mxu0 %v5273
      %v5569 = vpop.f32.mrb[0].mxu0
      %v5570 = vadd.f32 %v5353, %v5569
      %v5571 = vpop.f32.mrb[0].mxu0
      %v5572 = vpop.f32.mrb[0].mxu0
      %v5573 = vadd.f32 %v5353, %v5572
      %v5574 = vpop.f32.mrb[0].mxu0
      %5575 = vmatprep.mubr.bf16.mxu0 %v5277
      %5576 = vmatmul.mubr.bf16.gmra.mrb[0].mxu0 %v5276
      %v5577 = vpop.f32.mrb[0].mxu0
      %v5578 = vadd.f32 %v5353, %v5577
      %v5579 = vpop.f32.mrb[0].mxu0
      %v5580 = vpop.f32.mrb[0].mxu0
      %v5581 = vadd.f32 %v5353, %v5580
      %v5582 = vpop.f32.mrb[0].mxu0
      %5583 = vmatprep.mubr.bf16.mxu0 %v5280
      %5584 = vmatmul.mubr.bf16.gmra.mrb[0].mxu0 %v5279
      %v5585 = vpop.f32.mrb[0].mxu0
      %v5586 = vadd.f32 %v5353, %v5585
      %v5587 = vpop.f32.mrb[0].mxu0
      %v5588 = vpop.f32.mrb[0].mxu0
      %v5589 = vadd.f32 %v5353, %v5588
      %v5590 = vpop.f32.mrb[0].mxu0
      %5591 = vmatprep.mubr.bf16.mxu0 %v5283
      %5592 = vmatmul.mubr.bf16.gmra.mrb[0].mxu0 %v5282
      %v5593 = vpop.f32.mrb[0].mxu0
      %v5594 = vadd.f32 %v5353, %v5593
      %v5595 = vpop.f32.mrb[0].mxu0
      %v5596 = vpop.f32.mrb[0].mxu0
      %v5597 = vadd.f32 %v5353, %v5596
      %v5598 = vpop.f32.mrb[0].mxu0
      %5599 = vmatprep.mubr.bf16.mxu0 %v5286
      %5600 = vmatmul.mubr.bf16.gmra.mrb[0].mxu0 %v5285
      %v5601 = vpop.f32.mrb[0].mxu0
      %v5602 = vadd.f32 %v5353, %v5601
      %v5603 = vpop.f32.mrb[0].mxu0
      %v5604 = vpop.f32.mrb[0].mxu0
      %v5605 = vadd.f32 %v5353, %v5604
      %v5606 = vpop.f32.mrb[0].mxu0
      %5607 = vmatprep.mubr.bf16.mxu0 %v5289
      %5608 = vmatmul.mubr.bf16.gmra.mrb[0].mxu0 %v5288
      %v5609 = vpop.f32.mrb[0].mxu0
      %v5610 = vadd.f32 %v5353, %v5609
      %v5611 = vpop.f32.mrb[0].mxu0
      %v5612 = vpop.f32.mrb[0].mxu0
      %v5613 = vadd.f32 %v5353, %v5612
      %v5614 = vpop.f32.mrb[0].mxu0
      %5615 = vmatprep.mubr.bf16.mxu0 %v5292
      %5616 = vmatmul.mubr.bf16.gmra.mrb[0].mxu0 %v5291
      %v5617 = vpop.f32.mrb[0].mxu0
      %v5618 = vadd.f32 %v5353, %v5617
      %v5619 = vpop.f32.mrb[0].mxu0
      %v5620 = vpop.f32.mrb[0].mxu0
      %v5621 = vadd.f32 %v5353, %v5620
      %v5622 = vpop.f32.mrb[0].mxu0
      %5623 = vmatprep.mubr.bf16.mxu0 %v5295
      %5624 = vmatmul.mubr.bf16.gmra.mrb[0].mxu0 %v5294
      %v5625 = vpop.f32.mrb[0].mxu0
      %v5626 = vadd.f32 %v5353, %v5625
      %v5627 = vpop.f32.mrb[0].mxu0
      %v5628 = vpop.f32.mrb[0].mxu0
      %v5629 = vadd.f32 %v5353, %v5628
      %v5630 = vpop.f32.mrb[0].mxu0
      %5631 = vmatprep.mubr.bf16.mxu0 %v5298
      %5632 = vmatmul.mubr.bf16.gmra.mrb[0].mxu0 %v5297
      %v5633 = vpop.f32.mrb[0].mxu0
      %v5634 = vadd.f32 %v5353, %v5633
      %v5635 = vpop.f32.mrb[0].mxu0
      %v5636 = vpop.f32.mrb[0].mxu0
      %v5637 = vadd.f32 %v5353, %v5636
      %v5638 = vpop.f32.mrb[0].mxu0
      %5639 = vmatprep.mubr.bf16.mxu0 %v5301
      %5640 = vmatmul.mubr.bf16.gmra.mrb[0].mxu0 %v5300
      %v5641 = vpop.f32.mrb[0].mxu0
      %v5642 = vadd.f32 %v5353, %v5641
      %v5643 = vpop.f32.mrb[0].mxu0
      %v5644 = vpop.f32.mrb[0].mxu0
      %v5645 = vadd.f32 %v5353, %v5644
      %v5646 = vpop.f32.mrb[0].mxu0
      %5647 = vmatprep.mubr.bf16.mxu0 %v5304
      %5648 = vmatmul.mubr.bf16.gmra.mrb[0].mxu0 %v5303
      %v5649 = vpop.f32.mrb[0].mxu0
      %v5650 = vadd.f32 %v5353, %v5649
      %v5651 = vpop.f32.mrb[0].mxu0
      %v5652 = vpop.f32.mrb[0].mxu0
      %v5653 = vadd.f32 %v5353, %v5652
      %v5654 = vpop.f32.mrb[0].mxu0
      %5655 = vmatprep.mubr.bf16.mxu0 %v5307
      %5656 = vmatmul.mubr.bf16.gmra.mrb[0].mxu0 %v5306
      %v5657 = vpop.f32.mrb[0].mxu0
      %v5658 = vadd.f32 %v5353, %v5657
      %v5659 = vpop.f32.mrb[0].mxu0
      %v5660 = vpop.f32.mrb[0].mxu0
      %v5661 = vadd.f32 %v5353, %v5660
      %v5662 = vpop.f32.mrb[0].mxu0
      %5663 = vmatprep.mubr.bf16.mxu0 %v5310
      %5664 = vmatmul.mubr.bf16.gmra.mrb[0].mxu0 %v5309
      %v5665 = vpop.f32.mrb[0].mxu0
      %v5666 = vadd.f32 %v5353, %v5665
      %v5667 = vpop.f32.mrb[0].mxu0
      %v5668 = vpop.f32.mrb[0].mxu0
      %v5669 = vadd.f32 %v5353, %v5668
      %v5670 = vpop.f32.mrb[0].mxu0
      %5671 = vdwg.mxu0
      %5672 = vmatprep.subr.bf16.mxu0 0
      %5673 = vmatpush1.bf16.msra.mxu0 %v5443
      %5674 = vmatprep.subr.bf16.mxu0 0
      %5675 = vmatpush1.bf16.msra.mxu0 %v5444
      %5676 = vmatprep.subr.bf16.mxu0 0
      %5677 = vmatpush1.bf16.msra.mxu0 0
      %5678 = vmatprep.subr.bf16.mxu0 0
      %5679 = vmatpush1.bf16.msra.mxu0 0
      %5680 = vmatprep.subr.bf16.mxu0 0
      %5681 = vmatpush1.bf16.msra.mxu0 0
      %5682 = vmatprep.subr.bf16.mxu0 0
      %5683 = vmatpush1.bf16.msra.mxu0 0
      %5684 = vmatprep.subr.bf16.mxu0 0
      %5685 = vmatpush1.bf16.msra.mxu0 0
      %5686 = vmatprep.subr.bf16.mxu0 0
      %5687 = vmatpush1.bf16.msra.mxu0 0
      %5688 = vmatprep.subr.bf16.mxu0 0
      %5689 = vmatpush1.bf16.msra.mxu0 0
      %5690 = vmatprep.subr.bf16.mxu0 0
      %5691 = vmatpush1.bf16.msra.mxu0 0
      %5692 = vmatprep.subr.bf16.mxu0 0
      %5693 = vmatpush1.bf16.msra.mxu0 0
      %5694 = vmatprep.subr.bf16.mxu0 0
      %5695 = vmatpush1.bf16.msra.mxu0 0
      %5696 = vmatprep.subr.bf16.mxu0 0
      %5697 = vmatpush1.bf16.msra.mxu0 0
      %5698 = vmatprep.subr.bf16.mxu0 0
      %5699 = vmatpush1.bf16.msra.mxu0 0
      %5700 = vmatprep.subr.bf16.mxu0 0
      %5701 = vmatpush1.bf16.msra.mxu0 0
      %5702 = vmatprep.subr.bf16.mxu0 0
      %5703 = vmatpush1.bf16.msra.mxu0 0
      %5704 = vmatprep.mubr.bf16.mxu0 0
      %5705 = vmatmul.mubr.bf16.gmra.mrb[0].mxu0 %v5464
      %v5706 = vpop.f32.mrb[0].mxu0
      %v5707 = vadd.f32 %v5546, %v5706
      %v5708 = vpop.f32.mrb[0].mxu0
      %v5709 = vpop.f32.mrb[0].mxu0
      %v5710 = vadd.f32 %v5549, %v5709
      %v5711 = vpop.f32.mrb[0].mxu0
      %5712 = vmatprep.mubr.bf16.mxu0 0
      %5713 = vmatmul.mubr.bf16.gmra.mrb[0].mxu0 %v5467
      %v5714 = vpop.f32.mrb[0].mxu0
      %v5715 = vadd.f32 %v5554, %v5714
      %v5716 = vpop.f32.mrb[0].mxu0
      %v5717 = vpop.f32.mrb[0].mxu0
      %v5718 = vadd.f32 %v5557, %v5717
      %v5719 = vpop.f32.mrb[0].mxu0
      %5720 = vmatprep.mubr.bf16.mxu0 0
      %5721 = vmatmul.mubr.bf16.gmra.mrb[0].mxu0 %v5470
      %v5722 = vpop.f32.mrb[0].mxu0
      %v5723 = vadd.f32 %v5562, %v5722
      %v5724 = vpop.f32.mrb[0].mxu0
      %v5725 = vpop.f32.mrb[0].mxu0
      %v5726 = vadd.f32 %v5565, %v5725
      %v5727 = vpop.f32.mrb[0].mxu0
      %5728 = vmatprep.mubr.bf16.mxu0 0
      %5729 = vmatmul.mubr.bf16.gmra.mrb[0].mxu0 %v5473
      %v5730 = vpop.f32.mrb[0].mxu0
      %v5731 = vadd.f32 %v5570, %v5730
      %v5732 = vpop.f32.mrb[0].mxu0
      %v5733 = vpop.f32.mrb[0].mxu0
      %v5734 = vadd.f32 %v5573, %v5733
      %v5735 = vpop.f32.mrb[0].mxu0
      %5736 = vmatprep.mubr.bf16.mxu0 0
      %5737 = vmatmul.mubr.bf16.gmra.mrb[0].mxu0 %v5476
      %v5738 = vpop.f32.mrb[0].mxu0
      %v5739 = vadd.f32 %v5578, %v5738
      %v5740 = vpop.f32.mrb[0].mxu0
      %v5741 = vpop.f32.mrb[0].mxu0
      %v5742 = vadd.f32 %v5581, %v5741
      %v5743 = vpop.f32.mrb[0].mxu0
      %5744 = vmatprep.mubr.bf16.mxu0 0
      %5745 = vmatmul.mubr.bf16.gmra.mrb[0].mxu0 %v5479
      %v5746 = vpop.f32.mrb[0].mxu0
      %v5747 = vadd.f32 %v5586, %v5746
      %v5748 = vpop.f32.mrb[0].mxu0
      %v5749 = vpop.f32.mrb[0].mxu0
      %v5750 = vadd.f32 %v5589, %v5749
      %v5751 = vpop.f32.mrb[0].mxu0
      %5752 = vmatprep.mubr.bf16.mxu0 0
      %5753 = vmatmul.mubr.bf16.gmra.mrb[0].mxu0 %v5482
      %v5754 = vpop.f32.mrb[0].mxu0
      %v5755 = vadd.f32 %v5594, %v5754
      %v5756 = vpop.f32.mrb[0].mxu0
      %v5757 = vpop.f32.mrb[0].mxu0
      %v5758 = vadd.f32 %v5597, %v5757
      %v5759 = vpop.f32.mrb[0].mxu0
      %5760 = vmatprep.mubr.bf16.mxu0 0
      %5761 = vmatmul.mubr.bf16.gmra.mrb[0].mxu0 %v5485
      %v5762 = vpop.f32.mrb[0].mxu0
      %v5763 = vadd.f32 %v5602, %v5762
      %v5764 = vpop.f32.mrb[0].mxu0
      %v5765 = vpop.f32.mrb[0].mxu0
      %v5766 = vadd.f32 %v5605, %v5765
      %v5767 = vpop.f32.mrb[0].mxu0
      %5768 = vmatprep.mubr.bf16.mxu0 0
      %5769 = vmatmul.mubr.bf16.gmra.mrb[0].mxu0 %v5488
      %v5770 = vpop.f32.mrb[0].mxu0
      %v5771 = vadd.f32 %v5610, %v5770
      %v5772 = vpop.f32.mrb[0].mxu0
      %v5773 = vpop.f32.mrb[0].mxu0
      %v5774 = vadd.f32 %v5613, %v5773
      %v5775 = vpop.f32.mrb[0].mxu0
      %5776 = vmatprep.mubr.bf16.mxu0 0
      %5777 = vmatmul.mubr.bf16.gmra.mrb[0].mxu0 %v5491
      %v5778 = vpop.f32.mrb[0].mxu0
      %v5779 = vadd.f32 %v5618, %v5778
      %v5780 = vpop.f32.mrb[0].mxu0
      %v5781 = vpop.f32.mrb[0].mxu0
      %v5782 = vadd.f32 %v5621, %v5781
      %v5783 = vpop.f32.mrb[0].mxu0
      %5784 = vmatprep.mubr.bf16.mxu0 0
      %5785 = vmatmul.mubr.bf16.gmra.mrb[0].mxu0 %v5494
      %v5786 = vpop.f32.mrb[0].mxu0
      %v5787 = vadd.f32 %v5626, %v5786
      %v5788 = vpop.f32.mrb[0].mxu0
      %v5789 = vpop.f32.mrb[0].mxu0
      %v5790 = vadd.f32 %v5629, %v5789
      %v5791 = vpop.f32.mrb[0].mxu0
      %5792 = vmatprep.mubr.bf16.mxu0 0
      %5793 = vmatmul.mubr.bf16.gmra.mrb[0].mxu0 %v5497
      %v5794 = vpop.f32.mrb[0].mxu0
      %v5795 = vadd.f32 %v5634, %v5794
      %v5796 = vpop.f32.mrb[0].mxu0
      %v5797 = vpop.f32.mrb[0].mxu0
      %v5798 = vadd.f32 %v5637, %v5797
      %v5799 = vpop.f32.mrb[0].mxu0
      %5800 = vmatprep.mubr.bf16.mxu0 0
      %5801 = vmatmul.mubr.bf16.gmra.mrb[0].mxu0 %v5500
      %v5802 = vpop.f32.mrb[0].mxu0
      %v5803 = vadd.f32 %v5642, %v5802
      %v5804 = vpop.f32.mrb[0].mxu0
      %v5805 = vpop.f32.mrb[0].mxu0
      %v5806 = vadd.f32 %v5645, %v5805
      %v5807 = vpop.f32.mrb[0].mxu0
      %5808 = vmatprep.mubr.bf16.mxu0 0
      %5809 = vmatmul.mubr.bf16.gmra.mrb[0].mxu0 %v5503
      %v5810 = vpop.f32.mrb[0].mxu0
      %v5811 = vadd.f32 %v5650, %v5810
      %v5812 = vpop.f32.mrb[0].mxu0
      %v5813 = vpop.f32.mrb[0].mxu0
      %v5814 = vadd.f32 %v5653, %v5813
      %v5815 = vpop.f32.mrb[0].mxu0
      %5816 = vmatprep.mubr.bf16.mxu0 0
      %5817 = vmatmul.mubr.bf16.gmra.mrb[0].mxu0 %v5506
      %v5818 = vpop.f32.mrb[0].mxu0
      %v5819 = vadd.f32 %v5658, %v5818
      %v5820 = vpop.f32.mrb[0].mxu0
      %v5821 = vpop.f32.mrb[0].mxu0
      %v5822 = vadd.f32 %v5661, %v5821
      %v5823 = vpop.f32.mrb[0].mxu0
      %5824 = vmatprep.mubr.bf16.mxu0 0
      %5825 = vmatmul.mubr.bf16.gmra.mrb[0].mxu0 %v5509
      %v5826 = vpop.f32.mrb[0].mxu0
      %v5827 = vadd.f32 %v5666, %v5826
      %v5828 = vpop.f32.mrb[0].mxu0
      %v5829 = vpop.f32.mrb[0].mxu0
      %v5830 = vadd.f32 %v5669, %v5829
      %v5831 = vpop.f32.mrb[0].mxu0
      %5832 = vdwg.mxu0
      %v5833 = vmax.f32 %v5707, 0.0
      %v5834 = vmax.f32 %v5710, 0.0
      %v5835 = vmax.f32 %v5715, 0.0
      %v5836 = vmax.f32 %v5718, 0.0
      %v5837 = vmax.f32 %v5723, 0.0
      %v5838 = vmax.f32 %v5726, 0.0
      %v5839 = vmax.f32 %v5731, 0.0
      %v5840 = vmax.f32 %v5734, 0.0
      %v5841 = vmax.f32 %v5739, 0.0
      %v5842 = vmax.f32 %v5742, 0.0
      %v5843 = vmax.f32 %v5747, 0.0
      %v5844 = vmax.f32 %v5750, 0.0
      %v5845 = vmax.f32 %v5755, 0.0
      %v5846 = vmax.f32 %v5758, 0.0
      %v5847 = vmax.f32 %v5763, 0.0
      %v5848 = vmax.f32 %v5766, 0.0
      %v5849 = vmax.f32 %v5771, 0.0
      %v5850 = vmax.f32 %v5774, 0.0
      %v5851 = vmax.f32 %v5779, 0.0
      %v5852 = vmax.f32 %v5782, 0.0
      %v5853 = vmax.f32 %v5787, 0.0
      %v5854 = vmax.f32 %v5790, 0.0
      %v5855 = vmax.f32 %v5795, 0.0
      %v5856 = vmax.f32 %v5798, 0.0
      %v5857 = vmax.f32 %v5803, 0.0
      %v5858 = vmax.f32 %v5806, 0.0
      %v5859 = vmax.f32 %v5811, 0.0
      %v5860 = vmax.f32 %v5814, 0.0
      %v5861 = vmax.f32 %v5819, 0.0
      %v5862 = vmax.f32 %v5822, 0.0
      %v5863 = vmax.f32 %v5827, 0.0
      %v5864 = vmax.f32 %v5830, 0.0
      %5865 = vst.msk [vmem:[%s224] sm:$0xff] %vm3360, %v5833
      %5866 = vst.msk [vmem:[%s224 + $0x8] sm:$0xff] %vm3360, %v5834
      %5867 = vst.msk [vmem:[%s224 + $0x10] sm:$0xff] %vm3360, %v5835
      %5868 = vst.msk [vmem:[%s224 + $0x18] sm:$0xff] %vm3360, %v5836
      %5869 = vst.msk [vmem:[%s224 + $0x20] sm:$0xff] %vm3360, %v5837
      %5870 = vst.msk [vmem:[%s224 + $0x28] sm:$0xff] %vm3360, %v5838
      %5871 = vst.msk [vmem:[%s224 + $0x30] sm:$0xff] %vm3360, %v5839
      %5872 = vst.msk [vmem:[%s224 + $0x38] sm:$0xff] %vm3360, %v5840
      %5873 = vst.msk [vmem:[%s224 + $0x40] sm:$0xff] %vm3360, %v5841
      %5874 = vst.msk [vmem:[%s224 + $0x48] sm:$0xff] %vm3360, %v5842
      %5875 = vst.msk [vmem:[%s224 + $0x50] sm:$0xff] %vm3360, %v5843
      %5876 = vst.msk [vmem:[%s224 + $0x58] sm:$0xff] %vm3360, %v5844
      %5877 = vst.msk [vmem:[%s224 + $0x60] sm:$0xff] %vm3360, %v5845
      %5878 = vst.msk [vmem:[%s224 + $0x68] sm:$0xff] %vm3360, %v5846
      %5879 = vst.msk [vmem:[%s224 + $0x70] sm:$0xff] %vm3360, %v5847
      %5880 = vst.msk [vmem:[%s224 + $0x78] sm:$0xff] %vm3360, %v5848
      %5881 = vst.msk [vmem:[%s224 + $0x80] sm:$0xff] %vm3360, %v5849
      %5882 = vst.msk [vmem:[%s224 + $0x88] sm:$0xff] %vm3360, %v5850
      %5883 = vst.msk [vmem:[%s224 + $0x90] sm:$0xff] %vm3360, %v5851
      %5884 = vst.msk [vmem:[%s224 + $0x98] sm:$0xff] %vm3360, %v5852
      %5885 = vst.msk [vmem:[%s224 + $0xa0] sm:$0xff] %vm3360, %v5853
      %5886 = vst.msk [vmem:[%s224 + $0xa8] sm:$0xff] %vm3360, %v5854
      %5887 = vst.msk [vmem:[%s224 + $0xb0] sm:$0xff] %vm3360, %v5855
      %5888 = vst.msk [vmem:[%s224 + $0xb8] sm:$0xff] %vm3360, %v5856
      %5889 = vst.msk [vmem:[%s224 + $0xc0] sm:$0xff] %vm3360, %v5857
      %5890 = vst.msk [vmem:[%s224 + $0xc8] sm:$0xff] %vm3360, %v5858
      %5891 = vst.msk [vmem:[%s224 + $0xd0] sm:$0xff] %vm3360, %v5859
      %5892 = vst.msk [vmem:[%s224 + $0xd8] sm:$0xff] %vm3360, %v5860
      %5893 = vst.msk [vmem:[%s224 + $0xe0] sm:$0xff] %vm3360, %v5861
      %5894 = vst.msk [vmem:[%s224 + $0xe8] sm:$0xff] %vm3360, %v5862
      %5895 = vst.msk [vmem:[%s224 + $0xf0] sm:$0xff] %vm3360, %v5863
      %5896 = vst.msk [vmem:[%s224 + $0xf8] sm:$0xff] %vm3360, %v5864
      %p5897 = scmp.lt.s32.totalorder %s16, 1
      %s5898 = scalar_select %p5897, %s16, 1
      %s5899 = smul.addr %s5898, 32
      %s5900 = smul.addr %s5899, 8
      %s5901 = scalar_lea.vmem %s5, %s5900
      // Predicated region
      $region41: #{multi_channel_encoder.3} parent=39 // pred_check
        %p5902 = pneg %p144
      $region42: #{multi_channel_encoder.3} parent=39 // pred_check_branch
        %5904 = sbr.rel (%p5902) target = $region44
      $region43: #{multi_channel_encoder.3} parent=39 // pred_region
        _
      $region44: #{multi_channel_encoder.3} parent=39 // pred_fallthru
        _
    $region40: #{multi_channel_encoder.3} parent=5 // pred_fallthru
      _
    %p5905 = scmp.le.s32.totalorder 2, %s11
    // Predicated region
    $region45: #{multi_channel_encoder.3} parent=5 // pred_check
      %p5906 = pneg %p5905
    $region46: #{multi_channel_encoder.3} parent=5 // pred_check_branch
      %5908 = sbr.rel (%p5906) target = $region48
    $region47: #{multi_channel_encoder.3} parent=5 // pred_region
      %s5909 = ssub.s32 %s11, 2
      // Predicated region
      $region49: #{multi_channel_encoder.3} parent=47 // pred_check
        %p5910 = pneg %p150
      $region50: #{multi_channel_encoder.3} parent=47 // pred_check_branch
        %5912 = sbr.rel (%p5910) target = $region52
      $region51: #{multi_channel_encoder.3} parent=47 // pred_region
        %p5913 = scmp.lt.s32.totalorder %s17, 1
        %s5914 = scalar_select %p5913, %s17, 1
        %s5915 = smul.addr %s5914, 32
        %s5916 = smul.addr %s5915, 8
        %s5917 = scalar_lea.vmem %s5, %s5916
      $region52: #{multi_channel_encoder.3} parent=47 // pred_fallthru
        _
    $region48: #{multi_channel_encoder.3} parent=5 // pred_fallthru
      _
  $region6: #{multi_channel_encoder.3} parent=0 // loop_footer
    %s15 = sadd.s32 1, %s11
  $region7: #{multi_channel_encoder.3} parent=0 // loop_footer_branch
    %10 = sbr.rel target = $region3
  $region8: #{multi_channel_encoder.3} parent=0 // loop_exit
    _

</llo_original>
